<compile_context>
chip_gen: v6e
topology: v6e:2x2x1
jax: 0.10.0
libtpu: 0.0.40
codegen_flags: <defaults>
</compile_context>

<pallas_src>
import jax
import jax.numpy as jnp
from jax.experimental import pallas as pl
from jax.experimental.pallas import tpu as pltpu


def voice2vec_kernel(x_ref, w1_ref, b1_ref, w2_ref, b2_ref, w3_ref, b3_ref,
                     wf1_ref, bf1_ref, wf2_ref, bf2_ref, out_ref,
                     a1_ref, p1_ref, a2_ref, p2_ref, a3_ref):
    f32 = jnp.float32
    tn = out_ref.shape[0]
    n_chunks = tn // 8                       # one chunk = 8 samples

    def conv_lrelu(in_ref, w_ref, b_ref, out_scr):
        # out[i] = leaky_relu(sum_k in[i+k] @ w[k] + b) for every row of
        # out_scr.  in_ref must have >= rows + (K-1) rows (zero tail for the
        # shifted reads).  Chunked over 8-sample row groups so the f32
        # accumulator (<= 24 vregs per chunk) stays in registers.
        rows = out_scr.shape[0]
        K = w_ref.shape[0]
        ch = rows // n_chunks
        for c in range(n_chunks):            # static unroll
            r0 = c * ch
            acc = jnp.dot(in_ref[pl.ds(r0, ch), :], w_ref[0],
                          preferred_element_type=f32)
            for k in range(1, K):            # K = 1 (conv1, host im2col) or 5
                acc = acc + jnp.dot(in_ref[pl.ds(r0 + k, ch), :], w_ref[k],
                                    preferred_element_type=f32)
            z = acc + b_ref[...]
            out_scr[pl.ds(r0, ch), :] = jnp.maximum(z, 0.01 * z)   # leaky_relu

    def maxpool2(in_scr, out_scr):
        # PyTorch MaxPool1d(2): out[j] = max(in[2j], in[2j+1]); even slot
        # sizes keep the global stride-2 read slot-aligned.  The 8 tail rows
        # of out_scr are zeroed so the next conv's shifted reads stay defined.
        m = out_scr.shape[0] - 8
        out_scr[pl.ds(0, m), :] = jnp.maximum(in_scr[pl.ds(0, m, 2), :],
                                              in_scr[pl.ds(1, m, 2), :])
        out_scr[pl.ds(m, 8), :] = jnp.zeros((8, out_scr.shape[1]), f32)

    # Validity per sample (slot sizes 96/48/48/24/24, garbage rows near slot
    # boundaries never reach a valid output):
    #   conv1: 96 valid / 96, pool1: 48/48, conv2: 44/48, pool2: 22/24,
    #   conv3: 18/24, pool3 (fused below): 9.
    conv_lrelu(x_ref, w1_ref, b1_ref, a1_ref)     # (tn*96, 32)
    maxpool2(a1_ref, p1_ref)                      # (tn*48+8, 32)
    conv_lrelu(p1_ref, w2_ref, b2_ref, a2_ref)    # (tn*48, 64)
    maxpool2(a2_ref, p2_ref)                      # (tn*24+8, 64)
    conv_lrelu(p2_ref, w3_ref, b3_ref, a3_ref)    # (tn*24, 128)

    # pool3 fused with fc1.  Torch flatten order (c*9 + l) is baked into wf1's
    # (l, c, out) layout, so fc1(x) = sum_l max(a3[2l], a3[2l+1]) @ wf1[l].
    slot3 = a3_ref.shape[0] // tn                 # = 24
    hidden = wf1_ref.shape[2]
    acc = jnp.zeros((tn, hidden), f32)
    for l in range(wf1_ref.shape[0]):             # 9, static unroll
        rows = jnp.maximum(a3_ref[pl.ds(2 * l, tn, slot3), :],
                           a3_ref[pl.ds(2 * l + 1, tn, slot3), :])
        acc = acc + jnp.dot(rows, wf1_ref[l], preferred_element_type=f32)
    f1 = jnp.maximum(acc + bf1_ref[...], 0.0)                      # relu

    f2 = jnp.tanh(jnp.dot(f1, wf2_ref[...], preferred_element_type=f32)
                  + bf2_ref[...])
    # L2 normalize (rsqrt + eps protects the all-zero padded batch samples).
    inv = jax.lax.rsqrt(jnp.sum(f2 * f2, axis=-1, keepdims=True) + 1e-12)
    out_ref[...] = f2 * inv


def voice2vec_forward(x, params, tile_n=64):
    """x: (B, 3, F, T=100) float32  ->  (B, 3, dim) float32 (L2-normalized)."""
    w1, b1, w2, b2, w3, b3, wf1, bf1, wf2, bf2 = params
    B, three, F_, T = x.shape
    assert T == 100, "fc1 = 9*128 forces T == 100"
    N = B * three
    dim = wf2.shape[1]
    L1 = T - 4                                    # conv1 output length = 96

    tn = max(8, (min(tile_n, N) + 7) // 8 * 8)    # samples per grid step (x8)
    n_pad = (N + tn - 1) // tn * tn

    # host-side glue: NCL -> (N, T, F), im2col for conv1 (row (n,i) holds
    # [x[n,:,i], ..., x[n,:,i+4]] tap-major / channel-minor), zero-pad batch
    # N -> n_pad, then flatten to the slotted 2-D layout (n_pad*96, 40).
    xk = jnp.transpose(x.reshape(N, F_, T), (0, 2, 1)).astype(jnp.float32)
    xi = jnp.stack([xk[:, k:k + L1, :] for k in range(5)], axis=2)  # (N,96,5,F)
    xi = jnp.pad(xi.reshape(N, L1, 5 * F_), ((0, n_pad - N), (0, 0), (0, 0)))
    x2d = xi.reshape(n_pad * L1, 5 * F_)

    # conv1 weight flattened to the matching (1, 5*F, 32) single-tap form.
    w1f = w1.reshape(1, 5 * F_, 32)

    full = lambda a: pl.BlockSpec(a.shape, lambda i, _nd=a.ndim: (0,) * _nd)

    out = pl.pallas_call(
        voice2vec_kernel,
        out_shape=jax.ShapeDtypeStruct((n_pad, dim), jnp.float32),
        grid=(n_pad // tn,),
        in_specs=[
            pl.BlockSpec((tn * L1, 5 * F_), lambda i: (i, 0)),  # tile of samples
            full(w1f), full(b1),
            full(w2), full(b2),
            full(w3), full(b3),
            full(wf1), full(bf1),
            full(wf2), full(bf2),
        ],
        out_specs=pl.BlockSpec((tn, dim), lambda i: (i, 0)),
        scratch_shapes=[
            pltpu.VMEM((tn * 96, 32), jnp.float32),       # conv1 out
            pltpu.VMEM((tn * 48 + 8, 32), jnp.float32),   # pool1 out (+8 zero tail)
            pltpu.VMEM((tn * 48, 64), jnp.float32),       # conv2 out
            pltpu.VMEM((tn * 24 + 8, 64), jnp.float32),   # pool2 out (+8 zero tail)
            pltpu.VMEM((tn * 24, 128), jnp.float32),      # conv3 out
        ],
        compiler_params=pltpu.CompilerParams(
            dimension_semantics=("parallel",),
            vmem_limit_bytes=48 * 1024 * 1024),
    )(x2d, w1f, b1, w2, b2, w3, b3, wf1, bf1, wf2, bf2)

    return out[:N].reshape(B, three, dim)


def ref_forward(x, params):
    """Pure-JAX reference (same weight layout as the kernel)."""
    w1, b1, w2, b2, w3, b3, wf1, bf1, wf2, bf2 = params
    B, three, F_, T = x.shape
    h = jnp.transpose(x.reshape(B * three, F_, T), (0, 2, 1))   # (N, T, F)
    lrelu = lambda z: jnp.where(z > 0, z, 0.01 * z)

    def conv(h, w, b):
        K = w.shape[0]
        Lout = h.shape[1] - K + 1
        acc = sum(jnp.einsum('nlc,co->nlo', h[:, k:k + Lout, :], w[k])
                  for k in range(K))
        return acc + b[None, :, :]

    def pool(h):
        L = h.shape[1]
        return jnp.maximum(h[:, 0:(L // 2) * 2:2, :], h[:, 1:L:2, :])

    h = pool(lrelu(conv(h, w1, b1)))
    h = pool(lrelu(conv(h, w2, b2)))
    h = pool(lrelu(conv(h, w3, b3)))                            # (N, 9, 128)

    acc = sum(jnp.einsum('nc,co->no', h[:, l, :], wf1[l]) for l in range(9))
    f1 = jnp.maximum(acc + bf1, 0.0)
    f2 = jnp.tanh(f1 @ wf2 + bf2)
    f2 = f2 / jnp.linalg.norm(f2, axis=-1, keepdims=True)
    return f2.reshape(B, three, -1)


if __name__ == "__main__":
    # small shapes: batch=2, frequency=8, time=100 (forced by fc1 = 9*128), dim=16
    B, F_, T, DIM = 2, 8, 100, 16

    key = jax.random.PRNGKey(0)
    ks = jax.random.split(key, 11)
    u = lambda k, shape, s: s * jax.random.uniform(k, shape, jnp.float32, -1.0, 1.0)

    params = (
        u(ks[0], (5, F_, 32), 0.20),   # conv1 weight, (K,Cin,Cout) == torch (Cout,Cin,K).transpose(2,1,0)
        u(ks[1], (1, 32), 0.10),       # conv1 bias
        u(ks[2], (5, 32, 64), 0.10),   # conv2 weight
        u(ks[3], (1, 64), 0.10),       # conv2 bias
        u(ks[4], (5, 64, 128), 0.08),  # conv3 weight
        u(ks[5], (1, 128), 0.10),      # conv3 bias
        u(ks[6], (9, 128, 300), 0.03), # fc1 weight as (l,c,out): wf1[l,c,:] == torch fc1.weight[:, c*9+l]
        u(ks[7], (1, 300), 0.05),      # fc1 bias
        u(ks[8], (300, DIM), 0.05),    # fc2 weight (in,out) == torch fc2.weight.T
        u(ks[9], (1, DIM), 0.05),      # fc2 bias
    )

    x = jax.random.normal(ks[10], (B, 3, F_, T), jnp.float32)

    out = jax.block_until_ready(voice2vec_forward(x, params))
    ref = ref_forward(x, params)

    assert out.shape == (B, 3, DIM), out.shape
    assert bool(jnp.all(jnp.isfinite(out)))
    assert bool(jnp.allclose(out, ref, atol=2e-2, rtol=2e-2)), \
        f"max abs diff {float(jnp.max(jnp.abs(out - ref)))}"

    print("KERNEL_OK")
</pallas_src>

<mosaic_0001>
module attributes {stable_mosaic.version = 11 : i64} {
  func.func @voice2vec_kernel(%arg0: i32, %arg1: memref<768x40xf32, #tpu.memory_space<vmem>>, %arg2: memref<1x40x32xf32, #tpu.memory_space<vmem>>, %arg3: memref<1x32xf32, #tpu.memory_space<vmem>>, %arg4: memref<5x32x64xf32, #tpu.memory_space<vmem>>, %arg5: memref<1x64xf32, #tpu.memory_space<vmem>>, %arg6: memref<5x64x128xf32, #tpu.memory_space<vmem>>, %arg7: memref<1x128xf32, #tpu.memory_space<vmem>>, %arg8: memref<9x128x300xf32, #tpu.memory_space<vmem>>, %arg9: memref<1x300xf32, #tpu.memory_space<vmem>>, %arg10: memref<300x16xf32, #tpu.memory_space<vmem>>, %arg11: memref<1x16xf32, #tpu.memory_space<vmem>>, %arg12: memref<8x16xf32, #tpu.memory_space<vmem>>, %arg13: memref<768x32xf32, #tpu.memory_space<vmem>>, %arg14: memref<392x32xf32, #tpu.memory_space<vmem>>, %arg15: memref<384x64xf32, #tpu.memory_space<vmem>>, %arg16: memref<200x64xf32, #tpu.memory_space<vmem>>, %arg17: memref<192x128xf32, #tpu.memory_space<vmem>>) attributes {dimension_semantics = [#tpu.dimension_semantics<parallel>], iteration_bounds = array<i64: 1>, scalar_prefetch = 0 : i64, scratch_operands = 5 : i64, tpu.core_type = #tpu.core_type<tc>, window_params = [{transform_indices = @transform_0, window_bounds = array<i64: 768, 40>}, {pipeline_mode = #tpu.pipeline_mode<synchronous>, transform_indices = @transform_1, window_bounds = array<i64: 1, 40, 32>}, {pipeline_mode = #tpu.pipeline_mode<synchronous>, transform_indices = @transform_2, window_bounds = array<i64: 1, 32>}, {pipeline_mode = #tpu.pipeline_mode<synchronous>, transform_indices = @transform_3, window_bounds = array<i64: 5, 32, 64>}, {pipeline_mode = #tpu.pipeline_mode<synchronous>, transform_indices = @transform_4, window_bounds = array<i64: 1, 64>}, {pipeline_mode = #tpu.pipeline_mode<synchronous>, transform_indices = @transform_5, window_bounds = array<i64: 5, 64, 128>}, {pipeline_mode = #tpu.pipeline_mode<synchronous>, transform_indices = @transform_6, window_bounds = array<i64: 1, 128>}, {pipeline_mode = #tpu.pipeline_mode<synchronous>, transform_indices = @transform_7, window_bounds = array<i64: 9, 128, 300>}, {pipeline_mode = #tpu.pipeline_mode<synchronous>, transform_indices = @transform_8, window_bounds = array<i64: 1, 300>}, {pipeline_mode = #tpu.pipeline_mode<synchronous>, transform_indices = @transform_9, window_bounds = array<i64: 300, 16>}, {pipeline_mode = #tpu.pipeline_mode<synchronous>, transform_indices = @transform_10, window_bounds = array<i64: 1, 16>}, {transform_indices = @transform_11, window_bounds = array<i64: 8, 16>}]} {
    %c0 = arith.constant 0 : index
    %c0_0 = arith.constant 0 : index
    %0 = vector.load %arg1[%c0, %c0_0] : memref<768x40xf32, #tpu.memory_space<vmem>>, vector<768x40xf32>
    %c0_1 = arith.constant 0 : index
    %c0_2 = arith.constant 0 : index
    %c0_3 = arith.constant 0 : index
    %1 = vector.load %arg2[%c0_1, %c0_2, %c0_3] : memref<1x40x32xf32, #tpu.memory_space<vmem>>, vector<1x40x32xf32>
    %2 = vector.shape_cast %1 : vector<1x40x32xf32> to vector<40x32xf32>
    %cst = arith.constant dense<0.000000e+00> : vector<768x32xf32>
    %3 = tpu.matmul %0, %2, %cst {dimension_numbers = #tpu.dot_dimension_numbers<[1], [0], [0], [1], [0, 0, 1, 1], [], []>} : vector<768x40xf32>, vector<40x32xf32>, vector<768x32xf32> -> vector<768x32xf32>
    %c0_4 = arith.constant 0 : index
    %c0_5 = arith.constant 0 : index
    %4 = vector.load %arg3[%c0_4, %c0_5] : memref<1x32xf32, #tpu.memory_space<vmem>>, vector<1x32xf32>
    %5 = vector.broadcast %4 : vector<1x32xf32> to vector<768x32xf32>
    %6 = arith.addf %3, %5 : vector<768x32xf32>
    %cst_6 = arith.constant 0.00999999977 : f32
    %7 = vector.broadcast %cst_6 : f32 to vector<768x32xf32>
    %8 = arith.mulf %7, %6 : vector<768x32xf32>
    %9 = arith.maximumf %6, %8 : vector<768x32xf32>
    %c0_7 = arith.constant 0 : index
    %c0_8 = arith.constant 0 : index
    %10 = vector.load %arg13[%c0_7, %c0_8] : memref<768x32xf32, #tpu.memory_space<vmem>>, vector<768x32xf32>
    tpu.vector_store %arg13[%c0_7, %c0_8], %9 {strides = array<i32>} : memref<768x32xf32, #tpu.memory_space<vmem>>, vector<768x32xf32>,
    %c0_9 = arith.constant 0 : index
    %c0_10 = arith.constant 0 : index
    %11 = tpu.strided_load %arg13[%c0_9, %c0_10] {strides = array<i32: 2, 1>} : memref<768x32xf32, #tpu.memory_space<vmem>>, vector<384x32xf32>
    %c1 = arith.constant 1 : index
    %c0_11 = arith.constant 0 : index
    %12 = tpu.strided_load %arg13[%c1, %c0_11] {strides = array<i32: 2, 1>} : memref<768x32xf32, #tpu.memory_space<vmem>>, vector<384x32xf32>
    %13 = arith.maximumf %11, %12 : vector<384x32xf32>
    %c0_12 = arith.constant 0 : index
    %c0_13 = arith.constant 0 : index
    %14 = vector.load %arg14[%c0_12, %c0_13] : memref<392x32xf32, #tpu.memory_space<vmem>>, vector<384x32xf32>
    tpu.vector_store %arg14[%c0_12, %c0_13], %13 {strides = array<i32>} : memref<392x32xf32, #tpu.memory_space<vmem>>, vector<384x32xf32>,
    %cst_14 = arith.constant 0.000000e+00 : f32
    %15 = vector.broadcast %cst_14 : f32 to vector<8x32xf32>
    %c384 = arith.constant 384 : index
    %c0_15 = arith.constant 0 : index
    %16 = vector.load %arg14[%c384, %c0_15] : memref<392x32xf32, #tpu.memory_space<vmem>>, vector<8x32xf32>
    tpu.vector_store %arg14[%c384, %c0_15], %15 {strides = array<i32>} : memref<392x32xf32, #tpu.memory_space<vmem>>, vector<8x32xf32>,
    %c0_16 = arith.constant 0 : index
    %c0_17 = arith.constant 0 : index
    %17 = vector.load %arg14[%c0_16, %c0_17] : memref<392x32xf32, #tpu.memory_space<vmem>>, vector<384x32xf32>
    %c0_18 = arith.constant 0 : index
    %c0_19 = arith.constant 0 : index
    %c0_20 = arith.constant 0 : index
    %18 = vector.load %arg4[%c0_18, %c0_19, %c0_20] : memref<5x32x64xf32, #tpu.memory_space<vmem>>, vector<1x32x64xf32>
    %19 = vector.shape_cast %18 : vector<1x32x64xf32> to vector<32x64xf32>
    %cst_21 = arith.constant dense<0.000000e+00> : vector<384x64xf32>
    %20 = tpu.matmul %17, %19, %cst_21 {dimension_numbers = #tpu.dot_dimension_numbers<[1], [0], [0], [1], [0, 0, 1, 1], [], []>} : vector<384x32xf32>, vector<32x64xf32>, vector<384x64xf32> -> vector<384x64xf32>
    %c1_22 = arith.constant 1 : index
    %c0_23 = arith.constant 0 : index
    %21 = vector.load %arg14[%c1_22, %c0_23] : memref<392x32xf32, #tpu.memory_space<vmem>>, vector<384x32xf32>
    %c1_24 = arith.constant 1 : index
    %c0_25 = arith.constant 0 : index
    %c0_26 = arith.constant 0 : index
    %22 = vector.load %arg4[%c1_24, %c0_25, %c0_26] : memref<5x32x64xf32, #tpu.memory_space<vmem>>, vector<1x32x64xf32>
    %23 = vector.shape_cast %22 : vector<1x32x64xf32> to vector<32x64xf32>
    %cst_27 = arith.constant dense<0.000000e+00> : vector<384x64xf32>
    %24 = tpu.matmul %21, %23, %cst_27 {dimension_numbers = #tpu.dot_dimension_numbers<[1], [0], [0], [1], [0, 0, 1, 1], [], []>} : vector<384x32xf32>, vector<32x64xf32>, vector<384x64xf32> -> vector<384x64xf32>
    %25 = arith.addf %20, %24 : vector<384x64xf32>
    %c2 = arith.constant 2 : index
    %c0_28 = arith.constant 0 : index
    %26 = vector.load %arg14[%c2, %c0_28] : memref<392x32xf32, #tpu.memory_space<vmem>>, vector<384x32xf32>
    %c2_29 = arith.constant 2 : index
    %c0_30 = arith.constant 0 : index
    %c0_31 = arith.constant 0 : index
    %27 = vector.load %arg4[%c2_29, %c0_30, %c0_31] : memref<5x32x64xf32, #tpu.memory_space<vmem>>, vector<1x32x64xf32>
    %28 = vector.shape_cast %27 : vector<1x32x64xf32> to vector<32x64xf32>
    %cst_32 = arith.constant dense<0.000000e+00> : vector<384x64xf32>
    %29 = tpu.matmul %26, %28, %cst_32 {dimension_numbers = #tpu.dot_dimension_numbers<[1], [0], [0], [1], [0, 0, 1, 1], [], []>} : vector<384x32xf32>, vector<32x64xf32>, vector<384x64xf32> -> vector<384x64xf32>
    %30 = arith.addf %25, %29 : vector<384x64xf32>
    %c3 = arith.constant 3 : index
    %c0_33 = arith.constant 0 : index
    %31 = vector.load %arg14[%c3, %c0_33] : memref<392x32xf32, #tpu.memory_space<vmem>>, vector<384x32xf32>
    %c3_34 = arith.constant 3 : index
    %c0_35 = arith.constant 0 : index
    %c0_36 = arith.constant 0 : index
    %32 = vector.load %arg4[%c3_34, %c0_35, %c0_36] : memref<5x32x64xf32, #tpu.memory_space<vmem>>, vector<1x32x64xf32>
    %33 = vector.shape_cast %32 : vector<1x32x64xf32> to vector<32x64xf32>
    %cst_37 = arith.constant dense<0.000000e+00> : vector<384x64xf32>
    %34 = tpu.matmul %31, %33, %cst_37 {dimension_numbers = #tpu.dot_dimension_numbers<[1], [0], [0], [1], [0, 0, 1, 1], [], []>} : vector<384x32xf32>, vector<32x64xf32>, vector<384x64xf32> -> vector<384x64xf32>
    %35 = arith.addf %30, %34 : vector<384x64xf32>
    %c4 = arith.constant 4 : index
    %c0_38 = arith.constant 0 : index
    %36 = vector.load %arg14[%c4, %c0_38] : memref<392x32xf32, #tpu.memory_space<vmem>>, vector<384x32xf32>
    %c4_39 = arith.constant 4 : index
    %c0_40 = arith.constant 0 : index
    %c0_41 = arith.constant 0 : index
    %37 = vector.load %arg4[%c4_39, %c0_40, %c0_41] : memref<5x32x64xf32, #tpu.memory_space<vmem>>, vector<1x32x64xf32>
    %38 = vector.shape_cast %37 : vector<1x32x64xf32> to vector<32x64xf32>
    %cst_42 = arith.constant dense<0.000000e+00> : vector<384x64xf32>
    %39 = tpu.matmul %36, %38, %cst_42 {dimension_numbers = #tpu.dot_dimension_numbers<[1], [0], [0], [1], [0, 0, 1, 1], [], []>} : vector<384x32xf32>, vector<32x64xf32>, vector<384x64xf32> -> vector<384x64xf32>
    %40 = arith.addf %35, %39 : vector<384x64xf32>
    %c0_43 = arith.constant 0 : index
    %c0_44 = arith.constant 0 : index
    %41 = vector.load %arg5[%c0_43, %c0_44] : memref<1x64xf32, #tpu.memory_space<vmem>>, vector<1x64xf32>
    %42 = vector.broadcast %41 : vector<1x64xf32> to vector<384x64xf32>
    %43 = arith.addf %40, %42 : vector<384x64xf32>
    %cst_45 = arith.constant 0.00999999977 : f32
    %44 = vector.broadcast %cst_45 : f32 to vector<384x64xf32>
    %45 = arith.mulf %44, %43 : vector<384x64xf32>
    %46 = arith.maximumf %43, %45 : vector<384x64xf32>
    %c0_46 = arith.constant 0 : index
    %c0_47 = arith.constant 0 : index
    %47 = vector.load %arg15[%c0_46, %c0_47] : memref<384x64xf32, #tpu.memory_space<vmem>>, vector<384x64xf32>
    tpu.vector_store %arg15[%c0_46, %c0_47], %46 {strides = array<i32>} : memref<384x64xf32, #tpu.memory_space<vmem>>, vector<384x64xf32>,
    %c0_48 = arith.constant 0 : index
    %c0_49 = arith.constant 0 : index
    %48 = tpu.strided_load %arg15[%c0_48, %c0_49] {strides = array<i32: 2, 1>} : memref<384x64xf32, #tpu.memory_space<vmem>>, vector<192x64xf32>
    %c1_50 = arith.constant 1 : index
    %c0_51 = arith.constant 0 : index
    %49 = tpu.strided_load %arg15[%c1_50, %c0_51] {strides = array<i32: 2, 1>} : memref<384x64xf32, #tpu.memory_space<vmem>>, vector<192x64xf32>
    %50 = arith.maximumf %48, %49 : vector<192x64xf32>
    %c0_52 = arith.constant 0 : index
    %c0_53 = arith.constant 0 : index
    %51 = vector.load %arg16[%c0_52, %c0_53] : memref<200x64xf32, #tpu.memory_space<vmem>>, vector<192x64xf32>
    tpu.vector_store %arg16[%c0_52, %c0_53], %50 {strides = array<i32>} : memref<200x64xf32, #tpu.memory_space<vmem>>, vector<192x64xf32>,
    %cst_54 = arith.constant 0.000000e+00 : f32
    %52 = vector.broadcast %cst_54 : f32 to vector<8x64xf32>
    %c192 = arith.constant 192 : index
    %c0_55 = arith.constant 0 : index
    %53 = vector.load %arg16[%c192, %c0_55] : memref<200x64xf32, #tpu.memory_space<vmem>>, vector<8x64xf32>
    tpu.vector_store %arg16[%c192, %c0_55], %52 {strides = array<i32>} : memref<200x64xf32, #tpu.memory_space<vmem>>, vector<8x64xf32>,
    %c0_56 = arith.constant 0 : index
    %c0_57 = arith.constant 0 : index
    %54 = vector.load %arg16[%c0_56, %c0_57] : memref<200x64xf32, #tpu.memory_space<vmem>>, vector<192x64xf32>
    %c0_58 = arith.constant 0 : index
    %c0_59 = arith.constant 0 : index
    %c0_60 = arith.constant 0 : index
    %55 = vector.load %arg6[%c0_58, %c0_59, %c0_60] : memref<5x64x128xf32, #tpu.memory_space<vmem>>, vector<1x64x128xf32>
    %56 = vector.shape_cast %55 : vector<1x64x128xf32> to vector<64x128xf32>
    %cst_61 = arith.constant dense<0.000000e+00> : vector<192x128xf32>
    %57 = tpu.matmul %54, %56, %cst_61 {dimension_numbers = #tpu.dot_dimension_numbers<[1], [0], [0], [1], [0, 0, 1, 1], [], []>} : vector<192x64xf32>, vector<64x128xf32>, vector<192x128xf32> -> vector<192x128xf32>
    %c1_62 = arith.constant 1 : index
    %c0_63 = arith.constant 0 : index
    %58 = vector.load %arg16[%c1_62, %c0_63] : memref<200x64xf32, #tpu.memory_space<vmem>>, vector<192x64xf32>
    %c1_64 = arith.constant 1 : index
    %c0_65 = arith.constant 0 : index
    %c0_66 = arith.constant 0 : index
    %59 = vector.load %arg6[%c1_64, %c0_65, %c0_66] : memref<5x64x128xf32, #tpu.memory_space<vmem>>, vector<1x64x128xf32>
    %60 = vector.shape_cast %59 : vector<1x64x128xf32> to vector<64x128xf32>
    %cst_67 = arith.constant dense<0.000000e+00> : vector<192x128xf32>
    %61 = tpu.matmul %58, %60, %cst_67 {dimension_numbers = #tpu.dot_dimension_numbers<[1], [0], [0], [1], [0, 0, 1, 1], [], []>} : vector<192x64xf32>, vector<64x128xf32>, vector<192x128xf32> -> vector<192x128xf32>
    %62 = arith.addf %57, %61 : vector<192x128xf32>
    %c2_68 = arith.constant 2 : index
    %c0_69 = arith.constant 0 : index
    %63 = vector.load %arg16[%c2_68, %c0_69] : memref<200x64xf32, #tpu.memory_space<vmem>>, vector<192x64xf32>
    %c2_70 = arith.constant 2 : index
    %c0_71 = arith.constant 0 : index
    %c0_72 = arith.constant 0 : index
    %64 = vector.load %arg6[%c2_70, %c0_71, %c0_72] : memref<5x64x128xf32, #tpu.memory_space<vmem>>, vector<1x64x128xf32>
    %65 = vector.shape_cast %64 : vector<1x64x128xf32> to vector<64x128xf32>
    %cst_73 = arith.constant dense<0.000000e+00> : vector<192x128xf32>
    %66 = tpu.matmul %63, %65, %cst_73 {dimension_numbers = #tpu.dot_dimension_numbers<[1], [0], [0], [1], [0, 0, 1, 1], [], []>} : vector<192x64xf32>, vector<64x128xf32>, vector<192x128xf32> -> vector<192x128xf32>
    %67 = arith.addf %62, %66 : vector<192x128xf32>
    %c3_74 = arith.constant 3 : index
    %c0_75 = arith.constant 0 : index
    %68 = vector.load %arg16[%c3_74, %c0_75] : memref<200x64xf32, #tpu.memory_space<vmem>>, vector<192x64xf32>
    %c3_76 = arith.constant 3 : index
    %c0_77 = arith.constant 0 : index
    %c0_78 = arith.constant 0 : index
    %69 = vector.load %arg6[%c3_76, %c0_77, %c0_78] : memref<5x64x128xf32, #tpu.memory_space<vmem>>, vector<1x64x128xf32>
    %70 = vector.shape_cast %69 : vector<1x64x128xf32> to vector<64x128xf32>
    %cst_79 = arith.constant dense<0.000000e+00> : vector<192x128xf32>
    %71 = tpu.matmul %68, %70, %cst_79 {dimension_numbers = #tpu.dot_dimension_numbers<[1], [0], [0], [1], [0, 0, 1, 1], [], []>} : vector<192x64xf32>, vector<64x128xf32>, vector<192x128xf32> -> vector<192x128xf32>
    %72 = arith.addf %67, %71 : vector<192x128xf32>
    %c4_80 = arith.constant 4 : index
    %c0_81 = arith.constant 0 : index
    %73 = vector.load %arg16[%c4_80, %c0_81] : memref<200x64xf32, #tpu.memory_space<vmem>>, vector<192x64xf32>
    %c4_82 = arith.constant 4 : index
    %c0_83 = arith.constant 0 : index
    %c0_84 = arith.constant 0 : index
    %74 = vector.load %arg6[%c4_82, %c0_83, %c0_84] : memref<5x64x128xf32, #tpu.memory_space<vmem>>, vector<1x64x128xf32>
    %75 = vector.shape_cast %74 : vector<1x64x128xf32> to vector<64x128xf32>
    %cst_85 = arith.constant dense<0.000000e+00> : vector<192x128xf32>
    %76 = tpu.matmul %73, %75, %cst_85 {dimension_numbers = #tpu.dot_dimension_numbers<[1], [0], [0], [1], [0, 0, 1, 1], [], []>} : vector<192x64xf32>, vector<64x128xf32>, vector<192x128xf32> -> vector<192x128xf32>
    %77 = arith.addf %72, %76 : vector<192x128xf32>
    %c0_86 = arith.constant 0 : index
    %c0_87 = arith.constant 0 : index
    %78 = vector.load %arg7[%c0_86, %c0_87] : memref<1x128xf32, #tpu.memory_space<vmem>>, vector<1x128xf32>
    %79 = vector.broadcast %78 : vector<1x128xf32> to vector<192x128xf32>
    %80 = arith.addf %77, %79 : vector<192x128xf32>
    %cst_88 = arith.constant 0.00999999977 : f32
    %81 = vector.broadcast %cst_88 : f32 to vector<192x128xf32>
    %82 = arith.mulf %81, %80 : vector<192x128xf32>
    %83 = arith.maximumf %80, %82 : vector<192x128xf32>
    %c0_89 = arith.constant 0 : index
    %c0_90 = arith.constant 0 : index
    %84 = vector.load %arg17[%c0_89, %c0_90] : memref<192x128xf32, #tpu.memory_space<vmem>>, vector<192x128xf32>
    tpu.vector_store %arg17[%c0_89, %c0_90], %83 {strides = array<i32>} : memref<192x128xf32, #tpu.memory_space<vmem>>, vector<192x128xf32>,
    %cst_91 = arith.constant 0.000000e+00 : f32
    %85 = vector.broadcast %cst_91 : f32 to vector<8x300xf32>
    %c0_92 = arith.constant 0 : index
    %c0_93 = arith.constant 0 : index
    %86 = tpu.strided_load %arg17[%c0_92, %c0_93] {strides = array<i32: 24, 1>} : memref<192x128xf32, #tpu.memory_space<vmem>>, vector<8x128xf32>
    %c1_94 = arith.constant 1 : index
    %c0_95 = arith.constant 0 : index
    %87 = tpu.strided_load %arg17[%c1_94, %c0_95] {strides = array<i32: 24, 1>} : memref<192x128xf32, #tpu.memory_space<vmem>>, vector<8x128xf32>
    %88 = arith.maximumf %86, %87 : vector<8x128xf32>
    %c0_96 = arith.constant 0 : index
    %c0_97 = arith.constant 0 : index
    %c0_98 = arith.constant 0 : index
    %89 = vector.load %arg8[%c0_96, %c0_97, %c0_98] : memref<9x128x300xf32, #tpu.memory_space<vmem>>, vector<1x128x300xf32>
    %90 = vector.shape_cast %89 : vector<1x128x300xf32> to vector<128x300xf32>
    %cst_99 = arith.constant dense<0.000000e+00> : vector<8x300xf32>
    %91 = tpu.matmul %88, %90, %cst_99 {dimension_numbers = #tpu.dot_dimension_numbers<[1], [0], [0], [1], [0, 0, 1, 1], [], []>} : vector<8x128xf32>, vector<128x300xf32>, vector<8x300xf32> -> vector<8x300xf32>
    %92 = arith.addf %85, %91 : vector<8x300xf32>
    %c2_100 = arith.constant 2 : index
    %c0_101 = arith.constant 0 : index
    %93 = tpu.strided_load %arg17[%c2_100, %c0_101] {strides = array<i32: 24, 1>} : memref<192x128xf32, #tpu.memory_space<vmem>>, vector<8x128xf32>
    %c3_102 = arith.constant 3 : index
    %c0_103 = arith.constant 0 : index
    %94 = tpu.strided_load %arg17[%c3_102, %c0_103] {strides = array<i32: 24, 1>} : memref<192x128xf32, #tpu.memory_space<vmem>>, vector<8x128xf32>
    %95 = arith.maximumf %93, %94 : vector<8x128xf32>
    %c1_104 = arith.constant 1 : index
    %c0_105 = arith.constant 0 : index
    %c0_106 = arith.constant 0 : index
    %96 = vector.load %arg8[%c1_104, %c0_105, %c0_106] : memref<9x128x300xf32, #tpu.memory_space<vmem>>, vector<1x128x300xf32>
    %97 = vector.shape_cast %96 : vector<1x128x300xf32> to vector<128x300xf32>
    %cst_107 = arith.constant dense<0.000000e+00> : vector<8x300xf32>
    %98 = tpu.matmul %95, %97, %cst_107 {dimension_numbers = #tpu.dot_dimension_numbers<[1], [0], [0], [1], [0, 0, 1, 1], [], []>} : vector<8x128xf32>, vector<128x300xf32>, vector<8x300xf32> -> vector<8x300xf32>
    %99 = arith.addf %92, %98 : vector<8x300xf32>
    %c4_108 = arith.constant 4 : index
    %c0_109 = arith.constant 0 : index
    %100 = tpu.strided_load %arg17[%c4_108, %c0_109] {strides = array<i32: 24, 1>} : memref<192x128xf32, #tpu.memory_space<vmem>>, vector<8x128xf32>
    %c5 = arith.constant 5 : index
    %c0_110 = arith.constant 0 : index
    %101 = tpu.strided_load %arg17[%c5, %c0_110] {strides = array<i32: 24, 1>} : memref<192x128xf32, #tpu.memory_space<vmem>>, vector<8x128xf32>
    %102 = arith.maximumf %100, %101 : vector<8x128xf32>
    %c2_111 = arith.constant 2 : index
    %c0_112 = arith.constant 0 : index
    %c0_113 = arith.constant 0 : index
    %103 = vector.load %arg8[%c2_111, %c0_112, %c0_113] : memref<9x128x300xf32, #tpu.memory_space<vmem>>, vector<1x128x300xf32>
    %104 = vector.shape_cast %103 : vector<1x128x300xf32> to vector<128x300xf32>
    %cst_114 = arith.constant dense<0.000000e+00> : vector<8x300xf32>
    %105 = tpu.matmul %102, %104, %cst_114 {dimension_numbers = #tpu.dot_dimension_numbers<[1], [0], [0], [1], [0, 0, 1, 1], [], []>} : vector<8x128xf32>, vector<128x300xf32>, vector<8x300xf32> -> vector<8x300xf32>
    %106 = arith.addf %99, %105 : vector<8x300xf32>
    %c6 = arith.constant 6 : index
    %c0_115 = arith.constant 0 : index
    %107 = tpu.strided_load %arg17[%c6, %c0_115] {strides = array<i32: 24, 1>} : memref<192x128xf32, #tpu.memory_space<vmem>>, vector<8x128xf32>
    %c7 = arith.constant 7 : index
    %c0_116 = arith.constant 0 : index
    %108 = tpu.strided_load %arg17[%c7, %c0_116] {strides = array<i32: 24, 1>} : memref<192x128xf32, #tpu.memory_space<vmem>>, vector<8x128xf32>
    %109 = arith.maximumf %107, %108 : vector<8x128xf32>
    %c3_117 = arith.constant 3 : index
    %c0_118 = arith.constant 0 : index
    %c0_119 = arith.constant 0 : index
    %110 = vector.load %arg8[%c3_117, %c0_118, %c0_119] : memref<9x128x300xf32, #tpu.memory_space<vmem>>, vector<1x128x300xf32>
    %111 = vector.shape_cast %110 : vector<1x128x300xf32> to vector<128x300xf32>
    %cst_120 = arith.constant dense<0.000000e+00> : vector<8x300xf32>
    %112 = tpu.matmul %109, %111, %cst_120 {dimension_numbers = #tpu.dot_dimension_numbers<[1], [0], [0], [1], [0, 0, 1, 1], [], []>} : vector<8x128xf32>, vector<128x300xf32>, vector<8x300xf32> -> vector<8x300xf32>
    %113 = arith.addf %106, %112 : vector<8x300xf32>
    %c8 = arith.constant 8 : index
    %c0_121 = arith.constant 0 : index
    %114 = tpu.strided_load %arg17[%c8, %c0_121] {strides = array<i32: 24, 1>} : memref<192x128xf32, #tpu.memory_space<vmem>>, vector<8x128xf32>
    %c9 = arith.constant 9 : index
    %c0_122 = arith.constant 0 : index
    %115 = tpu.strided_load %arg17[%c9, %c0_122] {strides = array<i32: 24, 1>} : memref<192x128xf32, #tpu.memory_space<vmem>>, vector<8x128xf32>
    %116 = arith.maximumf %114, %115 : vector<8x128xf32>
    %c4_123 = arith.constant 4 : index
    %c0_124 = arith.constant 0 : index
    %c0_125 = arith.constant 0 : index
    %117 = vector.load %arg8[%c4_123, %c0_124, %c0_125] : memref<9x128x300xf32, #tpu.memory_space<vmem>>, vector<1x128x300xf32>
    %118 = vector.shape_cast %117 : vector<1x128x300xf32> to vector<128x300xf32>
    %cst_126 = arith.constant dense<0.000000e+00> : vector<8x300xf32>
    %119 = tpu.matmul %116, %118, %cst_126 {dimension_numbers = #tpu.dot_dimension_numbers<[1], [0], [0], [1], [0, 0, 1, 1], [], []>} : vector<8x128xf32>, vector<128x300xf32>, vector<8x300xf32> -> vector<8x300xf32>
    %120 = arith.addf %113, %119 : vector<8x300xf32>
    %c10 = arith.constant 10 : index
    %c0_127 = arith.constant 0 : index
    %121 = tpu.strided_load %arg17[%c10, %c0_127] {strides = array<i32: 24, 1>} : memref<192x128xf32, #tpu.memory_space<vmem>>, vector<8x128xf32>
    %c11 = arith.constant 11 : index
    %c0_128 = arith.constant 0 : index
    %122 = tpu.strided_load %arg17[%c11, %c0_128] {strides = array<i32: 24, 1>} : memref<192x128xf32, #tpu.memory_space<vmem>>, vector<8x128xf32>
    %123 = arith.maximumf %121, %122 : vector<8x128xf32>
    %c5_129 = arith.constant 5 : index
    %c0_130 = arith.constant 0 : index
    %c0_131 = arith.constant 0 : index
    %124 = vector.load %arg8[%c5_129, %c0_130, %c0_131] : memref<9x128x300xf32, #tpu.memory_space<vmem>>, vector<1x128x300xf32>
    %125 = vector.shape_cast %124 : vector<1x128x300xf32> to vector<128x300xf32>
    %cst_132 = arith.constant dense<0.000000e+00> : vector<8x300xf32>
    %126 = tpu.matmul %123, %125, %cst_132 {dimension_numbers = #tpu.dot_dimension_numbers<[1], [0], [0], [1], [0, 0, 1, 1], [], []>} : vector<8x128xf32>, vector<128x300xf32>, vector<8x300xf32> -> vector<8x300xf32>
    %127 = arith.addf %120, %126 : vector<8x300xf32>
    %c12 = arith.constant 12 : index
    %c0_133 = arith.constant 0 : index
    %128 = tpu.strided_load %arg17[%c12, %c0_133] {strides = array<i32: 24, 1>} : memref<192x128xf32, #tpu.memory_space<vmem>>, vector<8x128xf32>
    %c13 = arith.constant 13 : index
    %c0_134 = arith.constant 0 : index
    %129 = tpu.strided_load %arg17[%c13, %c0_134] {strides = array<i32: 24, 1>} : memref<192x128xf32, #tpu.memory_space<vmem>>, vector<8x128xf32>
    %130 = arith.maximumf %128, %129 : vector<8x128xf32>
    %c6_135 = arith.constant 6 : index
    %c0_136 = arith.constant 0 : index
    %c0_137 = arith.constant 0 : index
    %131 = vector.load %arg8[%c6_135, %c0_136, %c0_137] : memref<9x128x300xf32, #tpu.memory_space<vmem>>, vector<1x128x300xf32>
    %132 = vector.shape_cast %131 : vector<1x128x300xf32> to vector<128x300xf32>
    %cst_138 = arith.constant dense<0.000000e+00> : vector<8x300xf32>
    %133 = tpu.matmul %130, %132, %cst_138 {dimension_numbers = #tpu.dot_dimension_numbers<[1], [0], [0], [1], [0, 0, 1, 1], [], []>} : vector<8x128xf32>, vector<128x300xf32>, vector<8x300xf32> -> vector<8x300xf32>
    %134 = arith.addf %127, %133 : vector<8x300xf32>
    %c14 = arith.constant 14 : index
    %c0_139 = arith.constant 0 : index
    %135 = tpu.strided_load %arg17[%c14, %c0_139] {strides = array<i32: 24, 1>} : memref<192x128xf32, #tpu.memory_space<vmem>>, vector<8x128xf32>
    %c15 = arith.constant 15 : index
    %c0_140 = arith.constant 0 : index
    %136 = tpu.strided_load %arg17[%c15, %c0_140] {strides = array<i32: 24, 1>} : memref<192x128xf32, #tpu.memory_space<vmem>>, vector<8x128xf32>
    %137 = arith.maximumf %135, %136 : vector<8x128xf32>
    %c7_141 = arith.constant 7 : index
    %c0_142 = arith.constant 0 : index
    %c0_143 = arith.constant 0 : index
    %138 = vector.load %arg8[%c7_141, %c0_142, %c0_143] : memref<9x128x300xf32, #tpu.memory_space<vmem>>, vector<1x128x300xf32>
    %139 = vector.shape_cast %138 : vector<1x128x300xf32> to vector<128x300xf32>
    %cst_144 = arith.constant dense<0.000000e+00> : vector<8x300xf32>
    %140 = tpu.matmul %137, %139, %cst_144 {dimension_numbers = #tpu.dot_dimension_numbers<[1], [0], [0], [1], [0, 0, 1, 1], [], []>} : vector<8x128xf32>, vector<128x300xf32>, vector<8x300xf32> -> vector<8x300xf32>
    %141 = arith.addf %134, %140 : vector<8x300xf32>
    %c16 = arith.constant 16 : index
    %c0_145 = arith.constant 0 : index
    %142 = tpu.strided_load %arg17[%c16, %c0_145] {strides = array<i32: 24, 1>} : memref<192x128xf32, #tpu.memory_space<vmem>>, vector<8x128xf32>
    %c17 = arith.constant 17 : index
    %c0_146 = arith.constant 0 : index
    %143 = tpu.strided_load %arg17[%c17, %c0_146] {strides = array<i32: 24, 1>} : memref<192x128xf32, #tpu.memory_space<vmem>>, vector<8x128xf32>
    %144 = arith.maximumf %142, %143 : vector<8x128xf32>
    %c8_147 = arith.constant 8 : index
    %c0_148 = arith.constant 0 : index
    %c0_149 = arith.constant 0 : index
    %145 = vector.load %arg8[%c8_147, %c0_148, %c0_149] : memref<9x128x300xf32, #tpu.memory_space<vmem>>, vector<1x128x300xf32>
    %146 = vector.shape_cast %145 : vector<1x128x300xf32> to vector<128x300xf32>
    %cst_150 = arith.constant dense<0.000000e+00> : vector<8x300xf32>
    %147 = tpu.matmul %144, %146, %cst_150 {dimension_numbers = #tpu.dot_dimension_numbers<[1], [0], [0], [1], [0, 0, 1, 1], [], []>} : vector<8x128xf32>, vector<128x300xf32>, vector<8x300xf32> -> vector<8x300xf32>
    %148 = arith.addf %141, %147 : vector<8x300xf32>
    %c0_151 = arith.constant 0 : index
    %c0_152 = arith.constant 0 : index
    %149 = vector.load %arg9[%c0_151, %c0_152] : memref<1x300xf32, #tpu.memory_space<vmem>>, vector<1x300xf32>
    %150 = vector.broadcast %149 : vector<1x300xf32> to vector<8x300xf32>
    %151 = arith.addf %148, %150 : vector<8x300xf32>
    %cst_153 = arith.constant 0.000000e+00 : f32
    %152 = vector.broadcast %cst_153 : f32 to vector<8x300xf32>
    %153 = arith.maximumf %151, %152 : vector<8x300xf32>
    %c0_154 = arith.constant 0 : index
    %c0_155 = arith.constant 0 : index
    %154 = vector.load %arg10[%c0_154, %c0_155] : memref<300x16xf32, #tpu.memory_space<vmem>>, vector<300x16xf32>
    %cst_156 = arith.constant dense<0.000000e+00> : vector<8x16xf32>
    %155 = tpu.matmul %153, %154, %cst_156 {dimension_numbers = #tpu.dot_dimension_numbers<[1], [0], [0], [1], [0, 0, 1, 1], [], []>} : vector<8x300xf32>, vector<300x16xf32>, vector<8x16xf32> -> vector<8x16xf32>
    %c0_157 = arith.constant 0 : index
    %c0_158 = arith.constant 0 : index
    %156 = vector.load %arg11[%c0_157, %c0_158] : memref<1x16xf32, #tpu.memory_space<vmem>>, vector<1x16xf32>
    %157 = vector.broadcast %156 : vector<1x16xf32> to vector<8x16xf32>
    %158 = arith.addf %155, %157 : vector<8x16xf32>
    %159 = math.tanh %158 : vector<8x16xf32>
    %160 = arith.mulf %159, %159 : vector<8x16xf32>
    %cst_159 = arith.constant dense<0.000000e+00> : vector<8xf32>
    %161 = vector.multi_reduction <add>, %160, %cst_159 [1] : vector<8x16xf32> to vector<8xf32>
    %162 = vector.shape_cast %161 : vector<8xf32> to vector<8x1xf32>
    %cst_160 = arith.constant 9.99999996E-13 : f32
    %163 = vector.broadcast %cst_160 : f32 to vector<8x1xf32>
    %164 = arith.addf %162, %163 : vector<8x1xf32>
    %165 = math.rsqrt %164 : vector<8x1xf32>
    %166 = vector.broadcast %165 : vector<8x1xf32> to vector<8x16xf32>
    %167 = arith.mulf %159, %166 : vector<8x16xf32>
    %c0_161 = arith.constant 0 : index
    %c0_162 = arith.constant 0 : index
    %168 = vector.load %arg12[%c0_161, %c0_162] : memref<8x16xf32, #tpu.memory_space<vmem>>, vector<8x16xf32>
    tpu.vector_store %arg12[%c0_161, %c0_162], %167 {strides = array<i32>} : memref<8x16xf32, #tpu.memory_space<vmem>>, vector<8x16xf32>,
    return
  }
  func.func @transform_0(%arg0: i32) -> (i32, i32) {
    %c0_i32 = arith.constant 0 : i32
    %c0_i32_0 = arith.constant 0 : i32
    return %arg0, %c0_i32 : i32, i32
  }
  func.func @transform_1(%arg0: i32) -> (i32, i32, i32) {
    %c0_i32 = arith.constant 0 : i32
    %c0_i32_0 = arith.constant 0 : i32
    %c0_i32_1 = arith.constant 0 : i32
    %c0_i32_2 = arith.constant 0 : i32
    return %c0_i32, %c0_i32_0, %c0_i32_1 : i32, i32, i32
  }
  func.func @transform_2(%arg0: i32) -> (i32, i32) {
    %c0_i32 = arith.constant 0 : i32
    %c0_i32_0 = arith.constant 0 : i32
    %c0_i32_1 = arith.constant 0 : i32
    return %c0_i32, %c0_i32_0 : i32, i32
  }
  func.func @transform_3(%arg0: i32) -> (i32, i32, i32) {
    %c0_i32 = arith.constant 0 : i32
    %c0_i32_0 = arith.constant 0 : i32
    %c0_i32_1 = arith.constant 0 : i32
    %c0_i32_2 = arith.constant 0 : i32
    return %c0_i32, %c0_i32_0, %c0_i32_1 : i32, i32, i32
  }
  func.func @transform_4(%arg0: i32) -> (i32, i32) {
    %c0_i32 = arith.constant 0 : i32
    %c0_i32_0 = arith.constant 0 : i32
    %c0_i32_1 = arith.constant 0 : i32
    return %c0_i32, %c0_i32_0 : i32, i32
  }
  func.func @transform_5(%arg0: i32) -> (i32, i32, i32) {
    %c0_i32 = arith.constant 0 : i32
    %c0_i32_0 = arith.constant 0 : i32
    %c0_i32_1 = arith.constant 0 : i32
    %c0_i32_2 = arith.constant 0 : i32
    return %c0_i32, %c0_i32_0, %c0_i32_1 : i32, i32, i32
  }
  func.func @transform_6(%arg0: i32) -> (i32, i32) {
    %c0_i32 = arith.constant 0 : i32
    %c0_i32_0 = arith.constant 0 : i32
    %c0_i32_1 = arith.constant 0 : i32
    return %c0_i32, %c0_i32_0 : i32, i32
  }
  func.func @transform_7(%arg0: i32) -> (i32, i32, i32) {
    %c0_i32 = arith.constant 0 : i32
    %c0_i32_0 = arith.constant 0 : i32
    %c0_i32_1 = arith.constant 0 : i32
    %c0_i32_2 = arith.constant 0 : i32
    return %c0_i32, %c0_i32_0, %c0_i32_1 : i32, i32, i32
  }
  func.func @transform_8(%arg0: i32) -> (i32, i32) {
    %c0_i32 = arith.constant 0 : i32
    %c0_i32_0 = arith.constant 0 : i32
    %c0_i32_1 = arith.constant 0 : i32
    return %c0_i32, %c0_i32_0 : i32, i32
  }
  func.func @transform_9(%arg0: i32) -> (i32, i32) {
    %c0_i32 = arith.constant 0 : i32
    %c0_i32_0 = arith.constant 0 : i32
    %c0_i32_1 = arith.constant 0 : i32
    return %c0_i32, %c0_i32_0 : i32, i32
  }
  func.func @transform_10(%arg0: i32) -> (i32, i32) {
    %c0_i32 = arith.constant 0 : i32
    %c0_i32_0 = arith.constant 0 : i32
    %c0_i32_1 = arith.constant 0 : i32
    return %c0_i32, %c0_i32_0 : i32, i32
  }
  func.func @transform_11(%arg0: i32) -> (i32, i32) {
    %c0_i32 = arith.constant 0 : i32
    %c0_i32_0 = arith.constant 0 : i32
    return %arg0, %c0_i32 : i32, i32
  }
}

</mosaic_0001>

<llo_original>
// kernel: tpu_custom_call.1
$region0: #{tpu_custom_call.1}
  #allocation0 [shape = 'u32[]', space=smem, size = 0x4, offset = 0x4, fixed_abs, tag = 'smem constant byte address 0x4 - core index']
  #allocation1 [shape = 'u32[144,128]{1,0:T(1,128)}', space=vmem, size = 0x12000, scoped, tag = 'internal scratch']
  #allocation2 [shape = 'f32[768,32]{1,0:T(8,128)}', space=vmem, size = 0x60000, scoped, tag = 'scratch operand']
  #allocation3 [shape = 'f32[392,32]{1,0:T(8,128)}', space=vmem, size = 0x31000, scoped, tag = 'scratch operand']
  #allocation4 [shape = 'f32[384,64]{1,0:T(8,128)}', space=vmem, size = 0x30000, scoped, tag = 'scratch operand']
  #allocation5 [shape = 'f32[200,64]{1,0:T(8,128)}', space=vmem, size = 0x19000, scoped, tag = 'scratch operand']
  #allocation6 [shape = 'f32[192,128]{1,0:T(8,128)}', space=vmem, size = 0x18000, scoped, tag = 'scratch operand']
  %s0 = inlined_call_operand.vmem [shape: f32[768,40], index: 0, kind: input, shape index: {}]
  %s1 = inlined_call_operand.vmem [shape: f32[1,40,32], index: 1, kind: input, shape index: {}]
  %s2 = inlined_call_operand.vmem [shape: f32[1,32], index: 2, kind: input, shape index: {}]
  %s3 = inlined_call_operand.vmem [shape: f32[5,32,64], index: 3, kind: input, shape index: {}]
  %s4 = inlined_call_operand.vmem [shape: f32[1,64], index: 4, kind: input, shape index: {}]
  %s5 = inlined_call_operand.vmem [shape: f32[5,64,128], index: 5, kind: input, shape index: {}]
  %s6 = inlined_call_operand.vmem [shape: f32[1,128], index: 6, kind: input, shape index: {}]
  %s7 = inlined_call_operand.vmem [shape: f32[9,128,300], index: 7, kind: input, shape index: {}]
  %s8 = inlined_call_operand.vmem [shape: f32[1,300], index: 8, kind: input, shape index: {}]
  %s9 = inlined_call_operand.vmem [shape: f32[300,16], index: 9, kind: input, shape index: {}]
  %s10 = inlined_call_operand.vmem [shape: f32[1,16], index: 10, kind: input, shape index: {}]
  %s11 = inlined_call_operand.hbm [shape: f32[8,16], index: 11, kind: output, shape index: {}]
  %s12 = sld [smem:[#allocation0]]
  $region54: #{tpu_custom_call.1} parent=0
    _
  %s14 = ssub.s32 1, %s12
  %s15 = scalar_select 0, %s14, %s12
  $region1: #{tpu_custom_call.1} parent=0
    #allocation7 [shape = 'u8[4096]{0}', space=vmem, size = 0x1000, scoped, tag = 'output window, operand 0, single buffered']
    #allocation8 [shape = 's32[1]{0}', space=sflag, size = 0x4, scoped, tag = 'scoped memory for tpu_custom_call.1']
    %16 = vsyncpa [#allocation8], 0
    // Predicated region
    $region2: #{tpu_custom_call.1} parent=1 // pred_check
      _
    $region3: #{tpu_custom_call.1} parent=1 // pred_check_branch
      %18 = sbr.rel (0) target = $region5
    $region4: #{tpu_custom_call.1} parent=1 // pred_region
      _
    $region5: #{tpu_custom_call.1} parent=1 // pred_fallthru
      _
    // Predicated region
    $region6: #{tpu_custom_call.1} parent=1 // pred_check
      _
    $region7: #{tpu_custom_call.1} parent=1 // pred_check_branch
      %20 = sbr.rel (0) target = $region9
    $region8: #{tpu_custom_call.1} parent=1 // pred_region
      _
    $region9: #{tpu_custom_call.1} parent=1 // pred_fallthru
      _
    // Predicated region
    $region10: #{tpu_custom_call.1} parent=1 // pred_check
      _
    $region11: #{tpu_custom_call.1} parent=1 // pred_check_branch
      %22 = sbr.rel (0) target = $region13
    $region12: #{tpu_custom_call.1} parent=1 // pred_region
      _
    $region13: #{tpu_custom_call.1} parent=1 // pred_fallthru
      _
    // Predicated region
    $region14: #{tpu_custom_call.1} parent=1 // pred_check
      _
    $region15: #{tpu_custom_call.1} parent=1 // pred_check_branch
      %24 = sbr.rel (0) target = $region17
    $region16: #{tpu_custom_call.1} parent=1 // pred_region
      _
    $region17: #{tpu_custom_call.1} parent=1 // pred_fallthru
      _
    // Predicated region
    $region18: #{tpu_custom_call.1} parent=1 // pred_check
      _
    $region19: #{tpu_custom_call.1} parent=1 // pred_check_branch
      %26 = sbr.rel (0) target = $region21
    $region20: #{tpu_custom_call.1} parent=1 // pred_region
      _
    $region21: #{tpu_custom_call.1} parent=1 // pred_fallthru
      _
    // Predicated region
    $region22: #{tpu_custom_call.1} parent=1 // pred_check
      _
    $region23: #{tpu_custom_call.1} parent=1 // pred_check_branch
      %28 = sbr.rel (0) target = $region25
    $region24: #{tpu_custom_call.1} parent=1 // pred_region
      _
    $region25: #{tpu_custom_call.1} parent=1 // pred_fallthru
      _
    // Predicated region
    $region26: #{tpu_custom_call.1} parent=1 // pred_check
      _
    $region27: #{tpu_custom_call.1} parent=1 // pred_check_branch
      %30 = sbr.rel (0) target = $region29
    $region28: #{tpu_custom_call.1} parent=1 // pred_region
      _
    $region29: #{tpu_custom_call.1} parent=1 // pred_fallthru
      _
    // Predicated region
    $region30: #{tpu_custom_call.1} parent=1 // pred_check
      _
    $region31: #{tpu_custom_call.1} parent=1 // pred_check_branch
      %32 = sbr.rel (0) target = $region33
    $region32: #{tpu_custom_call.1} parent=1 // pred_region
      _
    $region33: #{tpu_custom_call.1} parent=1 // pred_fallthru
      _
    // Predicated region
    $region34: #{tpu_custom_call.1} parent=1 // pred_check
      _
    $region35: #{tpu_custom_call.1} parent=1 // pred_check_branch
      %34 = sbr.rel (0) target = $region37
    $region36: #{tpu_custom_call.1} parent=1 // pred_region
      _
    $region37: #{tpu_custom_call.1} parent=1 // pred_fallthru
      _
    // Predicated region
    $region38: #{tpu_custom_call.1} parent=1 // pred_check
      _
    $region39: #{tpu_custom_call.1} parent=1 // pred_check_branch
      %36 = sbr.rel (0) target = $region41
    $region40: #{tpu_custom_call.1} parent=1 // pred_region
      _
    $region41: #{tpu_custom_call.1} parent=1 // pred_fallthru
      _
    // Predicated region
    $region42: #{tpu_custom_call.1} parent=1 // pred_check
      _
    $region43: #{tpu_custom_call.1} parent=1 // pred_check_branch
      %38 = sbr.rel (0) target = $region45
    $region44: #{tpu_custom_call.1} parent=1 // pred_region
      _
    $region45: #{tpu_custom_call.1} parent=1 // pred_fallthru
      _
    %v39 = vld [vmem:[%s0] sm:$0xff]
    %v40 = vld [vmem:[%s0 + $0x8] sm:$0xff]
    %v41 = vld [vmem:[%s0 + $0x10] sm:$0xff]
    %v42 = vld [vmem:[%s0 + $0x18] sm:$0xff]
    %v43 = vld [vmem:[%s0 + $0x20] sm:$0xff]
    %v44 = vld [vmem:[%s0 + $0x28] sm:$0xff]
    %v45 = vld [vmem:[%s0 + $0x30] sm:$0xff]
    %v46 = vld [vmem:[%s0 + $0x38] sm:$0xff]
    %v47 = vld [vmem:[%s0 + $0x40] sm:$0xff]
    %v48 = vld [vmem:[%s0 + $0x48] sm:$0xff]
    %v49 = vld [vmem:[%s0 + $0x50] sm:$0xff]
    %v50 = vld [vmem:[%s0 + $0x58] sm:$0xff]
    %v51 = vld [vmem:[%s0 + $0x60] sm:$0xff]
    %v52 = vld [vmem:[%s0 + $0x68] sm:$0xff]
    %v53 = vld [vmem:[%s0 + $0x70] sm:$0xff]
    %v54 = vld [vmem:[%s0 + $0x78] sm:$0xff]
    %v55 = vld [vmem:[%s0 + $0x80] sm:$0xff]
    %v56 = vld [vmem:[%s0 + $0x88] sm:$0xff]
    %v57 = vld [vmem:[%s0 + $0x90] sm:$0xff]
    %v58 = vld [vmem:[%s0 + $0x98] sm:$0xff]
    %v59 = vld [vmem:[%s0 + $0xa0] sm:$0xff]
    %v60 = vld [vmem:[%s0 + $0xa8] sm:$0xff]
    %v61 = vld [vmem:[%s0 + $0xb0] sm:$0xff]
    %v62 = vld [vmem:[%s0 + $0xb8] sm:$0xff]
    %v63 = vld [vmem:[%s0 + $0xc0] sm:$0xff]
    %v64 = vld [vmem:[%s0 + $0xc8] sm:$0xff]
    %v65 = vld [vmem:[%s0 + $0xd0] sm:$0xff]
    %v66 = vld [vmem:[%s0 + $0xd8] sm:$0xff]
    %v67 = vld [vmem:[%s0 + $0xe0] sm:$0xff]
    %v68 = vld [vmem:[%s0 + $0xe8] sm:$0xff]
    %v69 = vld [vmem:[%s0 + $0xf0] sm:$0xff]
    %v70 = vld [vmem:[%s0 + $0xf8] sm:$0xff]
    %v71 = vld [vmem:[%s0 + $0x100] sm:$0xff]
    %v72 = vld [vmem:[%s0 + $0x108] sm:$0xff]
    %v73 = vld [vmem:[%s0 + $0x110] sm:$0xff]
    %v74 = vld [vmem:[%s0 + $0x118] sm:$0xff]
    %v75 = vld [vmem:[%s0 + $0x120] sm:$0xff]
    %v76 = vld [vmem:[%s0 + $0x128] sm:$0xff]
    %v77 = vld [vmem:[%s0 + $0x130] sm:$0xff]
    %v78 = vld [vmem:[%s0 + $0x138] sm:$0xff]
    %v79 = vld [vmem:[%s0 + $0x140] sm:$0xff]
    %v80 = vld [vmem:[%s0 + $0x148] sm:$0xff]
    %v81 = vld [vmem:[%s0 + $0x150] sm:$0xff]
    %v82 = vld [vmem:[%s0 + $0x158] sm:$0xff]
    %v83 = vld [vmem:[%s0 + $0x160] sm:$0xff]
    %v84 = vld [vmem:[%s0 + $0x168] sm:$0xff]
    %v85 = vld [vmem:[%s0 + $0x170] sm:$0xff]
    %v86 = vld [vmem:[%s0 + $0x178] sm:$0xff]
    %v87 = vld [vmem:[%s0 + $0x180] sm:$0xff]
    %v88 = vld [vmem:[%s0 + $0x188] sm:$0xff]
    %v89 = vld [vmem:[%s0 + $0x190] sm:$0xff]
    %v90 = vld [vmem:[%s0 + $0x198] sm:$0xff]
    %v91 = vld [vmem:[%s0 + $0x1a0] sm:$0xff]
    %v92 = vld [vmem:[%s0 + $0x1a8] sm:$0xff]
    %v93 = vld [vmem:[%s0 + $0x1b0] sm:$0xff]
    %v94 = vld [vmem:[%s0 + $0x1b8] sm:$0xff]
    %v95 = vld [vmem:[%s0 + $0x1c0] sm:$0xff]
    %v96 = vld [vmem:[%s0 + $0x1c8] sm:$0xff]
    %v97 = vld [vmem:[%s0 + $0x1d0] sm:$0xff]
    %v98 = vld [vmem:[%s0 + $0x1d8] sm:$0xff]
    %v99 = vld [vmem:[%s0 + $0x1e0] sm:$0xff]
    %v100 = vld [vmem:[%s0 + $0x1e8] sm:$0xff]
    %v101 = vld [vmem:[%s0 + $0x1f0] sm:$0xff]
    %v102 = vld [vmem:[%s0 + $0x1f8] sm:$0xff]
    %v103 = vld [vmem:[%s0 + $0x200] sm:$0xff]
    %v104 = vld [vmem:[%s0 + $0x208] sm:$0xff]
    %v105 = vld [vmem:[%s0 + $0x210] sm:$0xff]
    %v106 = vld [vmem:[%s0 + $0x218] sm:$0xff]
    %v107 = vld [vmem:[%s0 + $0x220] sm:$0xff]
    %v108 = vld [vmem:[%s0 + $0x228] sm:$0xff]
    %v109 = vld [vmem:[%s0 + $0x230] sm:$0xff]
    %v110 = vld [vmem:[%s0 + $0x238] sm:$0xff]
    %v111 = vld [vmem:[%s0 + $0x240] sm:$0xff]
    %v112 = vld [vmem:[%s0 + $0x248] sm:$0xff]
    %v113 = vld [vmem:[%s0 + $0x250] sm:$0xff]
    %v114 = vld [vmem:[%s0 + $0x258] sm:$0xff]
    %v115 = vld [vmem:[%s0 + $0x260] sm:$0xff]
    %v116 = vld [vmem:[%s0 + $0x268] sm:$0xff]
    %v117 = vld [vmem:[%s0 + $0x270] sm:$0xff]
    %v118 = vld [vmem:[%s0 + $0x278] sm:$0xff]
    %v119 = vld [vmem:[%s0 + $0x280] sm:$0xff]
    %v120 = vld [vmem:[%s0 + $0x288] sm:$0xff]
    %v121 = vld [vmem:[%s0 + $0x290] sm:$0xff]
    %v122 = vld [vmem:[%s0 + $0x298] sm:$0xff]
    %v123 = vld [vmem:[%s0 + $0x2a0] sm:$0xff]
    %v124 = vld [vmem:[%s0 + $0x2a8] sm:$0xff]
    %v125 = vld [vmem:[%s0 + $0x2b0] sm:$0xff]
    %v126 = vld [vmem:[%s0 + $0x2b8] sm:$0xff]
    %v127 = vld [vmem:[%s0 + $0x2c0] sm:$0xff]
    %v128 = vld [vmem:[%s0 + $0x2c8] sm:$0xff]
    %v129 = vld [vmem:[%s0 + $0x2d0] sm:$0xff]
    %v130 = vld [vmem:[%s0 + $0x2d8] sm:$0xff]
    %v131 = vld [vmem:[%s0 + $0x2e0] sm:$0xff]
    %v132 = vld [vmem:[%s0 + $0x2e8] sm:$0xff]
    %v133 = vld [vmem:[%s0 + $0x2f0] sm:$0xff]
    %v134 = vld [vmem:[%s0 + $0x2f8] sm:$0xff]
    %v135 = vld [vmem:[%s1] sm:$0xff]
    %v136 = vld [vmem:[%s1 + $0x8] sm:$0xff]
    %v137 = vld [vmem:[%s1 + $0x10] sm:$0xff]
    %v138 = vld [vmem:[%s1 + $0x18] sm:$0xff]
    %v139 = vld [vmem:[%s1 + $0x20] sm:$0xff]
    %v140 = vld [vmem:[%s2] sm:$0x1]
    %v142 = vlaneseq
    %v143 = vshrl.u32 %v142, 7
    %v144 = vsub.s32 0, %v143
    %v145 = vrot.slane %v140, %v144
    %vm147 = vcmask 326656
    %v149 = vsel %vm147, %v39, 0
    %v152 = vsel %vm147, %v40, 0
    %v155 = vsel %vm147, %v41, 0
    %v158 = vsel %vm147, %v42, 0
    %v161 = vsel %vm147, %v43, 0
    %v164 = vsel %vm147, %v44, 0
    %v167 = vsel %vm147, %v45, 0
    %v170 = vsel %vm147, %v46, 0
    %v173 = vsel %vm147, %v47, 0
    %v176 = vsel %vm147, %v48, 0
    %v179 = vsel %vm147, %v49, 0
    %v182 = vsel %vm147, %v50, 0
    %v185 = vsel %vm147, %v51, 0
    %v188 = vsel %vm147, %v52, 0
    %v191 = vsel %vm147, %v53, 0
    %v194 = vsel %vm147, %v54, 0
    %v197 = vsel %vm147, %v55, 0
    %v200 = vsel %vm147, %v56, 0
    %v203 = vsel %vm147, %v57, 0
    %v206 = vsel %vm147, %v58, 0
    %v209 = vsel %vm147, %v59, 0
    %v212 = vsel %vm147, %v60, 0
    %v215 = vsel %vm147, %v61, 0
    %v218 = vsel %vm147, %v62, 0
    %v221 = vsel %vm147, %v63, 0
    %v224 = vsel %vm147, %v64, 0
    %v227 = vsel %vm147, %v65, 0
    %v230 = vsel %vm147, %v66, 0
    %v233 = vsel %vm147, %v67, 0
    %v236 = vsel %vm147, %v68, 0
    %v239 = vsel %vm147, %v69, 0
    %v242 = vsel %vm147, %v70, 0
    %v245 = vsel %vm147, %v71, 0
    %v248 = vsel %vm147, %v72, 0
    %v251 = vsel %vm147, %v73, 0
    %v254 = vsel %vm147, %v74, 0
    %v257 = vsel %vm147, %v75, 0
    %v260 = vsel %vm147, %v76, 0
    %v263 = vsel %vm147, %v77, 0
    %v266 = vsel %vm147, %v78, 0
    %v269 = vsel %vm147, %v79, 0
    %v272 = vsel %vm147, %v80, 0
    %v275 = vsel %vm147, %v81, 0
    %v278 = vsel %vm147, %v82, 0
    %v281 = vsel %vm147, %v83, 0
    %v284 = vsel %vm147, %v84, 0
    %v287 = vsel %vm147, %v85, 0
    %v290 = vsel %vm147, %v86, 0
    %v293 = vsel %vm147, %v87, 0
    %v296 = vsel %vm147, %v88, 0
    %v299 = vsel %vm147, %v89, 0
    %v302 = vsel %vm147, %v90, 0
    %v305 = vsel %vm147, %v91, 0
    %v308 = vsel %vm147, %v92, 0
    %v311 = vsel %vm147, %v93, 0
    %v314 = vsel %vm147, %v94, 0
    %v317 = vsel %vm147, %v95, 0
    %v320 = vsel %vm147, %v96, 0
    %v323 = vsel %vm147, %v97, 0
    %v326 = vsel %vm147, %v98, 0
    %v329 = vsel %vm147, %v99, 0
    %v332 = vsel %vm147, %v100, 0
    %v335 = vsel %vm147, %v101, 0
    %v338 = vsel %vm147, %v102, 0
    %v341 = vsel %vm147, %v103, 0
    %v344 = vsel %vm147, %v104, 0
    %v347 = vsel %vm147, %v105, 0
    %v350 = vsel %vm147, %v106, 0
    %v353 = vsel %vm147, %v107, 0
    %v356 = vsel %vm147, %v108, 0
    %v359 = vsel %vm147, %v109, 0
    %v362 = vsel %vm147, %v110, 0
    %v365 = vsel %vm147, %v111, 0
    %v368 = vsel %vm147, %v112, 0
    %v371 = vsel %vm147, %v113, 0
    %v374 = vsel %vm147, %v114, 0
    %v377 = vsel %vm147, %v115, 0
    %v380 = vsel %vm147, %v116, 0
    %v383 = vsel %vm147, %v117, 0
    %v386 = vsel %vm147, %v118, 0
    %v389 = vsel %vm147, %v119, 0
    %v392 = vsel %vm147, %v120, 0
    %v395 = vsel %vm147, %v121, 0
    %v398 = vsel %vm147, %v122, 0
    %v401 = vsel %vm147, %v123, 0
    %v404 = vsel %vm147, %v124, 0
    %v407 = vsel %vm147, %v125, 0
    %v410 = vsel %vm147, %v126, 0
    %v413 = vsel %vm147, %v127, 0
    %v416 = vsel %vm147, %v128, 0
    %v419 = vsel %vm147, %v129, 0
    %v422 = vsel %vm147, %v130, 0
    %v425 = vsel %vm147, %v131, 0
    %v428 = vsel %vm147, %v132, 0
    %v431 = vsel %vm147, %v133, 0
    %v434 = vsel %vm147, %v134, 0
    %436 = vmatprep.subr.mxu0 0.0
    %437 = vmatpush1.msra.mxu0 0.0
    %438 = vmatprep.subr.mxu0 0.0
    %439 = vmatpush1.msra.mxu0 0.0
    %440 = vmatprep.subr.mxu0 0.0
    %441 = vmatpush1.msra.mxu0 0.0
    %442 = vmatprep.subr.mxu0 0.0
    %443 = vmatpush1.msra.mxu0 0.0
    %444 = vmatprep.subr.mxu0 0.0
    %445 = vmatpush1.msra.mxu0 0.0
    %446 = vmatprep.subr.mxu0 0.0
    %447 = vmatpush1.msra.mxu0 0.0
    %448 = vmatprep.subr.mxu0 0.0
    %449 = vmatpush1.msra.mxu0 0.0
    %450 = vmatprep.subr.mxu0 0.0
    %451 = vmatpush1.msra.mxu0 0.0
    %452 = vmatprep.subr.mxu0 0.0
    %453 = vmatpush1.msra.mxu0 0.0
    %454 = vmatprep.subr.mxu0 0.0
    %455 = vmatpush1.msra.mxu0 0.0
    %456 = vmatprep.subr.mxu0 0.0
    %457 = vmatpush1.msra.mxu0 0.0
    %458 = vmatprep.subr.mxu0 0.0
    %459 = vmatpush1.msra.mxu0 %v139
    %460 = vmatprep.subr.mxu0 0.0
    %461 = vmatpush1.msra.mxu0 %v138
    %462 = vmatprep.subr.mxu0 0.0
    %463 = vmatpush1.msra.mxu0 %v137
    %464 = vmatprep.subr.mxu0 0.0
    %465 = vmatpush1.msra.mxu0 %v136
    %466 = vmatprep.subr.mxu0 0.0
    %467 = vmatpush1.msra.mxu0 %v135
    %468 = vmatprep.subr.mxu0 0.0
    %469 = vmatpush2.msra.mxu0 0.0
    %470 = vmatprep.subr.mxu0 0.0
    %471 = vmatpush2.msra.mxu0 0.0
    %472 = vmatprep.subr.mxu0 0.0
    %473 = vmatpush2.msra.mxu0 0.0
    %474 = vmatprep.subr.mxu0 0.0
    %475 = vmatpush2.msra.mxu0 0.0
    %476 = vmatprep.subr.mxu0 0.0
    %477 = vmatpush2.msra.mxu0 0.0
    %478 = vmatprep.subr.mxu0 0.0
    %479 = vmatpush2.msra.mxu0 0.0
    %480 = vmatprep.subr.mxu0 0.0
    %481 = vmatpush2.msra.mxu0 0.0
    %482 = vmatprep.subr.mxu0 0.0
    %483 = vmatpush2.msra.mxu0 0.0
    %484 = vmatprep.subr.mxu0 0.0
    %485 = vmatpush2.msra.mxu0 0.0
    %486 = vmatprep.subr.mxu0 0.0
    %487 = vmatpush2.msra.mxu0 0.0
    %488 = vmatprep.subr.mxu0 0.0
    %489 = vmatpush2.msra.mxu0 0.0
    %490 = vmatprep.subr.mxu0 0.0
    %491 = vmatpush2.msra.mxu0 0.0
    %492 = vmatprep.subr.mxu0 0.0
    %493 = vmatpush2.msra.mxu0 0.0
    %494 = vmatprep.subr.mxu0 0.0
    %495 = vmatpush2.msra.mxu0 0.0
    %496 = vmatprep.subr.mxu0 0.0
    %497 = vmatpush2.msra.mxu0 0.0
    %498 = vmatprep.subr.mxu0 0.0
    %499 = vmatpush2.msra.mxu0 0.0
    %500 = vmatprep.mubr.f32.mxu0 0.0
    %501 = vmatmul.mubr.f32.gmra.mxu0 %v149
    %v502 = vpop.f32.mrf.mxu0
    %v503 = vadd.f32 %v145, %v502
    %v504 = vpop.f32.mrf.mxu0
    %505 = vmatprep.mubr.f32.mxu0 0.0
    %506 = vmatmul.mubr.f32.gmra.mxu0 %v152
    %v507 = vpop.f32.mrf.mxu0
    %v508 = vadd.f32 %v145, %v507
    %v509 = vpop.f32.mrf.mxu0
    %510 = vmatprep.mubr.f32.mxu0 0.0
    %511 = vmatmul.mubr.f32.gmra.mxu0 %v155
    %v512 = vpop.f32.mrf.mxu0
    %v513 = vadd.f32 %v145, %v512
    %v514 = vpop.f32.mrf.mxu0
    %515 = vmatprep.mubr.f32.mxu0 0.0
    %516 = vmatmul.mubr.f32.gmra.mxu0 %v158
    %v517 = vpop.f32.mrf.mxu0
    %v518 = vadd.f32 %v145, %v517
    %v519 = vpop.f32.mrf.mxu0
    %520 = vmatprep.mubr.f32.mxu0 0.0
    %521 = vmatmul.mubr.f32.gmra.mxu0 %v161
    %v522 = vpop.f32.mrf.mxu0
    %v523 = vadd.f32 %v145, %v522
    %v524 = vpop.f32.mrf.mxu0
    %525 = vmatprep.mubr.f32.mxu0 0.0
    %526 = vmatmul.mubr.f32.gmra.mxu0 %v164
    %v527 = vpop.f32.mrf.mxu0
    %v528 = vadd.f32 %v145, %v527
    %v529 = vpop.f32.mrf.mxu0
    %530 = vmatprep.mubr.f32.mxu0 0.0
    %531 = vmatmul.mubr.f32.gmra.mxu0 %v167
    %v532 = vpop.f32.mrf.mxu0
    %v533 = vadd.f32 %v145, %v532
    %v534 = vpop.f32.mrf.mxu0
    %535 = vmatprep.mubr.f32.mxu0 0.0
    %536 = vmatmul.mubr.f32.gmra.mxu0 %v170
    %v537 = vpop.f32.mrf.mxu0
    %v538 = vadd.f32 %v145, %v537
    %v539 = vpop.f32.mrf.mxu0
    %540 = vmatprep.mubr.f32.mxu0 0.0
    %541 = vmatmul.mubr.f32.gmra.mxu0 %v173
    %v542 = vpop.f32.mrf.mxu0
    %v543 = vadd.f32 %v145, %v542
    %v544 = vpop.f32.mrf.mxu0
    %545 = vmatprep.mubr.f32.mxu0 0.0
    %546 = vmatmul.mubr.f32.gmra.mxu0 %v176
    %v547 = vpop.f32.mrf.mxu0
    %v548 = vadd.f32 %v145, %v547
    %v549 = vpop.f32.mrf.mxu0
    %550 = vmatprep.mubr.f32.mxu0 0.0
    %551 = vmatmul.mubr.f32.gmra.mxu0 %v179
    %v552 = vpop.f32.mrf.mxu0
    %v553 = vadd.f32 %v145, %v552
    %v554 = vpop.f32.mrf.mxu0
    %555 = vmatprep.mubr.f32.mxu0 0.0
    %556 = vmatmul.mubr.f32.gmra.mxu0 %v182
    %v557 = vpop.f32.mrf.mxu0
    %v558 = vadd.f32 %v145, %v557
    %v559 = vpop.f32.mrf.mxu0
    %560 = vmatprep.mubr.f32.mxu0 0.0
    %561 = vmatmul.mubr.f32.gmra.mxu0 %v185
    %v562 = vpop.f32.mrf.mxu0
    %v563 = vadd.f32 %v145, %v562
    %v564 = vpop.f32.mrf.mxu0
    %565 = vmatprep.mubr.f32.mxu0 0.0
    %566 = vmatmul.mubr.f32.gmra.mxu0 %v188
    %v567 = vpop.f32.mrf.mxu0
    %v568 = vadd.f32 %v145, %v567
    %v569 = vpop.f32.mrf.mxu0
    %570 = vmatprep.mubr.f32.mxu0 0.0
    %571 = vmatmul.mubr.f32.gmra.mxu0 %v191
    %v572 = vpop.f32.mrf.mxu0
    %v573 = vadd.f32 %v145, %v572
    %v574 = vpop.f32.mrf.mxu0
    %575 = vmatprep.mubr.f32.mxu0 0.0
    %576 = vmatmul.mubr.f32.gmra.mxu0 %v194
    %v577 = vpop.f32.mrf.mxu0
    %v578 = vadd.f32 %v145, %v577
    %v579 = vpop.f32.mrf.mxu0
    %580 = vmatprep.mubr.f32.mxu0 0.0
    %581 = vmatmul.mubr.f32.gmra.mxu0 %v197
    %v582 = vpop.f32.mrf.mxu0
    %v583 = vadd.f32 %v145, %v582
    %v584 = vpop.f32.mrf.mxu0
    %585 = vmatprep.mubr.f32.mxu0 0.0
    %586 = vmatmul.mubr.f32.gmra.mxu0 %v200
    %v587 = vpop.f32.mrf.mxu0
    %v588 = vadd.f32 %v145, %v587
    %v589 = vpop.f32.mrf.mxu0
    %590 = vmatprep.mubr.f32.mxu0 0.0
    %591 = vmatmul.mubr.f32.gmra.mxu0 %v203
    %v592 = vpop.f32.mrf.mxu0
    %v593 = vadd.f32 %v145, %v592
    %v594 = vpop.f32.mrf.mxu0
    %595 = vmatprep.mubr.f32.mxu0 0.0
    %596 = vmatmul.mubr.f32.gmra.mxu0 %v206
    %v597 = vpop.f32.mrf.mxu0
    %v598 = vadd.f32 %v145, %v597
    %v599 = vpop.f32.mrf.mxu0
    %600 = vmatprep.mubr.f32.mxu0 0.0
    %601 = vmatmul.mubr.f32.gmra.mxu0 %v209
    %v602 = vpop.f32.mrf.mxu0
    %v603 = vadd.f32 %v145, %v602
    %v604 = vpop.f32.mrf.mxu0
    %605 = vmatprep.mubr.f32.mxu0 0.0
    %606 = vmatmul.mubr.f32.gmra.mxu0 %v212
    %v607 = vpop.f32.mrf.mxu0
    %v608 = vadd.f32 %v145, %v607
    %v609 = vpop.f32.mrf.mxu0
    %610 = vmatprep.mubr.f32.mxu0 0.0
    %611 = vmatmul.mubr.f32.gmra.mxu0 %v215
    %v612 = vpop.f32.mrf.mxu0
    %v613 = vadd.f32 %v145, %v612
    %v614 = vpop.f32.mrf.mxu0
    %615 = vmatprep.mubr.f32.mxu0 0.0
    %616 = vmatmul.mubr.f32.gmra.mxu0 %v218
    %v617 = vpop.f32.mrf.mxu0
    %v618 = vadd.f32 %v145, %v617
    %v619 = vpop.f32.mrf.mxu0
    %620 = vmatprep.mubr.f32.mxu0 0.0
    %621 = vmatmul.mubr.f32.gmra.mxu0 %v221
    %v622 = vpop.f32.mrf.mxu0
    %v623 = vadd.f32 %v145, %v622
    %v624 = vpop.f32.mrf.mxu0
    %625 = vmatprep.mubr.f32.mxu0 0.0
    %626 = vmatmul.mubr.f32.gmra.mxu0 %v224
    %v627 = vpop.f32.mrf.mxu0
    %v628 = vadd.f32 %v145, %v627
    %v629 = vpop.f32.mrf.mxu0
    %630 = vmatprep.mubr.f32.mxu0 0.0
    %631 = vmatmul.mubr.f32.gmra.mxu0 %v227
    %v632 = vpop.f32.mrf.mxu0
    %v633 = vadd.f32 %v145, %v632
    %v634 = vpop.f32.mrf.mxu0
    %635 = vmatprep.mubr.f32.mxu0 0.0
    %636 = vmatmul.mubr.f32.gmra.mxu0 %v230
    %v637 = vpop.f32.mrf.mxu0
    %v638 = vadd.f32 %v145, %v637
    %v639 = vpop.f32.mrf.mxu0
    %640 = vmatprep.mubr.f32.mxu0 0.0
    %641 = vmatmul.mubr.f32.gmra.mxu0 %v233
    %v642 = vpop.f32.mrf.mxu0
    %v643 = vadd.f32 %v145, %v642
    %v644 = vpop.f32.mrf.mxu0
    %645 = vmatprep.mubr.f32.mxu0 0.0
    %646 = vmatmul.mubr.f32.gmra.mxu0 %v236
    %v647 = vpop.f32.mrf.mxu0
    %v648 = vadd.f32 %v145, %v647
    %v649 = vpop.f32.mrf.mxu0
    %650 = vmatprep.mubr.f32.mxu0 0.0
    %651 = vmatmul.mubr.f32.gmra.mxu0 %v239
    %v652 = vpop.f32.mrf.mxu0
    %v653 = vadd.f32 %v145, %v652
    %v654 = vpop.f32.mrf.mxu0
    %655 = vmatprep.mubr.f32.mxu0 0.0
    %656 = vmatmul.mubr.f32.gmra.mxu0 %v242
    %v657 = vpop.f32.mrf.mxu0
    %v658 = vadd.f32 %v145, %v657
    %v659 = vpop.f32.mrf.mxu0
    %660 = vmatprep.mubr.f32.mxu0 0.0
    %661 = vmatmul.mubr.f32.gmra.mxu0 %v245
    %v662 = vpop.f32.mrf.mxu0
    %v663 = vadd.f32 %v145, %v662
    %v664 = vpop.f32.mrf.mxu0
    %665 = vmatprep.mubr.f32.mxu0 0.0
    %666 = vmatmul.mubr.f32.gmra.mxu0 %v248
    %v667 = vpop.f32.mrf.mxu0
    %v668 = vadd.f32 %v145, %v667
    %v669 = vpop.f32.mrf.mxu0
    %670 = vmatprep.mubr.f32.mxu0 0.0
    %671 = vmatmul.mubr.f32.gmra.mxu0 %v251
    %v672 = vpop.f32.mrf.mxu0
    %v673 = vadd.f32 %v145, %v672
    %v674 = vpop.f32.mrf.mxu0
    %675 = vmatprep.mubr.f32.mxu0 0.0
    %676 = vmatmul.mubr.f32.gmra.mxu0 %v254
    %v677 = vpop.f32.mrf.mxu0
    %v678 = vadd.f32 %v145, %v677
    %v679 = vpop.f32.mrf.mxu0
    %680 = vmatprep.mubr.f32.mxu0 0.0
    %681 = vmatmul.mubr.f32.gmra.mxu0 %v257
    %v682 = vpop.f32.mrf.mxu0
    %v683 = vadd.f32 %v145, %v682
    %v684 = vpop.f32.mrf.mxu0
    %685 = vmatprep.mubr.f32.mxu0 0.0
    %686 = vmatmul.mubr.f32.gmra.mxu0 %v260
    %v687 = vpop.f32.mrf.mxu0
    %v688 = vadd.f32 %v145, %v687
    %v689 = vpop.f32.mrf.mxu0
    %690 = vmatprep.mubr.f32.mxu0 0.0
    %691 = vmatmul.mubr.f32.gmra.mxu0 %v263
    %v692 = vpop.f32.mrf.mxu0
    %v693 = vadd.f32 %v145, %v692
    %v694 = vpop.f32.mrf.mxu0
    %695 = vmatprep.mubr.f32.mxu0 0.0
    %696 = vmatmul.mubr.f32.gmra.mxu0 %v266
    %v697 = vpop.f32.mrf.mxu0
    %v698 = vadd.f32 %v145, %v697
    %v699 = vpop.f32.mrf.mxu0
    %700 = vmatprep.mubr.f32.mxu0 0.0
    %701 = vmatmul.mubr.f32.gmra.mxu0 %v269
    %v702 = vpop.f32.mrf.mxu0
    %v703 = vadd.f32 %v145, %v702
    %v704 = vpop.f32.mrf.mxu0
    %705 = vmatprep.mubr.f32.mxu0 0.0
    %706 = vmatmul.mubr.f32.gmra.mxu0 %v272
    %v707 = vpop.f32.mrf.mxu0
    %v708 = vadd.f32 %v145, %v707
    %v709 = vpop.f32.mrf.mxu0
    %710 = vmatprep.mubr.f32.mxu0 0.0
    %711 = vmatmul.mubr.f32.gmra.mxu0 %v275
    %v712 = vpop.f32.mrf.mxu0
    %v713 = vadd.f32 %v145, %v712
    %v714 = vpop.f32.mrf.mxu0
    %715 = vmatprep.mubr.f32.mxu0 0.0
    %716 = vmatmul.mubr.f32.gmra.mxu0 %v278
    %v717 = vpop.f32.mrf.mxu0
    %v718 = vadd.f32 %v145, %v717
    %v719 = vpop.f32.mrf.mxu0
    %720 = vmatprep.mubr.f32.mxu0 0.0
    %721 = vmatmul.mubr.f32.gmra.mxu0 %v281
    %v722 = vpop.f32.mrf.mxu0
    %v723 = vadd.f32 %v145, %v722
    %v724 = vpop.f32.mrf.mxu0
    %725 = vmatprep.mubr.f32.mxu0 0.0
    %726 = vmatmul.mubr.f32.gmra.mxu0 %v284
    %v727 = vpop.f32.mrf.mxu0
    %v728 = vadd.f32 %v145, %v727
    %v729 = vpop.f32.mrf.mxu0
    %730 = vmatprep.mubr.f32.mxu0 0.0
    %731 = vmatmul.mubr.f32.gmra.mxu0 %v287
    %v732 = vpop.f32.mrf.mxu0
    %v733 = vadd.f32 %v145, %v732
    %v734 = vpop.f32.mrf.mxu0
    %735 = vmatprep.mubr.f32.mxu0 0.0
    %736 = vmatmul.mubr.f32.gmra.mxu0 %v290
    %v737 = vpop.f32.mrf.mxu0
    %v738 = vadd.f32 %v145, %v737
    %v739 = vpop.f32.mrf.mxu0
    %740 = vmatprep.mubr.f32.mxu0 0.0
    %741 = vmatmul.mubr.f32.gmra.mxu0 %v293
    %v742 = vpop.f32.mrf.mxu0
    %v743 = vadd.f32 %v145, %v742
    %v744 = vpop.f32.mrf.mxu0
    %745 = vmatprep.mubr.f32.mxu0 0.0
    %746 = vmatmul.mubr.f32.gmra.mxu0 %v296
    %v747 = vpop.f32.mrf.mxu0
    %v748 = vadd.f32 %v145, %v747
    %v749 = vpop.f32.mrf.mxu0
    %750 = vmatprep.mubr.f32.mxu0 0.0
    %751 = vmatmul.mubr.f32.gmra.mxu0 %v299
    %v752 = vpop.f32.mrf.mxu0
    %v753 = vadd.f32 %v145, %v752
    %v754 = vpop.f32.mrf.mxu0
    %755 = vmatprep.mubr.f32.mxu0 0.0
    %756 = vmatmul.mubr.f32.gmra.mxu0 %v302
    %v757 = vpop.f32.mrf.mxu0
    %v758 = vadd.f32 %v145, %v757
    %v759 = vpop.f32.mrf.mxu0
    %760 = vmatprep.mubr.f32.mxu0 0.0
    %761 = vmatmul.mubr.f32.gmra.mxu0 %v305
    %v762 = vpop.f32.mrf.mxu0
    %v763 = vadd.f32 %v145, %v762
    %v764 = vpop.f32.mrf.mxu0
    %765 = vmatprep.mubr.f32.mxu0 0.0
    %766 = vmatmul.mubr.f32.gmra.mxu0 %v308
    %v767 = vpop.f32.mrf.mxu0
    %v768 = vadd.f32 %v145, %v767
    %v769 = vpop.f32.mrf.mxu0
    %770 = vmatprep.mubr.f32.mxu0 0.0
    %771 = vmatmul.mubr.f32.gmra.mxu0 %v311
    %v772 = vpop.f32.mrf.mxu0
    %v773 = vadd.f32 %v145, %v772
    %v774 = vpop.f32.mrf.mxu0
    %775 = vmatprep.mubr.f32.mxu0 0.0
    %776 = vmatmul.mubr.f32.gmra.mxu0 %v314
    %v777 = vpop.f32.mrf.mxu0
    %v778 = vadd.f32 %v145, %v777
    %v779 = vpop.f32.mrf.mxu0
    %780 = vmatprep.mubr.f32.mxu0 0.0
    %781 = vmatmul.mubr.f32.gmra.mxu0 %v317
    %v782 = vpop.f32.mrf.mxu0
    %v783 = vadd.f32 %v145, %v782
    %v784 = vpop.f32.mrf.mxu0
    %785 = vmatprep.mubr.f32.mxu0 0.0
    %786 = vmatmul.mubr.f32.gmra.mxu0 %v320
    %v787 = vpop.f32.mrf.mxu0
    %v788 = vadd.f32 %v145, %v787
    %v789 = vpop.f32.mrf.mxu0
    %790 = vmatprep.mubr.f32.mxu0 0.0
    %791 = vmatmul.mubr.f32.gmra.mxu0 %v323
    %v792 = vpop.f32.mrf.mxu0
    %v793 = vadd.f32 %v145, %v792
    %v794 = vpop.f32.mrf.mxu0
    %795 = vmatprep.mubr.f32.mxu0 0.0
    %796 = vmatmul.mubr.f32.gmra.mxu0 %v326
    %v797 = vpop.f32.mrf.mxu0
    %v798 = vadd.f32 %v145, %v797
    %v799 = vpop.f32.mrf.mxu0
    %800 = vmatprep.mubr.f32.mxu0 0.0
    %801 = vmatmul.mubr.f32.gmra.mxu0 %v329
    %v802 = vpop.f32.mrf.mxu0
    %v803 = vadd.f32 %v145, %v802
    %v804 = vpop.f32.mrf.mxu0
    %805 = vmatprep.mubr.f32.mxu0 0.0
    %806 = vmatmul.mubr.f32.gmra.mxu0 %v332
    %v807 = vpop.f32.mrf.mxu0
    %v808 = vadd.f32 %v145, %v807
    %v809 = vpop.f32.mrf.mxu0
    %810 = vmatprep.mubr.f32.mxu0 0.0
    %811 = vmatmul.mubr.f32.gmra.mxu0 %v335
    %v812 = vpop.f32.mrf.mxu0
    %v813 = vadd.f32 %v145, %v812
    %v814 = vpop.f32.mrf.mxu0
    %815 = vmatprep.mubr.f32.mxu0 0.0
    %816 = vmatmul.mubr.f32.gmra.mxu0 %v338
    %v817 = vpop.f32.mrf.mxu0
    %v818 = vadd.f32 %v145, %v817
    %v819 = vpop.f32.mrf.mxu0
    %820 = vmatprep.mubr.f32.mxu0 0.0
    %821 = vmatmul.mubr.f32.gmra.mxu0 %v341
    %v822 = vpop.f32.mrf.mxu0
    %v823 = vadd.f32 %v145, %v822
    %v824 = vpop.f32.mrf.mxu0
    %825 = vmatprep.mubr.f32.mxu0 0.0
    %826 = vmatmul.mubr.f32.gmra.mxu0 %v344
    %v827 = vpop.f32.mrf.mxu0
    %v828 = vadd.f32 %v145, %v827
    %v829 = vpop.f32.mrf.mxu0
    %830 = vmatprep.mubr.f32.mxu0 0.0
    %831 = vmatmul.mubr.f32.gmra.mxu0 %v347
    %v832 = vpop.f32.mrf.mxu0
    %v833 = vadd.f32 %v145, %v832
    %v834 = vpop.f32.mrf.mxu0
    %835 = vmatprep.mubr.f32.mxu0 0.0
    %836 = vmatmul.mubr.f32.gmra.mxu0 %v350
    %v837 = vpop.f32.mrf.mxu0
    %v838 = vadd.f32 %v145, %v837
    %v839 = vpop.f32.mrf.mxu0
    %840 = vmatprep.mubr.f32.mxu0 0.0
    %841 = vmatmul.mubr.f32.gmra.mxu0 %v353
    %v842 = vpop.f32.mrf.mxu0
    %v843 = vadd.f32 %v145, %v842
    %v844 = vpop.f32.mrf.mxu0
    %845 = vmatprep.mubr.f32.mxu0 0.0
    %846 = vmatmul.mubr.f32.gmra.mxu0 %v356
    %v847 = vpop.f32.mrf.mxu0
    %v848 = vadd.f32 %v145, %v847
    %v849 = vpop.f32.mrf.mxu0
    %850 = vmatprep.mubr.f32.mxu0 0.0
    %851 = vmatmul.mubr.f32.gmra.mxu0 %v359
    %v852 = vpop.f32.mrf.mxu0
    %v853 = vadd.f32 %v145, %v852
    %v854 = vpop.f32.mrf.mxu0
    %855 = vmatprep.mubr.f32.mxu0 0.0
    %856 = vmatmul.mubr.f32.gmra.mxu0 %v362
    %v857 = vpop.f32.mrf.mxu0
    %v858 = vadd.f32 %v145, %v857
    %v859 = vpop.f32.mrf.mxu0
    %860 = vmatprep.mubr.f32.mxu0 0.0
    %861 = vmatmul.mubr.f32.gmra.mxu0 %v365
    %v862 = vpop.f32.mrf.mxu0
    %v863 = vadd.f32 %v145, %v862
    %v864 = vpop.f32.mrf.mxu0
    %865 = vmatprep.mubr.f32.mxu0 0.0
    %866 = vmatmul.mubr.f32.gmra.mxu0 %v368
    %v867 = vpop.f32.mrf.mxu0
    %v868 = vadd.f32 %v145, %v867
    %v869 = vpop.f32.mrf.mxu0
    %870 = vmatprep.mubr.f32.mxu0 0.0
    %871 = vmatmul.mubr.f32.gmra.mxu0 %v371
    %v872 = vpop.f32.mrf.mxu0
    %v873 = vadd.f32 %v145, %v872
    %v874 = vpop.f32.mrf.mxu0
    %875 = vmatprep.mubr.f32.mxu0 0.0
    %876 = vmatmul.mubr.f32.gmra.mxu0 %v374
    %v877 = vpop.f32.mrf.mxu0
    %v878 = vadd.f32 %v145, %v877
    %v879 = vpop.f32.mrf.mxu0
    %880 = vmatprep.mubr.f32.mxu0 0.0
    %881 = vmatmul.mubr.f32.gmra.mxu0 %v377
    %v882 = vpop.f32.mrf.mxu0
    %v883 = vadd.f32 %v145, %v882
    %v884 = vpop.f32.mrf.mxu0
    %885 = vmatprep.mubr.f32.mxu0 0.0
    %886 = vmatmul.mubr.f32.gmra.mxu0 %v380
    %v887 = vpop.f32.mrf.mxu0
    %v888 = vadd.f32 %v145, %v887
    %v889 = vpop.f32.mrf.mxu0
    %890 = vmatprep.mubr.f32.mxu0 0.0
    %891 = vmatmul.mubr.f32.gmra.mxu0 %v383
    %v892 = vpop.f32.mrf.mxu0
    %v893 = vadd.f32 %v145, %v892
    %v894 = vpop.f32.mrf.mxu0
    %895 = vmatprep.mubr.f32.mxu0 0.0
    %896 = vmatmul.mubr.f32.gmra.mxu0 %v386
    %v897 = vpop.f32.mrf.mxu0
    %v898 = vadd.f32 %v145, %v897
    %v899 = vpop.f32.mrf.mxu0
    %900 = vmatprep.mubr.f32.mxu0 0.0
    %901 = vmatmul.mubr.f32.gmra.mxu0 %v389
    %v902 = vpop.f32.mrf.mxu0
    %v903 = vadd.f32 %v145, %v902
    %v904 = vpop.f32.mrf.mxu0
    %905 = vmatprep.mubr.f32.mxu0 0.0
    %906 = vmatmul.mubr.f32.gmra.mxu0 %v392
    %v907 = vpop.f32.mrf.mxu0
    %v908 = vadd.f32 %v145, %v907
    %v909 = vpop.f32.mrf.mxu0
    %910 = vmatprep.mubr.f32.mxu0 0.0
    %911 = vmatmul.mubr.f32.gmra.mxu0 %v395
    %v912 = vpop.f32.mrf.mxu0
    %v913 = vadd.f32 %v145, %v912
    %v914 = vpop.f32.mrf.mxu0
    %915 = vmatprep.mubr.f32.mxu0 0.0
    %916 = vmatmul.mubr.f32.gmra.mxu0 %v398
    %v917 = vpop.f32.mrf.mxu0
    %v918 = vadd.f32 %v145, %v917
    %v919 = vpop.f32.mrf.mxu0
    %920 = vmatprep.mubr.f32.mxu0 0.0
    %921 = vmatmul.mubr.f32.gmra.mxu0 %v401
    %v922 = vpop.f32.mrf.mxu0
    %v923 = vadd.f32 %v145, %v922
    %v924 = vpop.f32.mrf.mxu0
    %925 = vmatprep.mubr.f32.mxu0 0.0
    %926 = vmatmul.mubr.f32.gmra.mxu0 %v404
    %v927 = vpop.f32.mrf.mxu0
    %v928 = vadd.f32 %v145, %v927
    %v929 = vpop.f32.mrf.mxu0
    %930 = vmatprep.mubr.f32.mxu0 0.0
    %931 = vmatmul.mubr.f32.gmra.mxu0 %v407
    %v932 = vpop.f32.mrf.mxu0
    %v933 = vadd.f32 %v145, %v932
    %v934 = vpop.f32.mrf.mxu0
    %935 = vmatprep.mubr.f32.mxu0 0.0
    %936 = vmatmul.mubr.f32.gmra.mxu0 %v410
    %v937 = vpop.f32.mrf.mxu0
    %v938 = vadd.f32 %v145, %v937
    %v939 = vpop.f32.mrf.mxu0
    %940 = vmatprep.mubr.f32.mxu0 0.0
    %941 = vmatmul.mubr.f32.gmra.mxu0 %v413
    %v942 = vpop.f32.mrf.mxu0
    %v943 = vadd.f32 %v145, %v942
    %v944 = vpop.f32.mrf.mxu0
    %945 = vmatprep.mubr.f32.mxu0 0.0
    %946 = vmatmul.mubr.f32.gmra.mxu0 %v416
    %v947 = vpop.f32.mrf.mxu0
    %v948 = vadd.f32 %v145, %v947
    %v949 = vpop.f32.mrf.mxu0
    %950 = vmatprep.mubr.f32.mxu0 0.0
    %951 = vmatmul.mubr.f32.gmra.mxu0 %v419
    %v952 = vpop.f32.mrf.mxu0
    %v953 = vadd.f32 %v145, %v952
    %v954 = vpop.f32.mrf.mxu0
    %955 = vmatprep.mubr.f32.mxu0 0.0
    %956 = vmatmul.mubr.f32.gmra.mxu0 %v422
    %v957 = vpop.f32.mrf.mxu0
    %v958 = vadd.f32 %v145, %v957
    %v959 = vpop.f32.mrf.mxu0
    %960 = vmatprep.mubr.f32.mxu0 0.0
    %961 = vmatmul.mubr.f32.gmra.mxu0 %v425
    %v962 = vpop.f32.mrf.mxu0
    %v963 = vadd.f32 %v145, %v962
    %v964 = vpop.f32.mrf.mxu0
    %965 = vmatprep.mubr.f32.mxu0 0.0
    %966 = vmatmul.mubr.f32.gmra.mxu0 %v428
    %v967 = vpop.f32.mrf.mxu0
    %v968 = vadd.f32 %v145, %v967
    %v969 = vpop.f32.mrf.mxu0
    %970 = vmatprep.mubr.f32.mxu0 0.0
    %971 = vmatmul.mubr.f32.gmra.mxu0 %v431
    %v972 = vpop.f32.mrf.mxu0
    %v973 = vadd.f32 %v145, %v972
    %v974 = vpop.f32.mrf.mxu0
    %975 = vmatprep.mubr.f32.mxu0 0.0
    %976 = vmatmul.mubr.f32.gmra.mxu0 %v434
    %v977 = vpop.f32.mrf.mxu0
    %v978 = vadd.f32 %v145, %v977
    %v979 = vpop.f32.mrf.mxu0
    %980 = vdwg.mxu0
    %v981 = vmul.f32 %v503, 0.01
    %v982 = vmul.f32 %v508, 0.01
    %v983 = vmul.f32 %v513, 0.01
    %v984 = vmul.f32 %v518, 0.01
    %v985 = vmul.f32 %v523, 0.01
    %v986 = vmul.f32 %v528, 0.01
    %v987 = vmul.f32 %v533, 0.01
    %v988 = vmul.f32 %v538, 0.01
    %v989 = vmul.f32 %v543, 0.01
    %v990 = vmul.f32 %v548, 0.01
    %v991 = vmul.f32 %v553, 0.01
    %v992 = vmul.f32 %v558, 0.01
    %v993 = vmul.f32 %v563, 0.01
    %v994 = vmul.f32 %v568, 0.01
    %v995 = vmul.f32 %v573, 0.01
    %v996 = vmul.f32 %v578, 0.01
    %v997 = vmul.f32 %v583, 0.01
    %v998 = vmul.f32 %v588, 0.01
    %v999 = vmul.f32 %v593, 0.01
    %v1000 = vmul.f32 %v598, 0.01
    %v1001 = vmul.f32 %v603, 0.01
    %v1002 = vmul.f32 %v608, 0.01
    %v1003 = vmul.f32 %v613, 0.01
    %v1004 = vmul.f32 %v618, 0.01
    %v1005 = vmul.f32 %v623, 0.01
    %v1006 = vmul.f32 %v628, 0.01
    %v1007 = vmul.f32 %v633, 0.01
    %v1008 = vmul.f32 %v638, 0.01
    %v1009 = vmul.f32 %v643, 0.01
    %v1010 = vmul.f32 %v648, 0.01
    %v1011 = vmul.f32 %v653, 0.01
    %v1012 = vmul.f32 %v658, 0.01
    %v1013 = vmul.f32 %v663, 0.01
    %v1014 = vmul.f32 %v668, 0.01
    %v1015 = vmul.f32 %v673, 0.01
    %v1016 = vmul.f32 %v678, 0.01
    %v1017 = vmul.f32 %v683, 0.01
    %v1018 = vmul.f32 %v688, 0.01
    %v1019 = vmul.f32 %v693, 0.01
    %v1020 = vmul.f32 %v698, 0.01
    %v1021 = vmul.f32 %v703, 0.01
    %v1022 = vmul.f32 %v708, 0.01
    %v1023 = vmul.f32 %v713, 0.01
    %v1024 = vmul.f32 %v718, 0.01
    %v1025 = vmul.f32 %v723, 0.01
    %v1026 = vmul.f32 %v728, 0.01
    %v1027 = vmul.f32 %v733, 0.01
    %v1028 = vmul.f32 %v738, 0.01
    %v1029 = vmul.f32 %v743, 0.01
    %v1030 = vmul.f32 %v748, 0.01
    %v1031 = vmul.f32 %v753, 0.01
    %v1032 = vmul.f32 %v758, 0.01
    %v1033 = vmul.f32 %v763, 0.01
    %v1034 = vmul.f32 %v768, 0.01
    %v1035 = vmul.f32 %v773, 0.01
    %v1036 = vmul.f32 %v778, 0.01
    %v1037 = vmul.f32 %v783, 0.01
    %v1038 = vmul.f32 %v788, 0.01
    %v1039 = vmul.f32 %v793, 0.01
    %v1040 = vmul.f32 %v798, 0.01
    %v1041 = vmul.f32 %v803, 0.01
    %v1042 = vmul.f32 %v808, 0.01
    %v1043 = vmul.f32 %v813, 0.01
    %v1044 = vmul.f32 %v818, 0.01
    %v1045 = vmul.f32 %v823, 0.01
    %v1046 = vmul.f32 %v828, 0.01
    %v1047 = vmul.f32 %v833, 0.01
    %v1048 = vmul.f32 %v838, 0.01
    %v1049 = vmul.f32 %v843, 0.01
    %v1050 = vmul.f32 %v848, 0.01
    %v1051 = vmul.f32 %v853, 0.01
    %v1052 = vmul.f32 %v858, 0.01
    %v1053 = vmul.f32 %v863, 0.01
    %v1054 = vmul.f32 %v868, 0.01
    %v1055 = vmul.f32 %v873, 0.01
    %v1056 = vmul.f32 %v878, 0.01
    %v1057 = vmul.f32 %v883, 0.01
    %v1058 = vmul.f32 %v888, 0.01
    %v1059 = vmul.f32 %v893, 0.01
    %v1060 = vmul.f32 %v898, 0.01
    %v1061 = vmul.f32 %v903, 0.01
    %v1062 = vmul.f32 %v908, 0.01
    %v1063 = vmul.f32 %v913, 0.01
    %v1064 = vmul.f32 %v918, 0.01
    %v1065 = vmul.f32 %v923, 0.01
    %v1066 = vmul.f32 %v928, 0.01
    %v1067 = vmul.f32 %v933, 0.01
    %v1068 = vmul.f32 %v938, 0.01
    %v1069 = vmul.f32 %v943, 0.01
    %v1070 = vmul.f32 %v948, 0.01
    %v1071 = vmul.f32 %v953, 0.01
    %v1072 = vmul.f32 %v958, 0.01
    %v1073 = vmul.f32 %v963, 0.01
    %v1074 = vmul.f32 %v968, 0.01
    %v1075 = vmul.f32 %v973, 0.01
    %v1076 = vmul.f32 %v978, 0.01
    %v1077 = vmax.f32 %v503, %v981
    %v1078 = vmax.f32 %v508, %v982
    %v1079 = vmax.f32 %v513, %v983
    %v1080 = vmax.f32 %v518, %v984
    %v1081 = vmax.f32 %v523, %v985
    %v1082 = vmax.f32 %v528, %v986
    %v1083 = vmax.f32 %v533, %v987
    %v1084 = vmax.f32 %v538, %v988
    %v1085 = vmax.f32 %v543, %v989
    %v1086 = vmax.f32 %v548, %v990
    %v1087 = vmax.f32 %v553, %v991
    %v1088 = vmax.f32 %v558, %v992
    %v1089 = vmax.f32 %v563, %v993
    %v1090 = vmax.f32 %v568, %v994
    %v1091 = vmax.f32 %v573, %v995
    %v1092 = vmax.f32 %v578, %v996
    %v1093 = vmax.f32 %v583, %v997
    %v1094 = vmax.f32 %v588, %v998
    %v1095 = vmax.f32 %v593, %v999
    %v1096 = vmax.f32 %v598, %v1000
    %v1097 = vmax.f32 %v603, %v1001
    %v1098 = vmax.f32 %v608, %v1002
    %v1099 = vmax.f32 %v613, %v1003
    %v1100 = vmax.f32 %v618, %v1004
    %v1101 = vmax.f32 %v623, %v1005
    %v1102 = vmax.f32 %v628, %v1006
    %v1103 = vmax.f32 %v633, %v1007
    %v1104 = vmax.f32 %v638, %v1008
    %v1105 = vmax.f32 %v643, %v1009
    %v1106 = vmax.f32 %v648, %v1010
    %v1107 = vmax.f32 %v653, %v1011
    %v1108 = vmax.f32 %v658, %v1012
    %v1109 = vmax.f32 %v663, %v1013
    %v1110 = vmax.f32 %v668, %v1014
    %v1111 = vmax.f32 %v673, %v1015
    %v1112 = vmax.f32 %v678, %v1016
    %v1113 = vmax.f32 %v683, %v1017
    %v1114 = vmax.f32 %v688, %v1018
    %v1115 = vmax.f32 %v693, %v1019
    %v1116 = vmax.f32 %v698, %v1020
    %v1117 = vmax.f32 %v703, %v1021
    %v1118 = vmax.f32 %v708, %v1022
    %v1119 = vmax.f32 %v713, %v1023
    %v1120 = vmax.f32 %v718, %v1024
    %v1121 = vmax.f32 %v723, %v1025
    %v1122 = vmax.f32 %v728, %v1026
    %v1123 = vmax.f32 %v733, %v1027
    %v1124 = vmax.f32 %v738, %v1028
    %v1125 = vmax.f32 %v743, %v1029
    %v1126 = vmax.f32 %v748, %v1030
    %v1127 = vmax.f32 %v753, %v1031
    %v1128 = vmax.f32 %v758, %v1032
    %v1129 = vmax.f32 %v763, %v1033
    %v1130 = vmax.f32 %v768, %v1034
    %v1131 = vmax.f32 %v773, %v1035
    %v1132 = vmax.f32 %v778, %v1036
    %v1133 = vmax.f32 %v783, %v1037
    %v1134 = vmax.f32 %v788, %v1038
    %v1135 = vmax.f32 %v793, %v1039
    %v1136 = vmax.f32 %v798, %v1040
    %v1137 = vmax.f32 %v803, %v1041
    %v1138 = vmax.f32 %v808, %v1042
    %v1139 = vmax.f32 %v813, %v1043
    %v1140 = vmax.f32 %v818, %v1044
    %v1141 = vmax.f32 %v823, %v1045
    %v1142 = vmax.f32 %v828, %v1046
    %v1143 = vmax.f32 %v833, %v1047
    %v1144 = vmax.f32 %v838, %v1048
    %v1145 = vmax.f32 %v843, %v1049
    %v1146 = vmax.f32 %v848, %v1050
    %v1147 = vmax.f32 %v853, %v1051
    %v1148 = vmax.f32 %v858, %v1052
    %v1149 = vmax.f32 %v863, %v1053
    %v1150 = vmax.f32 %v868, %v1054
    %v1151 = vmax.f32 %v873, %v1055
    %v1152 = vmax.f32 %v878, %v1056
    %v1153 = vmax.f32 %v883, %v1057
    %v1154 = vmax.f32 %v888, %v1058
    %v1155 = vmax.f32 %v893, %v1059
    %v1156 = vmax.f32 %v898, %v1060
    %v1157 = vmax.f32 %v903, %v1061
    %v1158 = vmax.f32 %v908, %v1062
    %v1159 = vmax.f32 %v913, %v1063
    %v1160 = vmax.f32 %v918, %v1064
    %v1161 = vmax.f32 %v923, %v1065
    %v1162 = vmax.f32 %v928, %v1066
    %v1163 = vmax.f32 %v933, %v1067
    %v1164 = vmax.f32 %v938, %v1068
    %v1165 = vmax.f32 %v943, %v1069
    %v1166 = vmax.f32 %v948, %v1070
    %v1167 = vmax.f32 %v953, %v1071
    %v1168 = vmax.f32 %v958, %v1072
    %v1169 = vmax.f32 %v963, %v1073
    %v1170 = vmax.f32 %v968, %v1074
    %v1171 = vmax.f32 %v973, %v1075
    %v1172 = vmax.f32 %v978, %v1076
    %vm1173 = vcmask 261120
    %1174 = vst.msk [vmem:[#allocation2] sm:$0xff] %vm1173, %v1077
    %1175 = vst.msk [vmem:[#allocation2 + $0x8] sm:$0xff] %vm1173, %v1078
    %1176 = vst.msk [vmem:[#allocation2 + $0x10] sm:$0xff] %vm1173, %v1079
    %1177 = vst.msk [vmem:[#allocation2 + $0x18] sm:$0xff] %vm1173, %v1080
    %1178 = vst.msk [vmem:[#allocation2 + $0x20] sm:$0xff] %vm1173, %v1081
    %1179 = vst.msk [vmem:[#allocation2 + $0x28] sm:$0xff] %vm1173, %v1082
    %1180 = vst.msk [vmem:[#allocation2 + $0x30] sm:$0xff] %vm1173, %v1083
    %1181 = vst.msk [vmem:[#allocation2 + $0x38] sm:$0xff] %vm1173, %v1084
    %1182 = vst.msk [vmem:[#allocation2 + $0x40] sm:$0xff] %vm1173, %v1085
    %1183 = vst.msk [vmem:[#allocation2 + $0x48] sm:$0xff] %vm1173, %v1086
    %1184 = vst.msk [vmem:[#allocation2 + $0x50] sm:$0xff] %vm1173, %v1087
    %1185 = vst.msk [vmem:[#allocation2 + $0x58] sm:$0xff] %vm1173, %v1088
    %1186 = vst.msk [vmem:[#allocation2 + $0x60] sm:$0xff] %vm1173, %v1089
    %1187 = vst.msk [vmem:[#allocation2 + $0x68] sm:$0xff] %vm1173, %v1090
    %1188 = vst.msk [vmem:[#allocation2 + $0x70] sm:$0xff] %vm1173, %v1091
    %1189 = vst.msk [vmem:[#allocation2 + $0x78] sm:$0xff] %vm1173, %v1092
    %1190 = vst.msk [vmem:[#allocation2 + $0x80] sm:$0xff] %vm1173, %v1093
    %1191 = vst.msk [vmem:[#allocation2 + $0x88] sm:$0xff] %vm1173, %v1094
    %1192 = vst.msk [vmem:[#allocation2 + $0x90] sm:$0xff] %vm1173, %v1095
    %1193 = vst.msk [vmem:[#allocation2 + $0x98] sm:$0xff] %vm1173, %v1096
    %1194 = vst.msk [vmem:[#allocation2 + $0xa0] sm:$0xff] %vm1173, %v1097
    %1195 = vst.msk [vmem:[#allocation2 + $0xa8] sm:$0xff] %vm1173, %v1098
    %1196 = vst.msk [vmem:[#allocation2 + $0xb0] sm:$0xff] %vm1173, %v1099
    %1197 = vst.msk [vmem:[#allocation2 + $0xb8] sm:$0xff] %vm1173, %v1100
    %1198 = vst.msk [vmem:[#allocation2 + $0xc0] sm:$0xff] %vm1173, %v1101
    %1199 = vst.msk [vmem:[#allocation2 + $0xc8] sm:$0xff] %vm1173, %v1102
    %1200 = vst.msk [vmem:[#allocation2 + $0xd0] sm:$0xff] %vm1173, %v1103
    %1201 = vst.msk [vmem:[#allocation2 + $0xd8] sm:$0xff] %vm1173, %v1104
    %1202 = vst.msk [vmem:[#allocation2 + $0xe0] sm:$0xff] %vm1173, %v1105
    %1203 = vst.msk [vmem:[#allocation2 + $0xe8] sm:$0xff] %vm1173, %v1106
    %1204 = vst.msk [vmem:[#allocation2 + $0xf0] sm:$0xff] %vm1173, %v1107
    %1205 = vst.msk [vmem:[#allocation2 + $0xf8] sm:$0xff] %vm1173, %v1108
    %1206 = vst.msk [vmem:[#allocation2 + $0x100] sm:$0xff] %vm1173, %v1109
    %1207 = vst.msk [vmem:[#allocation2 + $0x108] sm:$0xff] %vm1173, %v1110
    %1208 = vst.msk [vmem:[#allocation2 + $0x110] sm:$0xff] %vm1173, %v1111
    %1209 = vst.msk [vmem:[#allocation2 + $0x118] sm:$0xff] %vm1173, %v1112
    %1210 = vst.msk [vmem:[#allocation2 + $0x120] sm:$0xff] %vm1173, %v1113
    %1211 = vst.msk [vmem:[#allocation2 + $0x128] sm:$0xff] %vm1173, %v1114
    %1212 = vst.msk [vmem:[#allocation2 + $0x130] sm:$0xff] %vm1173, %v1115
    %1213 = vst.msk [vmem:[#allocation2 + $0x138] sm:$0xff] %vm1173, %v1116
    %1214 = vst.msk [vmem:[#allocation2 + $0x140] sm:$0xff] %vm1173, %v1117
    %1215 = vst.msk [vmem:[#allocation2 + $0x148] sm:$0xff] %vm1173, %v1118
    %1216 = vst.msk [vmem:[#allocation2 + $0x150] sm:$0xff] %vm1173, %v1119
    %1217 = vst.msk [vmem:[#allocation2 + $0x158] sm:$0xff] %vm1173, %v1120
    %1218 = vst.msk [vmem:[#allocation2 + $0x160] sm:$0xff] %vm1173, %v1121
    %1219 = vst.msk [vmem:[#allocation2 + $0x168] sm:$0xff] %vm1173, %v1122
    %1220 = vst.msk [vmem:[#allocation2 + $0x170] sm:$0xff] %vm1173, %v1123
    %1221 = vst.msk [vmem:[#allocation2 + $0x178] sm:$0xff] %vm1173, %v1124
    %1222 = vst.msk [vmem:[#allocation2 + $0x180] sm:$0xff] %vm1173, %v1125
    %1223 = vst.msk [vmem:[#allocation2 + $0x188] sm:$0xff] %vm1173, %v1126
    %1224 = vst.msk [vmem:[#allocation2 + $0x190] sm:$0xff] %vm1173, %v1127
    %1225 = vst.msk [vmem:[#allocation2 + $0x198] sm:$0xff] %vm1173, %v1128
    %1226 = vst.msk [vmem:[#allocation2 + $0x1a0] sm:$0xff] %vm1173, %v1129
    %1227 = vst.msk [vmem:[#allocation2 + $0x1a8] sm:$0xff] %vm1173, %v1130
    %1228 = vst.msk [vmem:[#allocation2 + $0x1b0] sm:$0xff] %vm1173, %v1131
    %1229 = vst.msk [vmem:[#allocation2 + $0x1b8] sm:$0xff] %vm1173, %v1132
    %1230 = vst.msk [vmem:[#allocation2 + $0x1c0] sm:$0xff] %vm1173, %v1133
    %1231 = vst.msk [vmem:[#allocation2 + $0x1c8] sm:$0xff] %vm1173, %v1134
    %1232 = vst.msk [vmem:[#allocation2 + $0x1d0] sm:$0xff] %vm1173, %v1135
    %1233 = vst.msk [vmem:[#allocation2 + $0x1d8] sm:$0xff] %vm1173, %v1136
    %1234 = vst.msk [vmem:[#allocation2 + $0x1e0] sm:$0xff] %vm1173, %v1137
    %1235 = vst.msk [vmem:[#allocation2 + $0x1e8] sm:$0xff] %vm1173, %v1138
    %1236 = vst.msk [vmem:[#allocation2 + $0x1f0] sm:$0xff] %vm1173, %v1139
    %1237 = vst.msk [vmem:[#allocation2 + $0x1f8] sm:$0xff] %vm1173, %v1140
    %1238 = vst.msk [vmem:[#allocation2 + $0x200] sm:$0xff] %vm1173, %v1141
    %1239 = vst.msk [vmem:[#allocation2 + $0x208] sm:$0xff] %vm1173, %v1142
    %1240 = vst.msk [vmem:[#allocation2 + $0x210] sm:$0xff] %vm1173, %v1143
    %1241 = vst.msk [vmem:[#allocation2 + $0x218] sm:$0xff] %vm1173, %v1144
    %1242 = vst.msk [vmem:[#allocation2 + $0x220] sm:$0xff] %vm1173, %v1145
    %1243 = vst.msk [vmem:[#allocation2 + $0x228] sm:$0xff] %vm1173, %v1146
    %1244 = vst.msk [vmem:[#allocation2 + $0x230] sm:$0xff] %vm1173, %v1147
    %1245 = vst.msk [vmem:[#allocation2 + $0x238] sm:$0xff] %vm1173, %v1148
    %1246 = vst.msk [vmem:[#allocation2 + $0x240] sm:$0xff] %vm1173, %v1149
    %1247 = vst.msk [vmem:[#allocation2 + $0x248] sm:$0xff] %vm1173, %v1150
    %1248 = vst.msk [vmem:[#allocation2 + $0x250] sm:$0xff] %vm1173, %v1151
    %1249 = vst.msk [vmem:[#allocation2 + $0x258] sm:$0xff] %vm1173, %v1152
    %1250 = vst.msk [vmem:[#allocation2 + $0x260] sm:$0xff] %vm1173, %v1153
    %1251 = vst.msk [vmem:[#allocation2 + $0x268] sm:$0xff] %vm1173, %v1154
    %1252 = vst.msk [vmem:[#allocation2 + $0x270] sm:$0xff] %vm1173, %v1155
    %1253 = vst.msk [vmem:[#allocation2 + $0x278] sm:$0xff] %vm1173, %v1156
    %1254 = vst.msk [vmem:[#allocation2 + $0x280] sm:$0xff] %vm1173, %v1157
    %1255 = vst.msk [vmem:[#allocation2 + $0x288] sm:$0xff] %vm1173, %v1158
    %1256 = vst.msk [vmem:[#allocation2 + $0x290] sm:$0xff] %vm1173, %v1159
    %1257 = vst.msk [vmem:[#allocation2 + $0x298] sm:$0xff] %vm1173, %v1160
    %1258 = vst.msk [vmem:[#allocation2 + $0x2a0] sm:$0xff] %vm1173, %v1161
    %1259 = vst.msk [vmem:[#allocation2 + $0x2a8] sm:$0xff] %vm1173, %v1162
    %1260 = vst.msk [vmem:[#allocation2 + $0x2b0] sm:$0xff] %vm1173, %v1163
    %1261 = vst.msk [vmem:[#allocation2 + $0x2b8] sm:$0xff] %vm1173, %v1164
    %1262 = vst.msk [vmem:[#allocation2 + $0x2c0] sm:$0xff] %vm1173, %v1165
    %1263 = vst.msk [vmem:[#allocation2 + $0x2c8] sm:$0xff] %vm1173, %v1166
    %1264 = vst.msk [vmem:[#allocation2 + $0x2d0] sm:$0xff] %vm1173, %v1167
    %1265 = vst.msk [vmem:[#allocation2 + $0x2d8] sm:$0xff] %vm1173, %v1168
    %1266 = vst.msk [vmem:[#allocation2 + $0x2e0] sm:$0xff] %vm1173, %v1169
    %1267 = vst.msk [vmem:[#allocation2 + $0x2e8] sm:$0xff] %vm1173, %v1170
    %1268 = vst.msk [vmem:[#allocation2 + $0x2f0] sm:$0xff] %vm1173, %v1171
    %1269 = vst.msk [vmem:[#allocation2 + $0x2f8] sm:$0xff] %vm1173, %v1172
    %v1270 = vld [vmem:[#allocation2] ss:$2 sm:$0xff]
    %s1271 = scalar_lea.vmem [#allocation2], 16
    %v1272 = vld [vmem:[%s1271] ss:$2 sm:$0xff]
    %s1273 = scalar_lea.vmem [#allocation2], 32
    %v1274 = vld [vmem:[%s1273] ss:$2 sm:$0xff]
    %s1275 = scalar_lea.vmem [#allocation2], 48
    %v1276 = vld [vmem:[%s1275] ss:$2 sm:$0xff]
    %s1277 = scalar_lea.vmem [#allocation2], 64
    %v1278 = vld [vmem:[%s1277] ss:$2 sm:$0xff]
    %s1279 = scalar_lea.vmem [#allocation2], 80
    %v1280 = vld [vmem:[%s1279] ss:$2 sm:$0xff]
    %s1281 = scalar_lea.vmem [#allocation2], 96
    %v1282 = vld [vmem:[%s1281] ss:$2 sm:$0xff]
    %s1283 = scalar_lea.vmem [#allocation2], 112
    %v1284 = vld [vmem:[%s1283] ss:$2 sm:$0xff]
    %s1285 = scalar_lea.vmem [#allocation2], 128
    %v1286 = vld [vmem:[%s1285] ss:$2 sm:$0xff]
    %s1287 = scalar_lea.vmem [#allocation2], 144
    %v1288 = vld [vmem:[%s1287] ss:$2 sm:$0xff]
    %s1289 = scalar_lea.vmem [#allocation2], 160
    %v1290 = vld [vmem:[%s1289] ss:$2 sm:$0xff]
    %s1291 = scalar_lea.vmem [#allocation2], 176
    %v1292 = vld [vmem:[%s1291] ss:$2 sm:$0xff]
    %s1293 = scalar_lea.vmem [#allocation2], 192
    %v1294 = vld [vmem:[%s1293] ss:$2 sm:$0xff]
    %s1295 = scalar_lea.vmem [#allocation2], 208
    %v1296 = vld [vmem:[%s1295] ss:$2 sm:$0xff]
    %s1297 = scalar_lea.vmem [#allocation2], 224
    %v1298 = vld [vmem:[%s1297] ss:$2 sm:$0xff]
    %s1299 = scalar_lea.vmem [#allocation2], 240
    %v1300 = vld [vmem:[%s1299] ss:$2 sm:$0xff]
    %s1301 = scalar_lea.vmem [#allocation2], 256
    %v1302 = vld [vmem:[%s1301] ss:$2 sm:$0xff]
    %s1303 = scalar_lea.vmem [#allocation2], 272
    %v1304 = vld [vmem:[%s1303] ss:$2 sm:$0xff]
    %s1305 = scalar_lea.vmem [#allocation2], 288
    %v1306 = vld [vmem:[%s1305] ss:$2 sm:$0xff]
    %s1307 = scalar_lea.vmem [#allocation2], 304
    %v1308 = vld [vmem:[%s1307] ss:$2 sm:$0xff]
    %s1309 = scalar_lea.vmem [#allocation2], 320
    %v1310 = vld [vmem:[%s1309] ss:$2 sm:$0xff]
    %s1311 = scalar_lea.vmem [#allocation2], 336
    %v1312 = vld [vmem:[%s1311] ss:$2 sm:$0xff]
    %s1313 = scalar_lea.vmem [#allocation2], 352
    %v1314 = vld [vmem:[%s1313] ss:$2 sm:$0xff]
    %s1315 = scalar_lea.vmem [#allocation2], 368
    %v1316 = vld [vmem:[%s1315] ss:$2 sm:$0xff]
    %s1317 = scalar_lea.vmem [#allocation2], 384
    %v1318 = vld [vmem:[%s1317] ss:$2 sm:$0xff]
    %s1319 = scalar_lea.vmem [#allocation2], 400
    %v1320 = vld [vmem:[%s1319] ss:$2 sm:$0xff]
    %s1321 = scalar_lea.vmem [#allocation2], 416
    %v1322 = vld [vmem:[%s1321] ss:$2 sm:$0xff]
    %s1323 = scalar_lea.vmem [#allocation2], 432
    %v1324 = vld [vmem:[%s1323] ss:$2 sm:$0xff]
    %s1325 = scalar_lea.vmem [#allocation2], 448
    %v1326 = vld [vmem:[%s1325] ss:$2 sm:$0xff]
    %s1327 = scalar_lea.vmem [#allocation2], 464
    %v1328 = vld [vmem:[%s1327] ss:$2 sm:$0xff]
    %s1329 = scalar_lea.vmem [#allocation2], 480
    %v1330 = vld [vmem:[%s1329] ss:$2 sm:$0xff]
    %s1331 = scalar_lea.vmem [#allocation2], 496
    %v1332 = vld [vmem:[%s1331] ss:$2 sm:$0xff]
    %s1333 = scalar_lea.vmem [#allocation2], 512
    %v1334 = vld [vmem:[%s1333] ss:$2 sm:$0xff]
    %s1335 = scalar_lea.vmem [#allocation2], 528
    %v1336 = vld [vmem:[%s1335] ss:$2 sm:$0xff]
    %s1337 = scalar_lea.vmem [#allocation2], 544
    %v1338 = vld [vmem:[%s1337] ss:$2 sm:$0xff]
    %s1339 = scalar_lea.vmem [#allocation2], 560
    %v1340 = vld [vmem:[%s1339] ss:$2 sm:$0xff]
    %s1341 = scalar_lea.vmem [#allocation2], 576
    %v1342 = vld [vmem:[%s1341] ss:$2 sm:$0xff]
    %s1343 = scalar_lea.vmem [#allocation2], 592
    %v1344 = vld [vmem:[%s1343] ss:$2 sm:$0xff]
    %s1345 = scalar_lea.vmem [#allocation2], 608
    %v1346 = vld [vmem:[%s1345] ss:$2 sm:$0xff]
    %s1347 = scalar_lea.vmem [#allocation2], 624
    %v1348 = vld [vmem:[%s1347] ss:$2 sm:$0xff]
    %s1349 = scalar_lea.vmem [#allocation2], 640
    %v1350 = vld [vmem:[%s1349] ss:$2 sm:$0xff]
    %s1351 = scalar_lea.vmem [#allocation2], 656
    %v1352 = vld [vmem:[%s1351] ss:$2 sm:$0xff]
    %s1353 = scalar_lea.vmem [#allocation2], 672
    %v1354 = vld [vmem:[%s1353] ss:$2 sm:$0xff]
    %s1355 = scalar_lea.vmem [#allocation2], 688
    %v1356 = vld [vmem:[%s1355] ss:$2 sm:$0xff]
    %s1357 = scalar_lea.vmem [#allocation2], 704
    %v1358 = vld [vmem:[%s1357] ss:$2 sm:$0xff]
    %s1359 = scalar_lea.vmem [#allocation2], 720
    %v1360 = vld [vmem:[%s1359] ss:$2 sm:$0xff]
    %s1361 = scalar_lea.vmem [#allocation2], 736
    %v1362 = vld [vmem:[%s1361] ss:$2 sm:$0xff]
    %s1363 = scalar_lea.vmem [#allocation2], 752
    %v1364 = vld [vmem:[%s1363] ss:$2 sm:$0xff]
    %s1365 = scalar_lea.vmem [#allocation2], 1
    %v1366 = vld [vmem:[%s1365] ss:$2 sm:$0xff]
    %s1367 = scalar_lea.vmem [#allocation2], 17
    %v1368 = vld [vmem:[%s1367] ss:$2 sm:$0xff]
    %s1369 = scalar_lea.vmem [#allocation2], 33
    %v1370 = vld [vmem:[%s1369] ss:$2 sm:$0xff]
    %s1371 = scalar_lea.vmem [#allocation2], 49
    %v1372 = vld [vmem:[%s1371] ss:$2 sm:$0xff]
    %s1373 = scalar_lea.vmem [#allocation2], 65
    %v1374 = vld [vmem:[%s1373] ss:$2 sm:$0xff]
    %s1375 = scalar_lea.vmem [#allocation2], 81
    %v1376 = vld [vmem:[%s1375] ss:$2 sm:$0xff]
    %s1377 = scalar_lea.vmem [#allocation2], 97
    %v1378 = vld [vmem:[%s1377] ss:$2 sm:$0xff]
    %s1379 = scalar_lea.vmem [#allocation2], 113
    %v1380 = vld [vmem:[%s1379] ss:$2 sm:$0xff]
    %s1381 = scalar_lea.vmem [#allocation2], 129
    %v1382 = vld [vmem:[%s1381] ss:$2 sm:$0xff]
    %s1383 = scalar_lea.vmem [#allocation2], 145
    %v1384 = vld [vmem:[%s1383] ss:$2 sm:$0xff]
    %s1385 = scalar_lea.vmem [#allocation2], 161
    %v1386 = vld [vmem:[%s1385] ss:$2 sm:$0xff]
    %s1387 = scalar_lea.vmem [#allocation2], 177
    %v1388 = vld [vmem:[%s1387] ss:$2 sm:$0xff]
    %s1389 = scalar_lea.vmem [#allocation2], 193
    %v1390 = vld [vmem:[%s1389] ss:$2 sm:$0xff]
    %s1391 = scalar_lea.vmem [#allocation2], 209
    %v1392 = vld [vmem:[%s1391] ss:$2 sm:$0xff]
    %s1393 = scalar_lea.vmem [#allocation2], 225
    %v1394 = vld [vmem:[%s1393] ss:$2 sm:$0xff]
    %s1395 = scalar_lea.vmem [#allocation2], 241
    %v1396 = vld [vmem:[%s1395] ss:$2 sm:$0xff]
    %s1397 = scalar_lea.vmem [#allocation2], 257
    %v1398 = vld [vmem:[%s1397] ss:$2 sm:$0xff]
    %s1399 = scalar_lea.vmem [#allocation2], 273
    %v1400 = vld [vmem:[%s1399] ss:$2 sm:$0xff]
    %s1401 = scalar_lea.vmem [#allocation2], 289
    %v1402 = vld [vmem:[%s1401] ss:$2 sm:$0xff]
    %s1403 = scalar_lea.vmem [#allocation2], 305
    %v1404 = vld [vmem:[%s1403] ss:$2 sm:$0xff]
    %s1405 = scalar_lea.vmem [#allocation2], 321
    %v1406 = vld [vmem:[%s1405] ss:$2 sm:$0xff]
    %s1407 = scalar_lea.vmem [#allocation2], 337
    %v1408 = vld [vmem:[%s1407] ss:$2 sm:$0xff]
    %s1409 = scalar_lea.vmem [#allocation2], 353
    %v1410 = vld [vmem:[%s1409] ss:$2 sm:$0xff]
    %s1411 = scalar_lea.vmem [#allocation2], 369
    %v1412 = vld [vmem:[%s1411] ss:$2 sm:$0xff]
    %s1413 = scalar_lea.vmem [#allocation2], 385
    %v1414 = vld [vmem:[%s1413] ss:$2 sm:$0xff]
    %s1415 = scalar_lea.vmem [#allocation2], 401
    %v1416 = vld [vmem:[%s1415] ss:$2 sm:$0xff]
    %s1417 = scalar_lea.vmem [#allocation2], 417
    %v1418 = vld [vmem:[%s1417] ss:$2 sm:$0xff]
    %s1419 = scalar_lea.vmem [#allocation2], 433
    %v1420 = vld [vmem:[%s1419] ss:$2 sm:$0xff]
    %s1421 = scalar_lea.vmem [#allocation2], 449
    %v1422 = vld [vmem:[%s1421] ss:$2 sm:$0xff]
    %s1423 = scalar_lea.vmem [#allocation2], 465
    %v1424 = vld [vmem:[%s1423] ss:$2 sm:$0xff]
    %s1425 = scalar_lea.vmem [#allocation2], 481
    %v1426 = vld [vmem:[%s1425] ss:$2 sm:$0xff]
    %s1427 = scalar_lea.vmem [#allocation2], 497
    %v1428 = vld [vmem:[%s1427] ss:$2 sm:$0xff]
    %s1429 = scalar_lea.vmem [#allocation2], 513
    %v1430 = vld [vmem:[%s1429] ss:$2 sm:$0xff]
    %s1431 = scalar_lea.vmem [#allocation2], 529
    %v1432 = vld [vmem:[%s1431] ss:$2 sm:$0xff]
    %s1433 = scalar_lea.vmem [#allocation2], 545
    %v1434 = vld [vmem:[%s1433] ss:$2 sm:$0xff]
    %s1435 = scalar_lea.vmem [#allocation2], 561
    %v1436 = vld [vmem:[%s1435] ss:$2 sm:$0xff]
    %s1437 = scalar_lea.vmem [#allocation2], 577
    %v1438 = vld [vmem:[%s1437] ss:$2 sm:$0xff]
    %s1439 = scalar_lea.vmem [#allocation2], 593
    %v1440 = vld [vmem:[%s1439] ss:$2 sm:$0xff]
    %s1441 = scalar_lea.vmem [#allocation2], 609
    %v1442 = vld [vmem:[%s1441] ss:$2 sm:$0xff]
    %s1443 = scalar_lea.vmem [#allocation2], 625
    %v1444 = vld [vmem:[%s1443] ss:$2 sm:$0xff]
    %s1445 = scalar_lea.vmem [#allocation2], 641
    %v1446 = vld [vmem:[%s1445] ss:$2 sm:$0xff]
    %s1447 = scalar_lea.vmem [#allocation2], 657
    %v1448 = vld [vmem:[%s1447] ss:$2 sm:$0xff]
    %s1449 = scalar_lea.vmem [#allocation2], 673
    %v1450 = vld [vmem:[%s1449] ss:$2 sm:$0xff]
    %s1451 = scalar_lea.vmem [#allocation2], 689
    %v1452 = vld [vmem:[%s1451] ss:$2 sm:$0xff]
    %s1453 = scalar_lea.vmem [#allocation2], 705
    %v1454 = vld [vmem:[%s1453] ss:$2 sm:$0xff]
    %s1455 = scalar_lea.vmem [#allocation2], 721
    %v1456 = vld [vmem:[%s1455] ss:$2 sm:$0xff]
    %s1457 = scalar_lea.vmem [#allocation2], 737
    %v1458 = vld [vmem:[%s1457] ss:$2 sm:$0xff]
    %s1459 = scalar_lea.vmem [#allocation2], 753
    %v1460 = vld [vmem:[%s1459] ss:$2 sm:$0xff]
    %v1461 = vmax.f32 %v1270, %v1366
    %v1462 = vmax.f32 %v1272, %v1368
    %v1463 = vmax.f32 %v1274, %v1370
    %v1464 = vmax.f32 %v1276, %v1372
    %v1465 = vmax.f32 %v1278, %v1374
    %v1466 = vmax.f32 %v1280, %v1376
    %v1467 = vmax.f32 %v1282, %v1378
    %v1468 = vmax.f32 %v1284, %v1380
    %v1469 = vmax.f32 %v1286, %v1382
    %v1470 = vmax.f32 %v1288, %v1384
    %v1471 = vmax.f32 %v1290, %v1386
    %v1472 = vmax.f32 %v1292, %v1388
    %v1473 = vmax.f32 %v1294, %v1390
    %v1474 = vmax.f32 %v1296, %v1392
    %v1475 = vmax.f32 %v1298, %v1394
    %v1476 = vmax.f32 %v1300, %v1396
    %v1477 = vmax.f32 %v1302, %v1398
    %v1478 = vmax.f32 %v1304, %v1400
    %v1479 = vmax.f32 %v1306, %v1402
    %v1480 = vmax.f32 %v1308, %v1404
    %v1481 = vmax.f32 %v1310, %v1406
    %v1482 = vmax.f32 %v1312, %v1408
    %v1483 = vmax.f32 %v1314, %v1410
    %v1484 = vmax.f32 %v1316, %v1412
    %v1485 = vmax.f32 %v1318, %v1414
    %v1486 = vmax.f32 %v1320, %v1416
    %v1487 = vmax.f32 %v1322, %v1418
    %v1488 = vmax.f32 %v1324, %v1420
    %v1489 = vmax.f32 %v1326, %v1422
    %v1490 = vmax.f32 %v1328, %v1424
    %v1491 = vmax.f32 %v1330, %v1426
    %v1492 = vmax.f32 %v1332, %v1428
    %v1493 = vmax.f32 %v1334, %v1430
    %v1494 = vmax.f32 %v1336, %v1432
    %v1495 = vmax.f32 %v1338, %v1434
    %v1496 = vmax.f32 %v1340, %v1436
    %v1497 = vmax.f32 %v1342, %v1438
    %v1498 = vmax.f32 %v1344, %v1440
    %v1499 = vmax.f32 %v1346, %v1442
    %v1500 = vmax.f32 %v1348, %v1444
    %v1501 = vmax.f32 %v1350, %v1446
    %v1502 = vmax.f32 %v1352, %v1448
    %v1503 = vmax.f32 %v1354, %v1450
    %v1504 = vmax.f32 %v1356, %v1452
    %v1505 = vmax.f32 %v1358, %v1454
    %v1506 = vmax.f32 %v1360, %v1456
    %v1507 = vmax.f32 %v1362, %v1458
    %v1508 = vmax.f32 %v1364, %v1460
    %1509 = vst.msk [vmem:[#allocation3] sm:$0xff] %vm1173, %v1461
    %1510 = vst.msk [vmem:[#allocation3 + $0x8] sm:$0xff] %vm1173, %v1462
    %1511 = vst.msk [vmem:[#allocation3 + $0x10] sm:$0xff] %vm1173, %v1463
    %1512 = vst.msk [vmem:[#allocation3 + $0x18] sm:$0xff] %vm1173, %v1464
    %1513 = vst.msk [vmem:[#allocation3 + $0x20] sm:$0xff] %vm1173, %v1465
    %1514 = vst.msk [vmem:[#allocation3 + $0x28] sm:$0xff] %vm1173, %v1466
    %1515 = vst.msk [vmem:[#allocation3 + $0x30] sm:$0xff] %vm1173, %v1467
    %1516 = vst.msk [vmem:[#allocation3 + $0x38] sm:$0xff] %vm1173, %v1468
    %1517 = vst.msk [vmem:[#allocation3 + $0x40] sm:$0xff] %vm1173, %v1469
    %1518 = vst.msk [vmem:[#allocation3 + $0x48] sm:$0xff] %vm1173, %v1470
    %1519 = vst.msk [vmem:[#allocation3 + $0x50] sm:$0xff] %vm1173, %v1471
    %1520 = vst.msk [vmem:[#allocation3 + $0x58] sm:$0xff] %vm1173, %v1472
    %1521 = vst.msk [vmem:[#allocation3 + $0x60] sm:$0xff] %vm1173, %v1473
    %1522 = vst.msk [vmem:[#allocation3 + $0x68] sm:$0xff] %vm1173, %v1474
    %1523 = vst.msk [vmem:[#allocation3 + $0x70] sm:$0xff] %vm1173, %v1475
    %1524 = vst.msk [vmem:[#allocation3 + $0x78] sm:$0xff] %vm1173, %v1476
    %1525 = vst.msk [vmem:[#allocation3 + $0x80] sm:$0xff] %vm1173, %v1477
    %1526 = vst.msk [vmem:[#allocation3 + $0x88] sm:$0xff] %vm1173, %v1478
    %1527 = vst.msk [vmem:[#allocation3 + $0x90] sm:$0xff] %vm1173, %v1479
    %1528 = vst.msk [vmem:[#allocation3 + $0x98] sm:$0xff] %vm1173, %v1480
    %1529 = vst.msk [vmem:[#allocation3 + $0xa0] sm:$0xff] %vm1173, %v1481
    %1530 = vst.msk [vmem:[#allocation3 + $0xa8] sm:$0xff] %vm1173, %v1482
    %1531 = vst.msk [vmem:[#allocation3 + $0xb0] sm:$0xff] %vm1173, %v1483
    %1532 = vst.msk [vmem:[#allocation3 + $0xb8] sm:$0xff] %vm1173, %v1484
    %1533 = vst.msk [vmem:[#allocation3 + $0xc0] sm:$0xff] %vm1173, %v1485
    %1534 = vst.msk [vmem:[#allocation3 + $0xc8] sm:$0xff] %vm1173, %v1486
    %1535 = vst.msk [vmem:[#allocation3 + $0xd0] sm:$0xff] %vm1173, %v1487
    %1536 = vst.msk [vmem:[#allocation3 + $0xd8] sm:$0xff] %vm1173, %v1488
    %1537 = vst.msk [vmem:[#allocation3 + $0xe0] sm:$0xff] %vm1173, %v1489
    %1538 = vst.msk [vmem:[#allocation3 + $0xe8] sm:$0xff] %vm1173, %v1490
    %1539 = vst.msk [vmem:[#allocation3 + $0xf0] sm:$0xff] %vm1173, %v1491
    %1540 = vst.msk [vmem:[#allocation3 + $0xf8] sm:$0xff] %vm1173, %v1492
    %1541 = vst.msk [vmem:[#allocation3 + $0x100] sm:$0xff] %vm1173, %v1493
    %1542 = vst.msk [vmem:[#allocation3 + $0x108] sm:$0xff] %vm1173, %v1494
    %1543 = vst.msk [vmem:[#allocation3 + $0x110] sm:$0xff] %vm1173, %v1495
    %1544 = vst.msk [vmem:[#allocation3 + $0x118] sm:$0xff] %vm1173, %v1496
    %1545 = vst.msk [vmem:[#allocation3 + $0x120] sm:$0xff] %vm1173, %v1497
    %1546 = vst.msk [vmem:[#allocation3 + $0x128] sm:$0xff] %vm1173, %v1498
    %1547 = vst.msk [vmem:[#allocation3 + $0x130] sm:$0xff] %vm1173, %v1499
    %1548 = vst.msk [vmem:[#allocation3 + $0x138] sm:$0xff] %vm1173, %v1500
    %1549 = vst.msk [vmem:[#allocation3 + $0x140] sm:$0xff] %vm1173, %v1501
    %1550 = vst.msk [vmem:[#allocation3 + $0x148] sm:$0xff] %vm1173, %v1502
    %1551 = vst.msk [vmem:[#allocation3 + $0x150] sm:$0xff] %vm1173, %v1503
    %1552 = vst.msk [vmem:[#allocation3 + $0x158] sm:$0xff] %vm1173, %v1504
    %1553 = vst.msk [vmem:[#allocation3 + $0x160] sm:$0xff] %vm1173, %v1505
    %1554 = vst.msk [vmem:[#allocation3 + $0x168] sm:$0xff] %vm1173, %v1506
    %1555 = vst.msk [vmem:[#allocation3 + $0x170] sm:$0xff] %vm1173, %v1507
    %1556 = vst.msk [vmem:[#allocation3 + $0x178] sm:$0xff] %vm1173, %v1508
    %1557 = vst.msk [vmem:[#allocation3 + $0x180] sm:$0xff] %vm1173, 0.0
    %v1558 = vld [vmem:[#allocation3] sm:$0xff]
    %v1559 = vld [vmem:[#allocation3 + $0x8] sm:$0xff]
    %v1560 = vld [vmem:[#allocation3 + $0x10] sm:$0xff]
    %v1561 = vld [vmem:[#allocation3 + $0x18] sm:$0xff]
    %v1562 = vld [vmem:[#allocation3 + $0x20] sm:$0xff]
    %v1563 = vld [vmem:[#allocation3 + $0x28] sm:$0xff]
    %v1564 = vld [vmem:[#allocation3 + $0x30] sm:$0xff]
    %v1565 = vld [vmem:[#allocation3 + $0x38] sm:$0xff]
    %v1566 = vld [vmem:[#allocation3 + $0x40] sm:$0xff]
    %v1567 = vld [vmem:[#allocation3 + $0x48] sm:$0xff]
    %v1568 = vld [vmem:[#allocation3 + $0x50] sm:$0xff]
    %v1569 = vld [vmem:[#allocation3 + $0x58] sm:$0xff]
    %v1570 = vld [vmem:[#allocation3 + $0x60] sm:$0xff]
    %v1571 = vld [vmem:[#allocation3 + $0x68] sm:$0xff]
    %v1572 = vld [vmem:[#allocation3 + $0x70] sm:$0xff]
    %v1573 = vld [vmem:[#allocation3 + $0x78] sm:$0xff]
    %v1574 = vld [vmem:[#allocation3 + $0x80] sm:$0xff]
    %v1575 = vld [vmem:[#allocation3 + $0x88] sm:$0xff]
    %v1576 = vld [vmem:[#allocation3 + $0x90] sm:$0xff]
    %v1577 = vld [vmem:[#allocation3 + $0x98] sm:$0xff]
    %v1578 = vld [vmem:[#allocation3 + $0xa0] sm:$0xff]
    %v1579 = vld [vmem:[#allocation3 + $0xa8] sm:$0xff]
    %v1580 = vld [vmem:[#allocation3 + $0xb0] sm:$0xff]
    %v1581 = vld [vmem:[#allocation3 + $0xb8] sm:$0xff]
    %v1582 = vld [vmem:[#allocation3 + $0xc0] sm:$0xff]
    %v1583 = vld [vmem:[#allocation3 + $0xc8] sm:$0xff]
    %v1584 = vld [vmem:[#allocation3 + $0xd0] sm:$0xff]
    %v1585 = vld [vmem:[#allocation3 + $0xd8] sm:$0xff]
    %v1586 = vld [vmem:[#allocation3 + $0xe0] sm:$0xff]
    %v1587 = vld [vmem:[#allocation3 + $0xe8] sm:$0xff]
    %v1588 = vld [vmem:[#allocation3 + $0xf0] sm:$0xff]
    %v1589 = vld [vmem:[#allocation3 + $0xf8] sm:$0xff]
    %v1590 = vld [vmem:[#allocation3 + $0x100] sm:$0xff]
    %v1591 = vld [vmem:[#allocation3 + $0x108] sm:$0xff]
    %v1592 = vld [vmem:[#allocation3 + $0x110] sm:$0xff]
    %v1593 = vld [vmem:[#allocation3 + $0x118] sm:$0xff]
    %v1594 = vld [vmem:[#allocation3 + $0x120] sm:$0xff]
    %v1595 = vld [vmem:[#allocation3 + $0x128] sm:$0xff]
    %v1596 = vld [vmem:[#allocation3 + $0x130] sm:$0xff]
    %v1597 = vld [vmem:[#allocation3 + $0x138] sm:$0xff]
    %v1598 = vld [vmem:[#allocation3 + $0x140] sm:$0xff]
    %v1599 = vld [vmem:[#allocation3 + $0x148] sm:$0xff]
    %v1600 = vld [vmem:[#allocation3 + $0x150] sm:$0xff]
    %v1601 = vld [vmem:[#allocation3 + $0x158] sm:$0xff]
    %v1602 = vld [vmem:[#allocation3 + $0x160] sm:$0xff]
    %v1603 = vld [vmem:[#allocation3 + $0x168] sm:$0xff]
    %v1604 = vld [vmem:[#allocation3 + $0x170] sm:$0xff]
    %v1605 = vld [vmem:[#allocation3 + $0x178] sm:$0xff]
    %v1606 = vld [vmem:[%s3] sm:$0xff]
    %v1607 = vld [vmem:[%s3 + $0x8] sm:$0xff]
    %v1608 = vld [vmem:[%s3 + $0x10] sm:$0xff]
    %v1609 = vld [vmem:[%s3 + $0x18] sm:$0xff]
    %v1610 = vld [vmem:[#allocation3 + $0x1] sm:$0xff]
    %v1611 = vld [vmem:[#allocation3 + $0x9] sm:$0xff]
    %v1612 = vld [vmem:[#allocation3 + $0x11] sm:$0xff]
    %v1613 = vld [vmem:[#allocation3 + $0x19] sm:$0xff]
    %v1614 = vld [vmem:[#allocation3 + $0x21] sm:$0xff]
    %v1615 = vld [vmem:[#allocation3 + $0x29] sm:$0xff]
    %v1616 = vld [vmem:[#allocation3 + $0x31] sm:$0xff]
    %v1617 = vld [vmem:[#allocation3 + $0x39] sm:$0xff]
    %v1618 = vld [vmem:[#allocation3 + $0x41] sm:$0xff]
    %v1619 = vld [vmem:[#allocation3 + $0x49] sm:$0xff]
    %v1620 = vld [vmem:[#allocation3 + $0x51] sm:$0xff]
    %v1621 = vld [vmem:[#allocation3 + $0x59] sm:$0xff]
    %v1622 = vld [vmem:[#allocation3 + $0x61] sm:$0xff]
    %v1623 = vld [vmem:[#allocation3 + $0x69] sm:$0xff]
    %v1624 = vld [vmem:[#allocation3 + $0x71] sm:$0xff]
    %v1625 = vld [vmem:[#allocation3 + $0x79] sm:$0xff]
    %v1626 = vld [vmem:[#allocation3 + $0x81] sm:$0xff]
    %v1627 = vld [vmem:[#allocation3 + $0x89] sm:$0xff]
    %v1628 = vld [vmem:[#allocation3 + $0x91] sm:$0xff]
    %v1629 = vld [vmem:[#allocation3 + $0x99] sm:$0xff]
    %v1630 = vld [vmem:[#allocation3 + $0xa1] sm:$0xff]
    %v1631 = vld [vmem:[#allocation3 + $0xa9] sm:$0xff]
    %v1632 = vld [vmem:[#allocation3 + $0xb1] sm:$0xff]
    %v1633 = vld [vmem:[#allocation3 + $0xb9] sm:$0xff]
    %v1634 = vld [vmem:[#allocation3 + $0xc1] sm:$0xff]
    %v1635 = vld [vmem:[#allocation3 + $0xc9] sm:$0xff]
    %v1636 = vld [vmem:[#allocation3 + $0xd1] sm:$0xff]
    %v1637 = vld [vmem:[#allocation3 + $0xd9] sm:$0xff]
    %v1638 = vld [vmem:[#allocation3 + $0xe1] sm:$0xff]
    %v1639 = vld [vmem:[#allocation3 + $0xe9] sm:$0xff]
    %v1640 = vld [vmem:[#allocation3 + $0xf1] sm:$0xff]
    %v1641 = vld [vmem:[#allocation3 + $0xf9] sm:$0xff]
    %v1642 = vld [vmem:[#allocation3 + $0x101] sm:$0xff]
    %v1643 = vld [vmem:[#allocation3 + $0x109] sm:$0xff]
    %v1644 = vld [vmem:[#allocation3 + $0x111] sm:$0xff]
    %v1645 = vld [vmem:[#allocation3 + $0x119] sm:$0xff]
    %v1646 = vld [vmem:[#allocation3 + $0x121] sm:$0xff]
    %v1647 = vld [vmem:[#allocation3 + $0x129] sm:$0xff]
    %v1648 = vld [vmem:[#allocation3 + $0x131] sm:$0xff]
    %v1649 = vld [vmem:[#allocation3 + $0x139] sm:$0xff]
    %v1650 = vld [vmem:[#allocation3 + $0x141] sm:$0xff]
    %v1651 = vld [vmem:[#allocation3 + $0x149] sm:$0xff]
    %v1652 = vld [vmem:[#allocation3 + $0x151] sm:$0xff]
    %v1653 = vld [vmem:[#allocation3 + $0x159] sm:$0xff]
    %v1654 = vld [vmem:[#allocation3 + $0x161] sm:$0xff]
    %v1655 = vld [vmem:[#allocation3 + $0x169] sm:$0xff]
    %v1656 = vld [vmem:[#allocation3 + $0x171] sm:$0xff]
    %v1657 = vld [vmem:[#allocation3 + $0x179] sm:$0xff]
    %s1658 = scalar_lea.vmem %s3, 32
    %v1659 = vld [vmem:[%s1658] sm:$0xff]
    %v1660 = vld [vmem:[%s1658 + $0x8] sm:$0xff]
    %v1661 = vld [vmem:[%s1658 + $0x10] sm:$0xff]
    %v1662 = vld [vmem:[%s1658 + $0x18] sm:$0xff]
    %v1664 = vsel %vm1173, %v1610, 0
    %v1667 = vsel %vm1173, %v1611, 0
    %v1670 = vsel %vm1173, %v1612, 0
    %v1673 = vsel %vm1173, %v1613, 0
    %v1676 = vsel %vm1173, %v1614, 0
    %v1679 = vsel %vm1173, %v1615, 0
    %v1682 = vsel %vm1173, %v1616, 0
    %v1685 = vsel %vm1173, %v1617, 0
    %v1688 = vsel %vm1173, %v1618, 0
    %v1691 = vsel %vm1173, %v1619, 0
    %v1694 = vsel %vm1173, %v1620, 0
    %v1697 = vsel %vm1173, %v1621, 0
    %v1700 = vsel %vm1173, %v1622, 0
    %v1703 = vsel %vm1173, %v1623, 0
    %v1706 = vsel %vm1173, %v1624, 0
    %v1709 = vsel %vm1173, %v1625, 0
    %v1712 = vsel %vm1173, %v1626, 0
    %v1715 = vsel %vm1173, %v1627, 0
    %v1718 = vsel %vm1173, %v1628, 0
    %v1721 = vsel %vm1173, %v1629, 0
    %v1724 = vsel %vm1173, %v1630, 0
    %v1727 = vsel %vm1173, %v1631, 0
    %v1730 = vsel %vm1173, %v1632, 0
    %v1733 = vsel %vm1173, %v1633, 0
    %v1736 = vsel %vm1173, %v1634, 0
    %v1739 = vsel %vm1173, %v1635, 0
    %v1742 = vsel %vm1173, %v1636, 0
    %v1745 = vsel %vm1173, %v1637, 0
    %v1748 = vsel %vm1173, %v1638, 0
    %v1751 = vsel %vm1173, %v1639, 0
    %v1754 = vsel %vm1173, %v1640, 0
    %v1757 = vsel %vm1173, %v1641, 0
    %v1760 = vsel %vm1173, %v1642, 0
    %v1763 = vsel %vm1173, %v1643, 0
    %v1766 = vsel %vm1173, %v1644, 0
    %v1769 = vsel %vm1173, %v1645, 0
    %v1772 = vsel %vm1173, %v1646, 0
    %v1775 = vsel %vm1173, %v1647, 0
    %v1778 = vsel %vm1173, %v1648, 0
    %v1781 = vsel %vm1173, %v1649, 0
    %v1784 = vsel %vm1173, %v1650, 0
    %v1787 = vsel %vm1173, %v1651, 0
    %v1790 = vsel %vm1173, %v1652, 0
    %v1793 = vsel %vm1173, %v1653, 0
    %v1796 = vsel %vm1173, %v1654, 0
    %v1799 = vsel %vm1173, %v1655, 0
    %v1802 = vsel %vm1173, %v1656, 0
    %v1805 = vsel %vm1173, %v1657, 0
    %1807 = vmatprep.subr.mxu0 0.0
    %1808 = vmatpush1.msra.mxu0 0.0
    %1809 = vmatprep.subr.mxu0 0.0
    %1810 = vmatpush1.msra.mxu0 0.0
    %1811 = vmatprep.subr.mxu0 0.0
    %1812 = vmatpush1.msra.mxu0 0.0
    %1813 = vmatprep.subr.mxu0 0.0
    %1814 = vmatpush1.msra.mxu0 0.0
    %1815 = vmatprep.subr.mxu0 0.0
    %1816 = vmatpush1.msra.mxu0 0.0
    %1817 = vmatprep.subr.mxu0 0.0
    %1818 = vmatpush1.msra.mxu0 0.0
    %1819 = vmatprep.subr.mxu0 0.0
    %1820 = vmatpush1.msra.mxu0 0.0
    %1821 = vmatprep.subr.mxu0 0.0
    %1822 = vmatpush1.msra.mxu0 0.0
    %1823 = vmatprep.subr.mxu0 0.0
    %1824 = vmatpush1.msra.mxu0 0.0
    %1825 = vmatprep.subr.mxu0 0.0
    %1826 = vmatpush1.msra.mxu0 0.0
    %1827 = vmatprep.subr.mxu0 0.0
    %1828 = vmatpush1.msra.mxu0 0.0
    %1829 = vmatprep.subr.mxu0 0.0
    %1830 = vmatpush1.msra.mxu0 0.0
    %1831 = vmatprep.subr.mxu0 0.0
    %1832 = vmatpush1.msra.mxu0 %v1662
    %1833 = vmatprep.subr.mxu0 0.0
    %1834 = vmatpush1.msra.mxu0 %v1661
    %1835 = vmatprep.subr.mxu0 0.0
    %1836 = vmatpush1.msra.mxu0 %v1660
    %1837 = vmatprep.subr.mxu0 0.0
    %1838 = vmatpush1.msra.mxu0 %v1659
    %1839 = vmatprep.subr.mxu0 0.0
    %1840 = vmatpush2.msra.mxu0 0.0
    %1841 = vmatprep.subr.mxu0 0.0
    %1842 = vmatpush2.msra.mxu0 0.0
    %1843 = vmatprep.subr.mxu0 0.0
    %1844 = vmatpush2.msra.mxu0 0.0
    %1845 = vmatprep.subr.mxu0 0.0
    %1846 = vmatpush2.msra.mxu0 0.0
    %1847 = vmatprep.subr.mxu0 0.0
    %1848 = vmatpush2.msra.mxu0 0.0
    %1849 = vmatprep.subr.mxu0 0.0
    %1850 = vmatpush2.msra.mxu0 0.0
    %1851 = vmatprep.subr.mxu0 0.0
    %1852 = vmatpush2.msra.mxu0 0.0
    %1853 = vmatprep.subr.mxu0 0.0
    %1854 = vmatpush2.msra.mxu0 0.0
    %1855 = vmatprep.subr.mxu0 0.0
    %1856 = vmatpush2.msra.mxu0 0.0
    %1857 = vmatprep.subr.mxu0 0.0
    %1858 = vmatpush2.msra.mxu0 0.0
    %1859 = vmatprep.subr.mxu0 0.0
    %1860 = vmatpush2.msra.mxu0 0.0
    %1861 = vmatprep.subr.mxu0 0.0
    %1862 = vmatpush2.msra.mxu0 0.0
    %1863 = vmatprep.subr.mxu0 0.0
    %1864 = vmatpush2.msra.mxu0 0.0
    %1865 = vmatprep.subr.mxu0 0.0
    %1866 = vmatpush2.msra.mxu0 0.0
    %1867 = vmatprep.subr.mxu0 0.0
    %1868 = vmatpush2.msra.mxu0 0.0
    %1869 = vmatprep.subr.mxu0 0.0
    %1870 = vmatpush2.msra.mxu0 0.0
    %1871 = vmatprep.mubr.f32.mxu0 0.0
    %1872 = vmatmul.mubr.f32.gmra.mxu0 %v1664
    %v1873 = vpop.f32.mrf.mxu0
    %v1874 = vadd.f32 0.0, %v1873
    %v1875 = vpop.f32.mrf.mxu0
    %1876 = vmatprep.mubr.f32.mxu0 0.0
    %1877 = vmatmul.mubr.f32.gmra.mxu0 %v1667
    %v1878 = vpop.f32.mrf.mxu0
    %v1879 = vadd.f32 0.0, %v1878
    %v1880 = vpop.f32.mrf.mxu0
    %1881 = vmatprep.mubr.f32.mxu0 0.0
    %1882 = vmatmul.mubr.f32.gmra.mxu0 %v1670
    %v1883 = vpop.f32.mrf.mxu0
    %v1884 = vadd.f32 0.0, %v1883
    %v1885 = vpop.f32.mrf.mxu0
    %1886 = vmatprep.mubr.f32.mxu0 0.0
    %1887 = vmatmul.mubr.f32.gmra.mxu0 %v1673
    %v1888 = vpop.f32.mrf.mxu0
    %v1889 = vadd.f32 0.0, %v1888
    %v1890 = vpop.f32.mrf.mxu0
    %1891 = vmatprep.mubr.f32.mxu0 0.0
    %1892 = vmatmul.mubr.f32.gmra.mxu0 %v1676
    %v1893 = vpop.f32.mrf.mxu0
    %v1894 = vadd.f32 0.0, %v1893
    %v1895 = vpop.f32.mrf.mxu0
    %1896 = vmatprep.mubr.f32.mxu0 0.0
    %1897 = vmatmul.mubr.f32.gmra.mxu0 %v1679
    %v1898 = vpop.f32.mrf.mxu0
    %v1899 = vadd.f32 0.0, %v1898
    %v1900 = vpop.f32.mrf.mxu0
    %1901 = vmatprep.mubr.f32.mxu0 0.0
    %1902 = vmatmul.mubr.f32.gmra.mxu0 %v1682
    %v1903 = vpop.f32.mrf.mxu0
    %v1904 = vadd.f32 0.0, %v1903
    %v1905 = vpop.f32.mrf.mxu0
    %1906 = vmatprep.mubr.f32.mxu0 0.0
    %1907 = vmatmul.mubr.f32.gmra.mxu0 %v1685
    %v1908 = vpop.f32.mrf.mxu0
    %v1909 = vadd.f32 0.0, %v1908
    %v1910 = vpop.f32.mrf.mxu0
    %1911 = vmatprep.mubr.f32.mxu0 0.0
    %1912 = vmatmul.mubr.f32.gmra.mxu0 %v1688
    %v1913 = vpop.f32.mrf.mxu0
    %v1914 = vadd.f32 0.0, %v1913
    %v1915 = vpop.f32.mrf.mxu0
    %1916 = vmatprep.mubr.f32.mxu0 0.0
    %1917 = vmatmul.mubr.f32.gmra.mxu0 %v1691
    %v1918 = vpop.f32.mrf.mxu0
    %v1919 = vadd.f32 0.0, %v1918
    %v1920 = vpop.f32.mrf.mxu0
    %1921 = vmatprep.mubr.f32.mxu0 0.0
    %1922 = vmatmul.mubr.f32.gmra.mxu0 %v1694
    %v1923 = vpop.f32.mrf.mxu0
    %v1924 = vadd.f32 0.0, %v1923
    %v1925 = vpop.f32.mrf.mxu0
    %1926 = vmatprep.mubr.f32.mxu0 0.0
    %1927 = vmatmul.mubr.f32.gmra.mxu0 %v1697
    %v1928 = vpop.f32.mrf.mxu0
    %v1929 = vadd.f32 0.0, %v1928
    %v1930 = vpop.f32.mrf.mxu0
    %1931 = vmatprep.mubr.f32.mxu0 0.0
    %1932 = vmatmul.mubr.f32.gmra.mxu0 %v1700
    %v1933 = vpop.f32.mrf.mxu0
    %v1934 = vadd.f32 0.0, %v1933
    %v1935 = vpop.f32.mrf.mxu0
    %1936 = vmatprep.mubr.f32.mxu0 0.0
    %1937 = vmatmul.mubr.f32.gmra.mxu0 %v1703
    %v1938 = vpop.f32.mrf.mxu0
    %v1939 = vadd.f32 0.0, %v1938
    %v1940 = vpop.f32.mrf.mxu0
    %1941 = vmatprep.mubr.f32.mxu0 0.0
    %1942 = vmatmul.mubr.f32.gmra.mxu0 %v1706
    %v1943 = vpop.f32.mrf.mxu0
    %v1944 = vadd.f32 0.0, %v1943
    %v1945 = vpop.f32.mrf.mxu0
    %1946 = vmatprep.mubr.f32.mxu0 0.0
    %1947 = vmatmul.mubr.f32.gmra.mxu0 %v1709
    %v1948 = vpop.f32.mrf.mxu0
    %v1949 = vadd.f32 0.0, %v1948
    %v1950 = vpop.f32.mrf.mxu0
    %1951 = vmatprep.mubr.f32.mxu0 0.0
    %1952 = vmatmul.mubr.f32.gmra.mxu0 %v1712
    %v1953 = vpop.f32.mrf.mxu0
    %v1954 = vadd.f32 0.0, %v1953
    %v1955 = vpop.f32.mrf.mxu0
    %1956 = vmatprep.mubr.f32.mxu0 0.0
    %1957 = vmatmul.mubr.f32.gmra.mxu0 %v1715
    %v1958 = vpop.f32.mrf.mxu0
    %v1959 = vadd.f32 0.0, %v1958
    %v1960 = vpop.f32.mrf.mxu0
    %1961 = vmatprep.mubr.f32.mxu0 0.0
    %1962 = vmatmul.mubr.f32.gmra.mxu0 %v1718
    %v1963 = vpop.f32.mrf.mxu0
    %v1964 = vadd.f32 0.0, %v1963
    %v1965 = vpop.f32.mrf.mxu0
    %1966 = vmatprep.mubr.f32.mxu0 0.0
    %1967 = vmatmul.mubr.f32.gmra.mxu0 %v1721
    %v1968 = vpop.f32.mrf.mxu0
    %v1969 = vadd.f32 0.0, %v1968
    %v1970 = vpop.f32.mrf.mxu0
    %1971 = vmatprep.mubr.f32.mxu0 0.0
    %1972 = vmatmul.mubr.f32.gmra.mxu0 %v1724
    %v1973 = vpop.f32.mrf.mxu0
    %v1974 = vadd.f32 0.0, %v1973
    %v1975 = vpop.f32.mrf.mxu0
    %1976 = vmatprep.mubr.f32.mxu0 0.0
    %1977 = vmatmul.mubr.f32.gmra.mxu0 %v1727
    %v1978 = vpop.f32.mrf.mxu0
    %v1979 = vadd.f32 0.0, %v1978
    %v1980 = vpop.f32.mrf.mxu0
    %1981 = vmatprep.mubr.f32.mxu0 0.0
    %1982 = vmatmul.mubr.f32.gmra.mxu0 %v1730
    %v1983 = vpop.f32.mrf.mxu0
    %v1984 = vadd.f32 0.0, %v1983
    %v1985 = vpop.f32.mrf.mxu0
    %1986 = vmatprep.mubr.f32.mxu0 0.0
    %1987 = vmatmul.mubr.f32.gmra.mxu0 %v1733
    %v1988 = vpop.f32.mrf.mxu0
    %v1989 = vadd.f32 0.0, %v1988
    %v1990 = vpop.f32.mrf.mxu0
    %1991 = vmatprep.mubr.f32.mxu0 0.0
    %1992 = vmatmul.mubr.f32.gmra.mxu0 %v1736
    %v1993 = vpop.f32.mrf.mxu0
    %v1994 = vadd.f32 0.0, %v1993
    %v1995 = vpop.f32.mrf.mxu0
    %1996 = vmatprep.mubr.f32.mxu0 0.0
    %1997 = vmatmul.mubr.f32.gmra.mxu0 %v1739
    %v1998 = vpop.f32.mrf.mxu0
    %v1999 = vadd.f32 0.0, %v1998
    %v2000 = vpop.f32.mrf.mxu0
    %2001 = vmatprep.mubr.f32.mxu0 0.0
    %2002 = vmatmul.mubr.f32.gmra.mxu0 %v1742
    %v2003 = vpop.f32.mrf.mxu0
    %v2004 = vadd.f32 0.0, %v2003
    %v2005 = vpop.f32.mrf.mxu0
    %2006 = vmatprep.mubr.f32.mxu0 0.0
    %2007 = vmatmul.mubr.f32.gmra.mxu0 %v1745
    %v2008 = vpop.f32.mrf.mxu0
    %v2009 = vadd.f32 0.0, %v2008
    %v2010 = vpop.f32.mrf.mxu0
    %2011 = vmatprep.mubr.f32.mxu0 0.0
    %2012 = vmatmul.mubr.f32.gmra.mxu0 %v1748
    %v2013 = vpop.f32.mrf.mxu0
    %v2014 = vadd.f32 0.0, %v2013
    %v2015 = vpop.f32.mrf.mxu0
    %2016 = vmatprep.mubr.f32.mxu0 0.0
    %2017 = vmatmul.mubr.f32.gmra.mxu0 %v1751
    %v2018 = vpop.f32.mrf.mxu0
    %v2019 = vadd.f32 0.0, %v2018
    %v2020 = vpop.f32.mrf.mxu0
    %2021 = vmatprep.mubr.f32.mxu0 0.0
    %2022 = vmatmul.mubr.f32.gmra.mxu0 %v1754
    %v2023 = vpop.f32.mrf.mxu0
    %v2024 = vadd.f32 0.0, %v2023
    %v2025 = vpop.f32.mrf.mxu0
    %2026 = vmatprep.mubr.f32.mxu0 0.0
    %2027 = vmatmul.mubr.f32.gmra.mxu0 %v1757
    %v2028 = vpop.f32.mrf.mxu0
    %v2029 = vadd.f32 0.0, %v2028
    %v2030 = vpop.f32.mrf.mxu0
    %2031 = vmatprep.mubr.f32.mxu0 0.0
    %2032 = vmatmul.mubr.f32.gmra.mxu0 %v1760
    %v2033 = vpop.f32.mrf.mxu0
    %v2034 = vadd.f32 0.0, %v2033
    %v2035 = vpop.f32.mrf.mxu0
    %2036 = vmatprep.mubr.f32.mxu0 0.0
    %2037 = vmatmul.mubr.f32.gmra.mxu0 %v1763
    %v2038 = vpop.f32.mrf.mxu0
    %v2039 = vadd.f32 0.0, %v2038
    %v2040 = vpop.f32.mrf.mxu0
    %2041 = vmatprep.mubr.f32.mxu0 0.0
    %2042 = vmatmul.mubr.f32.gmra.mxu0 %v1766
    %v2043 = vpop.f32.mrf.mxu0
    %v2044 = vadd.f32 0.0, %v2043
    %v2045 = vpop.f32.mrf.mxu0
    %2046 = vmatprep.mubr.f32.mxu0 0.0
    %2047 = vmatmul.mubr.f32.gmra.mxu0 %v1769
    %v2048 = vpop.f32.mrf.mxu0
    %v2049 = vadd.f32 0.0, %v2048
    %v2050 = vpop.f32.mrf.mxu0
    %2051 = vmatprep.mubr.f32.mxu0 0.0
    %2052 = vmatmul.mubr.f32.gmra.mxu0 %v1772
    %v2053 = vpop.f32.mrf.mxu0
    %v2054 = vadd.f32 0.0, %v2053
    %v2055 = vpop.f32.mrf.mxu0
    %2056 = vmatprep.mubr.f32.mxu0 0.0
    %2057 = vmatmul.mubr.f32.gmra.mxu0 %v1775
    %v2058 = vpop.f32.mrf.mxu0
    %v2059 = vadd.f32 0.0, %v2058
    %v2060 = vpop.f32.mrf.mxu0
    %2061 = vmatprep.mubr.f32.mxu0 0.0
    %2062 = vmatmul.mubr.f32.gmra.mxu0 %v1778
    %v2063 = vpop.f32.mrf.mxu0
    %v2064 = vadd.f32 0.0, %v2063
    %v2065 = vpop.f32.mrf.mxu0
    %2066 = vmatprep.mubr.f32.mxu0 0.0
    %2067 = vmatmul.mubr.f32.gmra.mxu0 %v1781
    %v2068 = vpop.f32.mrf.mxu0
    %v2069 = vadd.f32 0.0, %v2068
    %v2070 = vpop.f32.mrf.mxu0
    %2071 = vmatprep.mubr.f32.mxu0 0.0
    %2072 = vmatmul.mubr.f32.gmra.mxu0 %v1784
    %v2073 = vpop.f32.mrf.mxu0
    %v2074 = vadd.f32 0.0, %v2073
    %v2075 = vpop.f32.mrf.mxu0
    %2076 = vmatprep.mubr.f32.mxu0 0.0
    %2077 = vmatmul.mubr.f32.gmra.mxu0 %v1787
    %v2078 = vpop.f32.mrf.mxu0
    %v2079 = vadd.f32 0.0, %v2078
    %v2080 = vpop.f32.mrf.mxu0
    %2081 = vmatprep.mubr.f32.mxu0 0.0
    %2082 = vmatmul.mubr.f32.gmra.mxu0 %v1790
    %v2083 = vpop.f32.mrf.mxu0
    %v2084 = vadd.f32 0.0, %v2083
    %v2085 = vpop.f32.mrf.mxu0
    %2086 = vmatprep.mubr.f32.mxu0 0.0
    %2087 = vmatmul.mubr.f32.gmra.mxu0 %v1793
    %v2088 = vpop.f32.mrf.mxu0
    %v2089 = vadd.f32 0.0, %v2088
    %v2090 = vpop.f32.mrf.mxu0
    %2091 = vmatprep.mubr.f32.mxu0 0.0
    %2092 = vmatmul.mubr.f32.gmra.mxu0 %v1796
    %v2093 = vpop.f32.mrf.mxu0
    %v2094 = vadd.f32 0.0, %v2093
    %v2095 = vpop.f32.mrf.mxu0
    %2096 = vmatprep.mubr.f32.mxu0 0.0
    %2097 = vmatmul.mubr.f32.gmra.mxu0 %v1799
    %v2098 = vpop.f32.mrf.mxu0
    %v2099 = vadd.f32 0.0, %v2098
    %v2100 = vpop.f32.mrf.mxu0
    %2101 = vmatprep.mubr.f32.mxu0 0.0
    %2102 = vmatmul.mubr.f32.gmra.mxu0 %v1802
    %v2103 = vpop.f32.mrf.mxu0
    %v2104 = vadd.f32 0.0, %v2103
    %v2105 = vpop.f32.mrf.mxu0
    %2106 = vmatprep.mubr.f32.mxu0 0.0
    %2107 = vmatmul.mubr.f32.gmra.mxu0 %v1805
    %v2108 = vpop.f32.mrf.mxu0
    %v2109 = vadd.f32 0.0, %v2108
    %v2110 = vpop.f32.mrf.mxu0
    %2111 = vdwg.mxu0
    %v2113 = vsel %vm1173, %v1558, 0
    %v2116 = vsel %vm1173, %v1559, 0
    %v2119 = vsel %vm1173, %v1560, 0
    %v2122 = vsel %vm1173, %v1561, 0
    %v2125 = vsel %vm1173, %v1562, 0
    %v2128 = vsel %vm1173, %v1563, 0
    %v2131 = vsel %vm1173, %v1564, 0
    %v2134 = vsel %vm1173, %v1565, 0
    %v2137 = vsel %vm1173, %v1566, 0
    %v2140 = vsel %vm1173, %v1567, 0
    %v2143 = vsel %vm1173, %v1568, 0
    %v2146 = vsel %vm1173, %v1569, 0
    %v2149 = vsel %vm1173, %v1570, 0
    %v2152 = vsel %vm1173, %v1571, 0
    %v2155 = vsel %vm1173, %v1572, 0
    %v2158 = vsel %vm1173, %v1573, 0
    %v2161 = vsel %vm1173, %v1574, 0
    %v2164 = vsel %vm1173, %v1575, 0
    %v2167 = vsel %vm1173, %v1576, 0
    %v2170 = vsel %vm1173, %v1577, 0
    %v2173 = vsel %vm1173, %v1578, 0
    %v2176 = vsel %vm1173, %v1579, 0
    %v2179 = vsel %vm1173, %v1580, 0
    %v2182 = vsel %vm1173, %v1581, 0
    %v2185 = vsel %vm1173, %v1582, 0
    %v2188 = vsel %vm1173, %v1583, 0
    %v2191 = vsel %vm1173, %v1584, 0
    %v2194 = vsel %vm1173, %v1585, 0
    %v2197 = vsel %vm1173, %v1586, 0
    %v2200 = vsel %vm1173, %v1587, 0
    %v2203 = vsel %vm1173, %v1588, 0
    %v2206 = vsel %vm1173, %v1589, 0
    %v2209 = vsel %vm1173, %v1590, 0
    %v2212 = vsel %vm1173, %v1591, 0
    %v2215 = vsel %vm1173, %v1592, 0
    %v2218 = vsel %vm1173, %v1593, 0
    %v2221 = vsel %vm1173, %v1594, 0
    %v2224 = vsel %vm1173, %v1595, 0
    %v2227 = vsel %vm1173, %v1596, 0
    %v2230 = vsel %vm1173, %v1597, 0
    %v2233 = vsel %vm1173, %v1598, 0
    %v2236 = vsel %vm1173, %v1599, 0
    %v2239 = vsel %vm1173, %v1600, 0
    %v2242 = vsel %vm1173, %v1601, 0
    %v2245 = vsel %vm1173, %v1602, 0
    %v2248 = vsel %vm1173, %v1603, 0
    %v2251 = vsel %vm1173, %v1604, 0
    %v2254 = vsel %vm1173, %v1605, 0
    %2256 = vmatprep.subr.mxu0 0.0
    %2257 = vmatpush1.msra.mxu0 0.0
    %2258 = vmatprep.subr.mxu0 0.0
    %2259 = vmatpush1.msra.mxu0 0.0
    %2260 = vmatprep.subr.mxu0 0.0
    %2261 = vmatpush1.msra.mxu0 0.0
    %2262 = vmatprep.subr.mxu0 0.0
    %2263 = vmatpush1.msra.mxu0 0.0
    %2264 = vmatprep.subr.mxu0 0.0
    %2265 = vmatpush1.msra.mxu0 0.0
    %2266 = vmatprep.subr.mxu0 0.0
    %2267 = vmatpush1.msra.mxu0 0.0
    %2268 = vmatprep.subr.mxu0 0.0
    %2269 = vmatpush1.msra.mxu0 0.0
    %2270 = vmatprep.subr.mxu0 0.0
    %2271 = vmatpush1.msra.mxu0 0.0
    %2272 = vmatprep.subr.mxu0 0.0
    %2273 = vmatpush1.msra.mxu0 0.0
    %2274 = vmatprep.subr.mxu0 0.0
    %2275 = vmatpush1.msra.mxu0 0.0
    %2276 = vmatprep.subr.mxu0 0.0
    %2277 = vmatpush1.msra.mxu0 0.0
    %2278 = vmatprep.subr.mxu0 0.0
    %2279 = vmatpush1.msra.mxu0 0.0
    %2280 = vmatprep.subr.mxu0 0.0
    %2281 = vmatpush1.msra.mxu0 %v1609
    %2282 = vmatprep.subr.mxu0 0.0
    %2283 = vmatpush1.msra.mxu0 %v1608
    %2284 = vmatprep.subr.mxu0 0.0
    %2285 = vmatpush1.msra.mxu0 %v1607
    %2286 = vmatprep.subr.mxu0 0.0
    %2287 = vmatpush1.msra.mxu0 %v1606
    %2288 = vmatprep.subr.mxu0 0.0
    %2289 = vmatpush2.msra.mxu0 0.0
    %2290 = vmatprep.subr.mxu0 0.0
    %2291 = vmatpush2.msra.mxu0 0.0
    %2292 = vmatprep.subr.mxu0 0.0
    %2293 = vmatpush2.msra.mxu0 0.0
    %2294 = vmatprep.subr.mxu0 0.0
    %2295 = vmatpush2.msra.mxu0 0.0
    %2296 = vmatprep.subr.mxu0 0.0
    %2297 = vmatpush2.msra.mxu0 0.0
    %2298 = vmatprep.subr.mxu0 0.0
    %2299 = vmatpush2.msra.mxu0 0.0
    %2300 = vmatprep.subr.mxu0 0.0
    %2301 = vmatpush2.msra.mxu0 0.0
    %2302 = vmatprep.subr.mxu0 0.0
    %2303 = vmatpush2.msra.mxu0 0.0
    %2304 = vmatprep.subr.mxu0 0.0
    %2305 = vmatpush2.msra.mxu0 0.0
    %2306 = vmatprep.subr.mxu0 0.0
    %2307 = vmatpush2.msra.mxu0 0.0
    %2308 = vmatprep.subr.mxu0 0.0
    %2309 = vmatpush2.msra.mxu0 0.0
    %2310 = vmatprep.subr.mxu0 0.0
    %2311 = vmatpush2.msra.mxu0 0.0
    %2312 = vmatprep.subr.mxu0 0.0
    %2313 = vmatpush2.msra.mxu0 0.0
    %2314 = vmatprep.subr.mxu0 0.0
    %2315 = vmatpush2.msra.mxu0 0.0
    %2316 = vmatprep.subr.mxu0 0.0
    %2317 = vmatpush2.msra.mxu0 0.0
    %2318 = vmatprep.subr.mxu0 0.0
    %2319 = vmatpush2.msra.mxu0 0.0
    %2320 = vmatprep.mubr.f32.mxu0 0.0
    %2321 = vmatmul.mubr.f32.gmra.mxu0 %v2113
    %v2322 = vpop.f32.mrf.mxu0
    %v2323 = vadd.f32 %v1874, %v2322
    %v2324 = vpop.f32.mrf.mxu0
    %2325 = vmatprep.mubr.f32.mxu0 0.0
    %2326 = vmatmul.mubr.f32.gmra.mxu0 %v2116
    %v2327 = vpop.f32.mrf.mxu0
    %v2328 = vadd.f32 %v1879, %v2327
    %v2329 = vpop.f32.mrf.mxu0
    %2330 = vmatprep.mubr.f32.mxu0 0.0
    %2331 = vmatmul.mubr.f32.gmra.mxu0 %v2119
    %v2332 = vpop.f32.mrf.mxu0
    %v2333 = vadd.f32 %v1884, %v2332
    %v2334 = vpop.f32.mrf.mxu0
    %2335 = vmatprep.mubr.f32.mxu0 0.0
    %2336 = vmatmul.mubr.f32.gmra.mxu0 %v2122
    %v2337 = vpop.f32.mrf.mxu0
    %v2338 = vadd.f32 %v1889, %v2337
    %v2339 = vpop.f32.mrf.mxu0
    %2340 = vmatprep.mubr.f32.mxu0 0.0
    %2341 = vmatmul.mubr.f32.gmra.mxu0 %v2125
    %v2342 = vpop.f32.mrf.mxu0
    %v2343 = vadd.f32 %v1894, %v2342
    %v2344 = vpop.f32.mrf.mxu0
    %2345 = vmatprep.mubr.f32.mxu0 0.0
    %2346 = vmatmul.mubr.f32.gmra.mxu0 %v2128
    %v2347 = vpop.f32.mrf.mxu0
    %v2348 = vadd.f32 %v1899, %v2347
    %v2349 = vpop.f32.mrf.mxu0
    %2350 = vmatprep.mubr.f32.mxu0 0.0
    %2351 = vmatmul.mubr.f32.gmra.mxu0 %v2131
    %v2352 = vpop.f32.mrf.mxu0
    %v2353 = vadd.f32 %v1904, %v2352
    %v2354 = vpop.f32.mrf.mxu0
    %2355 = vmatprep.mubr.f32.mxu0 0.0
    %2356 = vmatmul.mubr.f32.gmra.mxu0 %v2134
    %v2357 = vpop.f32.mrf.mxu0
    %v2358 = vadd.f32 %v1909, %v2357
    %v2359 = vpop.f32.mrf.mxu0
    %2360 = vmatprep.mubr.f32.mxu0 0.0
    %2361 = vmatmul.mubr.f32.gmra.mxu0 %v2137
    %v2362 = vpop.f32.mrf.mxu0
    %v2363 = vadd.f32 %v1914, %v2362
    %v2364 = vpop.f32.mrf.mxu0
    %2365 = vmatprep.mubr.f32.mxu0 0.0
    %2366 = vmatmul.mubr.f32.gmra.mxu0 %v2140
    %v2367 = vpop.f32.mrf.mxu0
    %v2368 = vadd.f32 %v1919, %v2367
    %v2369 = vpop.f32.mrf.mxu0
    %2370 = vmatprep.mubr.f32.mxu0 0.0
    %2371 = vmatmul.mubr.f32.gmra.mxu0 %v2143
    %v2372 = vpop.f32.mrf.mxu0
    %v2373 = vadd.f32 %v1924, %v2372
    %v2374 = vpop.f32.mrf.mxu0
    %2375 = vmatprep.mubr.f32.mxu0 0.0
    %2376 = vmatmul.mubr.f32.gmra.mxu0 %v2146
    %v2377 = vpop.f32.mrf.mxu0
    %v2378 = vadd.f32 %v1929, %v2377
    %v2379 = vpop.f32.mrf.mxu0
    %2380 = vmatprep.mubr.f32.mxu0 0.0
    %2381 = vmatmul.mubr.f32.gmra.mxu0 %v2149
    %v2382 = vpop.f32.mrf.mxu0
    %v2383 = vadd.f32 %v1934, %v2382
    %v2384 = vpop.f32.mrf.mxu0
    %2385 = vmatprep.mubr.f32.mxu0 0.0
    %2386 = vmatmul.mubr.f32.gmra.mxu0 %v2152
    %v2387 = vpop.f32.mrf.mxu0
    %v2388 = vadd.f32 %v1939, %v2387
    %v2389 = vpop.f32.mrf.mxu0
    %2390 = vmatprep.mubr.f32.mxu0 0.0
    %2391 = vmatmul.mubr.f32.gmra.mxu0 %v2155
    %v2392 = vpop.f32.mrf.mxu0
    %v2393 = vadd.f32 %v1944, %v2392
    %v2394 = vpop.f32.mrf.mxu0
    %2395 = vmatprep.mubr.f32.mxu0 0.0
    %2396 = vmatmul.mubr.f32.gmra.mxu0 %v2158
    %v2397 = vpop.f32.mrf.mxu0
    %v2398 = vadd.f32 %v1949, %v2397
    %v2399 = vpop.f32.mrf.mxu0
    %2400 = vmatprep.mubr.f32.mxu0 0.0
    %2401 = vmatmul.mubr.f32.gmra.mxu0 %v2161
    %v2402 = vpop.f32.mrf.mxu0
    %v2403 = vadd.f32 %v1954, %v2402
    %v2404 = vpop.f32.mrf.mxu0
    %2405 = vmatprep.mubr.f32.mxu0 0.0
    %2406 = vmatmul.mubr.f32.gmra.mxu0 %v2164
    %v2407 = vpop.f32.mrf.mxu0
    %v2408 = vadd.f32 %v1959, %v2407
    %v2409 = vpop.f32.mrf.mxu0
    %2410 = vmatprep.mubr.f32.mxu0 0.0
    %2411 = vmatmul.mubr.f32.gmra.mxu0 %v2167
    %v2412 = vpop.f32.mrf.mxu0
    %v2413 = vadd.f32 %v1964, %v2412
    %v2414 = vpop.f32.mrf.mxu0
    %2415 = vmatprep.mubr.f32.mxu0 0.0
    %2416 = vmatmul.mubr.f32.gmra.mxu0 %v2170
    %v2417 = vpop.f32.mrf.mxu0
    %v2418 = vadd.f32 %v1969, %v2417
    %v2419 = vpop.f32.mrf.mxu0
    %2420 = vmatprep.mubr.f32.mxu0 0.0
    %2421 = vmatmul.mubr.f32.gmra.mxu0 %v2173
    %v2422 = vpop.f32.mrf.mxu0
    %v2423 = vadd.f32 %v1974, %v2422
    %v2424 = vpop.f32.mrf.mxu0
    %2425 = vmatprep.mubr.f32.mxu0 0.0
    %2426 = vmatmul.mubr.f32.gmra.mxu0 %v2176
    %v2427 = vpop.f32.mrf.mxu0
    %v2428 = vadd.f32 %v1979, %v2427
    %v2429 = vpop.f32.mrf.mxu0
    %2430 = vmatprep.mubr.f32.mxu0 0.0
    %2431 = vmatmul.mubr.f32.gmra.mxu0 %v2179
    %v2432 = vpop.f32.mrf.mxu0
    %v2433 = vadd.f32 %v1984, %v2432
    %v2434 = vpop.f32.mrf.mxu0
    %2435 = vmatprep.mubr.f32.mxu0 0.0
    %2436 = vmatmul.mubr.f32.gmra.mxu0 %v2182
    %v2437 = vpop.f32.mrf.mxu0
    %v2438 = vadd.f32 %v1989, %v2437
    %v2439 = vpop.f32.mrf.mxu0
    %2440 = vmatprep.mubr.f32.mxu0 0.0
    %2441 = vmatmul.mubr.f32.gmra.mxu0 %v2185
    %v2442 = vpop.f32.mrf.mxu0
    %v2443 = vadd.f32 %v1994, %v2442
    %v2444 = vpop.f32.mrf.mxu0
    %2445 = vmatprep.mubr.f32.mxu0 0.0
    %2446 = vmatmul.mubr.f32.gmra.mxu0 %v2188
    %v2447 = vpop.f32.mrf.mxu0
    %v2448 = vadd.f32 %v1999, %v2447
    %v2449 = vpop.f32.mrf.mxu0
    %2450 = vmatprep.mubr.f32.mxu0 0.0
    %2451 = vmatmul.mubr.f32.gmra.mxu0 %v2191
    %v2452 = vpop.f32.mrf.mxu0
    %v2453 = vadd.f32 %v2004, %v2452
    %v2454 = vpop.f32.mrf.mxu0
    %2455 = vmatprep.mubr.f32.mxu0 0.0
    %2456 = vmatmul.mubr.f32.gmra.mxu0 %v2194
    %v2457 = vpop.f32.mrf.mxu0
    %v2458 = vadd.f32 %v2009, %v2457
    %v2459 = vpop.f32.mrf.mxu0
    %2460 = vmatprep.mubr.f32.mxu0 0.0
    %2461 = vmatmul.mubr.f32.gmra.mxu0 %v2197
    %v2462 = vpop.f32.mrf.mxu0
    %v2463 = vadd.f32 %v2014, %v2462
    %v2464 = vpop.f32.mrf.mxu0
    %2465 = vmatprep.mubr.f32.mxu0 0.0
    %2466 = vmatmul.mubr.f32.gmra.mxu0 %v2200
    %v2467 = vpop.f32.mrf.mxu0
    %v2468 = vadd.f32 %v2019, %v2467
    %v2469 = vpop.f32.mrf.mxu0
    %2470 = vmatprep.mubr.f32.mxu0 0.0
    %2471 = vmatmul.mubr.f32.gmra.mxu0 %v2203
    %v2472 = vpop.f32.mrf.mxu0
    %v2473 = vadd.f32 %v2024, %v2472
    %v2474 = vpop.f32.mrf.mxu0
    %2475 = vmatprep.mubr.f32.mxu0 0.0
    %2476 = vmatmul.mubr.f32.gmra.mxu0 %v2206
    %v2477 = vpop.f32.mrf.mxu0
    %v2478 = vadd.f32 %v2029, %v2477
    %v2479 = vpop.f32.mrf.mxu0
    %2480 = vmatprep.mubr.f32.mxu0 0.0
    %2481 = vmatmul.mubr.f32.gmra.mxu0 %v2209
    %v2482 = vpop.f32.mrf.mxu0
    %v2483 = vadd.f32 %v2034, %v2482
    %v2484 = vpop.f32.mrf.mxu0
    %2485 = vmatprep.mubr.f32.mxu0 0.0
    %2486 = vmatmul.mubr.f32.gmra.mxu0 %v2212
    %v2487 = vpop.f32.mrf.mxu0
    %v2488 = vadd.f32 %v2039, %v2487
    %v2489 = vpop.f32.mrf.mxu0
    %2490 = vmatprep.mubr.f32.mxu0 0.0
    %2491 = vmatmul.mubr.f32.gmra.mxu0 %v2215
    %v2492 = vpop.f32.mrf.mxu0
    %v2493 = vadd.f32 %v2044, %v2492
    %v2494 = vpop.f32.mrf.mxu0
    %2495 = vmatprep.mubr.f32.mxu0 0.0
    %2496 = vmatmul.mubr.f32.gmra.mxu0 %v2218
    %v2497 = vpop.f32.mrf.mxu0
    %v2498 = vadd.f32 %v2049, %v2497
    %v2499 = vpop.f32.mrf.mxu0
    %2500 = vmatprep.mubr.f32.mxu0 0.0
    %2501 = vmatmul.mubr.f32.gmra.mxu0 %v2221
    %v2502 = vpop.f32.mrf.mxu0
    %v2503 = vadd.f32 %v2054, %v2502
    %v2504 = vpop.f32.mrf.mxu0
    %2505 = vmatprep.mubr.f32.mxu0 0.0
    %2506 = vmatmul.mubr.f32.gmra.mxu0 %v2224
    %v2507 = vpop.f32.mrf.mxu0
    %v2508 = vadd.f32 %v2059, %v2507
    %v2509 = vpop.f32.mrf.mxu0
    %2510 = vmatprep.mubr.f32.mxu0 0.0
    %2511 = vmatmul.mubr.f32.gmra.mxu0 %v2227
    %v2512 = vpop.f32.mrf.mxu0
    %v2513 = vadd.f32 %v2064, %v2512
    %v2514 = vpop.f32.mrf.mxu0
    %2515 = vmatprep.mubr.f32.mxu0 0.0
    %2516 = vmatmul.mubr.f32.gmra.mxu0 %v2230
    %v2517 = vpop.f32.mrf.mxu0
    %v2518 = vadd.f32 %v2069, %v2517
    %v2519 = vpop.f32.mrf.mxu0
    %2520 = vmatprep.mubr.f32.mxu0 0.0
    %2521 = vmatmul.mubr.f32.gmra.mxu0 %v2233
    %v2522 = vpop.f32.mrf.mxu0
    %v2523 = vadd.f32 %v2074, %v2522
    %v2524 = vpop.f32.mrf.mxu0
    %2525 = vmatprep.mubr.f32.mxu0 0.0
    %2526 = vmatmul.mubr.f32.gmra.mxu0 %v2236
    %v2527 = vpop.f32.mrf.mxu0
    %v2528 = vadd.f32 %v2079, %v2527
    %v2529 = vpop.f32.mrf.mxu0
    %2530 = vmatprep.mubr.f32.mxu0 0.0
    %2531 = vmatmul.mubr.f32.gmra.mxu0 %v2239
    %v2532 = vpop.f32.mrf.mxu0
    %v2533 = vadd.f32 %v2084, %v2532
    %v2534 = vpop.f32.mrf.mxu0
    %2535 = vmatprep.mubr.f32.mxu0 0.0
    %2536 = vmatmul.mubr.f32.gmra.mxu0 %v2242
    %v2537 = vpop.f32.mrf.mxu0
    %v2538 = vadd.f32 %v2089, %v2537
    %v2539 = vpop.f32.mrf.mxu0
    %2540 = vmatprep.mubr.f32.mxu0 0.0
    %2541 = vmatmul.mubr.f32.gmra.mxu0 %v2245
    %v2542 = vpop.f32.mrf.mxu0
    %v2543 = vadd.f32 %v2094, %v2542
    %v2544 = vpop.f32.mrf.mxu0
    %2545 = vmatprep.mubr.f32.mxu0 0.0
    %2546 = vmatmul.mubr.f32.gmra.mxu0 %v2248
    %v2547 = vpop.f32.mrf.mxu0
    %v2548 = vadd.f32 %v2099, %v2547
    %v2549 = vpop.f32.mrf.mxu0
    %2550 = vmatprep.mubr.f32.mxu0 0.0
    %2551 = vmatmul.mubr.f32.gmra.mxu0 %v2251
    %v2552 = vpop.f32.mrf.mxu0
    %v2553 = vadd.f32 %v2104, %v2552
    %v2554 = vpop.f32.mrf.mxu0
    %2555 = vmatprep.mubr.f32.mxu0 0.0
    %2556 = vmatmul.mubr.f32.gmra.mxu0 %v2254
    %v2557 = vpop.f32.mrf.mxu0
    %v2558 = vadd.f32 %v2109, %v2557
    %v2559 = vpop.f32.mrf.mxu0
    %2560 = vdwg.mxu0
    %v2561 = vld [vmem:[#allocation3 + $0x2] sm:$0xff]
    %v2562 = vld [vmem:[#allocation3 + $0xa] sm:$0xff]
    %v2563 = vld [vmem:[#allocation3 + $0x12] sm:$0xff]
    %v2564 = vld [vmem:[#allocation3 + $0x1a] sm:$0xff]
    %v2565 = vld [vmem:[#allocation3 + $0x22] sm:$0xff]
    %v2566 = vld [vmem:[#allocation3 + $0x2a] sm:$0xff]
    %v2567 = vld [vmem:[#allocation3 + $0x32] sm:$0xff]
    %v2568 = vld [vmem:[#allocation3 + $0x3a] sm:$0xff]
    %v2569 = vld [vmem:[#allocation3 + $0x42] sm:$0xff]
    %v2570 = vld [vmem:[#allocation3 + $0x4a] sm:$0xff]
    %v2571 = vld [vmem:[#allocation3 + $0x52] sm:$0xff]
    %v2572 = vld [vmem:[#allocation3 + $0x5a] sm:$0xff]
    %v2573 = vld [vmem:[#allocation3 + $0x62] sm:$0xff]
    %v2574 = vld [vmem:[#allocation3 + $0x6a] sm:$0xff]
    %v2575 = vld [vmem:[#allocation3 + $0x72] sm:$0xff]
    %v2576 = vld [vmem:[#allocation3 + $0x7a] sm:$0xff]
    %v2577 = vld [vmem:[#allocation3 + $0x82] sm:$0xff]
    %v2578 = vld [vmem:[#allocation3 + $0x8a] sm:$0xff]
    %v2579 = vld [vmem:[#allocation3 + $0x92] sm:$0xff]
    %v2580 = vld [vmem:[#allocation3 + $0x9a] sm:$0xff]
    %v2581 = vld [vmem:[#allocation3 + $0xa2] sm:$0xff]
    %v2582 = vld [vmem:[#allocation3 + $0xaa] sm:$0xff]
    %v2583 = vld [vmem:[#allocation3 + $0xb2] sm:$0xff]
    %v2584 = vld [vmem:[#allocation3 + $0xba] sm:$0xff]
    %v2585 = vld [vmem:[#allocation3 + $0xc2] sm:$0xff]
    %v2586 = vld [vmem:[#allocation3 + $0xca] sm:$0xff]
    %v2587 = vld [vmem:[#allocation3 + $0xd2] sm:$0xff]
    %v2588 = vld [vmem:[#allocation3 + $0xda] sm:$0xff]
    %v2589 = vld [vmem:[#allocation3 + $0xe2] sm:$0xff]
    %v2590 = vld [vmem:[#allocation3 + $0xea] sm:$0xff]
    %v2591 = vld [vmem:[#allocation3 + $0xf2] sm:$0xff]
    %v2592 = vld [vmem:[#allocation3 + $0xfa] sm:$0xff]
    %v2593 = vld [vmem:[#allocation3 + $0x102] sm:$0xff]
    %v2594 = vld [vmem:[#allocation3 + $0x10a] sm:$0xff]
    %v2595 = vld [vmem:[#allocation3 + $0x112] sm:$0xff]
    %v2596 = vld [vmem:[#allocation3 + $0x11a] sm:$0xff]
    %v2597 = vld [vmem:[#allocation3 + $0x122] sm:$0xff]
    %v2598 = vld [vmem:[#allocation3 + $0x12a] sm:$0xff]
    %v2599 = vld [vmem:[#allocation3 + $0x132] sm:$0xff]
    %v2600 = vld [vmem:[#allocation3 + $0x13a] sm:$0xff]
    %v2601 = vld [vmem:[#allocation3 + $0x142] sm:$0xff]
    %v2602 = vld [vmem:[#allocation3 + $0x14a] sm:$0xff]
    %v2603 = vld [vmem:[#allocation3 + $0x152] sm:$0xff]
    %v2604 = vld [vmem:[#allocation3 + $0x15a] sm:$0xff]
    %v2605 = vld [vmem:[#allocation3 + $0x162] sm:$0xff]
    %v2606 = vld [vmem:[#allocation3 + $0x16a] sm:$0xff]
    %v2607 = vld [vmem:[#allocation3 + $0x172] sm:$0xff]
    %v2608 = vld [vmem:[#allocation3 + $0x17a] sm:$0xff]
    %s2609 = scalar_lea.vmem %s3, 64
    %v2610 = vld [vmem:[%s2609] sm:$0xff]
    %v2611 = vld [vmem:[%s2609 + $0x8] sm:$0xff]
    %v2612 = vld [vmem:[%s2609 + $0x10] sm:$0xff]
    %v2613 = vld [vmem:[%s2609 + $0x18] sm:$0xff]
    %v2615 = vsel %vm1173, %v2561, 0
    %v2618 = vsel %vm1173, %v2562, 0
    %v2621 = vsel %vm1173, %v2563, 0
    %v2624 = vsel %vm1173, %v2564, 0
    %v2627 = vsel %vm1173, %v2565, 0
    %v2630 = vsel %vm1173, %v2566, 0
    %v2633 = vsel %vm1173, %v2567, 0
    %v2636 = vsel %vm1173, %v2568, 0
    %v2639 = vsel %vm1173, %v2569, 0
    %v2642 = vsel %vm1173, %v2570, 0
    %v2645 = vsel %vm1173, %v2571, 0
    %v2648 = vsel %vm1173, %v2572, 0
    %v2651 = vsel %vm1173, %v2573, 0
    %v2654 = vsel %vm1173, %v2574, 0
    %v2657 = vsel %vm1173, %v2575, 0
    %v2660 = vsel %vm1173, %v2576, 0
    %v2663 = vsel %vm1173, %v2577, 0
    %v2666 = vsel %vm1173, %v2578, 0
    %v2669 = vsel %vm1173, %v2579, 0
    %v2672 = vsel %vm1173, %v2580, 0
    %v2675 = vsel %vm1173, %v2581, 0
    %v2678 = vsel %vm1173, %v2582, 0
    %v2681 = vsel %vm1173, %v2583, 0
    %v2684 = vsel %vm1173, %v2584, 0
    %v2687 = vsel %vm1173, %v2585, 0
    %v2690 = vsel %vm1173, %v2586, 0
    %v2693 = vsel %vm1173, %v2587, 0
    %v2696 = vsel %vm1173, %v2588, 0
    %v2699 = vsel %vm1173, %v2589, 0
    %v2702 = vsel %vm1173, %v2590, 0
    %v2705 = vsel %vm1173, %v2591, 0
    %v2708 = vsel %vm1173, %v2592, 0
    %v2711 = vsel %vm1173, %v2593, 0
    %v2714 = vsel %vm1173, %v2594, 0
    %v2717 = vsel %vm1173, %v2595, 0
    %v2720 = vsel %vm1173, %v2596, 0
    %v2723 = vsel %vm1173, %v2597, 0
    %v2726 = vsel %vm1173, %v2598, 0
    %v2729 = vsel %vm1173, %v2599, 0
    %v2732 = vsel %vm1173, %v2600, 0
    %v2735 = vsel %vm1173, %v2601, 0
    %v2738 = vsel %vm1173, %v2602, 0
    %v2741 = vsel %vm1173, %v2603, 0
    %v2744 = vsel %vm1173, %v2604, 0
    %v2747 = vsel %vm1173, %v2605, 0
    %v2750 = vsel %vm1173, %v2606, 0
    %v2753 = vsel %vm1173, %v2607, 0
    %v2756 = vsel %vm1173, %v2608, 0
    %2758 = vmatprep.subr.mxu0 0.0
    %2759 = vmatpush1.msra.mxu0 0.0
    %2760 = vmatprep.subr.mxu0 0.0
    %2761 = vmatpush1.msra.mxu0 0.0
    %2762 = vmatprep.subr.mxu0 0.0
    %2763 = vmatpush1.msra.mxu0 0.0
    %2764 = vmatprep.subr.mxu0 0.0
    %2765 = vmatpush1.msra.mxu0 0.0
    %2766 = vmatprep.subr.mxu0 0.0
    %2767 = vmatpush1.msra.mxu0 0.0
    %2768 = vmatprep.subr.mxu0 0.0
    %2769 = vmatpush1.msra.mxu0 0.0
    %2770 = vmatprep.subr.mxu0 0.0
    %2771 = vmatpush1.msra.mxu0 0.0
    %2772 = vmatprep.subr.mxu0 0.0
    %2773 = vmatpush1.msra.mxu0 0.0
    %2774 = vmatprep.subr.mxu0 0.0
    %2775 = vmatpush1.msra.mxu0 0.0
    %2776 = vmatprep.subr.mxu0 0.0
    %2777 = vmatpush1.msra.mxu0 0.0
    %2778 = vmatprep.subr.mxu0 0.0
    %2779 = vmatpush1.msra.mxu0 0.0
    %2780 = vmatprep.subr.mxu0 0.0
    %2781 = vmatpush1.msra.mxu0 0.0
    %2782 = vmatprep.subr.mxu0 0.0
    %2783 = vmatpush1.msra.mxu0 %v2613
    %2784 = vmatprep.subr.mxu0 0.0
    %2785 = vmatpush1.msra.mxu0 %v2612
    %2786 = vmatprep.subr.mxu0 0.0
    %2787 = vmatpush1.msra.mxu0 %v2611
    %2788 = vmatprep.subr.mxu0 0.0
    %2789 = vmatpush1.msra.mxu0 %v2610
    %2790 = vmatprep.subr.mxu0 0.0
    %2791 = vmatpush2.msra.mxu0 0.0
    %2792 = vmatprep.subr.mxu0 0.0
    %2793 = vmatpush2.msra.mxu0 0.0
    %2794 = vmatprep.subr.mxu0 0.0
    %2795 = vmatpush2.msra.mxu0 0.0
    %2796 = vmatprep.subr.mxu0 0.0
    %2797 = vmatpush2.msra.mxu0 0.0
    %2798 = vmatprep.subr.mxu0 0.0
    %2799 = vmatpush2.msra.mxu0 0.0
    %2800 = vmatprep.subr.mxu0 0.0
    %2801 = vmatpush2.msra.mxu0 0.0
    %2802 = vmatprep.subr.mxu0 0.0
    %2803 = vmatpush2.msra.mxu0 0.0
    %2804 = vmatprep.subr.mxu0 0.0
    %2805 = vmatpush2.msra.mxu0 0.0
    %2806 = vmatprep.subr.mxu0 0.0
    %2807 = vmatpush2.msra.mxu0 0.0
    %2808 = vmatprep.subr.mxu0 0.0
    %2809 = vmatpush2.msra.mxu0 0.0
    %2810 = vmatprep.subr.mxu0 0.0
    %2811 = vmatpush2.msra.mxu0 0.0
    %2812 = vmatprep.subr.mxu0 0.0
    %2813 = vmatpush2.msra.mxu0 0.0
    %2814 = vmatprep.subr.mxu0 0.0
    %2815 = vmatpush2.msra.mxu0 0.0
    %2816 = vmatprep.subr.mxu0 0.0
    %2817 = vmatpush2.msra.mxu0 0.0
    %2818 = vmatprep.subr.mxu0 0.0
    %2819 = vmatpush2.msra.mxu0 0.0
    %2820 = vmatprep.subr.mxu0 0.0
    %2821 = vmatpush2.msra.mxu0 0.0
    %2822 = vmatprep.mubr.f32.mxu0 0.0
    %2823 = vmatmul.mubr.f32.gmra.mxu0 %v2615
    %v2824 = vpop.f32.mrf.mxu0
    %v2825 = vadd.f32 0.0, %v2824
    %v2826 = vpop.f32.mrf.mxu0
    %2827 = vmatprep.mubr.f32.mxu0 0.0
    %2828 = vmatmul.mubr.f32.gmra.mxu0 %v2618
    %v2829 = vpop.f32.mrf.mxu0
    %v2830 = vadd.f32 0.0, %v2829
    %v2831 = vpop.f32.mrf.mxu0
    %2832 = vmatprep.mubr.f32.mxu0 0.0
    %2833 = vmatmul.mubr.f32.gmra.mxu0 %v2621
    %v2834 = vpop.f32.mrf.mxu0
    %v2835 = vadd.f32 0.0, %v2834
    %v2836 = vpop.f32.mrf.mxu0
    %2837 = vmatprep.mubr.f32.mxu0 0.0
    %2838 = vmatmul.mubr.f32.gmra.mxu0 %v2624
    %v2839 = vpop.f32.mrf.mxu0
    %v2840 = vadd.f32 0.0, %v2839
    %v2841 = vpop.f32.mrf.mxu0
    %2842 = vmatprep.mubr.f32.mxu0 0.0
    %2843 = vmatmul.mubr.f32.gmra.mxu0 %v2627
    %v2844 = vpop.f32.mrf.mxu0
    %v2845 = vadd.f32 0.0, %v2844
    %v2846 = vpop.f32.mrf.mxu0
    %2847 = vmatprep.mubr.f32.mxu0 0.0
    %2848 = vmatmul.mubr.f32.gmra.mxu0 %v2630
    %v2849 = vpop.f32.mrf.mxu0
    %v2850 = vadd.f32 0.0, %v2849
    %v2851 = vpop.f32.mrf.mxu0
    %2852 = vmatprep.mubr.f32.mxu0 0.0
    %2853 = vmatmul.mubr.f32.gmra.mxu0 %v2633
    %v2854 = vpop.f32.mrf.mxu0
    %v2855 = vadd.f32 0.0, %v2854
    %v2856 = vpop.f32.mrf.mxu0
    %2857 = vmatprep.mubr.f32.mxu0 0.0
    %2858 = vmatmul.mubr.f32.gmra.mxu0 %v2636
    %v2859 = vpop.f32.mrf.mxu0
    %v2860 = vadd.f32 0.0, %v2859
    %v2861 = vpop.f32.mrf.mxu0
    %2862 = vmatprep.mubr.f32.mxu0 0.0
    %2863 = vmatmul.mubr.f32.gmra.mxu0 %v2639
    %v2864 = vpop.f32.mrf.mxu0
    %v2865 = vadd.f32 0.0, %v2864
    %v2866 = vpop.f32.mrf.mxu0
    %2867 = vmatprep.mubr.f32.mxu0 0.0
    %2868 = vmatmul.mubr.f32.gmra.mxu0 %v2642
    %v2869 = vpop.f32.mrf.mxu0
    %v2870 = vadd.f32 0.0, %v2869
    %v2871 = vpop.f32.mrf.mxu0
    %2872 = vmatprep.mubr.f32.mxu0 0.0
    %2873 = vmatmul.mubr.f32.gmra.mxu0 %v2645
    %v2874 = vpop.f32.mrf.mxu0
    %v2875 = vadd.f32 0.0, %v2874
    %v2876 = vpop.f32.mrf.mxu0
    %2877 = vmatprep.mubr.f32.mxu0 0.0
    %2878 = vmatmul.mubr.f32.gmra.mxu0 %v2648
    %v2879 = vpop.f32.mrf.mxu0
    %v2880 = vadd.f32 0.0, %v2879
    %v2881 = vpop.f32.mrf.mxu0
    %2882 = vmatprep.mubr.f32.mxu0 0.0
    %2883 = vmatmul.mubr.f32.gmra.mxu0 %v2651
    %v2884 = vpop.f32.mrf.mxu0
    %v2885 = vadd.f32 0.0, %v2884
    %v2886 = vpop.f32.mrf.mxu0
    %2887 = vmatprep.mubr.f32.mxu0 0.0
    %2888 = vmatmul.mubr.f32.gmra.mxu0 %v2654
    %v2889 = vpop.f32.mrf.mxu0
    %v2890 = vadd.f32 0.0, %v2889
    %v2891 = vpop.f32.mrf.mxu0
    %2892 = vmatprep.mubr.f32.mxu0 0.0
    %2893 = vmatmul.mubr.f32.gmra.mxu0 %v2657
    %v2894 = vpop.f32.mrf.mxu0
    %v2895 = vadd.f32 0.0, %v2894
    %v2896 = vpop.f32.mrf.mxu0
    %2897 = vmatprep.mubr.f32.mxu0 0.0
    %2898 = vmatmul.mubr.f32.gmra.mxu0 %v2660
    %v2899 = vpop.f32.mrf.mxu0
    %v2900 = vadd.f32 0.0, %v2899
    %v2901 = vpop.f32.mrf.mxu0
    %2902 = vmatprep.mubr.f32.mxu0 0.0
    %2903 = vmatmul.mubr.f32.gmra.mxu0 %v2663
    %v2904 = vpop.f32.mrf.mxu0
    %v2905 = vadd.f32 0.0, %v2904
    %v2906 = vpop.f32.mrf.mxu0
    %2907 = vmatprep.mubr.f32.mxu0 0.0
    %2908 = vmatmul.mubr.f32.gmra.mxu0 %v2666
    %v2909 = vpop.f32.mrf.mxu0
    %v2910 = vadd.f32 0.0, %v2909
    %v2911 = vpop.f32.mrf.mxu0
    %2912 = vmatprep.mubr.f32.mxu0 0.0
    %2913 = vmatmul.mubr.f32.gmra.mxu0 %v2669
    %v2914 = vpop.f32.mrf.mxu0
    %v2915 = vadd.f32 0.0, %v2914
    %v2916 = vpop.f32.mrf.mxu0
    %2917 = vmatprep.mubr.f32.mxu0 0.0
    %2918 = vmatmul.mubr.f32.gmra.mxu0 %v2672
    %v2919 = vpop.f32.mrf.mxu0
    %v2920 = vadd.f32 0.0, %v2919
    %v2921 = vpop.f32.mrf.mxu0
    %2922 = vmatprep.mubr.f32.mxu0 0.0
    %2923 = vmatmul.mubr.f32.gmra.mxu0 %v2675
    %v2924 = vpop.f32.mrf.mxu0
    %v2925 = vadd.f32 0.0, %v2924
    %v2926 = vpop.f32.mrf.mxu0
    %2927 = vmatprep.mubr.f32.mxu0 0.0
    %2928 = vmatmul.mubr.f32.gmra.mxu0 %v2678
    %v2929 = vpop.f32.mrf.mxu0
    %v2930 = vadd.f32 0.0, %v2929
    %v2931 = vpop.f32.mrf.mxu0
    %2932 = vmatprep.mubr.f32.mxu0 0.0
    %2933 = vmatmul.mubr.f32.gmra.mxu0 %v2681
    %v2934 = vpop.f32.mrf.mxu0
    %v2935 = vadd.f32 0.0, %v2934
    %v2936 = vpop.f32.mrf.mxu0
    %2937 = vmatprep.mubr.f32.mxu0 0.0
    %2938 = vmatmul.mubr.f32.gmra.mxu0 %v2684
    %v2939 = vpop.f32.mrf.mxu0
    %v2940 = vadd.f32 0.0, %v2939
    %v2941 = vpop.f32.mrf.mxu0
    %2942 = vmatprep.mubr.f32.mxu0 0.0
    %2943 = vmatmul.mubr.f32.gmra.mxu0 %v2687
    %v2944 = vpop.f32.mrf.mxu0
    %v2945 = vadd.f32 0.0, %v2944
    %v2946 = vpop.f32.mrf.mxu0
    %2947 = vmatprep.mubr.f32.mxu0 0.0
    %2948 = vmatmul.mubr.f32.gmra.mxu0 %v2690
    %v2949 = vpop.f32.mrf.mxu0
    %v2950 = vadd.f32 0.0, %v2949
    %v2951 = vpop.f32.mrf.mxu0
    %2952 = vmatprep.mubr.f32.mxu0 0.0
    %2953 = vmatmul.mubr.f32.gmra.mxu0 %v2693
    %v2954 = vpop.f32.mrf.mxu0
    %v2955 = vadd.f32 0.0, %v2954
    %v2956 = vpop.f32.mrf.mxu0
    %2957 = vmatprep.mubr.f32.mxu0 0.0
    %2958 = vmatmul.mubr.f32.gmra.mxu0 %v2696
    %v2959 = vpop.f32.mrf.mxu0
    %v2960 = vadd.f32 0.0, %v2959
    %v2961 = vpop.f32.mrf.mxu0
    %2962 = vmatprep.mubr.f32.mxu0 0.0
    %2963 = vmatmul.mubr.f32.gmra.mxu0 %v2699
    %v2964 = vpop.f32.mrf.mxu0
    %v2965 = vadd.f32 0.0, %v2964
    %v2966 = vpop.f32.mrf.mxu0
    %2967 = vmatprep.mubr.f32.mxu0 0.0
    %2968 = vmatmul.mubr.f32.gmra.mxu0 %v2702
    %v2969 = vpop.f32.mrf.mxu0
    %v2970 = vadd.f32 0.0, %v2969
    %v2971 = vpop.f32.mrf.mxu0
    %2972 = vmatprep.mubr.f32.mxu0 0.0
    %2973 = vmatmul.mubr.f32.gmra.mxu0 %v2705
    %v2974 = vpop.f32.mrf.mxu0
    %v2975 = vadd.f32 0.0, %v2974
    %v2976 = vpop.f32.mrf.mxu0
    %2977 = vmatprep.mubr.f32.mxu0 0.0
    %2978 = vmatmul.mubr.f32.gmra.mxu0 %v2708
    %v2979 = vpop.f32.mrf.mxu0
    %v2980 = vadd.f32 0.0, %v2979
    %v2981 = vpop.f32.mrf.mxu0
    %2982 = vmatprep.mubr.f32.mxu0 0.0
    %2983 = vmatmul.mubr.f32.gmra.mxu0 %v2711
    %v2984 = vpop.f32.mrf.mxu0
    %v2985 = vadd.f32 0.0, %v2984
    %v2986 = vpop.f32.mrf.mxu0
    %2987 = vmatprep.mubr.f32.mxu0 0.0
    %2988 = vmatmul.mubr.f32.gmra.mxu0 %v2714
    %v2989 = vpop.f32.mrf.mxu0
    %v2990 = vadd.f32 0.0, %v2989
    %v2991 = vpop.f32.mrf.mxu0
    %2992 = vmatprep.mubr.f32.mxu0 0.0
    %2993 = vmatmul.mubr.f32.gmra.mxu0 %v2717
    %v2994 = vpop.f32.mrf.mxu0
    %v2995 = vadd.f32 0.0, %v2994
    %v2996 = vpop.f32.mrf.mxu0
    %2997 = vmatprep.mubr.f32.mxu0 0.0
    %2998 = vmatmul.mubr.f32.gmra.mxu0 %v2720
    %v2999 = vpop.f32.mrf.mxu0
    %v3000 = vadd.f32 0.0, %v2999
    %v3001 = vpop.f32.mrf.mxu0
    %3002 = vmatprep.mubr.f32.mxu0 0.0
    %3003 = vmatmul.mubr.f32.gmra.mxu0 %v2723
    %v3004 = vpop.f32.mrf.mxu0
    %v3005 = vadd.f32 0.0, %v3004
    %v3006 = vpop.f32.mrf.mxu0
    %3007 = vmatprep.mubr.f32.mxu0 0.0
    %3008 = vmatmul.mubr.f32.gmra.mxu0 %v2726
    %v3009 = vpop.f32.mrf.mxu0
    %v3010 = vadd.f32 0.0, %v3009
    %v3011 = vpop.f32.mrf.mxu0
    %3012 = vmatprep.mubr.f32.mxu0 0.0
    %3013 = vmatmul.mubr.f32.gmra.mxu0 %v2729
    %v3014 = vpop.f32.mrf.mxu0
    %v3015 = vadd.f32 0.0, %v3014
    %v3016 = vpop.f32.mrf.mxu0
    %3017 = vmatprep.mubr.f32.mxu0 0.0
    %3018 = vmatmul.mubr.f32.gmra.mxu0 %v2732
    %v3019 = vpop.f32.mrf.mxu0
    %v3020 = vadd.f32 0.0, %v3019
    %v3021 = vpop.f32.mrf.mxu0
    %3022 = vmatprep.mubr.f32.mxu0 0.0
    %3023 = vmatmul.mubr.f32.gmra.mxu0 %v2735
    %v3024 = vpop.f32.mrf.mxu0
    %v3025 = vadd.f32 0.0, %v3024
    %v3026 = vpop.f32.mrf.mxu0
    %3027 = vmatprep.mubr.f32.mxu0 0.0
    %3028 = vmatmul.mubr.f32.gmra.mxu0 %v2738
    %v3029 = vpop.f32.mrf.mxu0
    %v3030 = vadd.f32 0.0, %v3029
    %v3031 = vpop.f32.mrf.mxu0
    %3032 = vmatprep.mubr.f32.mxu0 0.0
    %3033 = vmatmul.mubr.f32.gmra.mxu0 %v2741
    %v3034 = vpop.f32.mrf.mxu0
    %v3035 = vadd.f32 0.0, %v3034
    %v3036 = vpop.f32.mrf.mxu0
    %3037 = vmatprep.mubr.f32.mxu0 0.0
    %3038 = vmatmul.mubr.f32.gmra.mxu0 %v2744
    %v3039 = vpop.f32.mrf.mxu0
    %v3040 = vadd.f32 0.0, %v3039
    %v3041 = vpop.f32.mrf.mxu0
    %3042 = vmatprep.mubr.f32.mxu0 0.0
    %3043 = vmatmul.mubr.f32.gmra.mxu0 %v2747
    %v3044 = vpop.f32.mrf.mxu0
    %v3045 = vadd.f32 0.0, %v3044
    %v3046 = vpop.f32.mrf.mxu0
    %3047 = vmatprep.mubr.f32.mxu0 0.0
    %3048 = vmatmul.mubr.f32.gmra.mxu0 %v2750
    %v3049 = vpop.f32.mrf.mxu0
    %v3050 = vadd.f32 0.0, %v3049
    %v3051 = vpop.f32.mrf.mxu0
    %3052 = vmatprep.mubr.f32.mxu0 0.0
    %3053 = vmatmul.mubr.f32.gmra.mxu0 %v2753
    %v3054 = vpop.f32.mrf.mxu0
    %v3055 = vadd.f32 0.0, %v3054
    %v3056 = vpop.f32.mrf.mxu0
    %3057 = vmatprep.mubr.f32.mxu0 0.0
    %3058 = vmatmul.mubr.f32.gmra.mxu0 %v2756
    %v3059 = vpop.f32.mrf.mxu0
    %v3060 = vadd.f32 0.0, %v3059
    %v3061 = vpop.f32.mrf.mxu0
    %3062 = vdwg.mxu0
    %v3063 = vadd.f32 %v2323, %v2825
    %v3064 = vadd.f32 %v2328, %v2830
    %v3065 = vadd.f32 %v2333, %v2835
    %v3066 = vadd.f32 %v2338, %v2840
    %v3067 = vadd.f32 %v2343, %v2845
    %v3068 = vadd.f32 %v2348, %v2850
    %v3069 = vadd.f32 %v2353, %v2855
    %v3070 = vadd.f32 %v2358, %v2860
    %v3071 = vadd.f32 %v2363, %v2865
    %v3072 = vadd.f32 %v2368, %v2870
    %v3073 = vadd.f32 %v2373, %v2875
    %v3074 = vadd.f32 %v2378, %v2880
    %v3075 = vadd.f32 %v2383, %v2885
    %v3076 = vadd.f32 %v2388, %v2890
    %v3077 = vadd.f32 %v2393, %v2895
    %v3078 = vadd.f32 %v2398, %v2900
    %v3079 = vadd.f32 %v2403, %v2905
    %v3080 = vadd.f32 %v2408, %v2910
    %v3081 = vadd.f32 %v2413, %v2915
    %v3082 = vadd.f32 %v2418, %v2920
    %v3083 = vadd.f32 %v2423, %v2925
    %v3084 = vadd.f32 %v2428, %v2930
    %v3085 = vadd.f32 %v2433, %v2935
    %v3086 = vadd.f32 %v2438, %v2940
    %v3087 = vadd.f32 %v2443, %v2945
    %v3088 = vadd.f32 %v2448, %v2950
    %v3089 = vadd.f32 %v2453, %v2955
    %v3090 = vadd.f32 %v2458, %v2960
    %v3091 = vadd.f32 %v2463, %v2965
    %v3092 = vadd.f32 %v2468, %v2970
    %v3093 = vadd.f32 %v2473, %v2975
    %v3094 = vadd.f32 %v2478, %v2980
    %v3095 = vadd.f32 %v2483, %v2985
    %v3096 = vadd.f32 %v2488, %v2990
    %v3097 = vadd.f32 %v2493, %v2995
    %v3098 = vadd.f32 %v2498, %v3000
    %v3099 = vadd.f32 %v2503, %v3005
    %v3100 = vadd.f32 %v2508, %v3010
    %v3101 = vadd.f32 %v2513, %v3015
    %v3102 = vadd.f32 %v2518, %v3020
    %v3103 = vadd.f32 %v2523, %v3025
    %v3104 = vadd.f32 %v2528, %v3030
    %v3105 = vadd.f32 %v2533, %v3035
    %v3106 = vadd.f32 %v2538, %v3040
    %v3107 = vadd.f32 %v2543, %v3045
    %v3108 = vadd.f32 %v2548, %v3050
    %v3109 = vadd.f32 %v2553, %v3055
    %v3110 = vadd.f32 %v2558, %v3060
    %v3111 = vld [vmem:[#allocation3 + $0x3] sm:$0xff]
    %v3112 = vld [vmem:[#allocation3 + $0xb] sm:$0xff]
    %v3113 = vld [vmem:[#allocation3 + $0x13] sm:$0xff]
    %v3114 = vld [vmem:[#allocation3 + $0x1b] sm:$0xff]
    %v3115 = vld [vmem:[#allocation3 + $0x23] sm:$0xff]
    %v3116 = vld [vmem:[#allocation3 + $0x2b] sm:$0xff]
    %v3117 = vld [vmem:[#allocation3 + $0x33] sm:$0xff]
    %v3118 = vld [vmem:[#allocation3 + $0x3b] sm:$0xff]
    %v3119 = vld [vmem:[#allocation3 + $0x43] sm:$0xff]
    %v3120 = vld [vmem:[#allocation3 + $0x4b] sm:$0xff]
    %v3121 = vld [vmem:[#allocation3 + $0x53] sm:$0xff]
    %v3122 = vld [vmem:[#allocation3 + $0x5b] sm:$0xff]
    %v3123 = vld [vmem:[#allocation3 + $0x63] sm:$0xff]
    %v3124 = vld [vmem:[#allocation3 + $0x6b] sm:$0xff]
    %v3125 = vld [vmem:[#allocation3 + $0x73] sm:$0xff]
    %v3126 = vld [vmem:[#allocation3 + $0x7b] sm:$0xff]
    %v3127 = vld [vmem:[#allocation3 + $0x83] sm:$0xff]
    %v3128 = vld [vmem:[#allocation3 + $0x8b] sm:$0xff]
    %v3129 = vld [vmem:[#allocation3 + $0x93] sm:$0xff]
    %v3130 = vld [vmem:[#allocation3 + $0x9b] sm:$0xff]
    %v3131 = vld [vmem:[#allocation3 + $0xa3] sm:$0xff]
    %v3132 = vld [vmem:[#allocation3 + $0xab] sm:$0xff]
    %v3133 = vld [vmem:[#allocation3 + $0xb3] sm:$0xff]
    %v3134 = vld [vmem:[#allocation3 + $0xbb] sm:$0xff]
    %v3135 = vld [vmem:[#allocation3 + $0xc3] sm:$0xff]
    %v3136 = vld [vmem:[#allocation3 + $0xcb] sm:$0xff]
    %v3137 = vld [vmem:[#allocation3 + $0xd3] sm:$0xff]
    %v3138 = vld [vmem:[#allocation3 + $0xdb] sm:$0xff]
    %v3139 = vld [vmem:[#allocation3 + $0xe3] sm:$0xff]
    %v3140 = vld [vmem:[#allocation3 + $0xeb] sm:$0xff]
    %v3141 = vld [vmem:[#allocation3 + $0xf3] sm:$0xff]
    %v3142 = vld [vmem:[#allocation3 + $0xfb] sm:$0xff]
    %v3143 = vld [vmem:[#allocation3 + $0x103] sm:$0xff]
    %v3144 = vld [vmem:[#allocation3 + $0x10b] sm:$0xff]
    %v3145 = vld [vmem:[#allocation3 + $0x113] sm:$0xff]
    %v3146 = vld [vmem:[#allocation3 + $0x11b] sm:$0xff]
    %v3147 = vld [vmem:[#allocation3 + $0x123] sm:$0xff]
    %v3148 = vld [vmem:[#allocation3 + $0x12b] sm:$0xff]
    %v3149 = vld [vmem:[#allocation3 + $0x133] sm:$0xff]
    %v3150 = vld [vmem:[#allocation3 + $0x13b] sm:$0xff]
    %v3151 = vld [vmem:[#allocation3 + $0x143] sm:$0xff]
    %v3152 = vld [vmem:[#allocation3 + $0x14b] sm:$0xff]
    %v3153 = vld [vmem:[#allocation3 + $0x153] sm:$0xff]
    %v3154 = vld [vmem:[#allocation3 + $0x15b] sm:$0xff]
    %v3155 = vld [vmem:[#allocation3 + $0x163] sm:$0xff]
    %v3156 = vld [vmem:[#allocation3 + $0x16b] sm:$0xff]
    %v3157 = vld [vmem:[#allocation3 + $0x173] sm:$0xff]
    %v3158 = vld [vmem:[#allocation3 + $0x17b] sm:$0xff]
    %s3159 = scalar_lea.vmem %s3, 96
    %v3160 = vld [vmem:[%s3159] sm:$0xff]
    %v3161 = vld [vmem:[%s3159 + $0x8] sm:$0xff]
    %v3162 = vld [vmem:[%s3159 + $0x10] sm:$0xff]
    %v3163 = vld [vmem:[%s3159 + $0x18] sm:$0xff]
    %v3165 = vsel %vm1173, %v3111, 0
    %v3168 = vsel %vm1173, %v3112, 0
    %v3171 = vsel %vm1173, %v3113, 0
    %v3174 = vsel %vm1173, %v3114, 0
    %v3177 = vsel %vm1173, %v3115, 0
    %v3180 = vsel %vm1173, %v3116, 0
    %v3183 = vsel %vm1173, %v3117, 0
    %v3186 = vsel %vm1173, %v3118, 0
    %v3189 = vsel %vm1173, %v3119, 0
    %v3192 = vsel %vm1173, %v3120, 0
    %v3195 = vsel %vm1173, %v3121, 0
    %v3198 = vsel %vm1173, %v3122, 0
    %v3201 = vsel %vm1173, %v3123, 0
    %v3204 = vsel %vm1173, %v3124, 0
    %v3207 = vsel %vm1173, %v3125, 0
    %v3210 = vsel %vm1173, %v3126, 0
    %v3213 = vsel %vm1173, %v3127, 0
    %v3216 = vsel %vm1173, %v3128, 0
    %v3219 = vsel %vm1173, %v3129, 0
    %v3222 = vsel %vm1173, %v3130, 0
    %v3225 = vsel %vm1173, %v3131, 0
    %v3228 = vsel %vm1173, %v3132, 0
    %v3231 = vsel %vm1173, %v3133, 0
    %v3234 = vsel %vm1173, %v3134, 0
    %v3237 = vsel %vm1173, %v3135, 0
    %v3240 = vsel %vm1173, %v3136, 0
    %v3243 = vsel %vm1173, %v3137, 0
    %v3246 = vsel %vm1173, %v3138, 0
    %v3249 = vsel %vm1173, %v3139, 0
    %v3252 = vsel %vm1173, %v3140, 0
    %v3255 = vsel %vm1173, %v3141, 0
    %v3258 = vsel %vm1173, %v3142, 0
    %v3261 = vsel %vm1173, %v3143, 0
    %v3264 = vsel %vm1173, %v3144, 0
    %v3267 = vsel %vm1173, %v3145, 0
    %v3270 = vsel %vm1173, %v3146, 0
    %v3273 = vsel %vm1173, %v3147, 0
    %v3276 = vsel %vm1173, %v3148, 0
    %v3279 = vsel %vm1173, %v3149, 0
    %v3282 = vsel %vm1173, %v3150, 0
    %v3285 = vsel %vm1173, %v3151, 0
    %v3288 = vsel %vm1173, %v3152, 0
    %v3291 = vsel %vm1173, %v3153, 0
    %v3294 = vsel %vm1173, %v3154, 0
    %v3297 = vsel %vm1173, %v3155, 0
    %v3300 = vsel %vm1173, %v3156, 0
    %v3303 = vsel %vm1173, %v3157, 0
    %v3306 = vsel %vm1173, %v3158, 0
    %3308 = vmatprep.subr.mxu0 0.0
    %3309 = vmatpush1.msra.mxu0 0.0
    %3310 = vmatprep.subr.mxu0 0.0
    %3311 = vmatpush1.msra.mxu0 0.0
    %3312 = vmatprep.subr.mxu0 0.0
    %3313 = vmatpush1.msra.mxu0 0.0
    %3314 = vmatprep.subr.mxu0 0.0
    %3315 = vmatpush1.msra.mxu0 0.0
    %3316 = vmatprep.subr.mxu0 0.0
    %3317 = vmatpush1.msra.mxu0 0.0
    %3318 = vmatprep.subr.mxu0 0.0
    %3319 = vmatpush1.msra.mxu0 0.0
    %3320 = vmatprep.subr.mxu0 0.0
    %3321 = vmatpush1.msra.mxu0 0.0
    %3322 = vmatprep.subr.mxu0 0.0
    %3323 = vmatpush1.msra.mxu0 0.0
    %3324 = vmatprep.subr.mxu0 0.0
    %3325 = vmatpush1.msra.mxu0 0.0
    %3326 = vmatprep.subr.mxu0 0.0
    %3327 = vmatpush1.msra.mxu0 0.0
    %3328 = vmatprep.subr.mxu0 0.0
    %3329 = vmatpush1.msra.mxu0 0.0
    %3330 = vmatprep.subr.mxu0 0.0
    %3331 = vmatpush1.msra.mxu0 0.0
    %3332 = vmatprep.subr.mxu0 0.0
    %3333 = vmatpush1.msra.mxu0 %v3163
    %3334 = vmatprep.subr.mxu0 0.0
    %3335 = vmatpush1.msra.mxu0 %v3162
    %3336 = vmatprep.subr.mxu0 0.0
    %3337 = vmatpush1.msra.mxu0 %v3161
    %3338 = vmatprep.subr.mxu0 0.0
    %3339 = vmatpush1.msra.mxu0 %v3160
    %3340 = vmatprep.subr.mxu0 0.0
    %3341 = vmatpush2.msra.mxu0 0.0
    %3342 = vmatprep.subr.mxu0 0.0
    %3343 = vmatpush2.msra.mxu0 0.0
    %3344 = vmatprep.subr.mxu0 0.0
    %3345 = vmatpush2.msra.mxu0 0.0
    %3346 = vmatprep.subr.mxu0 0.0
    %3347 = vmatpush2.msra.mxu0 0.0
    %3348 = vmatprep.subr.mxu0 0.0
    %3349 = vmatpush2.msra.mxu0 0.0
    %3350 = vmatprep.subr.mxu0 0.0
    %3351 = vmatpush2.msra.mxu0 0.0
    %3352 = vmatprep.subr.mxu0 0.0
    %3353 = vmatpush2.msra.mxu0 0.0
    %3354 = vmatprep.subr.mxu0 0.0
    %3355 = vmatpush2.msra.mxu0 0.0
    %3356 = vmatprep.subr.mxu0 0.0
    %3357 = vmatpush2.msra.mxu0 0.0
    %3358 = vmatprep.subr.mxu0 0.0
    %3359 = vmatpush2.msra.mxu0 0.0
    %3360 = vmatprep.subr.mxu0 0.0
    %3361 = vmatpush2.msra.mxu0 0.0
    %3362 = vmatprep.subr.mxu0 0.0
    %3363 = vmatpush2.msra.mxu0 0.0
    %3364 = vmatprep.subr.mxu0 0.0
    %3365 = vmatpush2.msra.mxu0 0.0
    %3366 = vmatprep.subr.mxu0 0.0
    %3367 = vmatpush2.msra.mxu0 0.0
    %3368 = vmatprep.subr.mxu0 0.0
    %3369 = vmatpush2.msra.mxu0 0.0
    %3370 = vmatprep.subr.mxu0 0.0
    %3371 = vmatpush2.msra.mxu0 0.0
    %3372 = vmatprep.mubr.f32.mxu0 0.0
    %3373 = vmatmul.mubr.f32.gmra.mxu0 %v3165
    %v3374 = vpop.f32.mrf.mxu0
    %v3375 = vadd.f32 0.0, %v3374
    %v3376 = vpop.f32.mrf.mxu0
    %3377 = vmatprep.mubr.f32.mxu0 0.0
    %3378 = vmatmul.mubr.f32.gmra.mxu0 %v3168
    %v3379 = vpop.f32.mrf.mxu0
    %v3380 = vadd.f32 0.0, %v3379
    %v3381 = vpop.f32.mrf.mxu0
    %3382 = vmatprep.mubr.f32.mxu0 0.0
    %3383 = vmatmul.mubr.f32.gmra.mxu0 %v3171
    %v3384 = vpop.f32.mrf.mxu0
    %v3385 = vadd.f32 0.0, %v3384
    %v3386 = vpop.f32.mrf.mxu0
    %3387 = vmatprep.mubr.f32.mxu0 0.0
    %3388 = vmatmul.mubr.f32.gmra.mxu0 %v3174
    %v3389 = vpop.f32.mrf.mxu0
    %v3390 = vadd.f32 0.0, %v3389
    %v3391 = vpop.f32.mrf.mxu0
    %3392 = vmatprep.mubr.f32.mxu0 0.0
    %3393 = vmatmul.mubr.f32.gmra.mxu0 %v3177
    %v3394 = vpop.f32.mrf.mxu0
    %v3395 = vadd.f32 0.0, %v3394
    %v3396 = vpop.f32.mrf.mxu0
    %3397 = vmatprep.mubr.f32.mxu0 0.0
    %3398 = vmatmul.mubr.f32.gmra.mxu0 %v3180
    %v3399 = vpop.f32.mrf.mxu0
    %v3400 = vadd.f32 0.0, %v3399
    %v3401 = vpop.f32.mrf.mxu0
    %3402 = vmatprep.mubr.f32.mxu0 0.0
    %3403 = vmatmul.mubr.f32.gmra.mxu0 %v3183
    %v3404 = vpop.f32.mrf.mxu0
    %v3405 = vadd.f32 0.0, %v3404
    %v3406 = vpop.f32.mrf.mxu0
    %3407 = vmatprep.mubr.f32.mxu0 0.0
    %3408 = vmatmul.mubr.f32.gmra.mxu0 %v3186
    %v3409 = vpop.f32.mrf.mxu0
    %v3410 = vadd.f32 0.0, %v3409
    %v3411 = vpop.f32.mrf.mxu0
    %3412 = vmatprep.mubr.f32.mxu0 0.0
    %3413 = vmatmul.mubr.f32.gmra.mxu0 %v3189
    %v3414 = vpop.f32.mrf.mxu0
    %v3415 = vadd.f32 0.0, %v3414
    %v3416 = vpop.f32.mrf.mxu0
    %3417 = vmatprep.mubr.f32.mxu0 0.0
    %3418 = vmatmul.mubr.f32.gmra.mxu0 %v3192
    %v3419 = vpop.f32.mrf.mxu0
    %v3420 = vadd.f32 0.0, %v3419
    %v3421 = vpop.f32.mrf.mxu0
    %3422 = vmatprep.mubr.f32.mxu0 0.0
    %3423 = vmatmul.mubr.f32.gmra.mxu0 %v3195
    %v3424 = vpop.f32.mrf.mxu0
    %v3425 = vadd.f32 0.0, %v3424
    %v3426 = vpop.f32.mrf.mxu0
    %3427 = vmatprep.mubr.f32.mxu0 0.0
    %3428 = vmatmul.mubr.f32.gmra.mxu0 %v3198
    %v3429 = vpop.f32.mrf.mxu0
    %v3430 = vadd.f32 0.0, %v3429
    %v3431 = vpop.f32.mrf.mxu0
    %3432 = vmatprep.mubr.f32.mxu0 0.0
    %3433 = vmatmul.mubr.f32.gmra.mxu0 %v3201
    %v3434 = vpop.f32.mrf.mxu0
    %v3435 = vadd.f32 0.0, %v3434
    %v3436 = vpop.f32.mrf.mxu0
    %3437 = vmatprep.mubr.f32.mxu0 0.0
    %3438 = vmatmul.mubr.f32.gmra.mxu0 %v3204
    %v3439 = vpop.f32.mrf.mxu0
    %v3440 = vadd.f32 0.0, %v3439
    %v3441 = vpop.f32.mrf.mxu0
    %3442 = vmatprep.mubr.f32.mxu0 0.0
    %3443 = vmatmul.mubr.f32.gmra.mxu0 %v3207
    %v3444 = vpop.f32.mrf.mxu0
    %v3445 = vadd.f32 0.0, %v3444
    %v3446 = vpop.f32.mrf.mxu0
    %3447 = vmatprep.mubr.f32.mxu0 0.0
    %3448 = vmatmul.mubr.f32.gmra.mxu0 %v3210
    %v3449 = vpop.f32.mrf.mxu0
    %v3450 = vadd.f32 0.0, %v3449
    %v3451 = vpop.f32.mrf.mxu0
    %3452 = vmatprep.mubr.f32.mxu0 0.0
    %3453 = vmatmul.mubr.f32.gmra.mxu0 %v3213
    %v3454 = vpop.f32.mrf.mxu0
    %v3455 = vadd.f32 0.0, %v3454
    %v3456 = vpop.f32.mrf.mxu0
    %3457 = vmatprep.mubr.f32.mxu0 0.0
    %3458 = vmatmul.mubr.f32.gmra.mxu0 %v3216
    %v3459 = vpop.f32.mrf.mxu0
    %v3460 = vadd.f32 0.0, %v3459
    %v3461 = vpop.f32.mrf.mxu0
    %3462 = vmatprep.mubr.f32.mxu0 0.0
    %3463 = vmatmul.mubr.f32.gmra.mxu0 %v3219
    %v3464 = vpop.f32.mrf.mxu0
    %v3465 = vadd.f32 0.0, %v3464
    %v3466 = vpop.f32.mrf.mxu0
    %3467 = vmatprep.mubr.f32.mxu0 0.0
    %3468 = vmatmul.mubr.f32.gmra.mxu0 %v3222
    %v3469 = vpop.f32.mrf.mxu0
    %v3470 = vadd.f32 0.0, %v3469
    %v3471 = vpop.f32.mrf.mxu0
    %3472 = vmatprep.mubr.f32.mxu0 0.0
    %3473 = vmatmul.mubr.f32.gmra.mxu0 %v3225
    %v3474 = vpop.f32.mrf.mxu0
    %v3475 = vadd.f32 0.0, %v3474
    %v3476 = vpop.f32.mrf.mxu0
    %3477 = vmatprep.mubr.f32.mxu0 0.0
    %3478 = vmatmul.mubr.f32.gmra.mxu0 %v3228
    %v3479 = vpop.f32.mrf.mxu0
    %v3480 = vadd.f32 0.0, %v3479
    %v3481 = vpop.f32.mrf.mxu0
    %3482 = vmatprep.mubr.f32.mxu0 0.0
    %3483 = vmatmul.mubr.f32.gmra.mxu0 %v3231
    %v3484 = vpop.f32.mrf.mxu0
    %v3485 = vadd.f32 0.0, %v3484
    %v3486 = vpop.f32.mrf.mxu0
    %3487 = vmatprep.mubr.f32.mxu0 0.0
    %3488 = vmatmul.mubr.f32.gmra.mxu0 %v3234
    %v3489 = vpop.f32.mrf.mxu0
    %v3490 = vadd.f32 0.0, %v3489
    %v3491 = vpop.f32.mrf.mxu0
    %3492 = vmatprep.mubr.f32.mxu0 0.0
    %3493 = vmatmul.mubr.f32.gmra.mxu0 %v3237
    %v3494 = vpop.f32.mrf.mxu0
    %v3495 = vadd.f32 0.0, %v3494
    %v3496 = vpop.f32.mrf.mxu0
    %3497 = vmatprep.mubr.f32.mxu0 0.0
    %3498 = vmatmul.mubr.f32.gmra.mxu0 %v3240
    %v3499 = vpop.f32.mrf.mxu0
    %v3500 = vadd.f32 0.0, %v3499
    %v3501 = vpop.f32.mrf.mxu0
    %3502 = vmatprep.mubr.f32.mxu0 0.0
    %3503 = vmatmul.mubr.f32.gmra.mxu0 %v3243
    %v3504 = vpop.f32.mrf.mxu0
    %v3505 = vadd.f32 0.0, %v3504
    %v3506 = vpop.f32.mrf.mxu0
    %3507 = vmatprep.mubr.f32.mxu0 0.0
    %3508 = vmatmul.mubr.f32.gmra.mxu0 %v3246
    %v3509 = vpop.f32.mrf.mxu0
    %v3510 = vadd.f32 0.0, %v3509
    %v3511 = vpop.f32.mrf.mxu0
    %3512 = vmatprep.mubr.f32.mxu0 0.0
    %3513 = vmatmul.mubr.f32.gmra.mxu0 %v3249
    %v3514 = vpop.f32.mrf.mxu0
    %v3515 = vadd.f32 0.0, %v3514
    %v3516 = vpop.f32.mrf.mxu0
    %3517 = vmatprep.mubr.f32.mxu0 0.0
    %3518 = vmatmul.mubr.f32.gmra.mxu0 %v3252
    %v3519 = vpop.f32.mrf.mxu0
    %v3520 = vadd.f32 0.0, %v3519
    %v3521 = vpop.f32.mrf.mxu0
    %3522 = vmatprep.mubr.f32.mxu0 0.0
    %3523 = vmatmul.mubr.f32.gmra.mxu0 %v3255
    %v3524 = vpop.f32.mrf.mxu0
    %v3525 = vadd.f32 0.0, %v3524
    %v3526 = vpop.f32.mrf.mxu0
    %3527 = vmatprep.mubr.f32.mxu0 0.0
    %3528 = vmatmul.mubr.f32.gmra.mxu0 %v3258
    %v3529 = vpop.f32.mrf.mxu0
    %v3530 = vadd.f32 0.0, %v3529
    %v3531 = vpop.f32.mrf.mxu0
    %3532 = vmatprep.mubr.f32.mxu0 0.0
    %3533 = vmatmul.mubr.f32.gmra.mxu0 %v3261
    %v3534 = vpop.f32.mrf.mxu0
    %v3535 = vadd.f32 0.0, %v3534
    %v3536 = vpop.f32.mrf.mxu0
    %3537 = vmatprep.mubr.f32.mxu0 0.0
    %3538 = vmatmul.mubr.f32.gmra.mxu0 %v3264
    %v3539 = vpop.f32.mrf.mxu0
    %v3540 = vadd.f32 0.0, %v3539
    %v3541 = vpop.f32.mrf.mxu0
    %3542 = vmatprep.mubr.f32.mxu0 0.0
    %3543 = vmatmul.mubr.f32.gmra.mxu0 %v3267
    %v3544 = vpop.f32.mrf.mxu0
    %v3545 = vadd.f32 0.0, %v3544
    %v3546 = vpop.f32.mrf.mxu0
    %3547 = vmatprep.mubr.f32.mxu0 0.0
    %3548 = vmatmul.mubr.f32.gmra.mxu0 %v3270
    %v3549 = vpop.f32.mrf.mxu0
    %v3550 = vadd.f32 0.0, %v3549
    %v3551 = vpop.f32.mrf.mxu0
    %3552 = vmatprep.mubr.f32.mxu0 0.0
    %3553 = vmatmul.mubr.f32.gmra.mxu0 %v3273
    %v3554 = vpop.f32.mrf.mxu0
    %v3555 = vadd.f32 0.0, %v3554
    %v3556 = vpop.f32.mrf.mxu0
    %3557 = vmatprep.mubr.f32.mxu0 0.0
    %3558 = vmatmul.mubr.f32.gmra.mxu0 %v3276
    %v3559 = vpop.f32.mrf.mxu0
    %v3560 = vadd.f32 0.0, %v3559
    %v3561 = vpop.f32.mrf.mxu0
    %3562 = vmatprep.mubr.f32.mxu0 0.0
    %3563 = vmatmul.mubr.f32.gmra.mxu0 %v3279
    %v3564 = vpop.f32.mrf.mxu0
    %v3565 = vadd.f32 0.0, %v3564
    %v3566 = vpop.f32.mrf.mxu0
    %3567 = vmatprep.mubr.f32.mxu0 0.0
    %3568 = vmatmul.mubr.f32.gmra.mxu0 %v3282
    %v3569 = vpop.f32.mrf.mxu0
    %v3570 = vadd.f32 0.0, %v3569
    %v3571 = vpop.f32.mrf.mxu0
    %3572 = vmatprep.mubr.f32.mxu0 0.0
    %3573 = vmatmul.mubr.f32.gmra.mxu0 %v3285
    %v3574 = vpop.f32.mrf.mxu0
    %v3575 = vadd.f32 0.0, %v3574
    %v3576 = vpop.f32.mrf.mxu0
    %3577 = vmatprep.mubr.f32.mxu0 0.0
    %3578 = vmatmul.mubr.f32.gmra.mxu0 %v3288
    %v3579 = vpop.f32.mrf.mxu0
    %v3580 = vadd.f32 0.0, %v3579
    %v3581 = vpop.f32.mrf.mxu0
    %3582 = vmatprep.mubr.f32.mxu0 0.0
    %3583 = vmatmul.mubr.f32.gmra.mxu0 %v3291
    %v3584 = vpop.f32.mrf.mxu0
    %v3585 = vadd.f32 0.0, %v3584
    %v3586 = vpop.f32.mrf.mxu0
    %3587 = vmatprep.mubr.f32.mxu0 0.0
    %3588 = vmatmul.mubr.f32.gmra.mxu0 %v3294
    %v3589 = vpop.f32.mrf.mxu0
    %v3590 = vadd.f32 0.0, %v3589
    %v3591 = vpop.f32.mrf.mxu0
    %3592 = vmatprep.mubr.f32.mxu0 0.0
    %3593 = vmatmul.mubr.f32.gmra.mxu0 %v3297
    %v3594 = vpop.f32.mrf.mxu0
    %v3595 = vadd.f32 0.0, %v3594
    %v3596 = vpop.f32.mrf.mxu0
    %3597 = vmatprep.mubr.f32.mxu0 0.0
    %3598 = vmatmul.mubr.f32.gmra.mxu0 %v3300
    %v3599 = vpop.f32.mrf.mxu0
    %v3600 = vadd.f32 0.0, %v3599
    %v3601 = vpop.f32.mrf.mxu0
    %3602 = vmatprep.mubr.f32.mxu0 0.0
    %3603 = vmatmul.mubr.f32.gmra.mxu0 %v3303
    %v3604 = vpop.f32.mrf.mxu0
    %v3605 = vadd.f32 0.0, %v3604
    %v3606 = vpop.f32.mrf.mxu0
    %3607 = vmatprep.mubr.f32.mxu0 0.0
    %3608 = vmatmul.mubr.f32.gmra.mxu0 %v3306
    %v3609 = vpop.f32.mrf.mxu0
    %v3610 = vadd.f32 0.0, %v3609
    %v3611 = vpop.f32.mrf.mxu0
    %3612 = vdwg.mxu0
    %v3613 = vadd.f32 %v3063, %v3375
    %v3614 = vadd.f32 %v3064, %v3380
    %v3615 = vadd.f32 %v3065, %v3385
    %v3616 = vadd.f32 %v3066, %v3390
    %v3617 = vadd.f32 %v3067, %v3395
    %v3618 = vadd.f32 %v3068, %v3400
    %v3619 = vadd.f32 %v3069, %v3405
    %v3620 = vadd.f32 %v3070, %v3410
    %v3621 = vadd.f32 %v3071, %v3415
    %v3622 = vadd.f32 %v3072, %v3420
    %v3623 = vadd.f32 %v3073, %v3425
    %v3624 = vadd.f32 %v3074, %v3430
    %v3625 = vadd.f32 %v3075, %v3435
    %v3626 = vadd.f32 %v3076, %v3440
    %v3627 = vadd.f32 %v3077, %v3445
    %v3628 = vadd.f32 %v3078, %v3450
    %v3629 = vadd.f32 %v3079, %v3455
    %v3630 = vadd.f32 %v3080, %v3460
    %v3631 = vadd.f32 %v3081, %v3465
    %v3632 = vadd.f32 %v3082, %v3470
    %v3633 = vadd.f32 %v3083, %v3475
    %v3634 = vadd.f32 %v3084, %v3480
    %v3635 = vadd.f32 %v3085, %v3485
    %v3636 = vadd.f32 %v3086, %v3490
    %v3637 = vadd.f32 %v3087, %v3495
    %v3638 = vadd.f32 %v3088, %v3500
    %v3639 = vadd.f32 %v3089, %v3505
    %v3640 = vadd.f32 %v3090, %v3510
    %v3641 = vadd.f32 %v3091, %v3515
    %v3642 = vadd.f32 %v3092, %v3520
    %v3643 = vadd.f32 %v3093, %v3525
    %v3644 = vadd.f32 %v3094, %v3530
    %v3645 = vadd.f32 %v3095, %v3535
    %v3646 = vadd.f32 %v3096, %v3540
    %v3647 = vadd.f32 %v3097, %v3545
    %v3648 = vadd.f32 %v3098, %v3550
    %v3649 = vadd.f32 %v3099, %v3555
    %v3650 = vadd.f32 %v3100, %v3560
    %v3651 = vadd.f32 %v3101, %v3565
    %v3652 = vadd.f32 %v3102, %v3570
    %v3653 = vadd.f32 %v3103, %v3575
    %v3654 = vadd.f32 %v3104, %v3580
    %v3655 = vadd.f32 %v3105, %v3585
    %v3656 = vadd.f32 %v3106, %v3590
    %v3657 = vadd.f32 %v3107, %v3595
    %v3658 = vadd.f32 %v3108, %v3600
    %v3659 = vadd.f32 %v3109, %v3605
    %v3660 = vadd.f32 %v3110, %v3610
    %v3661 = vld [vmem:[#allocation3 + $0x4] sm:$0xff]
    %v3662 = vld [vmem:[#allocation3 + $0xc] sm:$0xff]
    %v3663 = vld [vmem:[#allocation3 + $0x14] sm:$0xff]
    %v3664 = vld [vmem:[#allocation3 + $0x1c] sm:$0xff]
    %v3665 = vld [vmem:[#allocation3 + $0x24] sm:$0xff]
    %v3666 = vld [vmem:[#allocation3 + $0x2c] sm:$0xff]
    %v3667 = vld [vmem:[#allocation3 + $0x34] sm:$0xff]
    %v3668 = vld [vmem:[#allocation3 + $0x3c] sm:$0xff]
    %v3669 = vld [vmem:[#allocation3 + $0x44] sm:$0xff]
    %v3670 = vld [vmem:[#allocation3 + $0x4c] sm:$0xff]
    %v3671 = vld [vmem:[#allocation3 + $0x54] sm:$0xff]
    %v3672 = vld [vmem:[#allocation3 + $0x5c] sm:$0xff]
    %v3673 = vld [vmem:[#allocation3 + $0x64] sm:$0xff]
    %v3674 = vld [vmem:[#allocation3 + $0x6c] sm:$0xff]
    %v3675 = vld [vmem:[#allocation3 + $0x74] sm:$0xff]
    %v3676 = vld [vmem:[#allocation3 + $0x7c] sm:$0xff]
    %v3677 = vld [vmem:[#allocation3 + $0x84] sm:$0xff]
    %v3678 = vld [vmem:[#allocation3 + $0x8c] sm:$0xff]
    %v3679 = vld [vmem:[#allocation3 + $0x94] sm:$0xff]
    %v3680 = vld [vmem:[#allocation3 + $0x9c] sm:$0xff]
    %v3681 = vld [vmem:[#allocation3 + $0xa4] sm:$0xff]
    %v3682 = vld [vmem:[#allocation3 + $0xac] sm:$0xff]
    %v3683 = vld [vmem:[#allocation3 + $0xb4] sm:$0xff]
    %v3684 = vld [vmem:[#allocation3 + $0xbc] sm:$0xff]
    %v3685 = vld [vmem:[#allocation3 + $0xc4] sm:$0xff]
    %v3686 = vld [vmem:[#allocation3 + $0xcc] sm:$0xff]
    %v3687 = vld [vmem:[#allocation3 + $0xd4] sm:$0xff]
    %v3688 = vld [vmem:[#allocation3 + $0xdc] sm:$0xff]
    %v3689 = vld [vmem:[#allocation3 + $0xe4] sm:$0xff]
    %v3690 = vld [vmem:[#allocation3 + $0xec] sm:$0xff]
    %v3691 = vld [vmem:[#allocation3 + $0xf4] sm:$0xff]
    %v3692 = vld [vmem:[#allocation3 + $0xfc] sm:$0xff]
    %v3693 = vld [vmem:[#allocation3 + $0x104] sm:$0xff]
    %v3694 = vld [vmem:[#allocation3 + $0x10c] sm:$0xff]
    %v3695 = vld [vmem:[#allocation3 + $0x114] sm:$0xff]
    %v3696 = vld [vmem:[#allocation3 + $0x11c] sm:$0xff]
    %v3697 = vld [vmem:[#allocation3 + $0x124] sm:$0xff]
    %v3698 = vld [vmem:[#allocation3 + $0x12c] sm:$0xff]
    %v3699 = vld [vmem:[#allocation3 + $0x134] sm:$0xff]
    %v3700 = vld [vmem:[#allocation3 + $0x13c] sm:$0xff]
    %v3701 = vld [vmem:[#allocation3 + $0x144] sm:$0xff]
    %v3702 = vld [vmem:[#allocation3 + $0x14c] sm:$0xff]
    %v3703 = vld [vmem:[#allocation3 + $0x154] sm:$0xff]
    %v3704 = vld [vmem:[#allocation3 + $0x15c] sm:$0xff]
    %v3705 = vld [vmem:[#allocation3 + $0x164] sm:$0xff]
    %v3706 = vld [vmem:[#allocation3 + $0x16c] sm:$0xff]
    %v3707 = vld [vmem:[#allocation3 + $0x174] sm:$0xff]
    %v3708 = vld [vmem:[#allocation3 + $0x17c] sm:$0xff]
    %s3709 = scalar_lea.vmem %s3, 128
    %v3710 = vld [vmem:[%s3709] sm:$0xff]
    %v3711 = vld [vmem:[%s3709 + $0x8] sm:$0xff]
    %v3712 = vld [vmem:[%s3709 + $0x10] sm:$0xff]
    %v3713 = vld [vmem:[%s3709 + $0x18] sm:$0xff]
    %v3715 = vsel %vm1173, %v3661, 0
    %v3718 = vsel %vm1173, %v3662, 0
    %v3721 = vsel %vm1173, %v3663, 0
    %v3724 = vsel %vm1173, %v3664, 0
    %v3727 = vsel %vm1173, %v3665, 0
    %v3730 = vsel %vm1173, %v3666, 0
    %v3733 = vsel %vm1173, %v3667, 0
    %v3736 = vsel %vm1173, %v3668, 0
    %v3739 = vsel %vm1173, %v3669, 0
    %v3742 = vsel %vm1173, %v3670, 0
    %v3745 = vsel %vm1173, %v3671, 0
    %v3748 = vsel %vm1173, %v3672, 0
    %v3751 = vsel %vm1173, %v3673, 0
    %v3754 = vsel %vm1173, %v3674, 0
    %v3757 = vsel %vm1173, %v3675, 0
    %v3760 = vsel %vm1173, %v3676, 0
    %v3763 = vsel %vm1173, %v3677, 0
    %v3766 = vsel %vm1173, %v3678, 0
    %v3769 = vsel %vm1173, %v3679, 0
    %v3772 = vsel %vm1173, %v3680, 0
    %v3775 = vsel %vm1173, %v3681, 0
    %v3778 = vsel %vm1173, %v3682, 0
    %v3781 = vsel %vm1173, %v3683, 0
    %v3784 = vsel %vm1173, %v3684, 0
    %v3787 = vsel %vm1173, %v3685, 0
    %v3790 = vsel %vm1173, %v3686, 0
    %v3793 = vsel %vm1173, %v3687, 0
    %v3796 = vsel %vm1173, %v3688, 0
    %v3799 = vsel %vm1173, %v3689, 0
    %v3802 = vsel %vm1173, %v3690, 0
    %v3805 = vsel %vm1173, %v3691, 0
    %v3808 = vsel %vm1173, %v3692, 0
    %v3811 = vsel %vm1173, %v3693, 0
    %v3814 = vsel %vm1173, %v3694, 0
    %v3817 = vsel %vm1173, %v3695, 0
    %v3820 = vsel %vm1173, %v3696, 0
    %v3823 = vsel %vm1173, %v3697, 0
    %v3826 = vsel %vm1173, %v3698, 0
    %v3829 = vsel %vm1173, %v3699, 0
    %v3832 = vsel %vm1173, %v3700, 0
    %v3835 = vsel %vm1173, %v3701, 0
    %v3838 = vsel %vm1173, %v3702, 0
    %v3841 = vsel %vm1173, %v3703, 0
    %v3844 = vsel %vm1173, %v3704, 0
    %v3847 = vsel %vm1173, %v3705, 0
    %v3850 = vsel %vm1173, %v3706, 0
    %v3853 = vsel %vm1173, %v3707, 0
    %v3856 = vsel %vm1173, %v3708, 0
    %3858 = vmatprep.subr.mxu0 0.0
    %3859 = vmatpush1.msra.mxu0 0.0
    %3860 = vmatprep.subr.mxu0 0.0
    %3861 = vmatpush1.msra.mxu0 0.0
    %3862 = vmatprep.subr.mxu0 0.0
    %3863 = vmatpush1.msra.mxu0 0.0
    %3864 = vmatprep.subr.mxu0 0.0
    %3865 = vmatpush1.msra.mxu0 0.0
    %3866 = vmatprep.subr.mxu0 0.0
    %3867 = vmatpush1.msra.mxu0 0.0
    %3868 = vmatprep.subr.mxu0 0.0
    %3869 = vmatpush1.msra.mxu0 0.0
    %3870 = vmatprep.subr.mxu0 0.0
    %3871 = vmatpush1.msra.mxu0 0.0
    %3872 = vmatprep.subr.mxu0 0.0
    %3873 = vmatpush1.msra.mxu0 0.0
    %3874 = vmatprep.subr.mxu0 0.0
    %3875 = vmatpush1.msra.mxu0 0.0
    %3876 = vmatprep.subr.mxu0 0.0
    %3877 = vmatpush1.msra.mxu0 0.0
    %3878 = vmatprep.subr.mxu0 0.0
    %3879 = vmatpush1.msra.mxu0 0.0
    %3880 = vmatprep.subr.mxu0 0.0
    %3881 = vmatpush1.msra.mxu0 0.0
    %3882 = vmatprep.subr.mxu0 0.0
    %3883 = vmatpush1.msra.mxu0 %v3713
    %3884 = vmatprep.subr.mxu0 0.0
    %3885 = vmatpush1.msra.mxu0 %v3712
    %3886 = vmatprep.subr.mxu0 0.0
    %3887 = vmatpush1.msra.mxu0 %v3711
    %3888 = vmatprep.subr.mxu0 0.0
    %3889 = vmatpush1.msra.mxu0 %v3710
    %3890 = vmatprep.subr.mxu0 0.0
    %3891 = vmatpush2.msra.mxu0 0.0
    %3892 = vmatprep.subr.mxu0 0.0
    %3893 = vmatpush2.msra.mxu0 0.0
    %3894 = vmatprep.subr.mxu0 0.0
    %3895 = vmatpush2.msra.mxu0 0.0
    %3896 = vmatprep.subr.mxu0 0.0
    %3897 = vmatpush2.msra.mxu0 0.0
    %3898 = vmatprep.subr.mxu0 0.0
    %3899 = vmatpush2.msra.mxu0 0.0
    %3900 = vmatprep.subr.mxu0 0.0
    %3901 = vmatpush2.msra.mxu0 0.0
    %3902 = vmatprep.subr.mxu0 0.0
    %3903 = vmatpush2.msra.mxu0 0.0
    %3904 = vmatprep.subr.mxu0 0.0
    %3905 = vmatpush2.msra.mxu0 0.0
    %3906 = vmatprep.subr.mxu0 0.0
    %3907 = vmatpush2.msra.mxu0 0.0
    %3908 = vmatprep.subr.mxu0 0.0
    %3909 = vmatpush2.msra.mxu0 0.0
    %3910 = vmatprep.subr.mxu0 0.0
    %3911 = vmatpush2.msra.mxu0 0.0
    %3912 = vmatprep.subr.mxu0 0.0
    %3913 = vmatpush2.msra.mxu0 0.0
    %3914 = vmatprep.subr.mxu0 0.0
    %3915 = vmatpush2.msra.mxu0 0.0
    %3916 = vmatprep.subr.mxu0 0.0
    %3917 = vmatpush2.msra.mxu0 0.0
    %3918 = vmatprep.subr.mxu0 0.0
    %3919 = vmatpush2.msra.mxu0 0.0
    %3920 = vmatprep.subr.mxu0 0.0
    %3921 = vmatpush2.msra.mxu0 0.0
    %3922 = vmatprep.mubr.f32.mxu0 0.0
    %3923 = vmatmul.mubr.f32.gmra.mxu0 %v3715
    %v3924 = vpop.f32.mrf.mxu0
    %v3925 = vadd.f32 0.0, %v3924
    %v3926 = vpop.f32.mrf.mxu0
    %3927 = vmatprep.mubr.f32.mxu0 0.0
    %3928 = vmatmul.mubr.f32.gmra.mxu0 %v3718
    %v3929 = vpop.f32.mrf.mxu0
    %v3930 = vadd.f32 0.0, %v3929
    %v3931 = vpop.f32.mrf.mxu0
    %3932 = vmatprep.mubr.f32.mxu0 0.0
    %3933 = vmatmul.mubr.f32.gmra.mxu0 %v3721
    %v3934 = vpop.f32.mrf.mxu0
    %v3935 = vadd.f32 0.0, %v3934
    %v3936 = vpop.f32.mrf.mxu0
    %3937 = vmatprep.mubr.f32.mxu0 0.0
    %3938 = vmatmul.mubr.f32.gmra.mxu0 %v3724
    %v3939 = vpop.f32.mrf.mxu0
    %v3940 = vadd.f32 0.0, %v3939
    %v3941 = vpop.f32.mrf.mxu0
    %3942 = vmatprep.mubr.f32.mxu0 0.0
    %3943 = vmatmul.mubr.f32.gmra.mxu0 %v3727
    %v3944 = vpop.f32.mrf.mxu0
    %v3945 = vadd.f32 0.0, %v3944
    %v3946 = vpop.f32.mrf.mxu0
    %3947 = vmatprep.mubr.f32.mxu0 0.0
    %3948 = vmatmul.mubr.f32.gmra.mxu0 %v3730
    %v3949 = vpop.f32.mrf.mxu0
    %v3950 = vadd.f32 0.0, %v3949
    %v3951 = vpop.f32.mrf.mxu0
    %3952 = vmatprep.mubr.f32.mxu0 0.0
    %3953 = vmatmul.mubr.f32.gmra.mxu0 %v3733
    %v3954 = vpop.f32.mrf.mxu0
    %v3955 = vadd.f32 0.0, %v3954
    %v3956 = vpop.f32.mrf.mxu0
    %3957 = vmatprep.mubr.f32.mxu0 0.0
    %3958 = vmatmul.mubr.f32.gmra.mxu0 %v3736
    %v3959 = vpop.f32.mrf.mxu0
    %v3960 = vadd.f32 0.0, %v3959
    %v3961 = vpop.f32.mrf.mxu0
    %3962 = vmatprep.mubr.f32.mxu0 0.0
    %3963 = vmatmul.mubr.f32.gmra.mxu0 %v3739
    %v3964 = vpop.f32.mrf.mxu0
    %v3965 = vadd.f32 0.0, %v3964
    %v3966 = vpop.f32.mrf.mxu0
    %3967 = vmatprep.mubr.f32.mxu0 0.0
    %3968 = vmatmul.mubr.f32.gmra.mxu0 %v3742
    %v3969 = vpop.f32.mrf.mxu0
    %v3970 = vadd.f32 0.0, %v3969
    %v3971 = vpop.f32.mrf.mxu0
    %3972 = vmatprep.mubr.f32.mxu0 0.0
    %3973 = vmatmul.mubr.f32.gmra.mxu0 %v3745
    %v3974 = vpop.f32.mrf.mxu0
    %v3975 = vadd.f32 0.0, %v3974
    %v3976 = vpop.f32.mrf.mxu0
    %3977 = vmatprep.mubr.f32.mxu0 0.0
    %3978 = vmatmul.mubr.f32.gmra.mxu0 %v3748
    %v3979 = vpop.f32.mrf.mxu0
    %v3980 = vadd.f32 0.0, %v3979
    %v3981 = vpop.f32.mrf.mxu0
    %3982 = vmatprep.mubr.f32.mxu0 0.0
    %3983 = vmatmul.mubr.f32.gmra.mxu0 %v3751
    %v3984 = vpop.f32.mrf.mxu0
    %v3985 = vadd.f32 0.0, %v3984
    %v3986 = vpop.f32.mrf.mxu0
    %3987 = vmatprep.mubr.f32.mxu0 0.0
    %3988 = vmatmul.mubr.f32.gmra.mxu0 %v3754
    %v3989 = vpop.f32.mrf.mxu0
    %v3990 = vadd.f32 0.0, %v3989
    %v3991 = vpop.f32.mrf.mxu0
    %3992 = vmatprep.mubr.f32.mxu0 0.0
    %3993 = vmatmul.mubr.f32.gmra.mxu0 %v3757
    %v3994 = vpop.f32.mrf.mxu0
    %v3995 = vadd.f32 0.0, %v3994
    %v3996 = vpop.f32.mrf.mxu0
    %3997 = vmatprep.mubr.f32.mxu0 0.0
    %3998 = vmatmul.mubr.f32.gmra.mxu0 %v3760
    %v3999 = vpop.f32.mrf.mxu0
    %v4000 = vadd.f32 0.0, %v3999
    %v4001 = vpop.f32.mrf.mxu0
    %4002 = vmatprep.mubr.f32.mxu0 0.0
    %4003 = vmatmul.mubr.f32.gmra.mxu0 %v3763
    %v4004 = vpop.f32.mrf.mxu0
    %v4005 = vadd.f32 0.0, %v4004
    %v4006 = vpop.f32.mrf.mxu0
    %4007 = vmatprep.mubr.f32.mxu0 0.0
    %4008 = vmatmul.mubr.f32.gmra.mxu0 %v3766
    %v4009 = vpop.f32.mrf.mxu0
    %v4010 = vadd.f32 0.0, %v4009
    %v4011 = vpop.f32.mrf.mxu0
    %4012 = vmatprep.mubr.f32.mxu0 0.0
    %4013 = vmatmul.mubr.f32.gmra.mxu0 %v3769
    %v4014 = vpop.f32.mrf.mxu0
    %v4015 = vadd.f32 0.0, %v4014
    %v4016 = vpop.f32.mrf.mxu0
    %4017 = vmatprep.mubr.f32.mxu0 0.0
    %4018 = vmatmul.mubr.f32.gmra.mxu0 %v3772
    %v4019 = vpop.f32.mrf.mxu0
    %v4020 = vadd.f32 0.0, %v4019
    %v4021 = vpop.f32.mrf.mxu0
    %4022 = vmatprep.mubr.f32.mxu0 0.0
    %4023 = vmatmul.mubr.f32.gmra.mxu0 %v3775
    %v4024 = vpop.f32.mrf.mxu0
    %v4025 = vadd.f32 0.0, %v4024
    %v4026 = vpop.f32.mrf.mxu0
    %4027 = vmatprep.mubr.f32.mxu0 0.0
    %4028 = vmatmul.mubr.f32.gmra.mxu0 %v3778
    %v4029 = vpop.f32.mrf.mxu0
    %v4030 = vadd.f32 0.0, %v4029
    %v4031 = vpop.f32.mrf.mxu0
    %4032 = vmatprep.mubr.f32.mxu0 0.0
    %4033 = vmatmul.mubr.f32.gmra.mxu0 %v3781
    %v4034 = vpop.f32.mrf.mxu0
    %v4035 = vadd.f32 0.0, %v4034
    %v4036 = vpop.f32.mrf.mxu0
    %4037 = vmatprep.mubr.f32.mxu0 0.0
    %4038 = vmatmul.mubr.f32.gmra.mxu0 %v3784
    %v4039 = vpop.f32.mrf.mxu0
    %v4040 = vadd.f32 0.0, %v4039
    %v4041 = vpop.f32.mrf.mxu0
    %4042 = vmatprep.mubr.f32.mxu0 0.0
    %4043 = vmatmul.mubr.f32.gmra.mxu0 %v3787
    %v4044 = vpop.f32.mrf.mxu0
    %v4045 = vadd.f32 0.0, %v4044
    %v4046 = vpop.f32.mrf.mxu0
    %4047 = vmatprep.mubr.f32.mxu0 0.0
    %4048 = vmatmul.mubr.f32.gmra.mxu0 %v3790
    %v4049 = vpop.f32.mrf.mxu0
    %v4050 = vadd.f32 0.0, %v4049
    %v4051 = vpop.f32.mrf.mxu0
    %4052 = vmatprep.mubr.f32.mxu0 0.0
    %4053 = vmatmul.mubr.f32.gmra.mxu0 %v3793
    %v4054 = vpop.f32.mrf.mxu0
    %v4055 = vadd.f32 0.0, %v4054
    %v4056 = vpop.f32.mrf.mxu0
    %4057 = vmatprep.mubr.f32.mxu0 0.0
    %4058 = vmatmul.mubr.f32.gmra.mxu0 %v3796
    %v4059 = vpop.f32.mrf.mxu0
    %v4060 = vadd.f32 0.0, %v4059
    %v4061 = vpop.f32.mrf.mxu0
    %4062 = vmatprep.mubr.f32.mxu0 0.0
    %4063 = vmatmul.mubr.f32.gmra.mxu0 %v3799
    %v4064 = vpop.f32.mrf.mxu0
    %v4065 = vadd.f32 0.0, %v4064
    %v4066 = vpop.f32.mrf.mxu0
    %4067 = vmatprep.mubr.f32.mxu0 0.0
    %4068 = vmatmul.mubr.f32.gmra.mxu0 %v3802
    %v4069 = vpop.f32.mrf.mxu0
    %v4070 = vadd.f32 0.0, %v4069
    %v4071 = vpop.f32.mrf.mxu0
    %4072 = vmatprep.mubr.f32.mxu0 0.0
    %4073 = vmatmul.mubr.f32.gmra.mxu0 %v3805
    %v4074 = vpop.f32.mrf.mxu0
    %v4075 = vadd.f32 0.0, %v4074
    %v4076 = vpop.f32.mrf.mxu0
    %4077 = vmatprep.mubr.f32.mxu0 0.0
    %4078 = vmatmul.mubr.f32.gmra.mxu0 %v3808
    %v4079 = vpop.f32.mrf.mxu0
    %v4080 = vadd.f32 0.0, %v4079
    %v4081 = vpop.f32.mrf.mxu0
    %4082 = vmatprep.mubr.f32.mxu0 0.0
    %4083 = vmatmul.mubr.f32.gmra.mxu0 %v3811
    %v4084 = vpop.f32.mrf.mxu0
    %v4085 = vadd.f32 0.0, %v4084
    %v4086 = vpop.f32.mrf.mxu0
    %4087 = vmatprep.mubr.f32.mxu0 0.0
    %4088 = vmatmul.mubr.f32.gmra.mxu0 %v3814
    %v4089 = vpop.f32.mrf.mxu0
    %v4090 = vadd.f32 0.0, %v4089
    %v4091 = vpop.f32.mrf.mxu0
    %4092 = vmatprep.mubr.f32.mxu0 0.0
    %4093 = vmatmul.mubr.f32.gmra.mxu0 %v3817
    %v4094 = vpop.f32.mrf.mxu0
    %v4095 = vadd.f32 0.0, %v4094
    %v4096 = vpop.f32.mrf.mxu0
    %4097 = vmatprep.mubr.f32.mxu0 0.0
    %4098 = vmatmul.mubr.f32.gmra.mxu0 %v3820
    %v4099 = vpop.f32.mrf.mxu0
    %v4100 = vadd.f32 0.0, %v4099
    %v4101 = vpop.f32.mrf.mxu0
    %4102 = vmatprep.mubr.f32.mxu0 0.0
    %4103 = vmatmul.mubr.f32.gmra.mxu0 %v3823
    %v4104 = vpop.f32.mrf.mxu0
    %v4105 = vadd.f32 0.0, %v4104
    %v4106 = vpop.f32.mrf.mxu0
    %4107 = vmatprep.mubr.f32.mxu0 0.0
    %4108 = vmatmul.mubr.f32.gmra.mxu0 %v3826
    %v4109 = vpop.f32.mrf.mxu0
    %v4110 = vadd.f32 0.0, %v4109
    %v4111 = vpop.f32.mrf.mxu0
    %4112 = vmatprep.mubr.f32.mxu0 0.0
    %4113 = vmatmul.mubr.f32.gmra.mxu0 %v3829
    %v4114 = vpop.f32.mrf.mxu0
    %v4115 = vadd.f32 0.0, %v4114
    %v4116 = vpop.f32.mrf.mxu0
    %4117 = vmatprep.mubr.f32.mxu0 0.0
    %4118 = vmatmul.mubr.f32.gmra.mxu0 %v3832
    %v4119 = vpop.f32.mrf.mxu0
    %v4120 = vadd.f32 0.0, %v4119
    %v4121 = vpop.f32.mrf.mxu0
    %4122 = vmatprep.mubr.f32.mxu0 0.0
    %4123 = vmatmul.mubr.f32.gmra.mxu0 %v3835
    %v4124 = vpop.f32.mrf.mxu0
    %v4125 = vadd.f32 0.0, %v4124
    %v4126 = vpop.f32.mrf.mxu0
    %4127 = vmatprep.mubr.f32.mxu0 0.0
    %4128 = vmatmul.mubr.f32.gmra.mxu0 %v3838
    %v4129 = vpop.f32.mrf.mxu0
    %v4130 = vadd.f32 0.0, %v4129
    %v4131 = vpop.f32.mrf.mxu0
    %4132 = vmatprep.mubr.f32.mxu0 0.0
    %4133 = vmatmul.mubr.f32.gmra.mxu0 %v3841
    %v4134 = vpop.f32.mrf.mxu0
    %v4135 = vadd.f32 0.0, %v4134
    %v4136 = vpop.f32.mrf.mxu0
    %4137 = vmatprep.mubr.f32.mxu0 0.0
    %4138 = vmatmul.mubr.f32.gmra.mxu0 %v3844
    %v4139 = vpop.f32.mrf.mxu0
    %v4140 = vadd.f32 0.0, %v4139
    %v4141 = vpop.f32.mrf.mxu0
    %4142 = vmatprep.mubr.f32.mxu0 0.0
    %4143 = vmatmul.mubr.f32.gmra.mxu0 %v3847
    %v4144 = vpop.f32.mrf.mxu0
    %v4145 = vadd.f32 0.0, %v4144
    %v4146 = vpop.f32.mrf.mxu0
    %4147 = vmatprep.mubr.f32.mxu0 0.0
    %4148 = vmatmul.mubr.f32.gmra.mxu0 %v3850
    %v4149 = vpop.f32.mrf.mxu0
    %v4150 = vadd.f32 0.0, %v4149
    %v4151 = vpop.f32.mrf.mxu0
    %4152 = vmatprep.mubr.f32.mxu0 0.0
    %4153 = vmatmul.mubr.f32.gmra.mxu0 %v3853
    %v4154 = vpop.f32.mrf.mxu0
    %v4155 = vadd.f32 0.0, %v4154
    %v4156 = vpop.f32.mrf.mxu0
    %4157 = vmatprep.mubr.f32.mxu0 0.0
    %4158 = vmatmul.mubr.f32.gmra.mxu0 %v3856
    %v4159 = vpop.f32.mrf.mxu0
    %v4160 = vadd.f32 0.0, %v4159
    %v4161 = vpop.f32.mrf.mxu0
    %4162 = vdwg.mxu0
    %v4163 = vadd.f32 %v3613, %v3925
    %v4164 = vadd.f32 %v3614, %v3930
    %v4165 = vadd.f32 %v3615, %v3935
    %v4166 = vadd.f32 %v3616, %v3940
    %v4167 = vadd.f32 %v3617, %v3945
    %v4168 = vadd.f32 %v3618, %v3950
    %v4169 = vadd.f32 %v3619, %v3955
    %v4170 = vadd.f32 %v3620, %v3960
    %v4171 = vadd.f32 %v3621, %v3965
    %v4172 = vadd.f32 %v3622, %v3970
    %v4173 = vadd.f32 %v3623, %v3975
    %v4174 = vadd.f32 %v3624, %v3980
    %v4175 = vadd.f32 %v3625, %v3985
    %v4176 = vadd.f32 %v3626, %v3990
    %v4177 = vadd.f32 %v3627, %v3995
    %v4178 = vadd.f32 %v3628, %v4000
    %v4179 = vadd.f32 %v3629, %v4005
    %v4180 = vadd.f32 %v3630, %v4010
    %v4181 = vadd.f32 %v3631, %v4015
    %v4182 = vadd.f32 %v3632, %v4020
    %v4183 = vadd.f32 %v3633, %v4025
    %v4184 = vadd.f32 %v3634, %v4030
    %v4185 = vadd.f32 %v3635, %v4035
    %v4186 = vadd.f32 %v3636, %v4040
    %v4187 = vadd.f32 %v3637, %v4045
    %v4188 = vadd.f32 %v3638, %v4050
    %v4189 = vadd.f32 %v3639, %v4055
    %v4190 = vadd.f32 %v3640, %v4060
    %v4191 = vadd.f32 %v3641, %v4065
    %v4192 = vadd.f32 %v3642, %v4070
    %v4193 = vadd.f32 %v3643, %v4075
    %v4194 = vadd.f32 %v3644, %v4080
    %v4195 = vadd.f32 %v3645, %v4085
    %v4196 = vadd.f32 %v3646, %v4090
    %v4197 = vadd.f32 %v3647, %v4095
    %v4198 = vadd.f32 %v3648, %v4100
    %v4199 = vadd.f32 %v3649, %v4105
    %v4200 = vadd.f32 %v3650, %v4110
    %v4201 = vadd.f32 %v3651, %v4115
    %v4202 = vadd.f32 %v3652, %v4120
    %v4203 = vadd.f32 %v3653, %v4125
    %v4204 = vadd.f32 %v3654, %v4130
    %v4205 = vadd.f32 %v3655, %v4135
    %v4206 = vadd.f32 %v3656, %v4140
    %v4207 = vadd.f32 %v3657, %v4145
    %v4208 = vadd.f32 %v3658, %v4150
    %v4209 = vadd.f32 %v3659, %v4155
    %v4210 = vadd.f32 %v3660, %v4160
    %v4211 = vld [vmem:[%s4] sm:$0x1]
    %v4213 = vlaneseq
    %v4214 = vshrl.u32 %v4213, 7
    %v4215 = vsub.s32 0, %v4214
    %v4216 = vrot.slane %v4211, %v4215
    %v4218 = vadd.f32 %v4163, %v4216
    %v4219 = vadd.f32 %v4164, %v4216
    %v4220 = vadd.f32 %v4165, %v4216
    %v4221 = vadd.f32 %v4166, %v4216
    %v4222 = vadd.f32 %v4167, %v4216
    %v4223 = vadd.f32 %v4168, %v4216
    %v4224 = vadd.f32 %v4169, %v4216
    %v4225 = vadd.f32 %v4170, %v4216
    %v4226 = vadd.f32 %v4171, %v4216
    %v4227 = vadd.f32 %v4172, %v4216
    %v4228 = vadd.f32 %v4173, %v4216
    %v4229 = vadd.f32 %v4174, %v4216
    %v4230 = vadd.f32 %v4175, %v4216
    %v4231 = vadd.f32 %v4176, %v4216
    %v4232 = vadd.f32 %v4177, %v4216
    %v4233 = vadd.f32 %v4178, %v4216
    %v4234 = vadd.f32 %v4179, %v4216
    %v4235 = vadd.f32 %v4180, %v4216
    %v4236 = vadd.f32 %v4181, %v4216
    %v4237 = vadd.f32 %v4182, %v4216
    %v4238 = vadd.f32 %v4183, %v4216
    %v4239 = vadd.f32 %v4184, %v4216
    %v4240 = vadd.f32 %v4185, %v4216
    %v4241 = vadd.f32 %v4186, %v4216
    %v4242 = vadd.f32 %v4187, %v4216
    %v4243 = vadd.f32 %v4188, %v4216
    %v4244 = vadd.f32 %v4189, %v4216
    %v4245 = vadd.f32 %v4190, %v4216
    %v4246 = vadd.f32 %v4191, %v4216
    %v4247 = vadd.f32 %v4192, %v4216
    %v4248 = vadd.f32 %v4193, %v4216
    %v4249 = vadd.f32 %v4194, %v4216
    %v4250 = vadd.f32 %v4195, %v4216
    %v4251 = vadd.f32 %v4196, %v4216
    %v4252 = vadd.f32 %v4197, %v4216
    %v4253 = vadd.f32 %v4198, %v4216
    %v4254 = vadd.f32 %v4199, %v4216
    %v4255 = vadd.f32 %v4200, %v4216
    %v4256 = vadd.f32 %v4201, %v4216
    %v4257 = vadd.f32 %v4202, %v4216
    %v4258 = vadd.f32 %v4203, %v4216
    %v4259 = vadd.f32 %v4204, %v4216
    %v4260 = vadd.f32 %v4205, %v4216
    %v4261 = vadd.f32 %v4206, %v4216
    %v4262 = vadd.f32 %v4207, %v4216
    %v4263 = vadd.f32 %v4208, %v4216
    %v4264 = vadd.f32 %v4209, %v4216
    %v4265 = vadd.f32 %v4210, %v4216
    %v4266 = vmul.f32 %v4218, 0.01
    %v4267 = vmul.f32 %v4219, 0.01
    %v4268 = vmul.f32 %v4220, 0.01
    %v4269 = vmul.f32 %v4221, 0.01
    %v4270 = vmul.f32 %v4222, 0.01
    %v4271 = vmul.f32 %v4223, 0.01
    %v4272 = vmul.f32 %v4224, 0.01
    %v4273 = vmul.f32 %v4225, 0.01
    %v4274 = vmul.f32 %v4226, 0.01
    %v4275 = vmul.f32 %v4227, 0.01
    %v4276 = vmul.f32 %v4228, 0.01
    %v4277 = vmul.f32 %v4229, 0.01
    %v4278 = vmul.f32 %v4230, 0.01
    %v4279 = vmul.f32 %v4231, 0.01
    %v4280 = vmul.f32 %v4232, 0.01
    %v4281 = vmul.f32 %v4233, 0.01
    %v4282 = vmul.f32 %v4234, 0.01
    %v4283 = vmul.f32 %v4235, 0.01
    %v4284 = vmul.f32 %v4236, 0.01
    %v4285 = vmul.f32 %v4237, 0.01
    %v4286 = vmul.f32 %v4238, 0.01
    %v4287 = vmul.f32 %v4239, 0.01
    %v4288 = vmul.f32 %v4240, 0.01
    %v4289 = vmul.f32 %v4241, 0.01
    %v4290 = vmul.f32 %v4242, 0.01
    %v4291 = vmul.f32 %v4243, 0.01
    %v4292 = vmul.f32 %v4244, 0.01
    %v4293 = vmul.f32 %v4245, 0.01
    %v4294 = vmul.f32 %v4246, 0.01
    %v4295 = vmul.f32 %v4247, 0.01
    %v4296 = vmul.f32 %v4248, 0.01
    %v4297 = vmul.f32 %v4249, 0.01
    %v4298 = vmul.f32 %v4250, 0.01
    %v4299 = vmul.f32 %v4251, 0.01
    %v4300 = vmul.f32 %v4252, 0.01
    %v4301 = vmul.f32 %v4253, 0.01
    %v4302 = vmul.f32 %v4254, 0.01
    %v4303 = vmul.f32 %v4255, 0.01
    %v4304 = vmul.f32 %v4256, 0.01
    %v4305 = vmul.f32 %v4257, 0.01
    %v4306 = vmul.f32 %v4258, 0.01
    %v4307 = vmul.f32 %v4259, 0.01
    %v4308 = vmul.f32 %v4260, 0.01
    %v4309 = vmul.f32 %v4261, 0.01
    %v4310 = vmul.f32 %v4262, 0.01
    %v4311 = vmul.f32 %v4263, 0.01
    %v4312 = vmul.f32 %v4264, 0.01
    %v4313 = vmul.f32 %v4265, 0.01
    %v4314 = vmax.f32 %v4218, %v4266
    %v4315 = vmax.f32 %v4219, %v4267
    %v4316 = vmax.f32 %v4220, %v4268
    %v4317 = vmax.f32 %v4221, %v4269
    %v4318 = vmax.f32 %v4222, %v4270
    %v4319 = vmax.f32 %v4223, %v4271
    %v4320 = vmax.f32 %v4224, %v4272
    %v4321 = vmax.f32 %v4225, %v4273
    %v4322 = vmax.f32 %v4226, %v4274
    %v4323 = vmax.f32 %v4227, %v4275
    %v4324 = vmax.f32 %v4228, %v4276
    %v4325 = vmax.f32 %v4229, %v4277
    %v4326 = vmax.f32 %v4230, %v4278
    %v4327 = vmax.f32 %v4231, %v4279
    %v4328 = vmax.f32 %v4232, %v4280
    %v4329 = vmax.f32 %v4233, %v4281
    %v4330 = vmax.f32 %v4234, %v4282
    %v4331 = vmax.f32 %v4235, %v4283
    %v4332 = vmax.f32 %v4236, %v4284
    %v4333 = vmax.f32 %v4237, %v4285
    %v4334 = vmax.f32 %v4238, %v4286
    %v4335 = vmax.f32 %v4239, %v4287
    %v4336 = vmax.f32 %v4240, %v4288
    %v4337 = vmax.f32 %v4241, %v4289
    %v4338 = vmax.f32 %v4242, %v4290
    %v4339 = vmax.f32 %v4243, %v4291
    %v4340 = vmax.f32 %v4244, %v4292
    %v4341 = vmax.f32 %v4245, %v4293
    %v4342 = vmax.f32 %v4246, %v4294
    %v4343 = vmax.f32 %v4247, %v4295
    %v4344 = vmax.f32 %v4248, %v4296
    %v4345 = vmax.f32 %v4249, %v4297
    %v4346 = vmax.f32 %v4250, %v4298
    %v4347 = vmax.f32 %v4251, %v4299
    %v4348 = vmax.f32 %v4252, %v4300
    %v4349 = vmax.f32 %v4253, %v4301
    %v4350 = vmax.f32 %v4254, %v4302
    %v4351 = vmax.f32 %v4255, %v4303
    %v4352 = vmax.f32 %v4256, %v4304
    %v4353 = vmax.f32 %v4257, %v4305
    %v4354 = vmax.f32 %v4258, %v4306
    %v4355 = vmax.f32 %v4259, %v4307
    %v4356 = vmax.f32 %v4260, %v4308
    %v4357 = vmax.f32 %v4261, %v4309
    %v4358 = vmax.f32 %v4262, %v4310
    %v4359 = vmax.f32 %v4263, %v4311
    %v4360 = vmax.f32 %v4264, %v4312
    %v4361 = vmax.f32 %v4265, %v4313
    %vm4362 = vcmask 523264
    %4363 = vst.msk [vmem:[#allocation4] sm:$0xff] %vm4362, %v4314
    %4364 = vst.msk [vmem:[#allocation4 + $0x8] sm:$0xff] %vm4362, %v4315
    %4365 = vst.msk [vmem:[#allocation4 + $0x10] sm:$0xff] %vm4362, %v4316
    %4366 = vst.msk [vmem:[#allocation4 + $0x18] sm:$0xff] %vm4362, %v4317
    %4367 = vst.msk [vmem:[#allocation4 + $0x20] sm:$0xff] %vm4362, %v4318
    %4368 = vst.msk [vmem:[#allocation4 + $0x28] sm:$0xff] %vm4362, %v4319
    %4369 = vst.msk [vmem:[#allocation4 + $0x30] sm:$0xff] %vm4362, %v4320
    %4370 = vst.msk [vmem:[#allocation4 + $0x38] sm:$0xff] %vm4362, %v4321
    %4371 = vst.msk [vmem:[#allocation4 + $0x40] sm:$0xff] %vm4362, %v4322
    %4372 = vst.msk [vmem:[#allocation4 + $0x48] sm:$0xff] %vm4362, %v4323
    %4373 = vst.msk [vmem:[#allocation4 + $0x50] sm:$0xff] %vm4362, %v4324
    %4374 = vst.msk [vmem:[#allocation4 + $0x58] sm:$0xff] %vm4362, %v4325
    %4375 = vst.msk [vmem:[#allocation4 + $0x60] sm:$0xff] %vm4362, %v4326
    %4376 = vst.msk [vmem:[#allocation4 + $0x68] sm:$0xff] %vm4362, %v4327
    %4377 = vst.msk [vmem:[#allocation4 + $0x70] sm:$0xff] %vm4362, %v4328
    %4378 = vst.msk [vmem:[#allocation4 + $0x78] sm:$0xff] %vm4362, %v4329
    %4379 = vst.msk [vmem:[#allocation4 + $0x80] sm:$0xff] %vm4362, %v4330
    %4380 = vst.msk [vmem:[#allocation4 + $0x88] sm:$0xff] %vm4362, %v4331
    %4381 = vst.msk [vmem:[#allocation4 + $0x90] sm:$0xff] %vm4362, %v4332
    %4382 = vst.msk [vmem:[#allocation4 + $0x98] sm:$0xff] %vm4362, %v4333
    %4383 = vst.msk [vmem:[#allocation4 + $0xa0] sm:$0xff] %vm4362, %v4334
    %4384 = vst.msk [vmem:[#allocation4 + $0xa8] sm:$0xff] %vm4362, %v4335
    %4385 = vst.msk [vmem:[#allocation4 + $0xb0] sm:$0xff] %vm4362, %v4336
    %4386 = vst.msk [vmem:[#allocation4 + $0xb8] sm:$0xff] %vm4362, %v4337
    %4387 = vst.msk [vmem:[#allocation4 + $0xc0] sm:$0xff] %vm4362, %v4338
    %4388 = vst.msk [vmem:[#allocation4 + $0xc8] sm:$0xff] %vm4362, %v4339
    %4389 = vst.msk [vmem:[#allocation4 + $0xd0] sm:$0xff] %vm4362, %v4340
    %4390 = vst.msk [vmem:[#allocation4 + $0xd8] sm:$0xff] %vm4362, %v4341
    %4391 = vst.msk [vmem:[#allocation4 + $0xe0] sm:$0xff] %vm4362, %v4342
    %4392 = vst.msk [vmem:[#allocation4 + $0xe8] sm:$0xff] %vm4362, %v4343
    %4393 = vst.msk [vmem:[#allocation4 + $0xf0] sm:$0xff] %vm4362, %v4344
    %4394 = vst.msk [vmem:[#allocation4 + $0xf8] sm:$0xff] %vm4362, %v4345
    %4395 = vst.msk [vmem:[#allocation4 + $0x100] sm:$0xff] %vm4362, %v4346
    %4396 = vst.msk [vmem:[#allocation4 + $0x108] sm:$0xff] %vm4362, %v4347
    %4397 = vst.msk [vmem:[#allocation4 + $0x110] sm:$0xff] %vm4362, %v4348
    %4398 = vst.msk [vmem:[#allocation4 + $0x118] sm:$0xff] %vm4362, %v4349
    %4399 = vst.msk [vmem:[#allocation4 + $0x120] sm:$0xff] %vm4362, %v4350
    %4400 = vst.msk [vmem:[#allocation4 + $0x128] sm:$0xff] %vm4362, %v4351
    %4401 = vst.msk [vmem:[#allocation4 + $0x130] sm:$0xff] %vm4362, %v4352
    %4402 = vst.msk [vmem:[#allocation4 + $0x138] sm:$0xff] %vm4362, %v4353
    %4403 = vst.msk [vmem:[#allocation4 + $0x140] sm:$0xff] %vm4362, %v4354
    %4404 = vst.msk [vmem:[#allocation4 + $0x148] sm:$0xff] %vm4362, %v4355
    %4405 = vst.msk [vmem:[#allocation4 + $0x150] sm:$0xff] %vm4362, %v4356
    %4406 = vst.msk [vmem:[#allocation4 + $0x158] sm:$0xff] %vm4362, %v4357
    %4407 = vst.msk [vmem:[#allocation4 + $0x160] sm:$0xff] %vm4362, %v4358
    %4408 = vst.msk [vmem:[#allocation4 + $0x168] sm:$0xff] %vm4362, %v4359
    %4409 = vst.msk [vmem:[#allocation4 + $0x170] sm:$0xff] %vm4362, %v4360
    %4410 = vst.msk [vmem:[#allocation4 + $0x178] sm:$0xff] %vm4362, %v4361
    %v4411 = vld [vmem:[#allocation4] ss:$2 sm:$0xff]
    %s4412 = scalar_lea.vmem [#allocation4], 16
    %v4413 = vld [vmem:[%s4412] ss:$2 sm:$0xff]
    %s4414 = scalar_lea.vmem [#allocation4], 32
    %v4415 = vld [vmem:[%s4414] ss:$2 sm:$0xff]
    %s4416 = scalar_lea.vmem [#allocation4], 48
    %v4417 = vld [vmem:[%s4416] ss:$2 sm:$0xff]
    %s4418 = scalar_lea.vmem [#allocation4], 64
    %v4419 = vld [vmem:[%s4418] ss:$2 sm:$0xff]
    %s4420 = scalar_lea.vmem [#allocation4], 80
    %v4421 = vld [vmem:[%s4420] ss:$2 sm:$0xff]
    %s4422 = scalar_lea.vmem [#allocation4], 96
    %v4423 = vld [vmem:[%s4422] ss:$2 sm:$0xff]
    %s4424 = scalar_lea.vmem [#allocation4], 112
    %v4425 = vld [vmem:[%s4424] ss:$2 sm:$0xff]
    %s4426 = scalar_lea.vmem [#allocation4], 128
    %v4427 = vld [vmem:[%s4426] ss:$2 sm:$0xff]
    %s4428 = scalar_lea.vmem [#allocation4], 144
    %v4429 = vld [vmem:[%s4428] ss:$2 sm:$0xff]
    %s4430 = scalar_lea.vmem [#allocation4], 160
    %v4431 = vld [vmem:[%s4430] ss:$2 sm:$0xff]
    %s4432 = scalar_lea.vmem [#allocation4], 176
    %v4433 = vld [vmem:[%s4432] ss:$2 sm:$0xff]
    %s4434 = scalar_lea.vmem [#allocation4], 192
    %v4435 = vld [vmem:[%s4434] ss:$2 sm:$0xff]
    %s4436 = scalar_lea.vmem [#allocation4], 208
    %v4437 = vld [vmem:[%s4436] ss:$2 sm:$0xff]
    %s4438 = scalar_lea.vmem [#allocation4], 224
    %v4439 = vld [vmem:[%s4438] ss:$2 sm:$0xff]
    %s4440 = scalar_lea.vmem [#allocation4], 240
    %v4441 = vld [vmem:[%s4440] ss:$2 sm:$0xff]
    %s4442 = scalar_lea.vmem [#allocation4], 256
    %v4443 = vld [vmem:[%s4442] ss:$2 sm:$0xff]
    %s4444 = scalar_lea.vmem [#allocation4], 272
    %v4445 = vld [vmem:[%s4444] ss:$2 sm:$0xff]
    %s4446 = scalar_lea.vmem [#allocation4], 288
    %v4447 = vld [vmem:[%s4446] ss:$2 sm:$0xff]
    %s4448 = scalar_lea.vmem [#allocation4], 304
    %v4449 = vld [vmem:[%s4448] ss:$2 sm:$0xff]
    %s4450 = scalar_lea.vmem [#allocation4], 320
    %v4451 = vld [vmem:[%s4450] ss:$2 sm:$0xff]
    %s4452 = scalar_lea.vmem [#allocation4], 336
    %v4453 = vld [vmem:[%s4452] ss:$2 sm:$0xff]
    %s4454 = scalar_lea.vmem [#allocation4], 352
    %v4455 = vld [vmem:[%s4454] ss:$2 sm:$0xff]
    %s4456 = scalar_lea.vmem [#allocation4], 368
    %v4457 = vld [vmem:[%s4456] ss:$2 sm:$0xff]
    %s4458 = scalar_lea.vmem [#allocation4], 1
    %v4459 = vld [vmem:[%s4458] ss:$2 sm:$0xff]
    %s4460 = scalar_lea.vmem [#allocation4], 17
    %v4461 = vld [vmem:[%s4460] ss:$2 sm:$0xff]
    %s4462 = scalar_lea.vmem [#allocation4], 33
    %v4463 = vld [vmem:[%s4462] ss:$2 sm:$0xff]
    %s4464 = scalar_lea.vmem [#allocation4], 49
    %v4465 = vld [vmem:[%s4464] ss:$2 sm:$0xff]
    %s4466 = scalar_lea.vmem [#allocation4], 65
    %v4467 = vld [vmem:[%s4466] ss:$2 sm:$0xff]
    %s4468 = scalar_lea.vmem [#allocation4], 81
    %v4469 = vld [vmem:[%s4468] ss:$2 sm:$0xff]
    %s4470 = scalar_lea.vmem [#allocation4], 97
    %v4471 = vld [vmem:[%s4470] ss:$2 sm:$0xff]
    %s4472 = scalar_lea.vmem [#allocation4], 113
    %v4473 = vld [vmem:[%s4472] ss:$2 sm:$0xff]
    %s4474 = scalar_lea.vmem [#allocation4], 129
    %v4475 = vld [vmem:[%s4474] ss:$2 sm:$0xff]
    %s4476 = scalar_lea.vmem [#allocation4], 145
    %v4477 = vld [vmem:[%s4476] ss:$2 sm:$0xff]
    %s4478 = scalar_lea.vmem [#allocation4], 161
    %v4479 = vld [vmem:[%s4478] ss:$2 sm:$0xff]
    %s4480 = scalar_lea.vmem [#allocation4], 177
    %v4481 = vld [vmem:[%s4480] ss:$2 sm:$0xff]
    %s4482 = scalar_lea.vmem [#allocation4], 193
    %v4483 = vld [vmem:[%s4482] ss:$2 sm:$0xff]
    %s4484 = scalar_lea.vmem [#allocation4], 209
    %v4485 = vld [vmem:[%s4484] ss:$2 sm:$0xff]
    %s4486 = scalar_lea.vmem [#allocation4], 225
    %v4487 = vld [vmem:[%s4486] ss:$2 sm:$0xff]
    %s4488 = scalar_lea.vmem [#allocation4], 241
    %v4489 = vld [vmem:[%s4488] ss:$2 sm:$0xff]
    %s4490 = scalar_lea.vmem [#allocation4], 257
    %v4491 = vld [vmem:[%s4490] ss:$2 sm:$0xff]
    %s4492 = scalar_lea.vmem [#allocation4], 273
    %v4493 = vld [vmem:[%s4492] ss:$2 sm:$0xff]
    %s4494 = scalar_lea.vmem [#allocation4], 289
    %v4495 = vld [vmem:[%s4494] ss:$2 sm:$0xff]
    %s4496 = scalar_lea.vmem [#allocation4], 305
    %v4497 = vld [vmem:[%s4496] ss:$2 sm:$0xff]
    %s4498 = scalar_lea.vmem [#allocation4], 321
    %v4499 = vld [vmem:[%s4498] ss:$2 sm:$0xff]
    %s4500 = scalar_lea.vmem [#allocation4], 337
    %v4501 = vld [vmem:[%s4500] ss:$2 sm:$0xff]
    %s4502 = scalar_lea.vmem [#allocation4], 353
    %v4503 = vld [vmem:[%s4502] ss:$2 sm:$0xff]
    %s4504 = scalar_lea.vmem [#allocation4], 369
    %v4505 = vld [vmem:[%s4504] ss:$2 sm:$0xff]
    %v4506 = vmax.f32 %v4411, %v4459
    %v4507 = vmax.f32 %v4413, %v4461
    %v4508 = vmax.f32 %v4415, %v4463
    %v4509 = vmax.f32 %v4417, %v4465
    %v4510 = vmax.f32 %v4419, %v4467
    %v4511 = vmax.f32 %v4421, %v4469
    %v4512 = vmax.f32 %v4423, %v4471
    %v4513 = vmax.f32 %v4425, %v4473
    %v4514 = vmax.f32 %v4427, %v4475
    %v4515 = vmax.f32 %v4429, %v4477
    %v4516 = vmax.f32 %v4431, %v4479
    %v4517 = vmax.f32 %v4433, %v4481
    %v4518 = vmax.f32 %v4435, %v4483
    %v4519 = vmax.f32 %v4437, %v4485
    %v4520 = vmax.f32 %v4439, %v4487
    %v4521 = vmax.f32 %v4441, %v4489
    %v4522 = vmax.f32 %v4443, %v4491
    %v4523 = vmax.f32 %v4445, %v4493
    %v4524 = vmax.f32 %v4447, %v4495
    %v4525 = vmax.f32 %v4449, %v4497
    %v4526 = vmax.f32 %v4451, %v4499
    %v4527 = vmax.f32 %v4453, %v4501
    %v4528 = vmax.f32 %v4455, %v4503
    %v4529 = vmax.f32 %v4457, %v4505
    %4530 = vst.msk [vmem:[#allocation5] sm:$0xff] %vm4362, %v4506
    %4531 = vst.msk [vmem:[#allocation5 + $0x8] sm:$0xff] %vm4362, %v4507
    %4532 = vst.msk [vmem:[#allocation5 + $0x10] sm:$0xff] %vm4362, %v4508
    %4533 = vst.msk [vmem:[#allocation5 + $0x18] sm:$0xff] %vm4362, %v4509
    %4534 = vst.msk [vmem:[#allocation5 + $0x20] sm:$0xff] %vm4362, %v4510
    %4535 = vst.msk [vmem:[#allocation5 + $0x28] sm:$0xff] %vm4362, %v4511
    %4536 = vst.msk [vmem:[#allocation5 + $0x30] sm:$0xff] %vm4362, %v4512
    %4537 = vst.msk [vmem:[#allocation5 + $0x38] sm:$0xff] %vm4362, %v4513
    %4538 = vst.msk [vmem:[#allocation5 + $0x40] sm:$0xff] %vm4362, %v4514
    %4539 = vst.msk [vmem:[#allocation5 + $0x48] sm:$0xff] %vm4362, %v4515
    %4540 = vst.msk [vmem:[#allocation5 + $0x50] sm:$0xff] %vm4362, %v4516
    %4541 = vst.msk [vmem:[#allocation5 + $0x58] sm:$0xff] %vm4362, %v4517
    %4542 = vst.msk [vmem:[#allocation5 + $0x60] sm:$0xff] %vm4362, %v4518
    %4543 = vst.msk [vmem:[#allocation5 + $0x68] sm:$0xff] %vm4362, %v4519
    %4544 = vst.msk [vmem:[#allocation5 + $0x70] sm:$0xff] %vm4362, %v4520
    %4545 = vst.msk [vmem:[#allocation5 + $0x78] sm:$0xff] %vm4362, %v4521
    %4546 = vst.msk [vmem:[#allocation5 + $0x80] sm:$0xff] %vm4362, %v4522
    %4547 = vst.msk [vmem:[#allocation5 + $0x88] sm:$0xff] %vm4362, %v4523
    %4548 = vst.msk [vmem:[#allocation5 + $0x90] sm:$0xff] %vm4362, %v4524
    %4549 = vst.msk [vmem:[#allocation5 + $0x98] sm:$0xff] %vm4362, %v4525
    %4550 = vst.msk [vmem:[#allocation5 + $0xa0] sm:$0xff] %vm4362, %v4526
    %4551 = vst.msk [vmem:[#allocation5 + $0xa8] sm:$0xff] %vm4362, %v4527
    %4552 = vst.msk [vmem:[#allocation5 + $0xb0] sm:$0xff] %vm4362, %v4528
    %4553 = vst.msk [vmem:[#allocation5 + $0xb8] sm:$0xff] %vm4362, %v4529
    %4554 = vst.msk [vmem:[#allocation5 + $0xc0] sm:$0xff] %vm4362, 0.0
    %v4555 = vld [vmem:[#allocation5] sm:$0xff]
    %v4556 = vld [vmem:[#allocation5 + $0x8] sm:$0xff]
    %v4557 = vld [vmem:[#allocation5 + $0x10] sm:$0xff]
    %v4558 = vld [vmem:[#allocation5 + $0x18] sm:$0xff]
    %v4559 = vld [vmem:[#allocation5 + $0x20] sm:$0xff]
    %v4560 = vld [vmem:[#allocation5 + $0x28] sm:$0xff]
    %v4561 = vld [vmem:[#allocation5 + $0x30] sm:$0xff]
    %v4562 = vld [vmem:[#allocation5 + $0x38] sm:$0xff]
    %v4563 = vld [vmem:[#allocation5 + $0x40] sm:$0xff]
    %v4564 = vld [vmem:[#allocation5 + $0x48] sm:$0xff]
    %v4565 = vld [vmem:[#allocation5 + $0x50] sm:$0xff]
    %v4566 = vld [vmem:[#allocation5 + $0x58] sm:$0xff]
    %v4567 = vld [vmem:[#allocation5 + $0x60] sm:$0xff]
    %v4568 = vld [vmem:[#allocation5 + $0x68] sm:$0xff]
    %v4569 = vld [vmem:[#allocation5 + $0x70] sm:$0xff]
    %v4570 = vld [vmem:[#allocation5 + $0x78] sm:$0xff]
    %v4571 = vld [vmem:[#allocation5 + $0x80] sm:$0xff]
    %v4572 = vld [vmem:[#allocation5 + $0x88] sm:$0xff]
    %v4573 = vld [vmem:[#allocation5 + $0x90] sm:$0xff]
    %v4574 = vld [vmem:[#allocation5 + $0x98] sm:$0xff]
    %v4575 = vld [vmem:[#allocation5 + $0xa0] sm:$0xff]
    %v4576 = vld [vmem:[#allocation5 + $0xa8] sm:$0xff]
    %v4577 = vld [vmem:[#allocation5 + $0xb0] sm:$0xff]
    %v4578 = vld [vmem:[#allocation5 + $0xb8] sm:$0xff]
    %v4579 = vld [vmem:[%s5] sm:$0xff]
    %v4580 = vld [vmem:[%s5 + $0x8] sm:$0xff]
    %v4581 = vld [vmem:[%s5 + $0x10] sm:$0xff]
    %v4582 = vld [vmem:[%s5 + $0x18] sm:$0xff]
    %v4583 = vld [vmem:[%s5 + $0x20] sm:$0xff]
    %v4584 = vld [vmem:[%s5 + $0x28] sm:$0xff]
    %v4585 = vld [vmem:[%s5 + $0x30] sm:$0xff]
    %v4586 = vld [vmem:[%s5 + $0x38] sm:$0xff]
    %v4587 = vld [vmem:[#allocation5 + $0x1] sm:$0xff]
    %v4588 = vld [vmem:[#allocation5 + $0x9] sm:$0xff]
    %v4589 = vld [vmem:[#allocation5 + $0x11] sm:$0xff]
    %v4590 = vld [vmem:[#allocation5 + $0x19] sm:$0xff]
    %v4591 = vld [vmem:[#allocation5 + $0x21] sm:$0xff]
    %v4592 = vld [vmem:[#allocation5 + $0x29] sm:$0xff]
    %v4593 = vld [vmem:[#allocation5 + $0x31] sm:$0xff]
    %v4594 = vld [vmem:[#allocation5 + $0x39] sm:$0xff]
    %v4595 = vld [vmem:[#allocation5 + $0x41] sm:$0xff]
    %v4596 = vld [vmem:[#allocation5 + $0x49] sm:$0xff]
    %v4597 = vld [vmem:[#allocation5 + $0x51] sm:$0xff]
    %v4598 = vld [vmem:[#allocation5 + $0x59] sm:$0xff]
    %v4599 = vld [vmem:[#allocation5 + $0x61] sm:$0xff]
    %v4600 = vld [vmem:[#allocation5 + $0x69] sm:$0xff]
    %v4601 = vld [vmem:[#allocation5 + $0x71] sm:$0xff]
    %v4602 = vld [vmem:[#allocation5 + $0x79] sm:$0xff]
    %v4603 = vld [vmem:[#allocation5 + $0x81] sm:$0xff]
    %v4604 = vld [vmem:[#allocation5 + $0x89] sm:$0xff]
    %v4605 = vld [vmem:[#allocation5 + $0x91] sm:$0xff]
    %v4606 = vld [vmem:[#allocation5 + $0x99] sm:$0xff]
    %v4607 = vld [vmem:[#allocation5 + $0xa1] sm:$0xff]
    %v4608 = vld [vmem:[#allocation5 + $0xa9] sm:$0xff]
    %v4609 = vld [vmem:[#allocation5 + $0xb1] sm:$0xff]
    %v4610 = vld [vmem:[#allocation5 + $0xb9] sm:$0xff]
    %s4611 = scalar_lea.vmem %s5, 64
    %v4612 = vld [vmem:[%s4611] sm:$0xff]
    %v4613 = vld [vmem:[%s4611 + $0x8] sm:$0xff]
    %v4614 = vld [vmem:[%s4611 + $0x10] sm:$0xff]
    %v4615 = vld [vmem:[%s4611 + $0x18] sm:$0xff]
    %v4616 = vld [vmem:[%s4611 + $0x20] sm:$0xff]
    %v4617 = vld [vmem:[%s4611 + $0x28] sm:$0xff]
    %v4618 = vld [vmem:[%s4611 + $0x30] sm:$0xff]
    %v4619 = vld [vmem:[%s4611 + $0x38] sm:$0xff]
    %v4621 = vsel %vm4362, %v4587, 0
    %v4624 = vsel %vm4362, %v4588, 0
    %v4627 = vsel %vm4362, %v4589, 0
    %v4630 = vsel %vm4362, %v4590, 0
    %v4633 = vsel %vm4362, %v4591, 0
    %v4636 = vsel %vm4362, %v4592, 0
    %v4639 = vsel %vm4362, %v4593, 0
    %v4642 = vsel %vm4362, %v4594, 0
    %v4645 = vsel %vm4362, %v4595, 0
    %v4648 = vsel %vm4362, %v4596, 0
    %v4651 = vsel %vm4362, %v4597, 0
    %v4654 = vsel %vm4362, %v4598, 0
    %v4657 = vsel %vm4362, %v4599, 0
    %v4660 = vsel %vm4362, %v4600, 0
    %v4663 = vsel %vm4362, %v4601, 0
    %v4666 = vsel %vm4362, %v4602, 0
    %v4669 = vsel %vm4362, %v4603, 0
    %v4672 = vsel %vm4362, %v4604, 0
    %v4675 = vsel %vm4362, %v4605, 0
    %v4678 = vsel %vm4362, %v4606, 0
    %v4681 = vsel %vm4362, %v4607, 0
    %v4684 = vsel %vm4362, %v4608, 0
    %v4687 = vsel %vm4362, %v4609, 0
    %v4690 = vsel %vm4362, %v4610, 0
    %4692 = vmatprep.subr.mxu0 0.0
    %4693 = vmatpush1.msra.mxu0 0.0
    %4694 = vmatprep.subr.mxu0 0.0
    %4695 = vmatpush1.msra.mxu0 0.0
    %4696 = vmatprep.subr.mxu0 0.0
    %4697 = vmatpush1.msra.mxu0 0.0
    %4698 = vmatprep.subr.mxu0 0.0
    %4699 = vmatpush1.msra.mxu0 0.0
    %4700 = vmatprep.subr.mxu0 0.0
    %4701 = vmatpush1.msra.mxu0 0.0
    %4702 = vmatprep.subr.mxu0 0.0
    %4703 = vmatpush1.msra.mxu0 0.0
    %4704 = vmatprep.subr.mxu0 0.0
    %4705 = vmatpush1.msra.mxu0 0.0
    %4706 = vmatprep.subr.mxu0 0.0
    %4707 = vmatpush1.msra.mxu0 0.0
    %4708 = vmatprep.subr.mxu0 0.0
    %4709 = vmatpush1.msra.mxu0 %v4619
    %4710 = vmatprep.subr.mxu0 0.0
    %4711 = vmatpush1.msra.mxu0 %v4618
    %4712 = vmatprep.subr.mxu0 0.0
    %4713 = vmatpush1.msra.mxu0 %v4617
    %4714 = vmatprep.subr.mxu0 0.0
    %4715 = vmatpush1.msra.mxu0 %v4616
    %4716 = vmatprep.subr.mxu0 0.0
    %4717 = vmatpush1.msra.mxu0 %v4615
    %4718 = vmatprep.subr.mxu0 0.0
    %4719 = vmatpush1.msra.mxu0 %v4614
    %4720 = vmatprep.subr.mxu0 0.0
    %4721 = vmatpush1.msra.mxu0 %v4613
    %4722 = vmatprep.subr.mxu0 0.0
    %4723 = vmatpush1.msra.mxu0 %v4612
    %4724 = vmatprep.subr.mxu0 0.0
    %4725 = vmatpush2.msra.mxu0 0.0
    %4726 = vmatprep.subr.mxu0 0.0
    %4727 = vmatpush2.msra.mxu0 0.0
    %4728 = vmatprep.subr.mxu0 0.0
    %4729 = vmatpush2.msra.mxu0 0.0
    %4730 = vmatprep.subr.mxu0 0.0
    %4731 = vmatpush2.msra.mxu0 0.0
    %4732 = vmatprep.subr.mxu0 0.0
    %4733 = vmatpush2.msra.mxu0 0.0
    %4734 = vmatprep.subr.mxu0 0.0
    %4735 = vmatpush2.msra.mxu0 0.0
    %4736 = vmatprep.subr.mxu0 0.0
    %4737 = vmatpush2.msra.mxu0 0.0
    %4738 = vmatprep.subr.mxu0 0.0
    %4739 = vmatpush2.msra.mxu0 0.0
    %4740 = vmatprep.subr.mxu0 0.0
    %4741 = vmatpush2.msra.mxu0 0.0
    %4742 = vmatprep.subr.mxu0 0.0
    %4743 = vmatpush2.msra.mxu0 0.0
    %4744 = vmatprep.subr.mxu0 0.0
    %4745 = vmatpush2.msra.mxu0 0.0
    %4746 = vmatprep.subr.mxu0 0.0
    %4747 = vmatpush2.msra.mxu0 0.0
    %4748 = vmatprep.subr.mxu0 0.0
    %4749 = vmatpush2.msra.mxu0 0.0
    %4750 = vmatprep.subr.mxu0 0.0
    %4751 = vmatpush2.msra.mxu0 0.0
    %4752 = vmatprep.subr.mxu0 0.0
    %4753 = vmatpush2.msra.mxu0 0.0
    %4754 = vmatprep.subr.mxu0 0.0
    %4755 = vmatpush2.msra.mxu0 0.0
    %4756 = vmatprep.mubr.f32.mxu0 0.0
    %4757 = vmatmul.mubr.f32.gmra.mxu0 %v4621
    %v4758 = vpop.f32.mrf.mxu0
    %v4759 = vadd.f32 0.0, %v4758
    %v4760 = vpop.f32.mrf.mxu0
    %4761 = vmatprep.mubr.f32.mxu0 0.0
    %4762 = vmatmul.mubr.f32.gmra.mxu0 %v4624
    %v4763 = vpop.f32.mrf.mxu0
    %v4764 = vadd.f32 0.0, %v4763
    %v4765 = vpop.f32.mrf.mxu0
    %4766 = vmatprep.mubr.f32.mxu0 0.0
    %4767 = vmatmul.mubr.f32.gmra.mxu0 %v4627
    %v4768 = vpop.f32.mrf.mxu0
    %v4769 = vadd.f32 0.0, %v4768
    %v4770 = vpop.f32.mrf.mxu0
    %4771 = vmatprep.mubr.f32.mxu0 0.0
    %4772 = vmatmul.mubr.f32.gmra.mxu0 %v4630
    %v4773 = vpop.f32.mrf.mxu0
    %v4774 = vadd.f32 0.0, %v4773
    %v4775 = vpop.f32.mrf.mxu0
    %4776 = vmatprep.mubr.f32.mxu0 0.0
    %4777 = vmatmul.mubr.f32.gmra.mxu0 %v4633
    %v4778 = vpop.f32.mrf.mxu0
    %v4779 = vadd.f32 0.0, %v4778
    %v4780 = vpop.f32.mrf.mxu0
    %4781 = vmatprep.mubr.f32.mxu0 0.0
    %4782 = vmatmul.mubr.f32.gmra.mxu0 %v4636
    %v4783 = vpop.f32.mrf.mxu0
    %v4784 = vadd.f32 0.0, %v4783
    %v4785 = vpop.f32.mrf.mxu0
    %4786 = vmatprep.mubr.f32.mxu0 0.0
    %4787 = vmatmul.mubr.f32.gmra.mxu0 %v4639
    %v4788 = vpop.f32.mrf.mxu0
    %v4789 = vadd.f32 0.0, %v4788
    %v4790 = vpop.f32.mrf.mxu0
    %4791 = vmatprep.mubr.f32.mxu0 0.0
    %4792 = vmatmul.mubr.f32.gmra.mxu0 %v4642
    %v4793 = vpop.f32.mrf.mxu0
    %v4794 = vadd.f32 0.0, %v4793
    %v4795 = vpop.f32.mrf.mxu0
    %4796 = vmatprep.mubr.f32.mxu0 0.0
    %4797 = vmatmul.mubr.f32.gmra.mxu0 %v4645
    %v4798 = vpop.f32.mrf.mxu0
    %v4799 = vadd.f32 0.0, %v4798
    %v4800 = vpop.f32.mrf.mxu0
    %4801 = vmatprep.mubr.f32.mxu0 0.0
    %4802 = vmatmul.mubr.f32.gmra.mxu0 %v4648
    %v4803 = vpop.f32.mrf.mxu0
    %v4804 = vadd.f32 0.0, %v4803
    %v4805 = vpop.f32.mrf.mxu0
    %4806 = vmatprep.mubr.f32.mxu0 0.0
    %4807 = vmatmul.mubr.f32.gmra.mxu0 %v4651
    %v4808 = vpop.f32.mrf.mxu0
    %v4809 = vadd.f32 0.0, %v4808
    %v4810 = vpop.f32.mrf.mxu0
    %4811 = vmatprep.mubr.f32.mxu0 0.0
    %4812 = vmatmul.mubr.f32.gmra.mxu0 %v4654
    %v4813 = vpop.f32.mrf.mxu0
    %v4814 = vadd.f32 0.0, %v4813
    %v4815 = vpop.f32.mrf.mxu0
    %4816 = vmatprep.mubr.f32.mxu0 0.0
    %4817 = vmatmul.mubr.f32.gmra.mxu0 %v4657
    %v4818 = vpop.f32.mrf.mxu0
    %v4819 = vadd.f32 0.0, %v4818
    %v4820 = vpop.f32.mrf.mxu0
    %4821 = vmatprep.mubr.f32.mxu0 0.0
    %4822 = vmatmul.mubr.f32.gmra.mxu0 %v4660
    %v4823 = vpop.f32.mrf.mxu0
    %v4824 = vadd.f32 0.0, %v4823
    %v4825 = vpop.f32.mrf.mxu0
    %4826 = vmatprep.mubr.f32.mxu0 0.0
    %4827 = vmatmul.mubr.f32.gmra.mxu0 %v4663
    %v4828 = vpop.f32.mrf.mxu0
    %v4829 = vadd.f32 0.0, %v4828
    %v4830 = vpop.f32.mrf.mxu0
    %4831 = vmatprep.mubr.f32.mxu0 0.0
    %4832 = vmatmul.mubr.f32.gmra.mxu0 %v4666
    %v4833 = vpop.f32.mrf.mxu0
    %v4834 = vadd.f32 0.0, %v4833
    %v4835 = vpop.f32.mrf.mxu0
    %4836 = vmatprep.mubr.f32.mxu0 0.0
    %4837 = vmatmul.mubr.f32.gmra.mxu0 %v4669
    %v4838 = vpop.f32.mrf.mxu0
    %v4839 = vadd.f32 0.0, %v4838
    %v4840 = vpop.f32.mrf.mxu0
    %4841 = vmatprep.mubr.f32.mxu0 0.0
    %4842 = vmatmul.mubr.f32.gmra.mxu0 %v4672
    %v4843 = vpop.f32.mrf.mxu0
    %v4844 = vadd.f32 0.0, %v4843
    %v4845 = vpop.f32.mrf.mxu0
    %4846 = vmatprep.mubr.f32.mxu0 0.0
    %4847 = vmatmul.mubr.f32.gmra.mxu0 %v4675
    %v4848 = vpop.f32.mrf.mxu0
    %v4849 = vadd.f32 0.0, %v4848
    %v4850 = vpop.f32.mrf.mxu0
    %4851 = vmatprep.mubr.f32.mxu0 0.0
    %4852 = vmatmul.mubr.f32.gmra.mxu0 %v4678
    %v4853 = vpop.f32.mrf.mxu0
    %v4854 = vadd.f32 0.0, %v4853
    %v4855 = vpop.f32.mrf.mxu0
    %4856 = vmatprep.mubr.f32.mxu0 0.0
    %4857 = vmatmul.mubr.f32.gmra.mxu0 %v4681
    %v4858 = vpop.f32.mrf.mxu0
    %v4859 = vadd.f32 0.0, %v4858
    %v4860 = vpop.f32.mrf.mxu0
    %4861 = vmatprep.mubr.f32.mxu0 0.0
    %4862 = vmatmul.mubr.f32.gmra.mxu0 %v4684
    %v4863 = vpop.f32.mrf.mxu0
    %v4864 = vadd.f32 0.0, %v4863
    %v4865 = vpop.f32.mrf.mxu0
    %4866 = vmatprep.mubr.f32.mxu0 0.0
    %4867 = vmatmul.mubr.f32.gmra.mxu0 %v4687
    %v4868 = vpop.f32.mrf.mxu0
    %v4869 = vadd.f32 0.0, %v4868
    %v4870 = vpop.f32.mrf.mxu0
    %4871 = vmatprep.mubr.f32.mxu0 0.0
    %4872 = vmatmul.mubr.f32.gmra.mxu0 %v4690
    %v4873 = vpop.f32.mrf.mxu0
    %v4874 = vadd.f32 0.0, %v4873
    %v4875 = vpop.f32.mrf.mxu0
    %4876 = vdwg.mxu0
    %v4878 = vsel %vm4362, %v4555, 0
    %v4881 = vsel %vm4362, %v4556, 0
    %v4884 = vsel %vm4362, %v4557, 0
    %v4887 = vsel %vm4362, %v4558, 0
    %v4890 = vsel %vm4362, %v4559, 0
    %v4893 = vsel %vm4362, %v4560, 0
    %v4896 = vsel %vm4362, %v4561, 0
    %v4899 = vsel %vm4362, %v4562, 0
    %v4902 = vsel %vm4362, %v4563, 0
    %v4905 = vsel %vm4362, %v4564, 0
    %v4908 = vsel %vm4362, %v4565, 0
    %v4911 = vsel %vm4362, %v4566, 0
    %v4914 = vsel %vm4362, %v4567, 0
    %v4917 = vsel %vm4362, %v4568, 0
    %v4920 = vsel %vm4362, %v4569, 0
    %v4923 = vsel %vm4362, %v4570, 0
    %v4926 = vsel %vm4362, %v4571, 0
    %v4929 = vsel %vm4362, %v4572, 0
    %v4932 = vsel %vm4362, %v4573, 0
    %v4935 = vsel %vm4362, %v4574, 0
    %v4938 = vsel %vm4362, %v4575, 0
    %v4941 = vsel %vm4362, %v4576, 0
    %v4944 = vsel %vm4362, %v4577, 0
    %v4947 = vsel %vm4362, %v4578, 0
    %4949 = vmatprep.subr.mxu0 0.0
    %4950 = vmatpush1.msra.mxu0 0.0
    %4951 = vmatprep.subr.mxu0 0.0
    %4952 = vmatpush1.msra.mxu0 0.0
    %4953 = vmatprep.subr.mxu0 0.0
    %4954 = vmatpush1.msra.mxu0 0.0
    %4955 = vmatprep.subr.mxu0 0.0
    %4956 = vmatpush1.msra.mxu0 0.0
    %4957 = vmatprep.subr.mxu0 0.0
    %4958 = vmatpush1.msra.mxu0 0.0
    %4959 = vmatprep.subr.mxu0 0.0
    %4960 = vmatpush1.msra.mxu0 0.0
    %4961 = vmatprep.subr.mxu0 0.0
    %4962 = vmatpush1.msra.mxu0 0.0
    %4963 = vmatprep.subr.mxu0 0.0
    %4964 = vmatpush1.msra.mxu0 0.0
    %4965 = vmatprep.subr.mxu0 0.0
    %4966 = vmatpush1.msra.mxu0 %v4586
    %4967 = vmatprep.subr.mxu0 0.0
    %4968 = vmatpush1.msra.mxu0 %v4585
    %4969 = vmatprep.subr.mxu0 0.0
    %4970 = vmatpush1.msra.mxu0 %v4584
    %4971 = vmatprep.subr.mxu0 0.0
    %4972 = vmatpush1.msra.mxu0 %v4583
    %4973 = vmatprep.subr.mxu0 0.0
    %4974 = vmatpush1.msra.mxu0 %v4582
    %4975 = vmatprep.subr.mxu0 0.0
    %4976 = vmatpush1.msra.mxu0 %v4581
    %4977 = vmatprep.subr.mxu0 0.0
    %4978 = vmatpush1.msra.mxu0 %v4580
    %4979 = vmatprep.subr.mxu0 0.0
    %4980 = vmatpush1.msra.mxu0 %v4579
    %4981 = vmatprep.subr.mxu0 0.0
    %4982 = vmatpush2.msra.mxu0 0.0
    %4983 = vmatprep.subr.mxu0 0.0
    %4984 = vmatpush2.msra.mxu0 0.0
    %4985 = vmatprep.subr.mxu0 0.0
    %4986 = vmatpush2.msra.mxu0 0.0
    %4987 = vmatprep.subr.mxu0 0.0
    %4988 = vmatpush2.msra.mxu0 0.0
    %4989 = vmatprep.subr.mxu0 0.0
    %4990 = vmatpush2.msra.mxu0 0.0
    %4991 = vmatprep.subr.mxu0 0.0
    %4992 = vmatpush2.msra.mxu0 0.0
    %4993 = vmatprep.subr.mxu0 0.0
    %4994 = vmatpush2.msra.mxu0 0.0
    %4995 = vmatprep.subr.mxu0 0.0
    %4996 = vmatpush2.msra.mxu0 0.0
    %4997 = vmatprep.subr.mxu0 0.0
    %4998 = vmatpush2.msra.mxu0 0.0
    %4999 = vmatprep.subr.mxu0 0.0
    %5000 = vmatpush2.msra.mxu0 0.0
    %5001 = vmatprep.subr.mxu0 0.0
    %5002 = vmatpush2.msra.mxu0 0.0
    %5003 = vmatprep.subr.mxu0 0.0
    %5004 = vmatpush2.msra.mxu0 0.0
    %5005 = vmatprep.subr.mxu0 0.0
    %5006 = vmatpush2.msra.mxu0 0.0
    %5007 = vmatprep.subr.mxu0 0.0
    %5008 = vmatpush2.msra.mxu0 0.0
    %5009 = vmatprep.subr.mxu0 0.0
    %5010 = vmatpush2.msra.mxu0 0.0
    %5011 = vmatprep.subr.mxu0 0.0
    %5012 = vmatpush2.msra.mxu0 0.0
    %5013 = vmatprep.mubr.f32.mxu0 0.0
    %5014 = vmatmul.mubr.f32.gmra.mxu0 %v4878
    %v5015 = vpop.f32.mrf.mxu0
    %v5016 = vadd.f32 %v4759, %v5015
    %v5017 = vpop.f32.mrf.mxu0
    %5018 = vmatprep.mubr.f32.mxu0 0.0
    %5019 = vmatmul.mubr.f32.gmra.mxu0 %v4881
    %v5020 = vpop.f32.mrf.mxu0
    %v5021 = vadd.f32 %v4764, %v5020
    %v5022 = vpop.f32.mrf.mxu0
    %5023 = vmatprep.mubr.f32.mxu0 0.0
    %5024 = vmatmul.mubr.f32.gmra.mxu0 %v4884
    %v5025 = vpop.f32.mrf.mxu0
    %v5026 = vadd.f32 %v4769, %v5025
    %v5027 = vpop.f32.mrf.mxu0
    %5028 = vmatprep.mubr.f32.mxu0 0.0
    %5029 = vmatmul.mubr.f32.gmra.mxu0 %v4887
    %v5030 = vpop.f32.mrf.mxu0
    %v5031 = vadd.f32 %v4774, %v5030
    %v5032 = vpop.f32.mrf.mxu0
    %5033 = vmatprep.mubr.f32.mxu0 0.0
    %5034 = vmatmul.mubr.f32.gmra.mxu0 %v4890
    %v5035 = vpop.f32.mrf.mxu0
    %v5036 = vadd.f32 %v4779, %v5035
    %v5037 = vpop.f32.mrf.mxu0
    %5038 = vmatprep.mubr.f32.mxu0 0.0
    %5039 = vmatmul.mubr.f32.gmra.mxu0 %v4893
    %v5040 = vpop.f32.mrf.mxu0
    %v5041 = vadd.f32 %v4784, %v5040
    %v5042 = vpop.f32.mrf.mxu0
    %5043 = vmatprep.mubr.f32.mxu0 0.0
    %5044 = vmatmul.mubr.f32.gmra.mxu0 %v4896
    %v5045 = vpop.f32.mrf.mxu0
    %v5046 = vadd.f32 %v4789, %v5045
    %v5047 = vpop.f32.mrf.mxu0
    %5048 = vmatprep.mubr.f32.mxu0 0.0
    %5049 = vmatmul.mubr.f32.gmra.mxu0 %v4899
    %v5050 = vpop.f32.mrf.mxu0
    %v5051 = vadd.f32 %v4794, %v5050
    %v5052 = vpop.f32.mrf.mxu0
    %5053 = vmatprep.mubr.f32.mxu0 0.0
    %5054 = vmatmul.mubr.f32.gmra.mxu0 %v4902
    %v5055 = vpop.f32.mrf.mxu0
    %v5056 = vadd.f32 %v4799, %v5055
    %v5057 = vpop.f32.mrf.mxu0
    %5058 = vmatprep.mubr.f32.mxu0 0.0
    %5059 = vmatmul.mubr.f32.gmra.mxu0 %v4905
    %v5060 = vpop.f32.mrf.mxu0
    %v5061 = vadd.f32 %v4804, %v5060
    %v5062 = vpop.f32.mrf.mxu0
    %5063 = vmatprep.mubr.f32.mxu0 0.0
    %5064 = vmatmul.mubr.f32.gmra.mxu0 %v4908
    %v5065 = vpop.f32.mrf.mxu0
    %v5066 = vadd.f32 %v4809, %v5065
    %v5067 = vpop.f32.mrf.mxu0
    %5068 = vmatprep.mubr.f32.mxu0 0.0
    %5069 = vmatmul.mubr.f32.gmra.mxu0 %v4911
    %v5070 = vpop.f32.mrf.mxu0
    %v5071 = vadd.f32 %v4814, %v5070
    %v5072 = vpop.f32.mrf.mxu0
    %5073 = vmatprep.mubr.f32.mxu0 0.0
    %5074 = vmatmul.mubr.f32.gmra.mxu0 %v4914
    %v5075 = vpop.f32.mrf.mxu0
    %v5076 = vadd.f32 %v4819, %v5075
    %v5077 = vpop.f32.mrf.mxu0
    %5078 = vmatprep.mubr.f32.mxu0 0.0
    %5079 = vmatmul.mubr.f32.gmra.mxu0 %v4917
    %v5080 = vpop.f32.mrf.mxu0
    %v5081 = vadd.f32 %v4824, %v5080
    %v5082 = vpop.f32.mrf.mxu0
    %5083 = vmatprep.mubr.f32.mxu0 0.0
    %5084 = vmatmul.mubr.f32.gmra.mxu0 %v4920
    %v5085 = vpop.f32.mrf.mxu0
    %v5086 = vadd.f32 %v4829, %v5085
    %v5087 = vpop.f32.mrf.mxu0
    %5088 = vmatprep.mubr.f32.mxu0 0.0
    %5089 = vmatmul.mubr.f32.gmra.mxu0 %v4923
    %v5090 = vpop.f32.mrf.mxu0
    %v5091 = vadd.f32 %v4834, %v5090
    %v5092 = vpop.f32.mrf.mxu0
    %5093 = vmatprep.mubr.f32.mxu0 0.0
    %5094 = vmatmul.mubr.f32.gmra.mxu0 %v4926
    %v5095 = vpop.f32.mrf.mxu0
    %v5096 = vadd.f32 %v4839, %v5095
    %v5097 = vpop.f32.mrf.mxu0
    %5098 = vmatprep.mubr.f32.mxu0 0.0
    %5099 = vmatmul.mubr.f32.gmra.mxu0 %v4929
    %v5100 = vpop.f32.mrf.mxu0
    %v5101 = vadd.f32 %v4844, %v5100
    %v5102 = vpop.f32.mrf.mxu0
    %5103 = vmatprep.mubr.f32.mxu0 0.0
    %5104 = vmatmul.mubr.f32.gmra.mxu0 %v4932
    %v5105 = vpop.f32.mrf.mxu0
    %v5106 = vadd.f32 %v4849, %v5105
    %v5107 = vpop.f32.mrf.mxu0
    %5108 = vmatprep.mubr.f32.mxu0 0.0
    %5109 = vmatmul.mubr.f32.gmra.mxu0 %v4935
    %v5110 = vpop.f32.mrf.mxu0
    %v5111 = vadd.f32 %v4854, %v5110
    %v5112 = vpop.f32.mrf.mxu0
    %5113 = vmatprep.mubr.f32.mxu0 0.0
    %5114 = vmatmul.mubr.f32.gmra.mxu0 %v4938
    %v5115 = vpop.f32.mrf.mxu0
    %v5116 = vadd.f32 %v4859, %v5115
    %v5117 = vpop.f32.mrf.mxu0
    %5118 = vmatprep.mubr.f32.mxu0 0.0
    %5119 = vmatmul.mubr.f32.gmra.mxu0 %v4941
    %v5120 = vpop.f32.mrf.mxu0
    %v5121 = vadd.f32 %v4864, %v5120
    %v5122 = vpop.f32.mrf.mxu0
    %5123 = vmatprep.mubr.f32.mxu0 0.0
    %5124 = vmatmul.mubr.f32.gmra.mxu0 %v4944
    %v5125 = vpop.f32.mrf.mxu0
    %v5126 = vadd.f32 %v4869, %v5125
    %v5127 = vpop.f32.mrf.mxu0
    %5128 = vmatprep.mubr.f32.mxu0 0.0
    %5129 = vmatmul.mubr.f32.gmra.mxu0 %v4947
    %v5130 = vpop.f32.mrf.mxu0
    %v5131 = vadd.f32 %v4874, %v5130
    %v5132 = vpop.f32.mrf.mxu0
    %5133 = vdwg.mxu0
    %v5134 = vld [vmem:[#allocation5 + $0x2] sm:$0xff]
    %v5135 = vld [vmem:[#allocation5 + $0xa] sm:$0xff]
    %v5136 = vld [vmem:[#allocation5 + $0x12] sm:$0xff]
    %v5137 = vld [vmem:[#allocation5 + $0x1a] sm:$0xff]
    %v5138 = vld [vmem:[#allocation5 + $0x22] sm:$0xff]
    %v5139 = vld [vmem:[#allocation5 + $0x2a] sm:$0xff]
    %v5140 = vld [vmem:[#allocation5 + $0x32] sm:$0xff]
    %v5141 = vld [vmem:[#allocation5 + $0x3a] sm:$0xff]
    %v5142 = vld [vmem:[#allocation5 + $0x42] sm:$0xff]
    %v5143 = vld [vmem:[#allocation5 + $0x4a] sm:$0xff]
    %v5144 = vld [vmem:[#allocation5 + $0x52] sm:$0xff]
    %v5145 = vld [vmem:[#allocation5 + $0x5a] sm:$0xff]
    %v5146 = vld [vmem:[#allocation5 + $0x62] sm:$0xff]
    %v5147 = vld [vmem:[#allocation5 + $0x6a] sm:$0xff]
    %v5148 = vld [vmem:[#allocation5 + $0x72] sm:$0xff]
    %v5149 = vld [vmem:[#allocation5 + $0x7a] sm:$0xff]
    %v5150 = vld [vmem:[#allocation5 + $0x82] sm:$0xff]
    %v5151 = vld [vmem:[#allocation5 + $0x8a] sm:$0xff]
    %v5152 = vld [vmem:[#allocation5 + $0x92] sm:$0xff]
    %v5153 = vld [vmem:[#allocation5 + $0x9a] sm:$0xff]
    %v5154 = vld [vmem:[#allocation5 + $0xa2] sm:$0xff]
    %v5155 = vld [vmem:[#allocation5 + $0xaa] sm:$0xff]
    %v5156 = vld [vmem:[#allocation5 + $0xb2] sm:$0xff]
    %v5157 = vld [vmem:[#allocation5 + $0xba] sm:$0xff]
    %s5158 = scalar_lea.vmem %s5, 128
    %v5159 = vld [vmem:[%s5158] sm:$0xff]
    %v5160 = vld [vmem:[%s5158 + $0x8] sm:$0xff]
    %v5161 = vld [vmem:[%s5158 + $0x10] sm:$0xff]
    %v5162 = vld [vmem:[%s5158 + $0x18] sm:$0xff]
    %v5163 = vld [vmem:[%s5158 + $0x20] sm:$0xff]
    %v5164 = vld [vmem:[%s5158 + $0x28] sm:$0xff]
    %v5165 = vld [vmem:[%s5158 + $0x30] sm:$0xff]
    %v5166 = vld [vmem:[%s5158 + $0x38] sm:$0xff]
    %v5168 = vsel %vm4362, %v5134, 0
    %v5171 = vsel %vm4362, %v5135, 0
    %v5174 = vsel %vm4362, %v5136, 0
    %v5177 = vsel %vm4362, %v5137, 0
    %v5180 = vsel %vm4362, %v5138, 0
    %v5183 = vsel %vm4362, %v5139, 0
    %v5186 = vsel %vm4362, %v5140, 0
    %v5189 = vsel %vm4362, %v5141, 0
    %v5192 = vsel %vm4362, %v5142, 0
    %v5195 = vsel %vm4362, %v5143, 0
    %v5198 = vsel %vm4362, %v5144, 0
    %v5201 = vsel %vm4362, %v5145, 0
    %v5204 = vsel %vm4362, %v5146, 0
    %v5207 = vsel %vm4362, %v5147, 0
    %v5210 = vsel %vm4362, %v5148, 0
    %v5213 = vsel %vm4362, %v5149, 0
    %v5216 = vsel %vm4362, %v5150, 0
    %v5219 = vsel %vm4362, %v5151, 0
    %v5222 = vsel %vm4362, %v5152, 0
    %v5225 = vsel %vm4362, %v5153, 0
    %v5228 = vsel %vm4362, %v5154, 0
    %v5231 = vsel %vm4362, %v5155, 0
    %v5234 = vsel %vm4362, %v5156, 0
    %v5237 = vsel %vm4362, %v5157, 0
    %5239 = vmatprep.subr.mxu0 0.0
    %5240 = vmatpush1.msra.mxu0 0.0
    %5241 = vmatprep.subr.mxu0 0.0
    %5242 = vmatpush1.msra.mxu0 0.0
    %5243 = vmatprep.subr.mxu0 0.0
    %5244 = vmatpush1.msra.mxu0 0.0
    %5245 = vmatprep.subr.mxu0 0.0
    %5246 = vmatpush1.msra.mxu0 0.0
    %5247 = vmatprep.subr.mxu0 0.0
    %5248 = vmatpush1.msra.mxu0 0.0
    %5249 = vmatprep.subr.mxu0 0.0
    %5250 = vmatpush1.msra.mxu0 0.0
    %5251 = vmatprep.subr.mxu0 0.0
    %5252 = vmatpush1.msra.mxu0 0.0
    %5253 = vmatprep.subr.mxu0 0.0
    %5254 = vmatpush1.msra.mxu0 0.0
    %5255 = vmatprep.subr.mxu0 0.0
    %5256 = vmatpush1.msra.mxu0 %v5166
    %5257 = vmatprep.subr.mxu0 0.0
    %5258 = vmatpush1.msra.mxu0 %v5165
    %5259 = vmatprep.subr.mxu0 0.0
    %5260 = vmatpush1.msra.mxu0 %v5164
    %5261 = vmatprep.subr.mxu0 0.0
    %5262 = vmatpush1.msra.mxu0 %v5163
    %5263 = vmatprep.subr.mxu0 0.0
    %5264 = vmatpush1.msra.mxu0 %v5162
    %5265 = vmatprep.subr.mxu0 0.0
    %5266 = vmatpush1.msra.mxu0 %v5161
    %5267 = vmatprep.subr.mxu0 0.0
    %5268 = vmatpush1.msra.mxu0 %v5160
    %5269 = vmatprep.subr.mxu0 0.0
    %5270 = vmatpush1.msra.mxu0 %v5159
    %5271 = vmatprep.subr.mxu0 0.0
    %5272 = vmatpush2.msra.mxu0 0.0
    %5273 = vmatprep.subr.mxu0 0.0
    %5274 = vmatpush2.msra.mxu0 0.0
    %5275 = vmatprep.subr.mxu0 0.0
    %5276 = vmatpush2.msra.mxu0 0.0
    %5277 = vmatprep.subr.mxu0 0.0
    %5278 = vmatpush2.msra.mxu0 0.0
    %5279 = vmatprep.subr.mxu0 0.0
    %5280 = vmatpush2.msra.mxu0 0.0
    %5281 = vmatprep.subr.mxu0 0.0
    %5282 = vmatpush2.msra.mxu0 0.0
    %5283 = vmatprep.subr.mxu0 0.0
    %5284 = vmatpush2.msra.mxu0 0.0
    %5285 = vmatprep.subr.mxu0 0.0
    %5286 = vmatpush2.msra.mxu0 0.0
    %5287 = vmatprep.subr.mxu0 0.0
    %5288 = vmatpush2.msra.mxu0 0.0
    %5289 = vmatprep.subr.mxu0 0.0
    %5290 = vmatpush2.msra.mxu0 0.0
    %5291 = vmatprep.subr.mxu0 0.0
    %5292 = vmatpush2.msra.mxu0 0.0
    %5293 = vmatprep.subr.mxu0 0.0
    %5294 = vmatpush2.msra.mxu0 0.0
    %5295 = vmatprep.subr.mxu0 0.0
    %5296 = vmatpush2.msra.mxu0 0.0
    %5297 = vmatprep.subr.mxu0 0.0
    %5298 = vmatpush2.msra.mxu0 0.0
    %5299 = vmatprep.subr.mxu0 0.0
    %5300 = vmatpush2.msra.mxu0 0.0
    %5301 = vmatprep.subr.mxu0 0.0
    %5302 = vmatpush2.msra.mxu0 0.0
    %5303 = vmatprep.mubr.f32.mxu0 0.0
    %5304 = vmatmul.mubr.f32.gmra.mxu0 %v5168
    %v5305 = vpop.f32.mrf.mxu0
    %v5306 = vadd.f32 0.0, %v5305
    %v5307 = vpop.f32.mrf.mxu0
    %5308 = vmatprep.mubr.f32.mxu0 0.0
    %5309 = vmatmul.mubr.f32.gmra.mxu0 %v5171
    %v5310 = vpop.f32.mrf.mxu0
    %v5311 = vadd.f32 0.0, %v5310
    %v5312 = vpop.f32.mrf.mxu0
    %5313 = vmatprep.mubr.f32.mxu0 0.0
    %5314 = vmatmul.mubr.f32.gmra.mxu0 %v5174
    %v5315 = vpop.f32.mrf.mxu0
    %v5316 = vadd.f32 0.0, %v5315
    %v5317 = vpop.f32.mrf.mxu0
    %5318 = vmatprep.mubr.f32.mxu0 0.0
    %5319 = vmatmul.mubr.f32.gmra.mxu0 %v5177
    %v5320 = vpop.f32.mrf.mxu0
    %v5321 = vadd.f32 0.0, %v5320
    %v5322 = vpop.f32.mrf.mxu0
    %5323 = vmatprep.mubr.f32.mxu0 0.0
    %5324 = vmatmul.mubr.f32.gmra.mxu0 %v5180
    %v5325 = vpop.f32.mrf.mxu0
    %v5326 = vadd.f32 0.0, %v5325
    %v5327 = vpop.f32.mrf.mxu0
    %5328 = vmatprep.mubr.f32.mxu0 0.0
    %5329 = vmatmul.mubr.f32.gmra.mxu0 %v5183
    %v5330 = vpop.f32.mrf.mxu0
    %v5331 = vadd.f32 0.0, %v5330
    %v5332 = vpop.f32.mrf.mxu0
    %5333 = vmatprep.mubr.f32.mxu0 0.0
    %5334 = vmatmul.mubr.f32.gmra.mxu0 %v5186
    %v5335 = vpop.f32.mrf.mxu0
    %v5336 = vadd.f32 0.0, %v5335
    %v5337 = vpop.f32.mrf.mxu0
    %5338 = vmatprep.mubr.f32.mxu0 0.0
    %5339 = vmatmul.mubr.f32.gmra.mxu0 %v5189
    %v5340 = vpop.f32.mrf.mxu0
    %v5341 = vadd.f32 0.0, %v5340
    %v5342 = vpop.f32.mrf.mxu0
    %5343 = vmatprep.mubr.f32.mxu0 0.0
    %5344 = vmatmul.mubr.f32.gmra.mxu0 %v5192
    %v5345 = vpop.f32.mrf.mxu0
    %v5346 = vadd.f32 0.0, %v5345
    %v5347 = vpop.f32.mrf.mxu0
    %5348 = vmatprep.mubr.f32.mxu0 0.0
    %5349 = vmatmul.mubr.f32.gmra.mxu0 %v5195
    %v5350 = vpop.f32.mrf.mxu0
    %v5351 = vadd.f32 0.0, %v5350
    %v5352 = vpop.f32.mrf.mxu0
    %5353 = vmatprep.mubr.f32.mxu0 0.0
    %5354 = vmatmul.mubr.f32.gmra.mxu0 %v5198
    %v5355 = vpop.f32.mrf.mxu0
    %v5356 = vadd.f32 0.0, %v5355
    %v5357 = vpop.f32.mrf.mxu0
    %5358 = vmatprep.mubr.f32.mxu0 0.0
    %5359 = vmatmul.mubr.f32.gmra.mxu0 %v5201
    %v5360 = vpop.f32.mrf.mxu0
    %v5361 = vadd.f32 0.0, %v5360
    %v5362 = vpop.f32.mrf.mxu0
    %5363 = vmatprep.mubr.f32.mxu0 0.0
    %5364 = vmatmul.mubr.f32.gmra.mxu0 %v5204
    %v5365 = vpop.f32.mrf.mxu0
    %v5366 = vadd.f32 0.0, %v5365
    %v5367 = vpop.f32.mrf.mxu0
    %5368 = vmatprep.mubr.f32.mxu0 0.0
    %5369 = vmatmul.mubr.f32.gmra.mxu0 %v5207
    %v5370 = vpop.f32.mrf.mxu0
    %v5371 = vadd.f32 0.0, %v5370
    %v5372 = vpop.f32.mrf.mxu0
    %5373 = vmatprep.mubr.f32.mxu0 0.0
    %5374 = vmatmul.mubr.f32.gmra.mxu0 %v5210
    %v5375 = vpop.f32.mrf.mxu0
    %v5376 = vadd.f32 0.0, %v5375
    %v5377 = vpop.f32.mrf.mxu0
    %5378 = vmatprep.mubr.f32.mxu0 0.0
    %5379 = vmatmul.mubr.f32.gmra.mxu0 %v5213
    %v5380 = vpop.f32.mrf.mxu0
    %v5381 = vadd.f32 0.0, %v5380
    %v5382 = vpop.f32.mrf.mxu0
    %5383 = vmatprep.mubr.f32.mxu0 0.0
    %5384 = vmatmul.mubr.f32.gmra.mxu0 %v5216
    %v5385 = vpop.f32.mrf.mxu0
    %v5386 = vadd.f32 0.0, %v5385
    %v5387 = vpop.f32.mrf.mxu0
    %5388 = vmatprep.mubr.f32.mxu0 0.0
    %5389 = vmatmul.mubr.f32.gmra.mxu0 %v5219
    %v5390 = vpop.f32.mrf.mxu0
    %v5391 = vadd.f32 0.0, %v5390
    %v5392 = vpop.f32.mrf.mxu0
    %5393 = vmatprep.mubr.f32.mxu0 0.0
    %5394 = vmatmul.mubr.f32.gmra.mxu0 %v5222
    %v5395 = vpop.f32.mrf.mxu0
    %v5396 = vadd.f32 0.0, %v5395
    %v5397 = vpop.f32.mrf.mxu0
    %5398 = vmatprep.mubr.f32.mxu0 0.0
    %5399 = vmatmul.mubr.f32.gmra.mxu0 %v5225
    %v5400 = vpop.f32.mrf.mxu0
    %v5401 = vadd.f32 0.0, %v5400
    %v5402 = vpop.f32.mrf.mxu0
    %5403 = vmatprep.mubr.f32.mxu0 0.0
    %5404 = vmatmul.mubr.f32.gmra.mxu0 %v5228
    %v5405 = vpop.f32.mrf.mxu0
    %v5406 = vadd.f32 0.0, %v5405
    %v5407 = vpop.f32.mrf.mxu0
    %5408 = vmatprep.mubr.f32.mxu0 0.0
    %5409 = vmatmul.mubr.f32.gmra.mxu0 %v5231
    %v5410 = vpop.f32.mrf.mxu0
    %v5411 = vadd.f32 0.0, %v5410
    %v5412 = vpop.f32.mrf.mxu0
    %5413 = vmatprep.mubr.f32.mxu0 0.0
    %5414 = vmatmul.mubr.f32.gmra.mxu0 %v5234
    %v5415 = vpop.f32.mrf.mxu0
    %v5416 = vadd.f32 0.0, %v5415
    %v5417 = vpop.f32.mrf.mxu0
    %5418 = vmatprep.mubr.f32.mxu0 0.0
    %5419 = vmatmul.mubr.f32.gmra.mxu0 %v5237
    %v5420 = vpop.f32.mrf.mxu0
    %v5421 = vadd.f32 0.0, %v5420
    %v5422 = vpop.f32.mrf.mxu0
    %5423 = vdwg.mxu0
    %v5424 = vadd.f32 %v5016, %v5306
    %v5425 = vadd.f32 %v5021, %v5311
    %v5426 = vadd.f32 %v5026, %v5316
    %v5427 = vadd.f32 %v5031, %v5321
    %v5428 = vadd.f32 %v5036, %v5326
    %v5429 = vadd.f32 %v5041, %v5331
    %v5430 = vadd.f32 %v5046, %v5336
    %v5431 = vadd.f32 %v5051, %v5341
    %v5432 = vadd.f32 %v5056, %v5346
    %v5433 = vadd.f32 %v5061, %v5351
    %v5434 = vadd.f32 %v5066, %v5356
    %v5435 = vadd.f32 %v5071, %v5361
    %v5436 = vadd.f32 %v5076, %v5366
    %v5437 = vadd.f32 %v5081, %v5371
    %v5438 = vadd.f32 %v5086, %v5376
    %v5439 = vadd.f32 %v5091, %v5381
    %v5440 = vadd.f32 %v5096, %v5386
    %v5441 = vadd.f32 %v5101, %v5391
    %v5442 = vadd.f32 %v5106, %v5396
    %v5443 = vadd.f32 %v5111, %v5401
    %v5444 = vadd.f32 %v5116, %v5406
    %v5445 = vadd.f32 %v5121, %v5411
    %v5446 = vadd.f32 %v5126, %v5416
    %v5447 = vadd.f32 %v5131, %v5421
    %v5448 = vld [vmem:[#allocation5 + $0x3] sm:$0xff]
    %v5449 = vld [vmem:[#allocation5 + $0xb] sm:$0xff]
    %v5450 = vld [vmem:[#allocation5 + $0x13] sm:$0xff]
    %v5451 = vld [vmem:[#allocation5 + $0x1b] sm:$0xff]
    %v5452 = vld [vmem:[#allocation5 + $0x23] sm:$0xff]
    %v5453 = vld [vmem:[#allocation5 + $0x2b] sm:$0xff]
    %v5454 = vld [vmem:[#allocation5 + $0x33] sm:$0xff]
    %v5455 = vld [vmem:[#allocation5 + $0x3b] sm:$0xff]
    %v5456 = vld [vmem:[#allocation5 + $0x43] sm:$0xff]
    %v5457 = vld [vmem:[#allocation5 + $0x4b] sm:$0xff]
    %v5458 = vld [vmem:[#allocation5 + $0x53] sm:$0xff]
    %v5459 = vld [vmem:[#allocation5 + $0x5b] sm:$0xff]
    %v5460 = vld [vmem:[#allocation5 + $0x63] sm:$0xff]
    %v5461 = vld [vmem:[#allocation5 + $0x6b] sm:$0xff]
    %v5462 = vld [vmem:[#allocation5 + $0x73] sm:$0xff]
    %v5463 = vld [vmem:[#allocation5 + $0x7b] sm:$0xff]
    %v5464 = vld [vmem:[#allocation5 + $0x83] sm:$0xff]
    %v5465 = vld [vmem:[#allocation5 + $0x8b] sm:$0xff]
    %v5466 = vld [vmem:[#allocation5 + $0x93] sm:$0xff]
    %v5467 = vld [vmem:[#allocation5 + $0x9b] sm:$0xff]
    %v5468 = vld [vmem:[#allocation5 + $0xa3] sm:$0xff]
    %v5469 = vld [vmem:[#allocation5 + $0xab] sm:$0xff]
    %v5470 = vld [vmem:[#allocation5 + $0xb3] sm:$0xff]
    %v5471 = vld [vmem:[#allocation5 + $0xbb] sm:$0xff]
    %s5472 = scalar_lea.vmem %s5, 192
    %v5473 = vld [vmem:[%s5472] sm:$0xff]
    %v5474 = vld [vmem:[%s5472 + $0x8] sm:$0xff]
    %v5475 = vld [vmem:[%s5472 + $0x10] sm:$0xff]
    %v5476 = vld [vmem:[%s5472 + $0x18] sm:$0xff]
    %v5477 = vld [vmem:[%s5472 + $0x20] sm:$0xff]
    %v5478 = vld [vmem:[%s5472 + $0x28] sm:$0xff]
    %v5479 = vld [vmem:[%s5472 + $0x30] sm:$0xff]
    %v5480 = vld [vmem:[%s5472 + $0x38] sm:$0xff]
    %v5482 = vsel %vm4362, %v5448, 0
    %v5485 = vsel %vm4362, %v5449, 0
    %v5488 = vsel %vm4362, %v5450, 0
    %v5491 = vsel %vm4362, %v5451, 0
    %v5494 = vsel %vm4362, %v5452, 0
    %v5497 = vsel %vm4362, %v5453, 0
    %v5500 = vsel %vm4362, %v5454, 0
    %v5503 = vsel %vm4362, %v5455, 0
    %v5506 = vsel %vm4362, %v5456, 0
    %v5509 = vsel %vm4362, %v5457, 0
    %v5512 = vsel %vm4362, %v5458, 0
    %v5515 = vsel %vm4362, %v5459, 0
    %v5518 = vsel %vm4362, %v5460, 0
    %v5521 = vsel %vm4362, %v5461, 0
    %v5524 = vsel %vm4362, %v5462, 0
    %v5527 = vsel %vm4362, %v5463, 0
    %v5530 = vsel %vm4362, %v5464, 0
    %v5533 = vsel %vm4362, %v5465, 0
    %v5536 = vsel %vm4362, %v5466, 0
    %v5539 = vsel %vm4362, %v5467, 0
    %v5542 = vsel %vm4362, %v5468, 0
    %v5545 = vsel %vm4362, %v5469, 0
    %v5548 = vsel %vm4362, %v5470, 0
    %v5551 = vsel %vm4362, %v5471, 0
    %5553 = vmatprep.subr.mxu0 0.0
    %5554 = vmatpush1.msra.mxu0 0.0
    %5555 = vmatprep.subr.mxu0 0.0
    %5556 = vmatpush1.msra.mxu0 0.0
    %5557 = vmatprep.subr.mxu0 0.0
    %5558 = vmatpush1.msra.mxu0 0.0
    %5559 = vmatprep.subr.mxu0 0.0
    %5560 = vmatpush1.msra.mxu0 0.0
    %5561 = vmatprep.subr.mxu0 0.0
    %5562 = vmatpush1.msra.mxu0 0.0
    %5563 = vmatprep.subr.mxu0 0.0
    %5564 = vmatpush1.msra.mxu0 0.0
    %5565 = vmatprep.subr.mxu0 0.0
    %5566 = vmatpush1.msra.mxu0 0.0
    %5567 = vmatprep.subr.mxu0 0.0
    %5568 = vmatpush1.msra.mxu0 0.0
    %5569 = vmatprep.subr.mxu0 0.0
    %5570 = vmatpush1.msra.mxu0 %v5480
    %5571 = vmatprep.subr.mxu0 0.0
    %5572 = vmatpush1.msra.mxu0 %v5479
    %5573 = vmatprep.subr.mxu0 0.0
    %5574 = vmatpush1.msra.mxu0 %v5478
    %5575 = vmatprep.subr.mxu0 0.0
    %5576 = vmatpush1.msra.mxu0 %v5477
    %5577 = vmatprep.subr.mxu0 0.0
    %5578 = vmatpush1.msra.mxu0 %v5476
    %5579 = vmatprep.subr.mxu0 0.0
    %5580 = vmatpush1.msra.mxu0 %v5475
    %5581 = vmatprep.subr.mxu0 0.0
    %5582 = vmatpush1.msra.mxu0 %v5474
    %5583 = vmatprep.subr.mxu0 0.0
    %5584 = vmatpush1.msra.mxu0 %v5473
    %5585 = vmatprep.subr.mxu0 0.0
    %5586 = vmatpush2.msra.mxu0 0.0
    %5587 = vmatprep.subr.mxu0 0.0
    %5588 = vmatpush2.msra.mxu0 0.0
    %5589 = vmatprep.subr.mxu0 0.0
    %5590 = vmatpush2.msra.mxu0 0.0
    %5591 = vmatprep.subr.mxu0 0.0
    %5592 = vmatpush2.msra.mxu0 0.0
    %5593 = vmatprep.subr.mxu0 0.0
    %5594 = vmatpush2.msra.mxu0 0.0
    %5595 = vmatprep.subr.mxu0 0.0
    %5596 = vmatpush2.msra.mxu0 0.0
    %5597 = vmatprep.subr.mxu0 0.0
    %5598 = vmatpush2.msra.mxu0 0.0
    %5599 = vmatprep.subr.mxu0 0.0
    %5600 = vmatpush2.msra.mxu0 0.0
    %5601 = vmatprep.subr.mxu0 0.0
    %5602 = vmatpush2.msra.mxu0 0.0
    %5603 = vmatprep.subr.mxu0 0.0
    %5604 = vmatpush2.msra.mxu0 0.0
    %5605 = vmatprep.subr.mxu0 0.0
    %5606 = vmatpush2.msra.mxu0 0.0
    %5607 = vmatprep.subr.mxu0 0.0
    %5608 = vmatpush2.msra.mxu0 0.0
    %5609 = vmatprep.subr.mxu0 0.0
    %5610 = vmatpush2.msra.mxu0 0.0
    %5611 = vmatprep.subr.mxu0 0.0
    %5612 = vmatpush2.msra.mxu0 0.0
    %5613 = vmatprep.subr.mxu0 0.0
    %5614 = vmatpush2.msra.mxu0 0.0
    %5615 = vmatprep.subr.mxu0 0.0
    %5616 = vmatpush2.msra.mxu0 0.0
    %5617 = vmatprep.mubr.f32.mxu0 0.0
    %5618 = vmatmul.mubr.f32.gmra.mxu0 %v5482
    %v5619 = vpop.f32.mrf.mxu0
    %v5620 = vadd.f32 0.0, %v5619
    %v5621 = vpop.f32.mrf.mxu0
    %5622 = vmatprep.mubr.f32.mxu0 0.0
    %5623 = vmatmul.mubr.f32.gmra.mxu0 %v5485
    %v5624 = vpop.f32.mrf.mxu0
    %v5625 = vadd.f32 0.0, %v5624
    %v5626 = vpop.f32.mrf.mxu0
    %5627 = vmatprep.mubr.f32.mxu0 0.0
    %5628 = vmatmul.mubr.f32.gmra.mxu0 %v5488
    %v5629 = vpop.f32.mrf.mxu0
    %v5630 = vadd.f32 0.0, %v5629
    %v5631 = vpop.f32.mrf.mxu0
    %5632 = vmatprep.mubr.f32.mxu0 0.0
    %5633 = vmatmul.mubr.f32.gmra.mxu0 %v5491
    %v5634 = vpop.f32.mrf.mxu0
    %v5635 = vadd.f32 0.0, %v5634
    %v5636 = vpop.f32.mrf.mxu0
    %5637 = vmatprep.mubr.f32.mxu0 0.0
    %5638 = vmatmul.mubr.f32.gmra.mxu0 %v5494
    %v5639 = vpop.f32.mrf.mxu0
    %v5640 = vadd.f32 0.0, %v5639
    %v5641 = vpop.f32.mrf.mxu0
    %5642 = vmatprep.mubr.f32.mxu0 0.0
    %5643 = vmatmul.mubr.f32.gmra.mxu0 %v5497
    %v5644 = vpop.f32.mrf.mxu0
    %v5645 = vadd.f32 0.0, %v5644
    %v5646 = vpop.f32.mrf.mxu0
    %5647 = vmatprep.mubr.f32.mxu0 0.0
    %5648 = vmatmul.mubr.f32.gmra.mxu0 %v5500
    %v5649 = vpop.f32.mrf.mxu0
    %v5650 = vadd.f32 0.0, %v5649
    %v5651 = vpop.f32.mrf.mxu0
    %5652 = vmatprep.mubr.f32.mxu0 0.0
    %5653 = vmatmul.mubr.f32.gmra.mxu0 %v5503
    %v5654 = vpop.f32.mrf.mxu0
    %v5655 = vadd.f32 0.0, %v5654
    %v5656 = vpop.f32.mrf.mxu0
    %5657 = vmatprep.mubr.f32.mxu0 0.0
    %5658 = vmatmul.mubr.f32.gmra.mxu0 %v5506
    %v5659 = vpop.f32.mrf.mxu0
    %v5660 = vadd.f32 0.0, %v5659
    %v5661 = vpop.f32.mrf.mxu0
    %5662 = vmatprep.mubr.f32.mxu0 0.0
    %5663 = vmatmul.mubr.f32.gmra.mxu0 %v5509
    %v5664 = vpop.f32.mrf.mxu0
    %v5665 = vadd.f32 0.0, %v5664
    %v5666 = vpop.f32.mrf.mxu0
    %5667 = vmatprep.mubr.f32.mxu0 0.0
    %5668 = vmatmul.mubr.f32.gmra.mxu0 %v5512
    %v5669 = vpop.f32.mrf.mxu0
    %v5670 = vadd.f32 0.0, %v5669
    %v5671 = vpop.f32.mrf.mxu0
    %5672 = vmatprep.mubr.f32.mxu0 0.0
    %5673 = vmatmul.mubr.f32.gmra.mxu0 %v5515
    %v5674 = vpop.f32.mrf.mxu0
    %v5675 = vadd.f32 0.0, %v5674
    %v5676 = vpop.f32.mrf.mxu0
    %5677 = vmatprep.mubr.f32.mxu0 0.0
    %5678 = vmatmul.mubr.f32.gmra.mxu0 %v5518
    %v5679 = vpop.f32.mrf.mxu0
    %v5680 = vadd.f32 0.0, %v5679
    %v5681 = vpop.f32.mrf.mxu0
    %5682 = vmatprep.mubr.f32.mxu0 0.0
    %5683 = vmatmul.mubr.f32.gmra.mxu0 %v5521
    %v5684 = vpop.f32.mrf.mxu0
    %v5685 = vadd.f32 0.0, %v5684
    %v5686 = vpop.f32.mrf.mxu0
    %5687 = vmatprep.mubr.f32.mxu0 0.0
    %5688 = vmatmul.mubr.f32.gmra.mxu0 %v5524
    %v5689 = vpop.f32.mrf.mxu0
    %v5690 = vadd.f32 0.0, %v5689
    %v5691 = vpop.f32.mrf.mxu0
    %5692 = vmatprep.mubr.f32.mxu0 0.0
    %5693 = vmatmul.mubr.f32.gmra.mxu0 %v5527
    %v5694 = vpop.f32.mrf.mxu0
    %v5695 = vadd.f32 0.0, %v5694
    %v5696 = vpop.f32.mrf.mxu0
    %5697 = vmatprep.mubr.f32.mxu0 0.0
    %5698 = vmatmul.mubr.f32.gmra.mxu0 %v5530
    %v5699 = vpop.f32.mrf.mxu0
    %v5700 = vadd.f32 0.0, %v5699
    %v5701 = vpop.f32.mrf.mxu0
    %5702 = vmatprep.mubr.f32.mxu0 0.0
    %5703 = vmatmul.mubr.f32.gmra.mxu0 %v5533
    %v5704 = vpop.f32.mrf.mxu0
    %v5705 = vadd.f32 0.0, %v5704
    %v5706 = vpop.f32.mrf.mxu0
    %5707 = vmatprep.mubr.f32.mxu0 0.0
    %5708 = vmatmul.mubr.f32.gmra.mxu0 %v5536
    %v5709 = vpop.f32.mrf.mxu0
    %v5710 = vadd.f32 0.0, %v5709
    %v5711 = vpop.f32.mrf.mxu0
    %5712 = vmatprep.mubr.f32.mxu0 0.0
    %5713 = vmatmul.mubr.f32.gmra.mxu0 %v5539
    %v5714 = vpop.f32.mrf.mxu0
    %v5715 = vadd.f32 0.0, %v5714
    %v5716 = vpop.f32.mrf.mxu0
    %5717 = vmatprep.mubr.f32.mxu0 0.0
    %5718 = vmatmul.mubr.f32.gmra.mxu0 %v5542
    %v5719 = vpop.f32.mrf.mxu0
    %v5720 = vadd.f32 0.0, %v5719
    %v5721 = vpop.f32.mrf.mxu0
    %5722 = vmatprep.mubr.f32.mxu0 0.0
    %5723 = vmatmul.mubr.f32.gmra.mxu0 %v5545
    %v5724 = vpop.f32.mrf.mxu0
    %v5725 = vadd.f32 0.0, %v5724
    %v5726 = vpop.f32.mrf.mxu0
    %5727 = vmatprep.mubr.f32.mxu0 0.0
    %5728 = vmatmul.mubr.f32.gmra.mxu0 %v5548
    %v5729 = vpop.f32.mrf.mxu0
    %v5730 = vadd.f32 0.0, %v5729
    %v5731 = vpop.f32.mrf.mxu0
    %5732 = vmatprep.mubr.f32.mxu0 0.0
    %5733 = vmatmul.mubr.f32.gmra.mxu0 %v5551
    %v5734 = vpop.f32.mrf.mxu0
    %v5735 = vadd.f32 0.0, %v5734
    %v5736 = vpop.f32.mrf.mxu0
    %5737 = vdwg.mxu0
    %v5738 = vadd.f32 %v5424, %v5620
    %v5739 = vadd.f32 %v5425, %v5625
    %v5740 = vadd.f32 %v5426, %v5630
    %v5741 = vadd.f32 %v5427, %v5635
    %v5742 = vadd.f32 %v5428, %v5640
    %v5743 = vadd.f32 %v5429, %v5645
    %v5744 = vadd.f32 %v5430, %v5650
    %v5745 = vadd.f32 %v5431, %v5655
    %v5746 = vadd.f32 %v5432, %v5660
    %v5747 = vadd.f32 %v5433, %v5665
    %v5748 = vadd.f32 %v5434, %v5670
    %v5749 = vadd.f32 %v5435, %v5675
    %v5750 = vadd.f32 %v5436, %v5680
    %v5751 = vadd.f32 %v5437, %v5685
    %v5752 = vadd.f32 %v5438, %v5690
    %v5753 = vadd.f32 %v5439, %v5695
    %v5754 = vadd.f32 %v5440, %v5700
    %v5755 = vadd.f32 %v5441, %v5705
    %v5756 = vadd.f32 %v5442, %v5710
    %v5757 = vadd.f32 %v5443, %v5715
    %v5758 = vadd.f32 %v5444, %v5720
    %v5759 = vadd.f32 %v5445, %v5725
    %v5760 = vadd.f32 %v5446, %v5730
    %v5761 = vadd.f32 %v5447, %v5735
    %v5762 = vld [vmem:[#allocation5 + $0x4] sm:$0xff]
    %v5763 = vld [vmem:[#allocation5 + $0xc] sm:$0xff]
    %v5764 = vld [vmem:[#allocation5 + $0x14] sm:$0xff]
    %v5765 = vld [vmem:[#allocation5 + $0x1c] sm:$0xff]
    %v5766 = vld [vmem:[#allocation5 + $0x24] sm:$0xff]
    %v5767 = vld [vmem:[#allocation5 + $0x2c] sm:$0xff]
    %v5768 = vld [vmem:[#allocation5 + $0x34] sm:$0xff]
    %v5769 = vld [vmem:[#allocation5 + $0x3c] sm:$0xff]
    %v5770 = vld [vmem:[#allocation5 + $0x44] sm:$0xff]
    %v5771 = vld [vmem:[#allocation5 + $0x4c] sm:$0xff]
    %v5772 = vld [vmem:[#allocation5 + $0x54] sm:$0xff]
    %v5773 = vld [vmem:[#allocation5 + $0x5c] sm:$0xff]
    %v5774 = vld [vmem:[#allocation5 + $0x64] sm:$0xff]
    %v5775 = vld [vmem:[#allocation5 + $0x6c] sm:$0xff]
    %v5776 = vld [vmem:[#allocation5 + $0x74] sm:$0xff]
    %v5777 = vld [vmem:[#allocation5 + $0x7c] sm:$0xff]
    %v5778 = vld [vmem:[#allocation5 + $0x84] sm:$0xff]
    %v5779 = vld [vmem:[#allocation5 + $0x8c] sm:$0xff]
    %v5780 = vld [vmem:[#allocation5 + $0x94] sm:$0xff]
    %v5781 = vld [vmem:[#allocation5 + $0x9c] sm:$0xff]
    %v5782 = vld [vmem:[#allocation5 + $0xa4] sm:$0xff]
    %v5783 = vld [vmem:[#allocation5 + $0xac] sm:$0xff]
    %v5784 = vld [vmem:[#allocation5 + $0xb4] sm:$0xff]
    %v5785 = vld [vmem:[#allocation5 + $0xbc] sm:$0xff]
    %s5786 = scalar_lea.vmem %s5, 256
    %v5787 = vld [vmem:[%s5786] sm:$0xff]
    %v5788 = vld [vmem:[%s5786 + $0x8] sm:$0xff]
    %v5789 = vld [vmem:[%s5786 + $0x10] sm:$0xff]
    %v5790 = vld [vmem:[%s5786 + $0x18] sm:$0xff]
    %v5791 = vld [vmem:[%s5786 + $0x20] sm:$0xff]
    %v5792 = vld [vmem:[%s5786 + $0x28] sm:$0xff]
    %v5793 = vld [vmem:[%s5786 + $0x30] sm:$0xff]
    %v5794 = vld [vmem:[%s5786 + $0x38] sm:$0xff]
    %v5796 = vsel %vm4362, %v5762, 0
    %v5799 = vsel %vm4362, %v5763, 0
    %v5802 = vsel %vm4362, %v5764, 0
    %v5805 = vsel %vm4362, %v5765, 0
    %v5808 = vsel %vm4362, %v5766, 0
    %v5811 = vsel %vm4362, %v5767, 0
    %v5814 = vsel %vm4362, %v5768, 0
    %v5817 = vsel %vm4362, %v5769, 0
    %v5820 = vsel %vm4362, %v5770, 0
    %v5823 = vsel %vm4362, %v5771, 0
    %v5826 = vsel %vm4362, %v5772, 0
    %v5829 = vsel %vm4362, %v5773, 0
    %v5832 = vsel %vm4362, %v5774, 0
    %v5835 = vsel %vm4362, %v5775, 0
    %v5838 = vsel %vm4362, %v5776, 0
    %v5841 = vsel %vm4362, %v5777, 0
    %v5844 = vsel %vm4362, %v5778, 0
    %v5847 = vsel %vm4362, %v5779, 0
    %v5850 = vsel %vm4362, %v5780, 0
    %v5853 = vsel %vm4362, %v5781, 0
    %v5856 = vsel %vm4362, %v5782, 0
    %v5859 = vsel %vm4362, %v5783, 0
    %v5862 = vsel %vm4362, %v5784, 0
    %v5865 = vsel %vm4362, %v5785, 0
    %5867 = vmatprep.subr.mxu0 0.0
    %5868 = vmatpush1.msra.mxu0 0.0
    %5869 = vmatprep.subr.mxu0 0.0
    %5870 = vmatpush1.msra.mxu0 0.0
    %5871 = vmatprep.subr.mxu0 0.0
    %5872 = vmatpush1.msra.mxu0 0.0
    %5873 = vmatprep.subr.mxu0 0.0
    %5874 = vmatpush1.msra.mxu0 0.0
    %5875 = vmatprep.subr.mxu0 0.0
    %5876 = vmatpush1.msra.mxu0 0.0
    %5877 = vmatprep.subr.mxu0 0.0
    %5878 = vmatpush1.msra.mxu0 0.0
    %5879 = vmatprep.subr.mxu0 0.0
    %5880 = vmatpush1.msra.mxu0 0.0
    %5881 = vmatprep.subr.mxu0 0.0
    %5882 = vmatpush1.msra.mxu0 0.0
    %5883 = vmatprep.subr.mxu0 0.0
    %5884 = vmatpush1.msra.mxu0 %v5794
    %5885 = vmatprep.subr.mxu0 0.0
    %5886 = vmatpush1.msra.mxu0 %v5793
    %5887 = vmatprep.subr.mxu0 0.0
    %5888 = vmatpush1.msra.mxu0 %v5792
    %5889 = vmatprep.subr.mxu0 0.0
    %5890 = vmatpush1.msra.mxu0 %v5791
    %5891 = vmatprep.subr.mxu0 0.0
    %5892 = vmatpush1.msra.mxu0 %v5790
    %5893 = vmatprep.subr.mxu0 0.0
    %5894 = vmatpush1.msra.mxu0 %v5789
    %5895 = vmatprep.subr.mxu0 0.0
    %5896 = vmatpush1.msra.mxu0 %v5788
    %5897 = vmatprep.subr.mxu0 0.0
    %5898 = vmatpush1.msra.mxu0 %v5787
    %5899 = vmatprep.subr.mxu0 0.0
    %5900 = vmatpush2.msra.mxu0 0.0
    %5901 = vmatprep.subr.mxu0 0.0
    %5902 = vmatpush2.msra.mxu0 0.0
    %5903 = vmatprep.subr.mxu0 0.0
    %5904 = vmatpush2.msra.mxu0 0.0
    %5905 = vmatprep.subr.mxu0 0.0
    %5906 = vmatpush2.msra.mxu0 0.0
    %5907 = vmatprep.subr.mxu0 0.0
    %5908 = vmatpush2.msra.mxu0 0.0
    %5909 = vmatprep.subr.mxu0 0.0
    %5910 = vmatpush2.msra.mxu0 0.0
    %5911 = vmatprep.subr.mxu0 0.0
    %5912 = vmatpush2.msra.mxu0 0.0
    %5913 = vmatprep.subr.mxu0 0.0
    %5914 = vmatpush2.msra.mxu0 0.0
    %5915 = vmatprep.subr.mxu0 0.0
    %5916 = vmatpush2.msra.mxu0 0.0
    %5917 = vmatprep.subr.mxu0 0.0
    %5918 = vmatpush2.msra.mxu0 0.0
    %5919 = vmatprep.subr.mxu0 0.0
    %5920 = vmatpush2.msra.mxu0 0.0
    %5921 = vmatprep.subr.mxu0 0.0
    %5922 = vmatpush2.msra.mxu0 0.0
    %5923 = vmatprep.subr.mxu0 0.0
    %5924 = vmatpush2.msra.mxu0 0.0
    %5925 = vmatprep.subr.mxu0 0.0
    %5926 = vmatpush2.msra.mxu0 0.0
    %5927 = vmatprep.subr.mxu0 0.0
    %5928 = vmatpush2.msra.mxu0 0.0
    %5929 = vmatprep.subr.mxu0 0.0
    %5930 = vmatpush2.msra.mxu0 0.0
    %5931 = vmatprep.mubr.f32.mxu0 0.0
    %5932 = vmatmul.mubr.f32.gmra.mxu0 %v5796
    %v5933 = vpop.f32.mrf.mxu0
    %v5934 = vadd.f32 0.0, %v5933
    %v5935 = vpop.f32.mrf.mxu0
    %5936 = vmatprep.mubr.f32.mxu0 0.0
    %5937 = vmatmul.mubr.f32.gmra.mxu0 %v5799
    %v5938 = vpop.f32.mrf.mxu0
    %v5939 = vadd.f32 0.0, %v5938
    %v5940 = vpop.f32.mrf.mxu0
    %5941 = vmatprep.mubr.f32.mxu0 0.0
    %5942 = vmatmul.mubr.f32.gmra.mxu0 %v5802
    %v5943 = vpop.f32.mrf.mxu0
    %v5944 = vadd.f32 0.0, %v5943
    %v5945 = vpop.f32.mrf.mxu0
    %5946 = vmatprep.mubr.f32.mxu0 0.0
    %5947 = vmatmul.mubr.f32.gmra.mxu0 %v5805
    %v5948 = vpop.f32.mrf.mxu0
    %v5949 = vadd.f32 0.0, %v5948
    %v5950 = vpop.f32.mrf.mxu0
    %5951 = vmatprep.mubr.f32.mxu0 0.0
    %5952 = vmatmul.mubr.f32.gmra.mxu0 %v5808
    %v5953 = vpop.f32.mrf.mxu0
    %v5954 = vadd.f32 0.0, %v5953
    %v5955 = vpop.f32.mrf.mxu0
    %5956 = vmatprep.mubr.f32.mxu0 0.0
    %5957 = vmatmul.mubr.f32.gmra.mxu0 %v5811
    %v5958 = vpop.f32.mrf.mxu0
    %v5959 = vadd.f32 0.0, %v5958
    %v5960 = vpop.f32.mrf.mxu0
    %5961 = vmatprep.mubr.f32.mxu0 0.0
    %5962 = vmatmul.mubr.f32.gmra.mxu0 %v5814
    %v5963 = vpop.f32.mrf.mxu0
    %v5964 = vadd.f32 0.0, %v5963
    %v5965 = vpop.f32.mrf.mxu0
    %5966 = vmatprep.mubr.f32.mxu0 0.0
    %5967 = vmatmul.mubr.f32.gmra.mxu0 %v5817
    %v5968 = vpop.f32.mrf.mxu0
    %v5969 = vadd.f32 0.0, %v5968
    %v5970 = vpop.f32.mrf.mxu0
    %5971 = vmatprep.mubr.f32.mxu0 0.0
    %5972 = vmatmul.mubr.f32.gmra.mxu0 %v5820
    %v5973 = vpop.f32.mrf.mxu0
    %v5974 = vadd.f32 0.0, %v5973
    %v5975 = vpop.f32.mrf.mxu0
    %5976 = vmatprep.mubr.f32.mxu0 0.0
    %5977 = vmatmul.mubr.f32.gmra.mxu0 %v5823
    %v5978 = vpop.f32.mrf.mxu0
    %v5979 = vadd.f32 0.0, %v5978
    %v5980 = vpop.f32.mrf.mxu0
    %5981 = vmatprep.mubr.f32.mxu0 0.0
    %5982 = vmatmul.mubr.f32.gmra.mxu0 %v5826
    %v5983 = vpop.f32.mrf.mxu0
    %v5984 = vadd.f32 0.0, %v5983
    %v5985 = vpop.f32.mrf.mxu0
    %5986 = vmatprep.mubr.f32.mxu0 0.0
    %5987 = vmatmul.mubr.f32.gmra.mxu0 %v5829
    %v5988 = vpop.f32.mrf.mxu0
    %v5989 = vadd.f32 0.0, %v5988
    %v5990 = vpop.f32.mrf.mxu0
    %5991 = vmatprep.mubr.f32.mxu0 0.0
    %5992 = vmatmul.mubr.f32.gmra.mxu0 %v5832
    %v5993 = vpop.f32.mrf.mxu0
    %v5994 = vadd.f32 0.0, %v5993
    %v5995 = vpop.f32.mrf.mxu0
    %5996 = vmatprep.mubr.f32.mxu0 0.0
    %5997 = vmatmul.mubr.f32.gmra.mxu0 %v5835
    %v5998 = vpop.f32.mrf.mxu0
    %v5999 = vadd.f32 0.0, %v5998
    %v6000 = vpop.f32.mrf.mxu0
    %6001 = vmatprep.mubr.f32.mxu0 0.0
    %6002 = vmatmul.mubr.f32.gmra.mxu0 %v5838
    %v6003 = vpop.f32.mrf.mxu0
    %v6004 = vadd.f32 0.0, %v6003
    %v6005 = vpop.f32.mrf.mxu0
    %6006 = vmatprep.mubr.f32.mxu0 0.0
    %6007 = vmatmul.mubr.f32.gmra.mxu0 %v5841
    %v6008 = vpop.f32.mrf.mxu0
    %v6009 = vadd.f32 0.0, %v6008
    %v6010 = vpop.f32.mrf.mxu0
    %6011 = vmatprep.mubr.f32.mxu0 0.0
    %6012 = vmatmul.mubr.f32.gmra.mxu0 %v5844
    %v6013 = vpop.f32.mrf.mxu0
    %v6014 = vadd.f32 0.0, %v6013
    %v6015 = vpop.f32.mrf.mxu0
    %6016 = vmatprep.mubr.f32.mxu0 0.0
    %6017 = vmatmul.mubr.f32.gmra.mxu0 %v5847
    %v6018 = vpop.f32.mrf.mxu0
    %v6019 = vadd.f32 0.0, %v6018
    %v6020 = vpop.f32.mrf.mxu0
    %6021 = vmatprep.mubr.f32.mxu0 0.0
    %6022 = vmatmul.mubr.f32.gmra.mxu0 %v5850
    %v6023 = vpop.f32.mrf.mxu0
    %v6024 = vadd.f32 0.0, %v6023
    %v6025 = vpop.f32.mrf.mxu0
    %6026 = vmatprep.mubr.f32.mxu0 0.0
    %6027 = vmatmul.mubr.f32.gmra.mxu0 %v5853
    %v6028 = vpop.f32.mrf.mxu0
    %v6029 = vadd.f32 0.0, %v6028
    %v6030 = vpop.f32.mrf.mxu0
    %6031 = vmatprep.mubr.f32.mxu0 0.0
    %6032 = vmatmul.mubr.f32.gmra.mxu0 %v5856
    %v6033 = vpop.f32.mrf.mxu0
    %v6034 = vadd.f32 0.0, %v6033
    %v6035 = vpop.f32.mrf.mxu0
    %6036 = vmatprep.mubr.f32.mxu0 0.0
    %6037 = vmatmul.mubr.f32.gmra.mxu0 %v5859
    %v6038 = vpop.f32.mrf.mxu0
    %v6039 = vadd.f32 0.0, %v6038
    %v6040 = vpop.f32.mrf.mxu0
    %6041 = vmatprep.mubr.f32.mxu0 0.0
    %6042 = vmatmul.mubr.f32.gmra.mxu0 %v5862
    %v6043 = vpop.f32.mrf.mxu0
    %v6044 = vadd.f32 0.0, %v6043
    %v6045 = vpop.f32.mrf.mxu0
    %6046 = vmatprep.mubr.f32.mxu0 0.0
    %6047 = vmatmul.mubr.f32.gmra.mxu0 %v5865
    %v6048 = vpop.f32.mrf.mxu0
    %v6049 = vadd.f32 0.0, %v6048
    %v6050 = vpop.f32.mrf.mxu0
    %6051 = vdwg.mxu0
    %v6052 = vadd.f32 %v5738, %v5934
    %v6053 = vadd.f32 %v5739, %v5939
    %v6054 = vadd.f32 %v5740, %v5944
    %v6055 = vadd.f32 %v5741, %v5949
    %v6056 = vadd.f32 %v5742, %v5954
    %v6057 = vadd.f32 %v5743, %v5959
    %v6058 = vadd.f32 %v5744, %v5964
    %v6059 = vadd.f32 %v5745, %v5969
    %v6060 = vadd.f32 %v5746, %v5974
    %v6061 = vadd.f32 %v5747, %v5979
    %v6062 = vadd.f32 %v5748, %v5984
    %v6063 = vadd.f32 %v5749, %v5989
    %v6064 = vadd.f32 %v5750, %v5994
    %v6065 = vadd.f32 %v5751, %v5999
    %v6066 = vadd.f32 %v5752, %v6004
    %v6067 = vadd.f32 %v5753, %v6009
    %v6068 = vadd.f32 %v5754, %v6014
    %v6069 = vadd.f32 %v5755, %v6019
    %v6070 = vadd.f32 %v5756, %v6024
    %v6071 = vadd.f32 %v5757, %v6029
    %v6072 = vadd.f32 %v5758, %v6034
    %v6073 = vadd.f32 %v5759, %v6039
    %v6074 = vadd.f32 %v5760, %v6044
    %v6075 = vadd.f32 %v5761, %v6049
    %v6076 = vld [vmem:[%s6] sm:$0x1]
    %v6078 = vlaneseq
    %v6079 = vshrl.u32 %v6078, 7
    %v6080 = vsub.s32 0, %v6079
    %v6081 = vrot.slane %v6076, %v6080
    %v6083 = vadd.f32 %v6052, %v6081
    %v6084 = vadd.f32 %v6053, %v6081
    %v6085 = vadd.f32 %v6054, %v6081
    %v6086 = vadd.f32 %v6055, %v6081
    %v6087 = vadd.f32 %v6056, %v6081
    %v6088 = vadd.f32 %v6057, %v6081
    %v6089 = vadd.f32 %v6058, %v6081
    %v6090 = vadd.f32 %v6059, %v6081
    %v6091 = vadd.f32 %v6060, %v6081
    %v6092 = vadd.f32 %v6061, %v6081
    %v6093 = vadd.f32 %v6062, %v6081
    %v6094 = vadd.f32 %v6063, %v6081
    %v6095 = vadd.f32 %v6064, %v6081
    %v6096 = vadd.f32 %v6065, %v6081
    %v6097 = vadd.f32 %v6066, %v6081
    %v6098 = vadd.f32 %v6067, %v6081
    %v6099 = vadd.f32 %v6068, %v6081
    %v6100 = vadd.f32 %v6069, %v6081
    %v6101 = vadd.f32 %v6070, %v6081
    %v6102 = vadd.f32 %v6071, %v6081
    %v6103 = vadd.f32 %v6072, %v6081
    %v6104 = vadd.f32 %v6073, %v6081
    %v6105 = vadd.f32 %v6074, %v6081
    %v6106 = vadd.f32 %v6075, %v6081
    %v6107 = vmul.f32 %v6083, 0.01
    %v6108 = vmul.f32 %v6084, 0.01
    %v6109 = vmul.f32 %v6085, 0.01
    %v6110 = vmul.f32 %v6086, 0.01
    %v6111 = vmul.f32 %v6087, 0.01
    %v6112 = vmul.f32 %v6088, 0.01
    %v6113 = vmul.f32 %v6089, 0.01
    %v6114 = vmul.f32 %v6090, 0.01
    %v6115 = vmul.f32 %v6091, 0.01
    %v6116 = vmul.f32 %v6092, 0.01
    %v6117 = vmul.f32 %v6093, 0.01
    %v6118 = vmul.f32 %v6094, 0.01
    %v6119 = vmul.f32 %v6095, 0.01
    %v6120 = vmul.f32 %v6096, 0.01
    %v6121 = vmul.f32 %v6097, 0.01
    %v6122 = vmul.f32 %v6098, 0.01
    %v6123 = vmul.f32 %v6099, 0.01
    %v6124 = vmul.f32 %v6100, 0.01
    %v6125 = vmul.f32 %v6101, 0.01
    %v6126 = vmul.f32 %v6102, 0.01
    %v6127 = vmul.f32 %v6103, 0.01
    %v6128 = vmul.f32 %v6104, 0.01
    %v6129 = vmul.f32 %v6105, 0.01
    %v6130 = vmul.f32 %v6106, 0.01
    %v6131 = vmax.f32 %v6083, %v6107
    %v6132 = vmax.f32 %v6084, %v6108
    %v6133 = vmax.f32 %v6085, %v6109
    %v6134 = vmax.f32 %v6086, %v6110
    %v6135 = vmax.f32 %v6087, %v6111
    %v6136 = vmax.f32 %v6088, %v6112
    %v6137 = vmax.f32 %v6089, %v6113
    %v6138 = vmax.f32 %v6090, %v6114
    %v6139 = vmax.f32 %v6091, %v6115
    %v6140 = vmax.f32 %v6092, %v6116
    %v6141 = vmax.f32 %v6093, %v6117
    %v6142 = vmax.f32 %v6094, %v6118
    %v6143 = vmax.f32 %v6095, %v6119
    %v6144 = vmax.f32 %v6096, %v6120
    %v6145 = vmax.f32 %v6097, %v6121
    %v6146 = vmax.f32 %v6098, %v6122
    %v6147 = vmax.f32 %v6099, %v6123
    %v6148 = vmax.f32 %v6100, %v6124
    %v6149 = vmax.f32 %v6101, %v6125
    %v6150 = vmax.f32 %v6102, %v6126
    %v6151 = vmax.f32 %v6103, %v6127
    %v6152 = vmax.f32 %v6104, %v6128
    %v6153 = vmax.f32 %v6105, %v6129
    %v6154 = vmax.f32 %v6106, %v6130
    %6155 = vst [vmem:[#allocation6] sm:$0xff] %v6131
    %6156 = vst [vmem:[#allocation6 + $0x8] sm:$0xff] %v6132
    %6157 = vst [vmem:[#allocation6 + $0x10] sm:$0xff] %v6133
    %6158 = vst [vmem:[#allocation6 + $0x18] sm:$0xff] %v6134
    %6159 = vst [vmem:[#allocation6 + $0x20] sm:$0xff] %v6135
    %6160 = vst [vmem:[#allocation6 + $0x28] sm:$0xff] %v6136
    %6161 = vst [vmem:[#allocation6 + $0x30] sm:$0xff] %v6137
    %6162 = vst [vmem:[#allocation6 + $0x38] sm:$0xff] %v6138
    %6163 = vst [vmem:[#allocation6 + $0x40] sm:$0xff] %v6139
    %6164 = vst [vmem:[#allocation6 + $0x48] sm:$0xff] %v6140
    %6165 = vst [vmem:[#allocation6 + $0x50] sm:$0xff] %v6141
    %6166 = vst [vmem:[#allocation6 + $0x58] sm:$0xff] %v6142
    %6167 = vst [vmem:[#allocation6 + $0x60] sm:$0xff] %v6143
    %6168 = vst [vmem:[#allocation6 + $0x68] sm:$0xff] %v6144
    %6169 = vst [vmem:[#allocation6 + $0x70] sm:$0xff] %v6145
    %6170 = vst [vmem:[#allocation6 + $0x78] sm:$0xff] %v6146
    %6171 = vst [vmem:[#allocation6 + $0x80] sm:$0xff] %v6147
    %6172 = vst [vmem:[#allocation6 + $0x88] sm:$0xff] %v6148
    %6173 = vst [vmem:[#allocation6 + $0x90] sm:$0xff] %v6149
    %6174 = vst [vmem:[#allocation6 + $0x98] sm:$0xff] %v6150
    %6175 = vst [vmem:[#allocation6 + $0xa0] sm:$0xff] %v6151
    %6176 = vst [vmem:[#allocation6 + $0xa8] sm:$0xff] %v6152
    %6177 = vst [vmem:[#allocation6 + $0xb0] sm:$0xff] %v6153
    %6178 = vst [vmem:[#allocation6 + $0xb8] sm:$0xff] %v6154
    %v6179 = vld [vmem:[#allocation6] ss:$24 sm:$0xf]
    %v6180 = vld [vmem:[#allocation6] ss:$24 sm:$0xf0]
    %v6181 = vor.u32 %v6179, %v6180
    %s6182 = scalar_lea.vmem [#allocation6], 1
    %v6183 = vld [vmem:[%s6182] ss:$24 sm:$0xf]
    %v6184 = vld [vmem:[%s6182] ss:$24 sm:$0xf0]
    %v6185 = vor.u32 %v6183, %v6184
    %v6186 = vmax.f32 %v6181, %v6185
    %v6187 = vld [vmem:[%s7] sm:$0xff]
    %v6188 = vld [vmem:[%s7 + $0x8] sm:$0xff]
    %v6189 = vld [vmem:[%s7 + $0x10] sm:$0xff]
    %v6190 = vld [vmem:[%s7 + $0x18] sm:$0xff]
    %v6191 = vld [vmem:[%s7 + $0x20] sm:$0xff]
    %v6192 = vld [vmem:[%s7 + $0x28] sm:$0xff]
    %v6193 = vld [vmem:[%s7 + $0x30] sm:$0xff]
    %v6194 = vld [vmem:[%s7 + $0x38] sm:$0xff]
    %v6195 = vld [vmem:[%s7 + $0x40] sm:$0xff]
    %v6196 = vld [vmem:[%s7 + $0x48] sm:$0xff]
    %v6197 = vld [vmem:[%s7 + $0x50] sm:$0xff]
    %v6198 = vld [vmem:[%s7 + $0x58] sm:$0xff]
    %v6199 = vld [vmem:[%s7 + $0x60] sm:$0xff]
    %v6200 = vld [vmem:[%s7 + $0x68] sm:$0xff]
    %v6201 = vld [vmem:[%s7 + $0x70] sm:$0xff]
    %v6202 = vld [vmem:[%s7 + $0x78] sm:$0xff]
    %v6203 = vld [vmem:[%s7 + $0x80] sm:$0xff]
    %v6204 = vld [vmem:[%s7 + $0x88] sm:$0xff]
    %v6205 = vld [vmem:[%s7 + $0x90] sm:$0xff]
    %v6206 = vld [vmem:[%s7 + $0x98] sm:$0xff]
    %v6207 = vld [vmem:[%s7 + $0xa0] sm:$0xff]
    %v6208 = vld [vmem:[%s7 + $0xa8] sm:$0xff]
    %v6209 = vld [vmem:[%s7 + $0xb0] sm:$0xff]
    %v6210 = vld [vmem:[%s7 + $0xb8] sm:$0xff]
    %v6211 = vld [vmem:[%s7 + $0xc0] sm:$0xff]
    %v6212 = vld [vmem:[%s7 + $0xc8] sm:$0xff]
    %v6213 = vld [vmem:[%s7 + $0xd0] sm:$0xff]
    %v6214 = vld [vmem:[%s7 + $0xd8] sm:$0xff]
    %v6215 = vld [vmem:[%s7 + $0xe0] sm:$0xff]
    %v6216 = vld [vmem:[%s7 + $0xe8] sm:$0xff]
    %v6217 = vld [vmem:[%s7 + $0xf0] sm:$0xff]
    %v6218 = vld [vmem:[%s7 + $0xf8] sm:$0xff]
    %v6219 = vld [vmem:[%s7 + $0x100] sm:$0xff]
    %v6220 = vld [vmem:[%s7 + $0x108] sm:$0xff]
    %v6221 = vld [vmem:[%s7 + $0x110] sm:$0xff]
    %v6222 = vld [vmem:[%s7 + $0x118] sm:$0xff]
    %v6223 = vld [vmem:[%s7 + $0x120] sm:$0xff]
    %v6224 = vld [vmem:[%s7 + $0x128] sm:$0xff]
    %v6225 = vld [vmem:[%s7 + $0x130] sm:$0xff]
    %v6226 = vld [vmem:[%s7 + $0x138] sm:$0xff]
    %v6227 = vld [vmem:[%s7 + $0x140] sm:$0xff]
    %v6228 = vld [vmem:[%s7 + $0x148] sm:$0xff]
    %v6229 = vld [vmem:[%s7 + $0x150] sm:$0xff]
    %v6230 = vld [vmem:[%s7 + $0x158] sm:$0xff]
    %v6231 = vld [vmem:[%s7 + $0x160] sm:$0xff]
    %v6232 = vld [vmem:[%s7 + $0x168] sm:$0xff]
    %v6233 = vld [vmem:[%s7 + $0x170] sm:$0xff]
    %v6234 = vld [vmem:[%s7 + $0x178] sm:$0xff]
    %s6235 = scalar_lea.vmem [#allocation6], 2
    %v6236 = vld [vmem:[%s6235] ss:$24 sm:$0xf]
    %v6237 = vld [vmem:[%s6235] ss:$24 sm:$0xf0]
    %v6238 = vor.u32 %v6236, %v6237
    %s6239 = scalar_lea.vmem [#allocation6], 3
    %v6240 = vld [vmem:[%s6239] ss:$24 sm:$0xf]
    %v6241 = vld [vmem:[%s6239] ss:$24 sm:$0xf0]
    %v6242 = vor.u32 %v6240, %v6241
    %v6243 = vmax.f32 %v6238, %v6242
    %s6244 = scalar_lea.vmem %s7, 384
    %v6245 = vld [vmem:[%s6244] sm:$0xff]
    %v6246 = vld [vmem:[%s6244 + $0x8] sm:$0xff]
    %v6247 = vld [vmem:[%s6244 + $0x10] sm:$0xff]
    %v6248 = vld [vmem:[%s6244 + $0x18] sm:$0xff]
    %v6249 = vld [vmem:[%s6244 + $0x20] sm:$0xff]
    %v6250 = vld [vmem:[%s6244 + $0x28] sm:$0xff]
    %v6251 = vld [vmem:[%s6244 + $0x30] sm:$0xff]
    %v6252 = vld [vmem:[%s6244 + $0x38] sm:$0xff]
    %v6253 = vld [vmem:[%s6244 + $0x40] sm:$0xff]
    %v6254 = vld [vmem:[%s6244 + $0x48] sm:$0xff]
    %v6255 = vld [vmem:[%s6244 + $0x50] sm:$0xff]
    %v6256 = vld [vmem:[%s6244 + $0x58] sm:$0xff]
    %v6257 = vld [vmem:[%s6244 + $0x60] sm:$0xff]
    %v6258 = vld [vmem:[%s6244 + $0x68] sm:$0xff]
    %v6259 = vld [vmem:[%s6244 + $0x70] sm:$0xff]
    %v6260 = vld [vmem:[%s6244 + $0x78] sm:$0xff]
    %v6261 = vld [vmem:[%s6244 + $0x80] sm:$0xff]
    %v6262 = vld [vmem:[%s6244 + $0x88] sm:$0xff]
    %v6263 = vld [vmem:[%s6244 + $0x90] sm:$0xff]
    %v6264 = vld [vmem:[%s6244 + $0x98] sm:$0xff]
    %v6265 = vld [vmem:[%s6244 + $0xa0] sm:$0xff]
    %v6266 = vld [vmem:[%s6244 + $0xa8] sm:$0xff]
    %v6267 = vld [vmem:[%s6244 + $0xb0] sm:$0xff]
    %v6268 = vld [vmem:[%s6244 + $0xb8] sm:$0xff]
    %v6269 = vld [vmem:[%s6244 + $0xc0] sm:$0xff]
    %v6270 = vld [vmem:[%s6244 + $0xc8] sm:$0xff]
    %v6271 = vld [vmem:[%s6244 + $0xd0] sm:$0xff]
    %v6272 = vld [vmem:[%s6244 + $0xd8] sm:$0xff]
    %v6273 = vld [vmem:[%s6244 + $0xe0] sm:$0xff]
    %v6274 = vld [vmem:[%s6244 + $0xe8] sm:$0xff]
    %v6275 = vld [vmem:[%s6244 + $0xf0] sm:$0xff]
    %v6276 = vld [vmem:[%s6244 + $0xf8] sm:$0xff]
    %v6277 = vld [vmem:[%s6244 + $0x100] sm:$0xff]
    %v6278 = vld [vmem:[%s6244 + $0x108] sm:$0xff]
    %v6279 = vld [vmem:[%s6244 + $0x110] sm:$0xff]
    %v6280 = vld [vmem:[%s6244 + $0x118] sm:$0xff]
    %v6281 = vld [vmem:[%s6244 + $0x120] sm:$0xff]
    %v6282 = vld [vmem:[%s6244 + $0x128] sm:$0xff]
    %v6283 = vld [vmem:[%s6244 + $0x130] sm:$0xff]
    %v6284 = vld [vmem:[%s6244 + $0x138] sm:$0xff]
    %v6285 = vld [vmem:[%s6244 + $0x140] sm:$0xff]
    %v6286 = vld [vmem:[%s6244 + $0x148] sm:$0xff]
    %v6287 = vld [vmem:[%s6244 + $0x150] sm:$0xff]
    %v6288 = vld [vmem:[%s6244 + $0x158] sm:$0xff]
    %v6289 = vld [vmem:[%s6244 + $0x160] sm:$0xff]
    %v6290 = vld [vmem:[%s6244 + $0x168] sm:$0xff]
    %v6291 = vld [vmem:[%s6244 + $0x170] sm:$0xff]
    %v6292 = vld [vmem:[%s6244 + $0x178] sm:$0xff]
    %6293 = vmatprep.subr.mxu0 %v6291
    %6294 = vmatpush1.msra.mxu0 %v6290
    %6295 = vmatprep.subr.mxu0 %v6288
    %6296 = vmatpush1.msra.mxu0 %v6287
    %6297 = vmatprep.subr.mxu0 %v6285
    %6298 = vmatpush1.msra.mxu0 %v6284
    %6299 = vmatprep.subr.mxu0 %v6282
    %6300 = vmatpush1.msra.mxu0 %v6281
    %6301 = vmatprep.subr.mxu0 %v6279
    %6302 = vmatpush1.msra.mxu0 %v6278
    %6303 = vmatprep.subr.mxu0 %v6276
    %6304 = vmatpush1.msra.mxu0 %v6275
    %6305 = vmatprep.subr.mxu0 %v6273
    %6306 = vmatpush1.msra.mxu0 %v6272
    %6307 = vmatprep.subr.mxu0 %v6270
    %6308 = vmatpush1.msra.mxu0 %v6269
    %6309 = vmatprep.subr.mxu0 %v6267
    %6310 = vmatpush1.msra.mxu0 %v6266
    %6311 = vmatprep.subr.mxu0 %v6264
    %6312 = vmatpush1.msra.mxu0 %v6263
    %6313 = vmatprep.subr.mxu0 %v6261
    %6314 = vmatpush1.msra.mxu0 %v6260
    %6315 = vmatprep.subr.mxu0 %v6258
    %6316 = vmatpush1.msra.mxu0 %v6257
    %6317 = vmatprep.subr.mxu0 %v6255
    %6318 = vmatpush1.msra.mxu0 %v6254
    %6319 = vmatprep.subr.mxu0 %v6252
    %6320 = vmatpush1.msra.mxu0 %v6251
    %6321 = vmatprep.subr.mxu0 %v6249
    %6322 = vmatpush1.msra.mxu0 %v6248
    %6323 = vmatprep.subr.mxu0 %v6246
    %6324 = vmatpush1.msra.mxu0 %v6245
    %6325 = vmatprep.subr.mxu0 0.0
    %6326 = vmatpush2.msra.mxu0 0.0
    %6327 = vmatprep.subr.mxu0 0.0
    %6328 = vmatpush2.msra.mxu0 0.0
    %6329 = vmatprep.subr.mxu0 0.0
    %6330 = vmatpush2.msra.mxu0 0.0
    %6331 = vmatprep.subr.mxu0 0.0
    %6332 = vmatpush2.msra.mxu0 0.0
    %6333 = vmatprep.subr.mxu0 0.0
    %6334 = vmatpush2.msra.mxu0 0.0
    %6335 = vmatprep.subr.mxu0 0.0
    %6336 = vmatpush2.msra.mxu0 0.0
    %6337 = vmatprep.subr.mxu0 0.0
    %6338 = vmatpush2.msra.mxu0 0.0
    %6339 = vmatprep.subr.mxu0 0.0
    %6340 = vmatpush2.msra.mxu0 0.0
    %6341 = vmatprep.subr.mxu0 0.0
    %6342 = vmatpush2.msra.mxu0 0.0
    %6343 = vmatprep.subr.mxu0 0.0
    %6344 = vmatpush2.msra.mxu0 0.0
    %6345 = vmatprep.subr.mxu0 0.0
    %6346 = vmatpush2.msra.mxu0 0.0
    %6347 = vmatprep.subr.mxu0 0.0
    %6348 = vmatpush2.msra.mxu0 0.0
    %6349 = vmatprep.subr.mxu0 0.0
    %6350 = vmatpush2.msra.mxu0 0.0
    %6351 = vmatprep.subr.mxu0 0.0
    %6352 = vmatpush2.msra.mxu0 0.0
    %6353 = vmatprep.subr.mxu0 0.0
    %6354 = vmatpush2.msra.mxu0 0.0
    %6355 = vmatprep.subr.mxu0 0.0
    %6356 = vmatpush2.msra.mxu0 0.0
    %6357 = vmatprep.mubr.f32.mxu0 0.0
    %6358 = vmatmul.mubr.f32.gmra.mxu0 %v6243
    %v6359 = vpop.f32.mrf.mxu0
    %v6360 = vadd.f32 0.0, %v6359
    %v6361 = vpop.f32.mrf.mxu0
    %v6362 = vadd.f32 0.0, %v6361
    %6363 = vdwg.mxu0
    %6364 = vmatprep.subr.mxu0 0.0
    %6365 = vmatpush1.msra.mxu0 %v6292
    %6366 = vmatprep.subr.mxu0 0.0
    %6367 = vmatpush1.msra.mxu0 %v6289
    %6368 = vmatprep.subr.mxu0 0.0
    %6369 = vmatpush1.msra.mxu0 %v6286
    %6370 = vmatprep.subr.mxu0 0.0
    %6371 = vmatpush1.msra.mxu0 %v6283
    %6372 = vmatprep.subr.mxu0 0.0
    %6373 = vmatpush1.msra.mxu0 %v6280
    %6374 = vmatprep.subr.mxu0 0.0
    %6375 = vmatpush1.msra.mxu0 %v6277
    %6376 = vmatprep.subr.mxu0 0.0
    %6377 = vmatpush1.msra.mxu0 %v6274
    %6378 = vmatprep.subr.mxu0 0.0
    %6379 = vmatpush1.msra.mxu0 %v6271
    %6380 = vmatprep.subr.mxu0 0.0
    %6381 = vmatpush1.msra.mxu0 %v6268
    %6382 = vmatprep.subr.mxu0 0.0
    %6383 = vmatpush1.msra.mxu0 %v6265
    %6384 = vmatprep.subr.mxu0 0.0
    %6385 = vmatpush1.msra.mxu0 %v6262
    %6386 = vmatprep.subr.mxu0 0.0
    %6387 = vmatpush1.msra.mxu0 %v6259
    %6388 = vmatprep.subr.mxu0 0.0
    %6389 = vmatpush1.msra.mxu0 %v6256
    %6390 = vmatprep.subr.mxu0 0.0
    %6391 = vmatpush1.msra.mxu0 %v6253
    %6392 = vmatprep.subr.mxu0 0.0
    %6393 = vmatpush1.msra.mxu0 %v6250
    %6394 = vmatprep.subr.mxu0 0.0
    %6395 = vmatpush1.msra.mxu0 %v6247
    %6396 = vmatprep.subr.mxu0 0.0
    %6397 = vmatpush2.msra.mxu0 0.0
    %6398 = vmatprep.subr.mxu0 0.0
    %6399 = vmatpush2.msra.mxu0 0.0
    %6400 = vmatprep.subr.mxu0 0.0
    %6401 = vmatpush2.msra.mxu0 0.0
    %6402 = vmatprep.subr.mxu0 0.0
    %6403 = vmatpush2.msra.mxu0 0.0
    %6404 = vmatprep.subr.mxu0 0.0
    %6405 = vmatpush2.msra.mxu0 0.0
    %6406 = vmatprep.subr.mxu0 0.0
    %6407 = vmatpush2.msra.mxu0 0.0
    %6408 = vmatprep.subr.mxu0 0.0
    %6409 = vmatpush2.msra.mxu0 0.0
    %6410 = vmatprep.subr.mxu0 0.0
    %6411 = vmatpush2.msra.mxu0 0.0
    %6412 = vmatprep.subr.mxu0 0.0
    %6413 = vmatpush2.msra.mxu0 0.0
    %6414 = vmatprep.subr.mxu0 0.0
    %6415 = vmatpush2.msra.mxu0 0.0
    %6416 = vmatprep.subr.mxu0 0.0
    %6417 = vmatpush2.msra.mxu0 0.0
    %6418 = vmatprep.subr.mxu0 0.0
    %6419 = vmatpush2.msra.mxu0 0.0
    %6420 = vmatprep.subr.mxu0 0.0
    %6421 = vmatpush2.msra.mxu0 0.0
    %6422 = vmatprep.subr.mxu0 0.0
    %6423 = vmatpush2.msra.mxu0 0.0
    %6424 = vmatprep.subr.mxu0 0.0
    %6425 = vmatpush2.msra.mxu0 0.0
    %6426 = vmatprep.subr.mxu0 0.0
    %6427 = vmatpush2.msra.mxu0 0.0
    %6428 = vmatprep.mubr.f32.mxu0 0.0
    %6429 = vmatmul.mubr.f32.gmra.mxu0 %v6243
    %v6430 = vpop.f32.mrf.mxu0
    %v6431 = vadd.f32 0.0, %v6430
    %v6432 = vpop.f32.mrf.mxu0
    %6433 = vdwg.mxu0
    %6434 = vmatprep.subr.mxu0 %v6233
    %6435 = vmatpush1.msra.mxu0 %v6232
    %6436 = vmatprep.subr.mxu0 %v6230
    %6437 = vmatpush1.msra.mxu0 %v6229
    %6438 = vmatprep.subr.mxu0 %v6227
    %6439 = vmatpush1.msra.mxu0 %v6226
    %6440 = vmatprep.subr.mxu0 %v6224
    %6441 = vmatpush1.msra.mxu0 %v6223
    %6442 = vmatprep.subr.mxu0 %v6221
    %6443 = vmatpush1.msra.mxu0 %v6220
    %6444 = vmatprep.subr.mxu0 %v6218
    %6445 = vmatpush1.msra.mxu0 %v6217
    %6446 = vmatprep.subr.mxu0 %v6215
    %6447 = vmatpush1.msra.mxu0 %v6214
    %6448 = vmatprep.subr.mxu0 %v6212
    %6449 = vmatpush1.msra.mxu0 %v6211
    %6450 = vmatprep.subr.mxu0 %v6209
    %6451 = vmatpush1.msra.mxu0 %v6208
    %6452 = vmatprep.subr.mxu0 %v6206
    %6453 = vmatpush1.msra.mxu0 %v6205
    %6454 = vmatprep.subr.mxu0 %v6203
    %6455 = vmatpush1.msra.mxu0 %v6202
    %6456 = vmatprep.subr.mxu0 %v6200
    %6457 = vmatpush1.msra.mxu0 %v6199
    %6458 = vmatprep.subr.mxu0 %v6197
    %6459 = vmatpush1.msra.mxu0 %v6196
    %6460 = vmatprep.subr.mxu0 %v6194
    %6461 = vmatpush1.msra.mxu0 %v6193
    %6462 = vmatprep.subr.mxu0 %v6191
    %6463 = vmatpush1.msra.mxu0 %v6190
    %6464 = vmatprep.subr.mxu0 %v6188
    %6465 = vmatpush1.msra.mxu0 %v6187
    %6466 = vmatprep.subr.mxu0 0.0
    %6467 = vmatpush2.msra.mxu0 0.0
    %6468 = vmatprep.subr.mxu0 0.0
    %6469 = vmatpush2.msra.mxu0 0.0
    %6470 = vmatprep.subr.mxu0 0.0
    %6471 = vmatpush2.msra.mxu0 0.0
    %6472 = vmatprep.subr.mxu0 0.0
    %6473 = vmatpush2.msra.mxu0 0.0
    %6474 = vmatprep.subr.mxu0 0.0
    %6475 = vmatpush2.msra.mxu0 0.0
    %6476 = vmatprep.subr.mxu0 0.0
    %6477 = vmatpush2.msra.mxu0 0.0
    %6478 = vmatprep.subr.mxu0 0.0
    %6479 = vmatpush2.msra.mxu0 0.0
    %6480 = vmatprep.subr.mxu0 0.0
    %6481 = vmatpush2.msra.mxu0 0.0
    %6482 = vmatprep.subr.mxu0 0.0
    %6483 = vmatpush2.msra.mxu0 0.0
    %6484 = vmatprep.subr.mxu0 0.0
    %6485 = vmatpush2.msra.mxu0 0.0
    %6486 = vmatprep.subr.mxu0 0.0
    %6487 = vmatpush2.msra.mxu0 0.0
    %6488 = vmatprep.subr.mxu0 0.0
    %6489 = vmatpush2.msra.mxu0 0.0
    %6490 = vmatprep.subr.mxu0 0.0
    %6491 = vmatpush2.msra.mxu0 0.0
    %6492 = vmatprep.subr.mxu0 0.0
    %6493 = vmatpush2.msra.mxu0 0.0
    %6494 = vmatprep.subr.mxu0 0.0
    %6495 = vmatpush2.msra.mxu0 0.0
    %6496 = vmatprep.subr.mxu0 0.0
    %6497 = vmatpush2.msra.mxu0 0.0
    %6498 = vmatprep.mubr.f32.mxu0 0.0
    %6499 = vmatmul.mubr.f32.gmra.mxu0 %v6186
    %v6500 = vpop.f32.mrf.mxu0
    %v6501 = vadd.f32 %v6360, %v6500
    %v6502 = vpop.f32.mrf.mxu0
    %v6503 = vadd.f32 %v6362, %v6502
    %6504 = vdwg.mxu0
    %6505 = vmatprep.subr.mxu0 0.0
    %6506 = vmatpush1.msra.mxu0 %v6234
    %6507 = vmatprep.subr.mxu0 0.0
    %6508 = vmatpush1.msra.mxu0 %v6231
    %6509 = vmatprep.subr.mxu0 0.0
    %6510 = vmatpush1.msra.mxu0 %v6228
    %6511 = vmatprep.subr.mxu0 0.0
    %6512 = vmatpush1.msra.mxu0 %v6225
    %6513 = vmatprep.subr.mxu0 0.0
    %6514 = vmatpush1.msra.mxu0 %v6222
    %6515 = vmatprep.subr.mxu0 0.0
    %6516 = vmatpush1.msra.mxu0 %v6219
    %6517 = vmatprep.subr.mxu0 0.0
    %6518 = vmatpush1.msra.mxu0 %v6216
    %6519 = vmatprep.subr.mxu0 0.0
    %6520 = vmatpush1.msra.mxu0 %v6213
    %6521 = vmatprep.subr.mxu0 0.0
    %6522 = vmatpush1.msra.mxu0 %v6210
    %6523 = vmatprep.subr.mxu0 0.0
    %6524 = vmatpush1.msra.mxu0 %v6207
    %6525 = vmatprep.subr.mxu0 0.0
    %6526 = vmatpush1.msra.mxu0 %v6204
    %6527 = vmatprep.subr.mxu0 0.0
    %6528 = vmatpush1.msra.mxu0 %v6201
    %6529 = vmatprep.subr.mxu0 0.0
    %6530 = vmatpush1.msra.mxu0 %v6198
    %6531 = vmatprep.subr.mxu0 0.0
    %6532 = vmatpush1.msra.mxu0 %v6195
    %6533 = vmatprep.subr.mxu0 0.0
    %6534 = vmatpush1.msra.mxu0 %v6192
    %6535 = vmatprep.subr.mxu0 0.0
    %6536 = vmatpush1.msra.mxu0 %v6189
    %6537 = vmatprep.subr.mxu0 0.0
    %6538 = vmatpush2.msra.mxu0 0.0
    %6539 = vmatprep.subr.mxu0 0.0
    %6540 = vmatpush2.msra.mxu0 0.0
    %6541 = vmatprep.subr.mxu0 0.0
    %6542 = vmatpush2.msra.mxu0 0.0
    %6543 = vmatprep.subr.mxu0 0.0
    %6544 = vmatpush2.msra.mxu0 0.0
    %6545 = vmatprep.subr.mxu0 0.0
    %6546 = vmatpush2.msra.mxu0 0.0
    %6547 = vmatprep.subr.mxu0 0.0
    %6548 = vmatpush2.msra.mxu0 0.0
    %6549 = vmatprep.subr.mxu0 0.0
    %6550 = vmatpush2.msra.mxu0 0.0
    %6551 = vmatprep.subr.mxu0 0.0
    %6552 = vmatpush2.msra.mxu0 0.0
    %6553 = vmatprep.subr.mxu0 0.0
    %6554 = vmatpush2.msra.mxu0 0.0
    %6555 = vmatprep.subr.mxu0 0.0
    %6556 = vmatpush2.msra.mxu0 0.0
    %6557 = vmatprep.subr.mxu0 0.0
    %6558 = vmatpush2.msra.mxu0 0.0
    %6559 = vmatprep.subr.mxu0 0.0
    %6560 = vmatpush2.msra.mxu0 0.0
    %6561 = vmatprep.subr.mxu0 0.0
    %6562 = vmatpush2.msra.mxu0 0.0
    %6563 = vmatprep.subr.mxu0 0.0
    %6564 = vmatpush2.msra.mxu0 0.0
    %6565 = vmatprep.subr.mxu0 0.0
    %6566 = vmatpush2.msra.mxu0 0.0
    %6567 = vmatprep.subr.mxu0 0.0
    %6568 = vmatpush2.msra.mxu0 0.0
    %6569 = vmatprep.mubr.f32.mxu0 0.0
    %6570 = vmatmul.mubr.f32.gmra.mxu0 %v6186
    %v6571 = vpop.f32.mrf.mxu0
    %v6572 = vadd.f32 %v6431, %v6571
    %v6573 = vpop.f32.mrf.mxu0
    %6574 = vdwg.mxu0
    %s6575 = scalar_lea.vmem [#allocation6], 4
    %v6576 = vld [vmem:[%s6575] ss:$24 sm:$0xf]
    %v6577 = vld [vmem:[%s6575] ss:$24 sm:$0xf0]
    %v6578 = vor.u32 %v6576, %v6577
    %s6579 = scalar_lea.vmem [#allocation6], 5
    %v6580 = vld [vmem:[%s6579] ss:$24 sm:$0xf]
    %v6581 = vld [vmem:[%s6579] ss:$24 sm:$0xf0]
    %v6582 = vor.u32 %v6580, %v6581
    %v6583 = vmax.f32 %v6578, %v6582
    %s6584 = scalar_lea.vmem %s7, 768
    %v6585 = vld [vmem:[%s6584] sm:$0xff]
    %v6586 = vld [vmem:[%s6584 + $0x8] sm:$0xff]
    %v6587 = vld [vmem:[%s6584 + $0x10] sm:$0xff]
    %v6588 = vld [vmem:[%s6584 + $0x18] sm:$0xff]
    %v6589 = vld [vmem:[%s6584 + $0x20] sm:$0xff]
    %v6590 = vld [vmem:[%s6584 + $0x28] sm:$0xff]
    %v6591 = vld [vmem:[%s6584 + $0x30] sm:$0xff]
    %v6592 = vld [vmem:[%s6584 + $0x38] sm:$0xff]
    %v6593 = vld [vmem:[%s6584 + $0x40] sm:$0xff]
    %v6594 = vld [vmem:[%s6584 + $0x48] sm:$0xff]
    %v6595 = vld [vmem:[%s6584 + $0x50] sm:$0xff]
    %v6596 = vld [vmem:[%s6584 + $0x58] sm:$0xff]
    %v6597 = vld [vmem:[%s6584 + $0x60] sm:$0xff]
    %v6598 = vld [vmem:[%s6584 + $0x68] sm:$0xff]
    %v6599 = vld [vmem:[%s6584 + $0x70] sm:$0xff]
    %v6600 = vld [vmem:[%s6584 + $0x78] sm:$0xff]
    %v6601 = vld [vmem:[%s6584 + $0x80] sm:$0xff]
    %v6602 = vld [vmem:[%s6584 + $0x88] sm:$0xff]
    %v6603 = vld [vmem:[%s6584 + $0x90] sm:$0xff]
    %v6604 = vld [vmem:[%s6584 + $0x98] sm:$0xff]
    %v6605 = vld [vmem:[%s6584 + $0xa0] sm:$0xff]
    %v6606 = vld [vmem:[%s6584 + $0xa8] sm:$0xff]
    %v6607 = vld [vmem:[%s6584 + $0xb0] sm:$0xff]
    %v6608 = vld [vmem:[%s6584 + $0xb8] sm:$0xff]
    %v6609 = vld [vmem:[%s6584 + $0xc0] sm:$0xff]
    %v6610 = vld [vmem:[%s6584 + $0xc8] sm:$0xff]
    %v6611 = vld [vmem:[%s6584 + $0xd0] sm:$0xff]
    %v6612 = vld [vmem:[%s6584 + $0xd8] sm:$0xff]
    %v6613 = vld [vmem:[%s6584 + $0xe0] sm:$0xff]
    %v6614 = vld [vmem:[%s6584 + $0xe8] sm:$0xff]
    %v6615 = vld [vmem:[%s6584 + $0xf0] sm:$0xff]
    %v6616 = vld [vmem:[%s6584 + $0xf8] sm:$0xff]
    %v6617 = vld [vmem:[%s6584 + $0x100] sm:$0xff]
    %v6618 = vld [vmem:[%s6584 + $0x108] sm:$0xff]
    %v6619 = vld [vmem:[%s6584 + $0x110] sm:$0xff]
    %v6620 = vld [vmem:[%s6584 + $0x118] sm:$0xff]
    %v6621 = vld [vmem:[%s6584 + $0x120] sm:$0xff]
    %v6622 = vld [vmem:[%s6584 + $0x128] sm:$0xff]
    %v6623 = vld [vmem:[%s6584 + $0x130] sm:$0xff]
    %v6624 = vld [vmem:[%s6584 + $0x138] sm:$0xff]
    %v6625 = vld [vmem:[%s6584 + $0x140] sm:$0xff]
    %v6626 = vld [vmem:[%s6584 + $0x148] sm:$0xff]
    %v6627 = vld [vmem:[%s6584 + $0x150] sm:$0xff]
    %v6628 = vld [vmem:[%s6584 + $0x158] sm:$0xff]
    %v6629 = vld [vmem:[%s6584 + $0x160] sm:$0xff]
    %v6630 = vld [vmem:[%s6584 + $0x168] sm:$0xff]
    %v6631 = vld [vmem:[%s6584 + $0x170] sm:$0xff]
    %v6632 = vld [vmem:[%s6584 + $0x178] sm:$0xff]
    %6633 = vmatprep.subr.mxu0 %v6631
    %6634 = vmatpush1.msra.mxu0 %v6630
    %6635 = vmatprep.subr.mxu0 %v6628
    %6636 = vmatpush1.msra.mxu0 %v6627
    %6637 = vmatprep.subr.mxu0 %v6625
    %6638 = vmatpush1.msra.mxu0 %v6624
    %6639 = vmatprep.subr.mxu0 %v6622
    %6640 = vmatpush1.msra.mxu0 %v6621
    %6641 = vmatprep.subr.mxu0 %v6619
    %6642 = vmatpush1.msra.mxu0 %v6618
    %6643 = vmatprep.subr.mxu0 %v6616
    %6644 = vmatpush1.msra.mxu0 %v6615
    %6645 = vmatprep.subr.mxu0 %v6613
    %6646 = vmatpush1.msra.mxu0 %v6612
    %6647 = vmatprep.subr.mxu0 %v6610
    %6648 = vmatpush1.msra.mxu0 %v6609
    %6649 = vmatprep.subr.mxu0 %v6607
    %6650 = vmatpush1.msra.mxu0 %v6606
    %6651 = vmatprep.subr.mxu0 %v6604
    %6652 = vmatpush1.msra.mxu0 %v6603
    %6653 = vmatprep.subr.mxu0 %v6601
    %6654 = vmatpush1.msra.mxu0 %v6600
    %6655 = vmatprep.subr.mxu0 %v6598
    %6656 = vmatpush1.msra.mxu0 %v6597
    %6657 = vmatprep.subr.mxu0 %v6595
    %6658 = vmatpush1.msra.mxu0 %v6594
    %6659 = vmatprep.subr.mxu0 %v6592
    %6660 = vmatpush1.msra.mxu0 %v6591
    %6661 = vmatprep.subr.mxu0 %v6589
    %6662 = vmatpush1.msra.mxu0 %v6588
    %6663 = vmatprep.subr.mxu0 %v6586
    %6664 = vmatpush1.msra.mxu0 %v6585
    %6665 = vmatprep.subr.mxu0 0.0
    %6666 = vmatpush2.msra.mxu0 0.0
    %6667 = vmatprep.subr.mxu0 0.0
    %6668 = vmatpush2.msra.mxu0 0.0
    %6669 = vmatprep.subr.mxu0 0.0
    %6670 = vmatpush2.msra.mxu0 0.0
    %6671 = vmatprep.subr.mxu0 0.0
    %6672 = vmatpush2.msra.mxu0 0.0
    %6673 = vmatprep.subr.mxu0 0.0
    %6674 = vmatpush2.msra.mxu0 0.0
    %6675 = vmatprep.subr.mxu0 0.0
    %6676 = vmatpush2.msra.mxu0 0.0
    %6677 = vmatprep.subr.mxu0 0.0
    %6678 = vmatpush2.msra.mxu0 0.0
    %6679 = vmatprep.subr.mxu0 0.0
    %6680 = vmatpush2.msra.mxu0 0.0
    %6681 = vmatprep.subr.mxu0 0.0
    %6682 = vmatpush2.msra.mxu0 0.0
    %6683 = vmatprep.subr.mxu0 0.0
    %6684 = vmatpush2.msra.mxu0 0.0
    %6685 = vmatprep.subr.mxu0 0.0
    %6686 = vmatpush2.msra.mxu0 0.0
    %6687 = vmatprep.subr.mxu0 0.0
    %6688 = vmatpush2.msra.mxu0 0.0
    %6689 = vmatprep.subr.mxu0 0.0
    %6690 = vmatpush2.msra.mxu0 0.0
    %6691 = vmatprep.subr.mxu0 0.0
    %6692 = vmatpush2.msra.mxu0 0.0
    %6693 = vmatprep.subr.mxu0 0.0
    %6694 = vmatpush2.msra.mxu0 0.0
    %6695 = vmatprep.subr.mxu0 0.0
    %6696 = vmatpush2.msra.mxu0 0.0
    %6697 = vmatprep.mubr.f32.mxu0 0.0
    %6698 = vmatmul.mubr.f32.gmra.mxu0 %v6583
    %v6699 = vpop.f32.mrf.mxu0
    %v6700 = vadd.f32 0.0, %v6699
    %v6701 = vpop.f32.mrf.mxu0
    %v6702 = vadd.f32 0.0, %v6701
    %6703 = vdwg.mxu0
    %6704 = vmatprep.subr.mxu0 0.0
    %6705 = vmatpush1.msra.mxu0 %v6632
    %6706 = vmatprep.subr.mxu0 0.0
    %6707 = vmatpush1.msra.mxu0 %v6629
    %6708 = vmatprep.subr.mxu0 0.0
    %6709 = vmatpush1.msra.mxu0 %v6626
    %6710 = vmatprep.subr.mxu0 0.0
    %6711 = vmatpush1.msra.mxu0 %v6623
    %6712 = vmatprep.subr.mxu0 0.0
    %6713 = vmatpush1.msra.mxu0 %v6620
    %6714 = vmatprep.subr.mxu0 0.0
    %6715 = vmatpush1.msra.mxu0 %v6617
    %6716 = vmatprep.subr.mxu0 0.0
    %6717 = vmatpush1.msra.mxu0 %v6614
    %6718 = vmatprep.subr.mxu0 0.0
    %6719 = vmatpush1.msra.mxu0 %v6611
    %6720 = vmatprep.subr.mxu0 0.0
    %6721 = vmatpush1.msra.mxu0 %v6608
    %6722 = vmatprep.subr.mxu0 0.0
    %6723 = vmatpush1.msra.mxu0 %v6605
    %6724 = vmatprep.subr.mxu0 0.0
    %6725 = vmatpush1.msra.mxu0 %v6602
    %6726 = vmatprep.subr.mxu0 0.0
    %6727 = vmatpush1.msra.mxu0 %v6599
    %6728 = vmatprep.subr.mxu0 0.0
    %6729 = vmatpush1.msra.mxu0 %v6596
    %6730 = vmatprep.subr.mxu0 0.0
    %6731 = vmatpush1.msra.mxu0 %v6593
    %6732 = vmatprep.subr.mxu0 0.0
    %6733 = vmatpush1.msra.mxu0 %v6590
    %6734 = vmatprep.subr.mxu0 0.0
    %6735 = vmatpush1.msra.mxu0 %v6587
    %6736 = vmatprep.subr.mxu0 0.0
    %6737 = vmatpush2.msra.mxu0 0.0
    %6738 = vmatprep.subr.mxu0 0.0
    %6739 = vmatpush2.msra.mxu0 0.0
    %6740 = vmatprep.subr.mxu0 0.0
    %6741 = vmatpush2.msra.mxu0 0.0
    %6742 = vmatprep.subr.mxu0 0.0
    %6743 = vmatpush2.msra.mxu0 0.0
    %6744 = vmatprep.subr.mxu0 0.0
    %6745 = vmatpush2.msra.mxu0 0.0
    %6746 = vmatprep.subr.mxu0 0.0
    %6747 = vmatpush2.msra.mxu0 0.0
    %6748 = vmatprep.subr.mxu0 0.0
    %6749 = vmatpush2.msra.mxu0 0.0
    %6750 = vmatprep.subr.mxu0 0.0
    %6751 = vmatpush2.msra.mxu0 0.0
    %6752 = vmatprep.subr.mxu0 0.0
    %6753 = vmatpush2.msra.mxu0 0.0
    %6754 = vmatprep.subr.mxu0 0.0
    %6755 = vmatpush2.msra.mxu0 0.0
    %6756 = vmatprep.subr.mxu0 0.0
    %6757 = vmatpush2.msra.mxu0 0.0
    %6758 = vmatprep.subr.mxu0 0.0
    %6759 = vmatpush2.msra.mxu0 0.0
    %6760 = vmatprep.subr.mxu0 0.0
    %6761 = vmatpush2.msra.mxu0 0.0
    %6762 = vmatprep.subr.mxu0 0.0
    %6763 = vmatpush2.msra.mxu0 0.0
    %6764 = vmatprep.subr.mxu0 0.0
    %6765 = vmatpush2.msra.mxu0 0.0
    %6766 = vmatprep.subr.mxu0 0.0
    %6767 = vmatpush2.msra.mxu0 0.0
    %6768 = vmatprep.mubr.f32.mxu0 0.0
    %6769 = vmatmul.mubr.f32.gmra.mxu0 %v6583
    %v6770 = vpop.f32.mrf.mxu0
    %v6771 = vadd.f32 0.0, %v6770
    %v6772 = vpop.f32.mrf.mxu0
    %6773 = vdwg.mxu0
    %v6774 = vadd.f32 %v6501, %v6700
    %v6775 = vadd.f32 %v6503, %v6702
    %v6776 = vadd.f32 %v6572, %v6771
    %s6777 = scalar_lea.vmem [#allocation6], 6
    %v6778 = vld [vmem:[%s6777] ss:$24 sm:$0xf]
    %v6779 = vld [vmem:[%s6777] ss:$24 sm:$0xf0]
    %v6780 = vor.u32 %v6778, %v6779
    %s6781 = scalar_lea.vmem [#allocation6], 7
    %v6782 = vld [vmem:[%s6781] ss:$24 sm:$0xf]
    %v6783 = vld [vmem:[%s6781] ss:$24 sm:$0xf0]
    %v6784 = vor.u32 %v6782, %v6783
    %v6785 = vmax.f32 %v6780, %v6784
    %s6786 = scalar_lea.vmem %s7, 1152
    %v6787 = vld [vmem:[%s6786] sm:$0xff]
    %v6788 = vld [vmem:[%s6786 + $0x8] sm:$0xff]
    %v6789 = vld [vmem:[%s6786 + $0x10] sm:$0xff]
    %v6790 = vld [vmem:[%s6786 + $0x18] sm:$0xff]
    %v6791 = vld [vmem:[%s6786 + $0x20] sm:$0xff]
    %v6792 = vld [vmem:[%s6786 + $0x28] sm:$0xff]
    %v6793 = vld [vmem:[%s6786 + $0x30] sm:$0xff]
    %v6794 = vld [vmem:[%s6786 + $0x38] sm:$0xff]
    %v6795 = vld [vmem:[%s6786 + $0x40] sm:$0xff]
    %v6796 = vld [vmem:[%s6786 + $0x48] sm:$0xff]
    %v6797 = vld [vmem:[%s6786 + $0x50] sm:$0xff]
    %v6798 = vld [vmem:[%s6786 + $0x58] sm:$0xff]
    %v6799 = vld [vmem:[%s6786 + $0x60] sm:$0xff]
    %v6800 = vld [vmem:[%s6786 + $0x68] sm:$0xff]
    %v6801 = vld [vmem:[%s6786 + $0x70] sm:$0xff]
    %v6802 = vld [vmem:[%s6786 + $0x78] sm:$0xff]
    %v6803 = vld [vmem:[%s6786 + $0x80] sm:$0xff]
    %v6804 = vld [vmem:[%s6786 + $0x88] sm:$0xff]
    %v6805 = vld [vmem:[%s6786 + $0x90] sm:$0xff]
    %v6806 = vld [vmem:[%s6786 + $0x98] sm:$0xff]
    %v6807 = vld [vmem:[%s6786 + $0xa0] sm:$0xff]
    %v6808 = vld [vmem:[%s6786 + $0xa8] sm:$0xff]
    %v6809 = vld [vmem:[%s6786 + $0xb0] sm:$0xff]
    %v6810 = vld [vmem:[%s6786 + $0xb8] sm:$0xff]
    %v6811 = vld [vmem:[%s6786 + $0xc0] sm:$0xff]
    %v6812 = vld [vmem:[%s6786 + $0xc8] sm:$0xff]
    %v6813 = vld [vmem:[%s6786 + $0xd0] sm:$0xff]
    %v6814 = vld [vmem:[%s6786 + $0xd8] sm:$0xff]
    %v6815 = vld [vmem:[%s6786 + $0xe0] sm:$0xff]
    %v6816 = vld [vmem:[%s6786 + $0xe8] sm:$0xff]
    %v6817 = vld [vmem:[%s6786 + $0xf0] sm:$0xff]
    %v6818 = vld [vmem:[%s6786 + $0xf8] sm:$0xff]
    %v6819 = vld [vmem:[%s6786 + $0x100] sm:$0xff]
    %v6820 = vld [vmem:[%s6786 + $0x108] sm:$0xff]
    %v6821 = vld [vmem:[%s6786 + $0x110] sm:$0xff]
    %v6822 = vld [vmem:[%s6786 + $0x118] sm:$0xff]
    %v6823 = vld [vmem:[%s6786 + $0x120] sm:$0xff]
    %v6824 = vld [vmem:[%s6786 + $0x128] sm:$0xff]
    %v6825 = vld [vmem:[%s6786 + $0x130] sm:$0xff]
    %v6826 = vld [vmem:[%s6786 + $0x138] sm:$0xff]
    %v6827 = vld [vmem:[%s6786 + $0x140] sm:$0xff]
    %v6828 = vld [vmem:[%s6786 + $0x148] sm:$0xff]
    %v6829 = vld [vmem:[%s6786 + $0x150] sm:$0xff]
    %v6830 = vld [vmem:[%s6786 + $0x158] sm:$0xff]
    %v6831 = vld [vmem:[%s6786 + $0x160] sm:$0xff]
    %v6832 = vld [vmem:[%s6786 + $0x168] sm:$0xff]
    %v6833 = vld [vmem:[%s6786 + $0x170] sm:$0xff]
    %v6834 = vld [vmem:[%s6786 + $0x178] sm:$0xff]
    %6835 = vmatprep.subr.mxu0 %v6833
    %6836 = vmatpush1.msra.mxu0 %v6832
    %6837 = vmatprep.subr.mxu0 %v6830
    %6838 = vmatpush1.msra.mxu0 %v6829
    %6839 = vmatprep.subr.mxu0 %v6827
    %6840 = vmatpush1.msra.mxu0 %v6826
    %6841 = vmatprep.subr.mxu0 %v6824
    %6842 = vmatpush1.msra.mxu0 %v6823
    %6843 = vmatprep.subr.mxu0 %v6821
    %6844 = vmatpush1.msra.mxu0 %v6820
    %6845 = vmatprep.subr.mxu0 %v6818
    %6846 = vmatpush1.msra.mxu0 %v6817
    %6847 = vmatprep.subr.mxu0 %v6815
    %6848 = vmatpush1.msra.mxu0 %v6814
    %6849 = vmatprep.subr.mxu0 %v6812
    %6850 = vmatpush1.msra.mxu0 %v6811
    %6851 = vmatprep.subr.mxu0 %v6809
    %6852 = vmatpush1.msra.mxu0 %v6808
    %6853 = vmatprep.subr.mxu0 %v6806
    %6854 = vmatpush1.msra.mxu0 %v6805
    %6855 = vmatprep.subr.mxu0 %v6803
    %6856 = vmatpush1.msra.mxu0 %v6802
    %6857 = vmatprep.subr.mxu0 %v6800
    %6858 = vmatpush1.msra.mxu0 %v6799
    %6859 = vmatprep.subr.mxu0 %v6797
    %6860 = vmatpush1.msra.mxu0 %v6796
    %6861 = vmatprep.subr.mxu0 %v6794
    %6862 = vmatpush1.msra.mxu0 %v6793
    %6863 = vmatprep.subr.mxu0 %v6791
    %6864 = vmatpush1.msra.mxu0 %v6790
    %6865 = vmatprep.subr.mxu0 %v6788
    %6866 = vmatpush1.msra.mxu0 %v6787
    %6867 = vmatprep.subr.mxu0 0.0
    %6868 = vmatpush2.msra.mxu0 0.0
    %6869 = vmatprep.subr.mxu0 0.0
    %6870 = vmatpush2.msra.mxu0 0.0
    %6871 = vmatprep.subr.mxu0 0.0
    %6872 = vmatpush2.msra.mxu0 0.0
    %6873 = vmatprep.subr.mxu0 0.0
    %6874 = vmatpush2.msra.mxu0 0.0
    %6875 = vmatprep.subr.mxu0 0.0
    %6876 = vmatpush2.msra.mxu0 0.0
    %6877 = vmatprep.subr.mxu0 0.0
    %6878 = vmatpush2.msra.mxu0 0.0
    %6879 = vmatprep.subr.mxu0 0.0
    %6880 = vmatpush2.msra.mxu0 0.0
    %6881 = vmatprep.subr.mxu0 0.0
    %6882 = vmatpush2.msra.mxu0 0.0
    %6883 = vmatprep.subr.mxu0 0.0
    %6884 = vmatpush2.msra.mxu0 0.0
    %6885 = vmatprep.subr.mxu0 0.0
    %6886 = vmatpush2.msra.mxu0 0.0
    %6887 = vmatprep.subr.mxu0 0.0
    %6888 = vmatpush2.msra.mxu0 0.0
    %6889 = vmatprep.subr.mxu0 0.0
    %6890 = vmatpush2.msra.mxu0 0.0
    %6891 = vmatprep.subr.mxu0 0.0
    %6892 = vmatpush2.msra.mxu0 0.0
    %6893 = vmatprep.subr.mxu0 0.0
    %6894 = vmatpush2.msra.mxu0 0.0
    %6895 = vmatprep.subr.mxu0 0.0
    %6896 = vmatpush2.msra.mxu0 0.0
    %6897 = vmatprep.subr.mxu0 0.0
    %6898 = vmatpush2.msra.mxu0 0.0
    %6899 = vmatprep.mubr.f32.mxu0 0.0
    %6900 = vmatmul.mubr.f32.gmra.mxu0 %v6785
    %v6901 = vpop.f32.mrf.mxu0
    %v6902 = vadd.f32 0.0, %v6901
    %v6903 = vpop.f32.mrf.mxu0
    %v6904 = vadd.f32 0.0, %v6903
    %6905 = vdwg.mxu0
    %6906 = vmatprep.subr.mxu0 0.0
    %6907 = vmatpush1.msra.mxu0 %v6834
    %6908 = vmatprep.subr.mxu0 0.0
    %6909 = vmatpush1.msra.mxu0 %v6831
    %6910 = vmatprep.subr.mxu0 0.0
    %6911 = vmatpush1.msra.mxu0 %v6828
    %6912 = vmatprep.subr.mxu0 0.0
    %6913 = vmatpush1.msra.mxu0 %v6825
    %6914 = vmatprep.subr.mxu0 0.0
    %6915 = vmatpush1.msra.mxu0 %v6822
    %6916 = vmatprep.subr.mxu0 0.0
    %6917 = vmatpush1.msra.mxu0 %v6819
    %6918 = vmatprep.subr.mxu0 0.0
    %6919 = vmatpush1.msra.mxu0 %v6816
    %6920 = vmatprep.subr.mxu0 0.0
    %6921 = vmatpush1.msra.mxu0 %v6813
    %6922 = vmatprep.subr.mxu0 0.0
    %6923 = vmatpush1.msra.mxu0 %v6810
    %6924 = vmatprep.subr.mxu0 0.0
    %6925 = vmatpush1.msra.mxu0 %v6807
    %6926 = vmatprep.subr.mxu0 0.0
    %6927 = vmatpush1.msra.mxu0 %v6804
    %6928 = vmatprep.subr.mxu0 0.0
    %6929 = vmatpush1.msra.mxu0 %v6801
    %6930 = vmatprep.subr.mxu0 0.0
    %6931 = vmatpush1.msra.mxu0 %v6798
    %6932 = vmatprep.subr.mxu0 0.0
    %6933 = vmatpush1.msra.mxu0 %v6795
    %6934 = vmatprep.subr.mxu0 0.0
    %6935 = vmatpush1.msra.mxu0 %v6792
    %6936 = vmatprep.subr.mxu0 0.0
    %6937 = vmatpush1.msra.mxu0 %v6789
    %6938 = vmatprep.subr.mxu0 0.0
    %6939 = vmatpush2.msra.mxu0 0.0
    %6940 = vmatprep.subr.mxu0 0.0
    %6941 = vmatpush2.msra.mxu0 0.0
    %6942 = vmatprep.subr.mxu0 0.0
    %6943 = vmatpush2.msra.mxu0 0.0
    %6944 = vmatprep.subr.mxu0 0.0
    %6945 = vmatpush2.msra.mxu0 0.0
    %6946 = vmatprep.subr.mxu0 0.0
    %6947 = vmatpush2.msra.mxu0 0.0
    %6948 = vmatprep.subr.mxu0 0.0
    %6949 = vmatpush2.msra.mxu0 0.0
    %6950 = vmatprep.subr.mxu0 0.0
    %6951 = vmatpush2.msra.mxu0 0.0
    %6952 = vmatprep.subr.mxu0 0.0
    %6953 = vmatpush2.msra.mxu0 0.0
    %6954 = vmatprep.subr.mxu0 0.0
    %6955 = vmatpush2.msra.mxu0 0.0
    %6956 = vmatprep.subr.mxu0 0.0
    %6957 = vmatpush2.msra.mxu0 0.0
    %6958 = vmatprep.subr.mxu0 0.0
    %6959 = vmatpush2.msra.mxu0 0.0
    %6960 = vmatprep.subr.mxu0 0.0
    %6961 = vmatpush2.msra.mxu0 0.0
    %6962 = vmatprep.subr.mxu0 0.0
    %6963 = vmatpush2.msra.mxu0 0.0
    %6964 = vmatprep.subr.mxu0 0.0
    %6965 = vmatpush2.msra.mxu0 0.0
    %6966 = vmatprep.subr.mxu0 0.0
    %6967 = vmatpush2.msra.mxu0 0.0
    %6968 = vmatprep.subr.mxu0 0.0
    %6969 = vmatpush2.msra.mxu0 0.0
    %6970 = vmatprep.mubr.f32.mxu0 0.0
    %6971 = vmatmul.mubr.f32.gmra.mxu0 %v6785
    %v6972 = vpop.f32.mrf.mxu0
    %v6973 = vadd.f32 0.0, %v6972
    %v6974 = vpop.f32.mrf.mxu0
    %6975 = vdwg.mxu0
    %v6976 = vadd.f32 %v6774, %v6902
    %v6977 = vadd.f32 %v6775, %v6904
    %v6978 = vadd.f32 %v6776, %v6973
    %s6979 = scalar_lea.vmem [#allocation6], 8
    %v6980 = vld [vmem:[%s6979] ss:$24 sm:$0xf]
    %v6981 = vld [vmem:[%s6979] ss:$24 sm:$0xf0]
    %v6982 = vor.u32 %v6980, %v6981
    %s6983 = scalar_lea.vmem [#allocation6], 9
    %v6984 = vld [vmem:[%s6983] ss:$24 sm:$0xf]
    %v6985 = vld [vmem:[%s6983] ss:$24 sm:$0xf0]
    %v6986 = vor.u32 %v6984, %v6985
    %v6987 = vmax.f32 %v6982, %v6986
    %s6988 = scalar_lea.vmem %s7, 1536
    %v6989 = vld [vmem:[%s6988] sm:$0xff]
    %v6990 = vld [vmem:[%s6988 + $0x8] sm:$0xff]
    %v6991 = vld [vmem:[%s6988 + $0x10] sm:$0xff]
    %v6992 = vld [vmem:[%s6988 + $0x18] sm:$0xff]
    %v6993 = vld [vmem:[%s6988 + $0x20] sm:$0xff]
    %v6994 = vld [vmem:[%s6988 + $0x28] sm:$0xff]
    %v6995 = vld [vmem:[%s6988 + $0x30] sm:$0xff]
    %v6996 = vld [vmem:[%s6988 + $0x38] sm:$0xff]
    %v6997 = vld [vmem:[%s6988 + $0x40] sm:$0xff]
    %v6998 = vld [vmem:[%s6988 + $0x48] sm:$0xff]
    %v6999 = vld [vmem:[%s6988 + $0x50] sm:$0xff]
    %v7000 = vld [vmem:[%s6988 + $0x58] sm:$0xff]
    %v7001 = vld [vmem:[%s6988 + $0x60] sm:$0xff]
    %v7002 = vld [vmem:[%s6988 + $0x68] sm:$0xff]
    %v7003 = vld [vmem:[%s6988 + $0x70] sm:$0xff]
    %v7004 = vld [vmem:[%s6988 + $0x78] sm:$0xff]
    %v7005 = vld [vmem:[%s6988 + $0x80] sm:$0xff]
    %v7006 = vld [vmem:[%s6988 + $0x88] sm:$0xff]
    %v7007 = vld [vmem:[%s6988 + $0x90] sm:$0xff]
    %v7008 = vld [vmem:[%s6988 + $0x98] sm:$0xff]
    %v7009 = vld [vmem:[%s6988 + $0xa0] sm:$0xff]
    %v7010 = vld [vmem:[%s6988 + $0xa8] sm:$0xff]
    %v7011 = vld [vmem:[%s6988 + $0xb0] sm:$0xff]
    %v7012 = vld [vmem:[%s6988 + $0xb8] sm:$0xff]
    %v7013 = vld [vmem:[%s6988 + $0xc0] sm:$0xff]
    %v7014 = vld [vmem:[%s6988 + $0xc8] sm:$0xff]
    %v7015 = vld [vmem:[%s6988 + $0xd0] sm:$0xff]
    %v7016 = vld [vmem:[%s6988 + $0xd8] sm:$0xff]
    %v7017 = vld [vmem:[%s6988 + $0xe0] sm:$0xff]
    %v7018 = vld [vmem:[%s6988 + $0xe8] sm:$0xff]
    %v7019 = vld [vmem:[%s6988 + $0xf0] sm:$0xff]
    %v7020 = vld [vmem:[%s6988 + $0xf8] sm:$0xff]
    %v7021 = vld [vmem:[%s6988 + $0x100] sm:$0xff]
    %v7022 = vld [vmem:[%s6988 + $0x108] sm:$0xff]
    %v7023 = vld [vmem:[%s6988 + $0x110] sm:$0xff]
    %v7024 = vld [vmem:[%s6988 + $0x118] sm:$0xff]
    %v7025 = vld [vmem:[%s6988 + $0x120] sm:$0xff]
    %v7026 = vld [vmem:[%s6988 + $0x128] sm:$0xff]
    %v7027 = vld [vmem:[%s6988 + $0x130] sm:$0xff]
    %v7028 = vld [vmem:[%s6988 + $0x138] sm:$0xff]
    %v7029 = vld [vmem:[%s6988 + $0x140] sm:$0xff]
    %v7030 = vld [vmem:[%s6988 + $0x148] sm:$0xff]
    %v7031 = vld [vmem:[%s6988 + $0x150] sm:$0xff]
    %v7032 = vld [vmem:[%s6988 + $0x158] sm:$0xff]
    %v7033 = vld [vmem:[%s6988 + $0x160] sm:$0xff]
    %v7034 = vld [vmem:[%s6988 + $0x168] sm:$0xff]
    %v7035 = vld [vmem:[%s6988 + $0x170] sm:$0xff]
    %v7036 = vld [vmem:[%s6988 + $0x178] sm:$0xff]
    %7037 = vmatprep.subr.mxu0 %v7035
    %7038 = vmatpush1.msra.mxu0 %v7034
    %7039 = vmatprep.subr.mxu0 %v7032
    %7040 = vmatpush1.msra.mxu0 %v7031
    %7041 = vmatprep.subr.mxu0 %v7029
    %7042 = vmatpush1.msra.mxu0 %v7028
    %7043 = vmatprep.subr.mxu0 %v7026
    %7044 = vmatpush1.msra.mxu0 %v7025
    %7045 = vmatprep.subr.mxu0 %v7023
    %7046 = vmatpush1.msra.mxu0 %v7022
    %7047 = vmatprep.subr.mxu0 %v7020
    %7048 = vmatpush1.msra.mxu0 %v7019
    %7049 = vmatprep.subr.mxu0 %v7017
    %7050 = vmatpush1.msra.mxu0 %v7016
    %7051 = vmatprep.subr.mxu0 %v7014
    %7052 = vmatpush1.msra.mxu0 %v7013
    %7053 = vmatprep.subr.mxu0 %v7011
    %7054 = vmatpush1.msra.mxu0 %v7010
    %7055 = vmatprep.subr.mxu0 %v7008
    %7056 = vmatpush1.msra.mxu0 %v7007
    %7057 = vmatprep.subr.mxu0 %v7005
    %7058 = vmatpush1.msra.mxu0 %v7004
    %7059 = vmatprep.subr.mxu0 %v7002
    %7060 = vmatpush1.msra.mxu0 %v7001
    %7061 = vmatprep.subr.mxu0 %v6999
    %7062 = vmatpush1.msra.mxu0 %v6998
    %7063 = vmatprep.subr.mxu0 %v6996
    %7064 = vmatpush1.msra.mxu0 %v6995
    %7065 = vmatprep.subr.mxu0 %v6993
    %7066 = vmatpush1.msra.mxu0 %v6992
    %7067 = vmatprep.subr.mxu0 %v6990
    %7068 = vmatpush1.msra.mxu0 %v6989
    %7069 = vmatprep.subr.mxu0 0.0
    %7070 = vmatpush2.msra.mxu0 0.0
    %7071 = vmatprep.subr.mxu0 0.0
    %7072 = vmatpush2.msra.mxu0 0.0
    %7073 = vmatprep.subr.mxu0 0.0
    %7074 = vmatpush2.msra.mxu0 0.0
    %7075 = vmatprep.subr.mxu0 0.0
    %7076 = vmatpush2.msra.mxu0 0.0
    %7077 = vmatprep.subr.mxu0 0.0
    %7078 = vmatpush2.msra.mxu0 0.0
    %7079 = vmatprep.subr.mxu0 0.0
    %7080 = vmatpush2.msra.mxu0 0.0
    %7081 = vmatprep.subr.mxu0 0.0
    %7082 = vmatpush2.msra.mxu0 0.0
    %7083 = vmatprep.subr.mxu0 0.0
    %7084 = vmatpush2.msra.mxu0 0.0
    %7085 = vmatprep.subr.mxu0 0.0
    %7086 = vmatpush2.msra.mxu0 0.0
    %7087 = vmatprep.subr.mxu0 0.0
    %7088 = vmatpush2.msra.mxu0 0.0
    %7089 = vmatprep.subr.mxu0 0.0
    %7090 = vmatpush2.msra.mxu0 0.0
    %7091 = vmatprep.subr.mxu0 0.0
    %7092 = vmatpush2.msra.mxu0 0.0
    %7093 = vmatprep.subr.mxu0 0.0
    %7094 = vmatpush2.msra.mxu0 0.0
    %7095 = vmatprep.subr.mxu0 0.0
    %7096 = vmatpush2.msra.mxu0 0.0
    %7097 = vmatprep.subr.mxu0 0.0
    %7098 = vmatpush2.msra.mxu0 0.0
    %7099 = vmatprep.subr.mxu0 0.0
    %7100 = vmatpush2.msra.mxu0 0.0
    %7101 = vmatprep.mubr.f32.mxu0 0.0
    %7102 = vmatmul.mubr.f32.gmra.mxu0 %v6987
    %v7103 = vpop.f32.mrf.mxu0
    %v7104 = vadd.f32 0.0, %v7103
    %v7105 = vpop.f32.mrf.mxu0
    %v7106 = vadd.f32 0.0, %v7105
    %7107 = vdwg.mxu0
    %7108 = vmatprep.subr.mxu0 0.0
    %7109 = vmatpush1.msra.mxu0 %v7036
    %7110 = vmatprep.subr.mxu0 0.0
    %7111 = vmatpush1.msra.mxu0 %v7033
    %7112 = vmatprep.subr.mxu0 0.0
    %7113 = vmatpush1.msra.mxu0 %v7030
    %7114 = vmatprep.subr.mxu0 0.0
    %7115 = vmatpush1.msra.mxu0 %v7027
    %7116 = vmatprep.subr.mxu0 0.0
    %7117 = vmatpush1.msra.mxu0 %v7024
    %7118 = vmatprep.subr.mxu0 0.0
    %7119 = vmatpush1.msra.mxu0 %v7021
    %7120 = vmatprep.subr.mxu0 0.0
    %7121 = vmatpush1.msra.mxu0 %v7018
    %7122 = vmatprep.subr.mxu0 0.0
    %7123 = vmatpush1.msra.mxu0 %v7015
    %7124 = vmatprep.subr.mxu0 0.0
    %7125 = vmatpush1.msra.mxu0 %v7012
    %7126 = vmatprep.subr.mxu0 0.0
    %7127 = vmatpush1.msra.mxu0 %v7009
    %7128 = vmatprep.subr.mxu0 0.0
    %7129 = vmatpush1.msra.mxu0 %v7006
    %7130 = vmatprep.subr.mxu0 0.0
    %7131 = vmatpush1.msra.mxu0 %v7003
    %7132 = vmatprep.subr.mxu0 0.0
    %7133 = vmatpush1.msra.mxu0 %v7000
    %7134 = vmatprep.subr.mxu0 0.0
    %7135 = vmatpush1.msra.mxu0 %v6997
    %7136 = vmatprep.subr.mxu0 0.0
    %7137 = vmatpush1.msra.mxu0 %v6994
    %7138 = vmatprep.subr.mxu0 0.0
    %7139 = vmatpush1.msra.mxu0 %v6991
    %7140 = vmatprep.subr.mxu0 0.0
    %7141 = vmatpush2.msra.mxu0 0.0
    %7142 = vmatprep.subr.mxu0 0.0
    %7143 = vmatpush2.msra.mxu0 0.0
    %7144 = vmatprep.subr.mxu0 0.0
    %7145 = vmatpush2.msra.mxu0 0.0
    %7146 = vmatprep.subr.mxu0 0.0
    %7147 = vmatpush2.msra.mxu0 0.0
    %7148 = vmatprep.subr.mxu0 0.0
    %7149 = vmatpush2.msra.mxu0 0.0
    %7150 = vmatprep.subr.mxu0 0.0
    %7151 = vmatpush2.msra.mxu0 0.0
    %7152 = vmatprep.subr.mxu0 0.0
    %7153 = vmatpush2.msra.mxu0 0.0
    %7154 = vmatprep.subr.mxu0 0.0
    %7155 = vmatpush2.msra.mxu0 0.0
    %7156 = vmatprep.subr.mxu0 0.0
    %7157 = vmatpush2.msra.mxu0 0.0
    %7158 = vmatprep.subr.mxu0 0.0
    %7159 = vmatpush2.msra.mxu0 0.0
    %7160 = vmatprep.subr.mxu0 0.0
    %7161 = vmatpush2.msra.mxu0 0.0
    %7162 = vmatprep.subr.mxu0 0.0
    %7163 = vmatpush2.msra.mxu0 0.0
    %7164 = vmatprep.subr.mxu0 0.0
    %7165 = vmatpush2.msra.mxu0 0.0
    %7166 = vmatprep.subr.mxu0 0.0
    %7167 = vmatpush2.msra.mxu0 0.0
    %7168 = vmatprep.subr.mxu0 0.0
    %7169 = vmatpush2.msra.mxu0 0.0
    %7170 = vmatprep.subr.mxu0 0.0
    %7171 = vmatpush2.msra.mxu0 0.0
    %7172 = vmatprep.mubr.f32.mxu0 0.0
    %7173 = vmatmul.mubr.f32.gmra.mxu0 %v6987
    %v7174 = vpop.f32.mrf.mxu0
    %v7175 = vadd.f32 0.0, %v7174
    %v7176 = vpop.f32.mrf.mxu0
    %7177 = vdwg.mxu0
    %v7178 = vadd.f32 %v6976, %v7104
    %v7179 = vadd.f32 %v6977, %v7106
    %v7180 = vadd.f32 %v6978, %v7175
    %s7181 = scalar_lea.vmem [#allocation6], 10
    %v7182 = vld [vmem:[%s7181] ss:$24 sm:$0xf]
    %v7183 = vld [vmem:[%s7181] ss:$24 sm:$0xf0]
    %v7184 = vor.u32 %v7182, %v7183
    %s7185 = scalar_lea.vmem [#allocation6], 11
    %v7186 = vld [vmem:[%s7185] ss:$24 sm:$0xf]
    %v7187 = vld [vmem:[%s7185] ss:$24 sm:$0xf0]
    %v7188 = vor.u32 %v7186, %v7187
    %v7189 = vmax.f32 %v7184, %v7188
    %s7190 = scalar_lea.vmem %s7, 1920
    %v7191 = vld [vmem:[%s7190] sm:$0xff]
    %v7192 = vld [vmem:[%s7190 + $0x8] sm:$0xff]
    %v7193 = vld [vmem:[%s7190 + $0x10] sm:$0xff]
    %v7194 = vld [vmem:[%s7190 + $0x18] sm:$0xff]
    %v7195 = vld [vmem:[%s7190 + $0x20] sm:$0xff]
    %v7196 = vld [vmem:[%s7190 + $0x28] sm:$0xff]
    %v7197 = vld [vmem:[%s7190 + $0x30] sm:$0xff]
    %v7198 = vld [vmem:[%s7190 + $0x38] sm:$0xff]
    %v7199 = vld [vmem:[%s7190 + $0x40] sm:$0xff]
    %v7200 = vld [vmem:[%s7190 + $0x48] sm:$0xff]
    %v7201 = vld [vmem:[%s7190 + $0x50] sm:$0xff]
    %v7202 = vld [vmem:[%s7190 + $0x58] sm:$0xff]
    %v7203 = vld [vmem:[%s7190 + $0x60] sm:$0xff]
    %v7204 = vld [vmem:[%s7190 + $0x68] sm:$0xff]
    %v7205 = vld [vmem:[%s7190 + $0x70] sm:$0xff]
    %v7206 = vld [vmem:[%s7190 + $0x78] sm:$0xff]
    %v7207 = vld [vmem:[%s7190 + $0x80] sm:$0xff]
    %v7208 = vld [vmem:[%s7190 + $0x88] sm:$0xff]
    %v7209 = vld [vmem:[%s7190 + $0x90] sm:$0xff]
    %v7210 = vld [vmem:[%s7190 + $0x98] sm:$0xff]
    %v7211 = vld [vmem:[%s7190 + $0xa0] sm:$0xff]
    %v7212 = vld [vmem:[%s7190 + $0xa8] sm:$0xff]
    %v7213 = vld [vmem:[%s7190 + $0xb0] sm:$0xff]
    %v7214 = vld [vmem:[%s7190 + $0xb8] sm:$0xff]
    %v7215 = vld [vmem:[%s7190 + $0xc0] sm:$0xff]
    %v7216 = vld [vmem:[%s7190 + $0xc8] sm:$0xff]
    %v7217 = vld [vmem:[%s7190 + $0xd0] sm:$0xff]
    %v7218 = vld [vmem:[%s7190 + $0xd8] sm:$0xff]
    %v7219 = vld [vmem:[%s7190 + $0xe0] sm:$0xff]
    %v7220 = vld [vmem:[%s7190 + $0xe8] sm:$0xff]
    %v7221 = vld [vmem:[%s7190 + $0xf0] sm:$0xff]
    %v7222 = vld [vmem:[%s7190 + $0xf8] sm:$0xff]
    %v7223 = vld [vmem:[%s7190 + $0x100] sm:$0xff]
    %v7224 = vld [vmem:[%s7190 + $0x108] sm:$0xff]
    %v7225 = vld [vmem:[%s7190 + $0x110] sm:$0xff]
    %v7226 = vld [vmem:[%s7190 + $0x118] sm:$0xff]
    %v7227 = vld [vmem:[%s7190 + $0x120] sm:$0xff]
    %v7228 = vld [vmem:[%s7190 + $0x128] sm:$0xff]
    %v7229 = vld [vmem:[%s7190 + $0x130] sm:$0xff]
    %v7230 = vld [vmem:[%s7190 + $0x138] sm:$0xff]
    %v7231 = vld [vmem:[%s7190 + $0x140] sm:$0xff]
    %v7232 = vld [vmem:[%s7190 + $0x148] sm:$0xff]
    %v7233 = vld [vmem:[%s7190 + $0x150] sm:$0xff]
    %v7234 = vld [vmem:[%s7190 + $0x158] sm:$0xff]
    %v7235 = vld [vmem:[%s7190 + $0x160] sm:$0xff]
    %v7236 = vld [vmem:[%s7190 + $0x168] sm:$0xff]
    %v7237 = vld [vmem:[%s7190 + $0x170] sm:$0xff]
    %v7238 = vld [vmem:[%s7190 + $0x178] sm:$0xff]
    %7239 = vmatprep.subr.mxu0 %v7237
    %7240 = vmatpush1.msra.mxu0 %v7236
    %7241 = vmatprep.subr.mxu0 %v7234
    %7242 = vmatpush1.msra.mxu0 %v7233
    %7243 = vmatprep.subr.mxu0 %v7231
    %7244 = vmatpush1.msra.mxu0 %v7230
    %7245 = vmatprep.subr.mxu0 %v7228
    %7246 = vmatpush1.msra.mxu0 %v7227
    %7247 = vmatprep.subr.mxu0 %v7225
    %7248 = vmatpush1.msra.mxu0 %v7224
    %7249 = vmatprep.subr.mxu0 %v7222
    %7250 = vmatpush1.msra.mxu0 %v7221
    %7251 = vmatprep.subr.mxu0 %v7219
    %7252 = vmatpush1.msra.mxu0 %v7218
    %7253 = vmatprep.subr.mxu0 %v7216
    %7254 = vmatpush1.msra.mxu0 %v7215
    %7255 = vmatprep.subr.mxu0 %v7213
    %7256 = vmatpush1.msra.mxu0 %v7212
    %7257 = vmatprep.subr.mxu0 %v7210
    %7258 = vmatpush1.msra.mxu0 %v7209
    %7259 = vmatprep.subr.mxu0 %v7207
    %7260 = vmatpush1.msra.mxu0 %v7206
    %7261 = vmatprep.subr.mxu0 %v7204
    %7262 = vmatpush1.msra.mxu0 %v7203
    %7263 = vmatprep.subr.mxu0 %v7201
    %7264 = vmatpush1.msra.mxu0 %v7200
    %7265 = vmatprep.subr.mxu0 %v7198
    %7266 = vmatpush1.msra.mxu0 %v7197
    %7267 = vmatprep.subr.mxu0 %v7195
    %7268 = vmatpush1.msra.mxu0 %v7194
    %7269 = vmatprep.subr.mxu0 %v7192
    %7270 = vmatpush1.msra.mxu0 %v7191
    %7271 = vmatprep.subr.mxu0 0.0
    %7272 = vmatpush2.msra.mxu0 0.0
    %7273 = vmatprep.subr.mxu0 0.0
    %7274 = vmatpush2.msra.mxu0 0.0
    %7275 = vmatprep.subr.mxu0 0.0
    %7276 = vmatpush2.msra.mxu0 0.0
    %7277 = vmatprep.subr.mxu0 0.0
    %7278 = vmatpush2.msra.mxu0 0.0
    %7279 = vmatprep.subr.mxu0 0.0
    %7280 = vmatpush2.msra.mxu0 0.0
    %7281 = vmatprep.subr.mxu0 0.0
    %7282 = vmatpush2.msra.mxu0 0.0
    %7283 = vmatprep.subr.mxu0 0.0
    %7284 = vmatpush2.msra.mxu0 0.0
    %7285 = vmatprep.subr.mxu0 0.0
    %7286 = vmatpush2.msra.mxu0 0.0
    %7287 = vmatprep.subr.mxu0 0.0
    %7288 = vmatpush2.msra.mxu0 0.0
    %7289 = vmatprep.subr.mxu0 0.0
    %7290 = vmatpush2.msra.mxu0 0.0
    %7291 = vmatprep.subr.mxu0 0.0
    %7292 = vmatpush2.msra.mxu0 0.0
    %7293 = vmatprep.subr.mxu0 0.0
    %7294 = vmatpush2.msra.mxu0 0.0
    %7295 = vmatprep.subr.mxu0 0.0
    %7296 = vmatpush2.msra.mxu0 0.0
    %7297 = vmatprep.subr.mxu0 0.0
    %7298 = vmatpush2.msra.mxu0 0.0
    %7299 = vmatprep.subr.mxu0 0.0
    %7300 = vmatpush2.msra.mxu0 0.0
    %7301 = vmatprep.subr.mxu0 0.0
    %7302 = vmatpush2.msra.mxu0 0.0
    %7303 = vmatprep.mubr.f32.mxu0 0.0
    %7304 = vmatmul.mubr.f32.gmra.mxu0 %v7189
    %v7305 = vpop.f32.mrf.mxu0
    %v7306 = vadd.f32 0.0, %v7305
    %v7307 = vpop.f32.mrf.mxu0
    %v7308 = vadd.f32 0.0, %v7307
    %7309 = vdwg.mxu0
    %7310 = vmatprep.subr.mxu0 0.0
    %7311 = vmatpush1.msra.mxu0 %v7238
    %7312 = vmatprep.subr.mxu0 0.0
    %7313 = vmatpush1.msra.mxu0 %v7235
    %7314 = vmatprep.subr.mxu0 0.0
    %7315 = vmatpush1.msra.mxu0 %v7232
    %7316 = vmatprep.subr.mxu0 0.0
    %7317 = vmatpush1.msra.mxu0 %v7229
    %7318 = vmatprep.subr.mxu0 0.0
    %7319 = vmatpush1.msra.mxu0 %v7226
    %7320 = vmatprep.subr.mxu0 0.0
    %7321 = vmatpush1.msra.mxu0 %v7223
    %7322 = vmatprep.subr.mxu0 0.0
    %7323 = vmatpush1.msra.mxu0 %v7220
    %7324 = vmatprep.subr.mxu0 0.0
    %7325 = vmatpush1.msra.mxu0 %v7217
    %7326 = vmatprep.subr.mxu0 0.0
    %7327 = vmatpush1.msra.mxu0 %v7214
    %7328 = vmatprep.subr.mxu0 0.0
    %7329 = vmatpush1.msra.mxu0 %v7211
    %7330 = vmatprep.subr.mxu0 0.0
    %7331 = vmatpush1.msra.mxu0 %v7208
    %7332 = vmatprep.subr.mxu0 0.0
    %7333 = vmatpush1.msra.mxu0 %v7205
    %7334 = vmatprep.subr.mxu0 0.0
    %7335 = vmatpush1.msra.mxu0 %v7202
    %7336 = vmatprep.subr.mxu0 0.0
    %7337 = vmatpush1.msra.mxu0 %v7199
    %7338 = vmatprep.subr.mxu0 0.0
    %7339 = vmatpush1.msra.mxu0 %v7196
    %7340 = vmatprep.subr.mxu0 0.0
    %7341 = vmatpush1.msra.mxu0 %v7193
    %7342 = vmatprep.subr.mxu0 0.0
    %7343 = vmatpush2.msra.mxu0 0.0
    %7344 = vmatprep.subr.mxu0 0.0
    %7345 = vmatpush2.msra.mxu0 0.0
    %7346 = vmatprep.subr.mxu0 0.0
    %7347 = vmatpush2.msra.mxu0 0.0
    %7348 = vmatprep.subr.mxu0 0.0
    %7349 = vmatpush2.msra.mxu0 0.0
    %7350 = vmatprep.subr.mxu0 0.0
    %7351 = vmatpush2.msra.mxu0 0.0
    %7352 = vmatprep.subr.mxu0 0.0
    %7353 = vmatpush2.msra.mxu0 0.0
    %7354 = vmatprep.subr.mxu0 0.0
    %7355 = vmatpush2.msra.mxu0 0.0
    %7356 = vmatprep.subr.mxu0 0.0
    %7357 = vmatpush2.msra.mxu0 0.0
    %7358 = vmatprep.subr.mxu0 0.0
    %7359 = vmatpush2.msra.mxu0 0.0
    %7360 = vmatprep.subr.mxu0 0.0
    %7361 = vmatpush2.msra.mxu0 0.0
    %7362 = vmatprep.subr.mxu0 0.0
    %7363 = vmatpush2.msra.mxu0 0.0
    %7364 = vmatprep.subr.mxu0 0.0
    %7365 = vmatpush2.msra.mxu0 0.0
    %7366 = vmatprep.subr.mxu0 0.0
    %7367 = vmatpush2.msra.mxu0 0.0
    %7368 = vmatprep.subr.mxu0 0.0
    %7369 = vmatpush2.msra.mxu0 0.0
    %7370 = vmatprep.subr.mxu0 0.0
    %7371 = vmatpush2.msra.mxu0 0.0
    %7372 = vmatprep.subr.mxu0 0.0
    %7373 = vmatpush2.msra.mxu0 0.0
    %7374 = vmatprep.mubr.f32.mxu0 0.0
    %7375 = vmatmul.mubr.f32.gmra.mxu0 %v7189
    %v7376 = vpop.f32.mrf.mxu0
    %v7377 = vadd.f32 0.0, %v7376
    %v7378 = vpop.f32.mrf.mxu0
    %7379 = vdwg.mxu0
    %v7380 = vadd.f32 %v7178, %v7306
    %v7381 = vadd.f32 %v7179, %v7308
    %v7382 = vadd.f32 %v7180, %v7377
    %s7383 = scalar_lea.vmem [#allocation6], 12
    %v7384 = vld [vmem:[%s7383] ss:$24 sm:$0xf]
    %v7385 = vld [vmem:[%s7383] ss:$24 sm:$0xf0]
    %v7386 = vor.u32 %v7384, %v7385
    %s7387 = scalar_lea.vmem [#allocation6], 13
    %v7388 = vld [vmem:[%s7387] ss:$24 sm:$0xf]
    %v7389 = vld [vmem:[%s7387] ss:$24 sm:$0xf0]
    %v7390 = vor.u32 %v7388, %v7389
    %v7391 = vmax.f32 %v7386, %v7390
    %s7392 = scalar_lea.vmem %s7, 2304
    %v7393 = vld [vmem:[%s7392] sm:$0xff]
    %v7394 = vld [vmem:[%s7392 + $0x8] sm:$0xff]
    %v7395 = vld [vmem:[%s7392 + $0x10] sm:$0xff]
    %v7396 = vld [vmem:[%s7392 + $0x18] sm:$0xff]
    %v7397 = vld [vmem:[%s7392 + $0x20] sm:$0xff]
    %v7398 = vld [vmem:[%s7392 + $0x28] sm:$0xff]
    %v7399 = vld [vmem:[%s7392 + $0x30] sm:$0xff]
    %v7400 = vld [vmem:[%s7392 + $0x38] sm:$0xff]
    %v7401 = vld [vmem:[%s7392 + $0x40] sm:$0xff]
    %v7402 = vld [vmem:[%s7392 + $0x48] sm:$0xff]
    %v7403 = vld [vmem:[%s7392 + $0x50] sm:$0xff]
    %v7404 = vld [vmem:[%s7392 + $0x58] sm:$0xff]
    %v7405 = vld [vmem:[%s7392 + $0x60] sm:$0xff]
    %v7406 = vld [vmem:[%s7392 + $0x68] sm:$0xff]
    %v7407 = vld [vmem:[%s7392 + $0x70] sm:$0xff]
    %v7408 = vld [vmem:[%s7392 + $0x78] sm:$0xff]
    %v7409 = vld [vmem:[%s7392 + $0x80] sm:$0xff]
    %v7410 = vld [vmem:[%s7392 + $0x88] sm:$0xff]
    %v7411 = vld [vmem:[%s7392 + $0x90] sm:$0xff]
    %v7412 = vld [vmem:[%s7392 + $0x98] sm:$0xff]
    %v7413 = vld [vmem:[%s7392 + $0xa0] sm:$0xff]
    %v7414 = vld [vmem:[%s7392 + $0xa8] sm:$0xff]
    %v7415 = vld [vmem:[%s7392 + $0xb0] sm:$0xff]
    %v7416 = vld [vmem:[%s7392 + $0xb8] sm:$0xff]
    %v7417 = vld [vmem:[%s7392 + $0xc0] sm:$0xff]
    %v7418 = vld [vmem:[%s7392 + $0xc8] sm:$0xff]
    %v7419 = vld [vmem:[%s7392 + $0xd0] sm:$0xff]
    %v7420 = vld [vmem:[%s7392 + $0xd8] sm:$0xff]
    %v7421 = vld [vmem:[%s7392 + $0xe0] sm:$0xff]
    %v7422 = vld [vmem:[%s7392 + $0xe8] sm:$0xff]
    %v7423 = vld [vmem:[%s7392 + $0xf0] sm:$0xff]
    %v7424 = vld [vmem:[%s7392 + $0xf8] sm:$0xff]
    %v7425 = vld [vmem:[%s7392 + $0x100] sm:$0xff]
    %v7426 = vld [vmem:[%s7392 + $0x108] sm:$0xff]
    %v7427 = vld [vmem:[%s7392 + $0x110] sm:$0xff]
    %v7428 = vld [vmem:[%s7392 + $0x118] sm:$0xff]
    %v7429 = vld [vmem:[%s7392 + $0x120] sm:$0xff]
    %v7430 = vld [vmem:[%s7392 + $0x128] sm:$0xff]
    %v7431 = vld [vmem:[%s7392 + $0x130] sm:$0xff]
    %v7432 = vld [vmem:[%s7392 + $0x138] sm:$0xff]
    %v7433 = vld [vmem:[%s7392 + $0x140] sm:$0xff]
    %v7434 = vld [vmem:[%s7392 + $0x148] sm:$0xff]
    %v7435 = vld [vmem:[%s7392 + $0x150] sm:$0xff]
    %v7436 = vld [vmem:[%s7392 + $0x158] sm:$0xff]
    %v7437 = vld [vmem:[%s7392 + $0x160] sm:$0xff]
    %v7438 = vld [vmem:[%s7392 + $0x168] sm:$0xff]
    %v7439 = vld [vmem:[%s7392 + $0x170] sm:$0xff]
    %v7440 = vld [vmem:[%s7392 + $0x178] sm:$0xff]
    %7441 = vmatprep.subr.mxu0 %v7439
    %7442 = vmatpush1.msra.mxu0 %v7438
    %7443 = vmatprep.subr.mxu0 %v7436
    %7444 = vmatpush1.msra.mxu0 %v7435
    %7445 = vmatprep.subr.mxu0 %v7433
    %7446 = vmatpush1.msra.mxu0 %v7432
    %7447 = vmatprep.subr.mxu0 %v7430
    %7448 = vmatpush1.msra.mxu0 %v7429
    %7449 = vmatprep.subr.mxu0 %v7427
    %7450 = vmatpush1.msra.mxu0 %v7426
    %7451 = vmatprep.subr.mxu0 %v7424
    %7452 = vmatpush1.msra.mxu0 %v7423
    %7453 = vmatprep.subr.mxu0 %v7421
    %7454 = vmatpush1.msra.mxu0 %v7420
    %7455 = vmatprep.subr.mxu0 %v7418
    %7456 = vmatpush1.msra.mxu0 %v7417
    %7457 = vmatprep.subr.mxu0 %v7415
    %7458 = vmatpush1.msra.mxu0 %v7414
    %7459 = vmatprep.subr.mxu0 %v7412
    %7460 = vmatpush1.msra.mxu0 %v7411
    %7461 = vmatprep.subr.mxu0 %v7409
    %7462 = vmatpush1.msra.mxu0 %v7408
    %7463 = vmatprep.subr.mxu0 %v7406
    %7464 = vmatpush1.msra.mxu0 %v7405
    %7465 = vmatprep.subr.mxu0 %v7403
    %7466 = vmatpush1.msra.mxu0 %v7402
    %7467 = vmatprep.subr.mxu0 %v7400
    %7468 = vmatpush1.msra.mxu0 %v7399
    %7469 = vmatprep.subr.mxu0 %v7397
    %7470 = vmatpush1.msra.mxu0 %v7396
    %7471 = vmatprep.subr.mxu0 %v7394
    %7472 = vmatpush1.msra.mxu0 %v7393
    %7473 = vmatprep.subr.mxu0 0.0
    %7474 = vmatpush2.msra.mxu0 0.0
    %7475 = vmatprep.subr.mxu0 0.0
    %7476 = vmatpush2.msra.mxu0 0.0
    %7477 = vmatprep.subr.mxu0 0.0
    %7478 = vmatpush2.msra.mxu0 0.0
    %7479 = vmatprep.subr.mxu0 0.0
    %7480 = vmatpush2.msra.mxu0 0.0
    %7481 = vmatprep.subr.mxu0 0.0
    %7482 = vmatpush2.msra.mxu0 0.0
    %7483 = vmatprep.subr.mxu0 0.0
    %7484 = vmatpush2.msra.mxu0 0.0
    %7485 = vmatprep.subr.mxu0 0.0
    %7486 = vmatpush2.msra.mxu0 0.0
    %7487 = vmatprep.subr.mxu0 0.0
    %7488 = vmatpush2.msra.mxu0 0.0
    %7489 = vmatprep.subr.mxu0 0.0
    %7490 = vmatpush2.msra.mxu0 0.0
    %7491 = vmatprep.subr.mxu0 0.0
    %7492 = vmatpush2.msra.mxu0 0.0
    %7493 = vmatprep.subr.mxu0 0.0
    %7494 = vmatpush2.msra.mxu0 0.0
    %7495 = vmatprep.subr.mxu0 0.0
    %7496 = vmatpush2.msra.mxu0 0.0
    %7497 = vmatprep.subr.mxu0 0.0
    %7498 = vmatpush2.msra.mxu0 0.0
    %7499 = vmatprep.subr.mxu0 0.0
    %7500 = vmatpush2.msra.mxu0 0.0
    %7501 = vmatprep.subr.mxu0 0.0
    %7502 = vmatpush2.msra.mxu0 0.0
    %7503 = vmatprep.subr.mxu0 0.0
    %7504 = vmatpush2.msra.mxu0 0.0
    %7505 = vmatprep.mubr.f32.mxu0 0.0
    %7506 = vmatmul.mubr.f32.gmra.mxu0 %v7391
    %v7507 = vpop.f32.mrf.mxu0
    %v7508 = vadd.f32 0.0, %v7507
    %v7509 = vpop.f32.mrf.mxu0
    %v7510 = vadd.f32 0.0, %v7509
    %7511 = vdwg.mxu0
    %7512 = vmatprep.subr.mxu0 0.0
    %7513 = vmatpush1.msra.mxu0 %v7440
    %7514 = vmatprep.subr.mxu0 0.0
    %7515 = vmatpush1.msra.mxu0 %v7437
    %7516 = vmatprep.subr.mxu0 0.0
    %7517 = vmatpush1.msra.mxu0 %v7434
    %7518 = vmatprep.subr.mxu0 0.0
    %7519 = vmatpush1.msra.mxu0 %v7431
    %7520 = vmatprep.subr.mxu0 0.0
    %7521 = vmatpush1.msra.mxu0 %v7428
    %7522 = vmatprep.subr.mxu0 0.0
    %7523 = vmatpush1.msra.mxu0 %v7425
    %7524 = vmatprep.subr.mxu0 0.0
    %7525 = vmatpush1.msra.mxu0 %v7422
    %7526 = vmatprep.subr.mxu0 0.0
    %7527 = vmatpush1.msra.mxu0 %v7419
    %7528 = vmatprep.subr.mxu0 0.0
    %7529 = vmatpush1.msra.mxu0 %v7416
    %7530 = vmatprep.subr.mxu0 0.0
    %7531 = vmatpush1.msra.mxu0 %v7413
    %7532 = vmatprep.subr.mxu0 0.0
    %7533 = vmatpush1.msra.mxu0 %v7410
    %7534 = vmatprep.subr.mxu0 0.0
    %7535 = vmatpush1.msra.mxu0 %v7407
    %7536 = vmatprep.subr.mxu0 0.0
    %7537 = vmatpush1.msra.mxu0 %v7404
    %7538 = vmatprep.subr.mxu0 0.0
    %7539 = vmatpush1.msra.mxu0 %v7401
    %7540 = vmatprep.subr.mxu0 0.0
    %7541 = vmatpush1.msra.mxu0 %v7398
    %7542 = vmatprep.subr.mxu0 0.0
    %7543 = vmatpush1.msra.mxu0 %v7395
    %7544 = vmatprep.subr.mxu0 0.0
    %7545 = vmatpush2.msra.mxu0 0.0
    %7546 = vmatprep.subr.mxu0 0.0
    %7547 = vmatpush2.msra.mxu0 0.0
    %7548 = vmatprep.subr.mxu0 0.0
    %7549 = vmatpush2.msra.mxu0 0.0
    %7550 = vmatprep.subr.mxu0 0.0
    %7551 = vmatpush2.msra.mxu0 0.0
    %7552 = vmatprep.subr.mxu0 0.0
    %7553 = vmatpush2.msra.mxu0 0.0
    %7554 = vmatprep.subr.mxu0 0.0
    %7555 = vmatpush2.msra.mxu0 0.0
    %7556 = vmatprep.subr.mxu0 0.0
    %7557 = vmatpush2.msra.mxu0 0.0
    %7558 = vmatprep.subr.mxu0 0.0
    %7559 = vmatpush2.msra.mxu0 0.0
    %7560 = vmatprep.subr.mxu0 0.0
    %7561 = vmatpush2.msra.mxu0 0.0
    %7562 = vmatprep.subr.mxu0 0.0
    %7563 = vmatpush2.msra.mxu0 0.0
    %7564 = vmatprep.subr.mxu0 0.0
    %7565 = vmatpush2.msra.mxu0 0.0
    %7566 = vmatprep.subr.mxu0 0.0
    %7567 = vmatpush2.msra.mxu0 0.0
    %7568 = vmatprep.subr.mxu0 0.0
    %7569 = vmatpush2.msra.mxu0 0.0
    %7570 = vmatprep.subr.mxu0 0.0
    %7571 = vmatpush2.msra.mxu0 0.0
    %7572 = vmatprep.subr.mxu0 0.0
    %7573 = vmatpush2.msra.mxu0 0.0
    %7574 = vmatprep.subr.mxu0 0.0
    %7575 = vmatpush2.msra.mxu0 0.0
    %7576 = vmatprep.mubr.f32.mxu0 0.0
    %7577 = vmatmul.mubr.f32.gmra.mxu0 %v7391
    %v7578 = vpop.f32.mrf.mxu0
    %v7579 = vadd.f32 0.0, %v7578
    %v7580 = vpop.f32.mrf.mxu0
    %7581 = vdwg.mxu0
    %v7582 = vadd.f32 %v7380, %v7508
    %v7583 = vadd.f32 %v7381, %v7510
    %v7584 = vadd.f32 %v7382, %v7579
    %s7585 = scalar_lea.vmem [#allocation6], 14
    %v7586 = vld [vmem:[%s7585] ss:$24 sm:$0xf]
    %v7587 = vld [vmem:[%s7585] ss:$24 sm:$0xf0]
    %v7588 = vor.u32 %v7586, %v7587
    %s7589 = scalar_lea.vmem [#allocation6], 15
    %v7590 = vld [vmem:[%s7589] ss:$24 sm:$0xf]
    %v7591 = vld [vmem:[%s7589] ss:$24 sm:$0xf0]
    %v7592 = vor.u32 %v7590, %v7591
    %v7593 = vmax.f32 %v7588, %v7592
    %s7594 = scalar_lea.vmem %s7, 2688
    %v7595 = vld [vmem:[%s7594] sm:$0xff]
    %v7596 = vld [vmem:[%s7594 + $0x8] sm:$0xff]
    %v7597 = vld [vmem:[%s7594 + $0x10] sm:$0xff]
    %v7598 = vld [vmem:[%s7594 + $0x18] sm:$0xff]
    %v7599 = vld [vmem:[%s7594 + $0x20] sm:$0xff]
    %v7600 = vld [vmem:[%s7594 + $0x28] sm:$0xff]
    %v7601 = vld [vmem:[%s7594 + $0x30] sm:$0xff]
    %v7602 = vld [vmem:[%s7594 + $0x38] sm:$0xff]
    %v7603 = vld [vmem:[%s7594 + $0x40] sm:$0xff]
    %v7604 = vld [vmem:[%s7594 + $0x48] sm:$0xff]
    %v7605 = vld [vmem:[%s7594 + $0x50] sm:$0xff]
    %v7606 = vld [vmem:[%s7594 + $0x58] sm:$0xff]
    %v7607 = vld [vmem:[%s7594 + $0x60] sm:$0xff]
    %v7608 = vld [vmem:[%s7594 + $0x68] sm:$0xff]
    %v7609 = vld [vmem:[%s7594 + $0x70] sm:$0xff]
    %v7610 = vld [vmem:[%s7594 + $0x78] sm:$0xff]
    %v7611 = vld [vmem:[%s7594 + $0x80] sm:$0xff]
    %v7612 = vld [vmem:[%s7594 + $0x88] sm:$0xff]
    %v7613 = vld [vmem:[%s7594 + $0x90] sm:$0xff]
    %v7614 = vld [vmem:[%s7594 + $0x98] sm:$0xff]
    %v7615 = vld [vmem:[%s7594 + $0xa0] sm:$0xff]
    %v7616 = vld [vmem:[%s7594 + $0xa8] sm:$0xff]
    %v7617 = vld [vmem:[%s7594 + $0xb0] sm:$0xff]
    %v7618 = vld [vmem:[%s7594 + $0xb8] sm:$0xff]
    %v7619 = vld [vmem:[%s7594 + $0xc0] sm:$0xff]
    %v7620 = vld [vmem:[%s7594 + $0xc8] sm:$0xff]
    %v7621 = vld [vmem:[%s7594 + $0xd0] sm:$0xff]
    %v7622 = vld [vmem:[%s7594 + $0xd8] sm:$0xff]
    %v7623 = vld [vmem:[%s7594 + $0xe0] sm:$0xff]
    %v7624 = vld [vmem:[%s7594 + $0xe8] sm:$0xff]
    %v7625 = vld [vmem:[%s7594 + $0xf0] sm:$0xff]
    %v7626 = vld [vmem:[%s7594 + $0xf8] sm:$0xff]
    %v7627 = vld [vmem:[%s7594 + $0x100] sm:$0xff]
    %v7628 = vld [vmem:[%s7594 + $0x108] sm:$0xff]
    %v7629 = vld [vmem:[%s7594 + $0x110] sm:$0xff]
    %v7630 = vld [vmem:[%s7594 + $0x118] sm:$0xff]
    %v7631 = vld [vmem:[%s7594 + $0x120] sm:$0xff]
    %v7632 = vld [vmem:[%s7594 + $0x128] sm:$0xff]
    %v7633 = vld [vmem:[%s7594 + $0x130] sm:$0xff]
    %v7634 = vld [vmem:[%s7594 + $0x138] sm:$0xff]
    %v7635 = vld [vmem:[%s7594 + $0x140] sm:$0xff]
    %v7636 = vld [vmem:[%s7594 + $0x148] sm:$0xff]
    %v7637 = vld [vmem:[%s7594 + $0x150] sm:$0xff]
    %v7638 = vld [vmem:[%s7594 + $0x158] sm:$0xff]
    %v7639 = vld [vmem:[%s7594 + $0x160] sm:$0xff]
    %v7640 = vld [vmem:[%s7594 + $0x168] sm:$0xff]
    %v7641 = vld [vmem:[%s7594 + $0x170] sm:$0xff]
    %v7642 = vld [vmem:[%s7594 + $0x178] sm:$0xff]
    %7643 = vmatprep.subr.mxu0 %v7641
    %7644 = vmatpush1.msra.mxu0 %v7640
    %7645 = vmatprep.subr.mxu0 %v7638
    %7646 = vmatpush1.msra.mxu0 %v7637
    %7647 = vmatprep.subr.mxu0 %v7635
    %7648 = vmatpush1.msra.mxu0 %v7634
    %7649 = vmatprep.subr.mxu0 %v7632
    %7650 = vmatpush1.msra.mxu0 %v7631
    %7651 = vmatprep.subr.mxu0 %v7629
    %7652 = vmatpush1.msra.mxu0 %v7628
    %7653 = vmatprep.subr.mxu0 %v7626
    %7654 = vmatpush1.msra.mxu0 %v7625
    %7655 = vmatprep.subr.mxu0 %v7623
    %7656 = vmatpush1.msra.mxu0 %v7622
    %7657 = vmatprep.subr.mxu0 %v7620
    %7658 = vmatpush1.msra.mxu0 %v7619
    %7659 = vmatprep.subr.mxu0 %v7617
    %7660 = vmatpush1.msra.mxu0 %v7616
    %7661 = vmatprep.subr.mxu0 %v7614
    %7662 = vmatpush1.msra.mxu0 %v7613
    %7663 = vmatprep.subr.mxu0 %v7611
    %7664 = vmatpush1.msra.mxu0 %v7610
    %7665 = vmatprep.subr.mxu0 %v7608
    %7666 = vmatpush1.msra.mxu0 %v7607
    %7667 = vmatprep.subr.mxu0 %v7605
    %7668 = vmatpush1.msra.mxu0 %v7604
    %7669 = vmatprep.subr.mxu0 %v7602
    %7670 = vmatpush1.msra.mxu0 %v7601
    %7671 = vmatprep.subr.mxu0 %v7599
    %7672 = vmatpush1.msra.mxu0 %v7598
    %7673 = vmatprep.subr.mxu0 %v7596
    %7674 = vmatpush1.msra.mxu0 %v7595
    %7675 = vmatprep.subr.mxu0 0.0
    %7676 = vmatpush2.msra.mxu0 0.0
    %7677 = vmatprep.subr.mxu0 0.0
    %7678 = vmatpush2.msra.mxu0 0.0
    %7679 = vmatprep.subr.mxu0 0.0
    %7680 = vmatpush2.msra.mxu0 0.0
    %7681 = vmatprep.subr.mxu0 0.0
    %7682 = vmatpush2.msra.mxu0 0.0
    %7683 = vmatprep.subr.mxu0 0.0
    %7684 = vmatpush2.msra.mxu0 0.0
    %7685 = vmatprep.subr.mxu0 0.0
    %7686 = vmatpush2.msra.mxu0 0.0
    %7687 = vmatprep.subr.mxu0 0.0
    %7688 = vmatpush2.msra.mxu0 0.0
    %7689 = vmatprep.subr.mxu0 0.0
    %7690 = vmatpush2.msra.mxu0 0.0
    %7691 = vmatprep.subr.mxu0 0.0
    %7692 = vmatpush2.msra.mxu0 0.0
    %7693 = vmatprep.subr.mxu0 0.0
    %7694 = vmatpush2.msra.mxu0 0.0
    %7695 = vmatprep.subr.mxu0 0.0
    %7696 = vmatpush2.msra.mxu0 0.0
    %7697 = vmatprep.subr.mxu0 0.0
    %7698 = vmatpush2.msra.mxu0 0.0
    %7699 = vmatprep.subr.mxu0 0.0
    %7700 = vmatpush2.msra.mxu0 0.0
    %7701 = vmatprep.subr.mxu0 0.0
    %7702 = vmatpush2.msra.mxu0 0.0
    %7703 = vmatprep.subr.mxu0 0.0
    %7704 = vmatpush2.msra.mxu0 0.0
    %7705 = vmatprep.subr.mxu0 0.0
    %7706 = vmatpush2.msra.mxu0 0.0
    %7707 = vmatprep.mubr.f32.mxu0 0.0
    %7708 = vmatmul.mubr.f32.gmra.mxu0 %v7593
    %v7709 = vpop.f32.mrf.mxu0
    %v7710 = vadd.f32 0.0, %v7709
    %v7711 = vpop.f32.mrf.mxu0
    %v7712 = vadd.f32 0.0, %v7711
    %7713 = vdwg.mxu0
    %7714 = vmatprep.subr.mxu0 0.0
    %7715 = vmatpush1.msra.mxu0 %v7642
    %7716 = vmatprep.subr.mxu0 0.0
    %7717 = vmatpush1.msra.mxu0 %v7639
    %7718 = vmatprep.subr.mxu0 0.0
    %7719 = vmatpush1.msra.mxu0 %v7636
    %7720 = vmatprep.subr.mxu0 0.0
    %7721 = vmatpush1.msra.mxu0 %v7633
    %7722 = vmatprep.subr.mxu0 0.0
    %7723 = vmatpush1.msra.mxu0 %v7630
    %7724 = vmatprep.subr.mxu0 0.0
    %7725 = vmatpush1.msra.mxu0 %v7627
    %7726 = vmatprep.subr.mxu0 0.0
    %7727 = vmatpush1.msra.mxu0 %v7624
    %7728 = vmatprep.subr.mxu0 0.0
    %7729 = vmatpush1.msra.mxu0 %v7621
    %7730 = vmatprep.subr.mxu0 0.0
    %7731 = vmatpush1.msra.mxu0 %v7618
    %7732 = vmatprep.subr.mxu0 0.0
    %7733 = vmatpush1.msra.mxu0 %v7615
    %7734 = vmatprep.subr.mxu0 0.0
    %7735 = vmatpush1.msra.mxu0 %v7612
    %7736 = vmatprep.subr.mxu0 0.0
    %7737 = vmatpush1.msra.mxu0 %v7609
    %7738 = vmatprep.subr.mxu0 0.0
    %7739 = vmatpush1.msra.mxu0 %v7606
    %7740 = vmatprep.subr.mxu0 0.0
    %7741 = vmatpush1.msra.mxu0 %v7603
    %7742 = vmatprep.subr.mxu0 0.0
    %7743 = vmatpush1.msra.mxu0 %v7600
    %7744 = vmatprep.subr.mxu0 0.0
    %7745 = vmatpush1.msra.mxu0 %v7597
    %7746 = vmatprep.subr.mxu0 0.0
    %7747 = vmatpush2.msra.mxu0 0.0
    %7748 = vmatprep.subr.mxu0 0.0
    %7749 = vmatpush2.msra.mxu0 0.0
    %7750 = vmatprep.subr.mxu0 0.0
    %7751 = vmatpush2.msra.mxu0 0.0
    %7752 = vmatprep.subr.mxu0 0.0
    %7753 = vmatpush2.msra.mxu0 0.0
    %7754 = vmatprep.subr.mxu0 0.0
    %7755 = vmatpush2.msra.mxu0 0.0
    %7756 = vmatprep.subr.mxu0 0.0
    %7757 = vmatpush2.msra.mxu0 0.0
    %7758 = vmatprep.subr.mxu0 0.0
    %7759 = vmatpush2.msra.mxu0 0.0
    %7760 = vmatprep.subr.mxu0 0.0
    %7761 = vmatpush2.msra.mxu0 0.0
    %7762 = vmatprep.subr.mxu0 0.0
    %7763 = vmatpush2.msra.mxu0 0.0
    %7764 = vmatprep.subr.mxu0 0.0
    %7765 = vmatpush2.msra.mxu0 0.0
    %7766 = vmatprep.subr.mxu0 0.0
    %7767 = vmatpush2.msra.mxu0 0.0
    %7768 = vmatprep.subr.mxu0 0.0
    %7769 = vmatpush2.msra.mxu0 0.0
    %7770 = vmatprep.subr.mxu0 0.0
    %7771 = vmatpush2.msra.mxu0 0.0
    %7772 = vmatprep.subr.mxu0 0.0
    %7773 = vmatpush2.msra.mxu0 0.0
    %7774 = vmatprep.subr.mxu0 0.0
    %7775 = vmatpush2.msra.mxu0 0.0
    %7776 = vmatprep.subr.mxu0 0.0
    %7777 = vmatpush2.msra.mxu0 0.0
    %7778 = vmatprep.mubr.f32.mxu0 0.0
    %7779 = vmatmul.mubr.f32.gmra.mxu0 %v7593
    %v7780 = vpop.f32.mrf.mxu0
    %v7781 = vadd.f32 0.0, %v7780
    %v7782 = vpop.f32.mrf.mxu0
    %7783 = vdwg.mxu0
    %v7784 = vadd.f32 %v7582, %v7710
    %v7785 = vadd.f32 %v7583, %v7712
    %v7786 = vadd.f32 %v7584, %v7781
    %s7787 = scalar_lea.vmem [#allocation6], 16
    %v7788 = vld [vmem:[%s7787] ss:$24 sm:$0xf]
    %v7789 = vld [vmem:[%s7787] ss:$24 sm:$0xf0]
    %v7790 = vor.u32 %v7788, %v7789
    %s7791 = scalar_lea.vmem [#allocation6], 17
    %v7792 = vld [vmem:[%s7791] ss:$24 sm:$0xf]
    %v7793 = vld [vmem:[%s7791] ss:$24 sm:$0xf0]
    %v7794 = vor.u32 %v7792, %v7793
    %v7795 = vmax.f32 %v7790, %v7794
    %s7796 = scalar_lea.vmem %s7, 3072
    %v7797 = vld [vmem:[%s7796] sm:$0xff]
    %v7798 = vld [vmem:[%s7796 + $0x8] sm:$0xff]
    %v7799 = vld [vmem:[%s7796 + $0x10] sm:$0xff]
    %v7800 = vld [vmem:[%s7796 + $0x18] sm:$0xff]
    %v7801 = vld [vmem:[%s7796 + $0x20] sm:$0xff]
    %v7802 = vld [vmem:[%s7796 + $0x28] sm:$0xff]
    %v7803 = vld [vmem:[%s7796 + $0x30] sm:$0xff]
    %v7804 = vld [vmem:[%s7796 + $0x38] sm:$0xff]
    %v7805 = vld [vmem:[%s7796 + $0x40] sm:$0xff]
    %v7806 = vld [vmem:[%s7796 + $0x48] sm:$0xff]
    %v7807 = vld [vmem:[%s7796 + $0x50] sm:$0xff]
    %v7808 = vld [vmem:[%s7796 + $0x58] sm:$0xff]
    %v7809 = vld [vmem:[%s7796 + $0x60] sm:$0xff]
    %v7810 = vld [vmem:[%s7796 + $0x68] sm:$0xff]
    %v7811 = vld [vmem:[%s7796 + $0x70] sm:$0xff]
    %v7812 = vld [vmem:[%s7796 + $0x78] sm:$0xff]
    %v7813 = vld [vmem:[%s7796 + $0x80] sm:$0xff]
    %v7814 = vld [vmem:[%s7796 + $0x88] sm:$0xff]
    %v7815 = vld [vmem:[%s7796 + $0x90] sm:$0xff]
    %v7816 = vld [vmem:[%s7796 + $0x98] sm:$0xff]
    %v7817 = vld [vmem:[%s7796 + $0xa0] sm:$0xff]
    %v7818 = vld [vmem:[%s7796 + $0xa8] sm:$0xff]
    %v7819 = vld [vmem:[%s7796 + $0xb0] sm:$0xff]
    %v7820 = vld [vmem:[%s7796 + $0xb8] sm:$0xff]
    %v7821 = vld [vmem:[%s7796 + $0xc0] sm:$0xff]
    %v7822 = vld [vmem:[%s7796 + $0xc8] sm:$0xff]
    %v7823 = vld [vmem:[%s7796 + $0xd0] sm:$0xff]
    %v7824 = vld [vmem:[%s7796 + $0xd8] sm:$0xff]
    %v7825 = vld [vmem:[%s7796 + $0xe0] sm:$0xff]
    %v7826 = vld [vmem:[%s7796 + $0xe8] sm:$0xff]
    %v7827 = vld [vmem:[%s7796 + $0xf0] sm:$0xff]
    %v7828 = vld [vmem:[%s7796 + $0xf8] sm:$0xff]
    %v7829 = vld [vmem:[%s7796 + $0x100] sm:$0xff]
    %v7830 = vld [vmem:[%s7796 + $0x108] sm:$0xff]
    %v7831 = vld [vmem:[%s7796 + $0x110] sm:$0xff]
    %v7832 = vld [vmem:[%s7796 + $0x118] sm:$0xff]
    %v7833 = vld [vmem:[%s7796 + $0x120] sm:$0xff]
    %v7834 = vld [vmem:[%s7796 + $0x128] sm:$0xff]
    %v7835 = vld [vmem:[%s7796 + $0x130] sm:$0xff]
    %v7836 = vld [vmem:[%s7796 + $0x138] sm:$0xff]
    %v7837 = vld [vmem:[%s7796 + $0x140] sm:$0xff]
    %v7838 = vld [vmem:[%s7796 + $0x148] sm:$0xff]
    %v7839 = vld [vmem:[%s7796 + $0x150] sm:$0xff]
    %v7840 = vld [vmem:[%s7796 + $0x158] sm:$0xff]
    %v7841 = vld [vmem:[%s7796 + $0x160] sm:$0xff]
    %v7842 = vld [vmem:[%s7796 + $0x168] sm:$0xff]
    %v7843 = vld [vmem:[%s7796 + $0x170] sm:$0xff]
    %v7844 = vld [vmem:[%s7796 + $0x178] sm:$0xff]
    %7845 = vmatprep.subr.mxu0 %v7843
    %7846 = vmatpush1.msra.mxu0 %v7842
    %7847 = vmatprep.subr.mxu0 %v7840
    %7848 = vmatpush1.msra.mxu0 %v7839
    %7849 = vmatprep.subr.mxu0 %v7837
    %7850 = vmatpush1.msra.mxu0 %v7836
    %7851 = vmatprep.subr.mxu0 %v7834
    %7852 = vmatpush1.msra.mxu0 %v7833
    %7853 = vmatprep.subr.mxu0 %v7831
    %7854 = vmatpush1.msra.mxu0 %v7830
    %7855 = vmatprep.subr.mxu0 %v7828
    %7856 = vmatpush1.msra.mxu0 %v7827
    %7857 = vmatprep.subr.mxu0 %v7825
    %7858 = vmatpush1.msra.mxu0 %v7824
    %7859 = vmatprep.subr.mxu0 %v7822
    %7860 = vmatpush1.msra.mxu0 %v7821
    %7861 = vmatprep.subr.mxu0 %v7819
    %7862 = vmatpush1.msra.mxu0 %v7818
    %7863 = vmatprep.subr.mxu0 %v7816
    %7864 = vmatpush1.msra.mxu0 %v7815
    %7865 = vmatprep.subr.mxu0 %v7813
    %7866 = vmatpush1.msra.mxu0 %v7812
    %7867 = vmatprep.subr.mxu0 %v7810
    %7868 = vmatpush1.msra.mxu0 %v7809
    %7869 = vmatprep.subr.mxu0 %v7807
    %7870 = vmatpush1.msra.mxu0 %v7806
    %7871 = vmatprep.subr.mxu0 %v7804
    %7872 = vmatpush1.msra.mxu0 %v7803
    %7873 = vmatprep.subr.mxu0 %v7801
    %7874 = vmatpush1.msra.mxu0 %v7800
    %7875 = vmatprep.subr.mxu0 %v7798
    %7876 = vmatpush1.msra.mxu0 %v7797
    %7877 = vmatprep.subr.mxu0 0.0
    %7878 = vmatpush2.msra.mxu0 0.0
    %7879 = vmatprep.subr.mxu0 0.0
    %7880 = vmatpush2.msra.mxu0 0.0
    %7881 = vmatprep.subr.mxu0 0.0
    %7882 = vmatpush2.msra.mxu0 0.0
    %7883 = vmatprep.subr.mxu0 0.0
    %7884 = vmatpush2.msra.mxu0 0.0
    %7885 = vmatprep.subr.mxu0 0.0
    %7886 = vmatpush2.msra.mxu0 0.0
    %7887 = vmatprep.subr.mxu0 0.0
    %7888 = vmatpush2.msra.mxu0 0.0
    %7889 = vmatprep.subr.mxu0 0.0
    %7890 = vmatpush2.msra.mxu0 0.0
    %7891 = vmatprep.subr.mxu0 0.0
    %7892 = vmatpush2.msra.mxu0 0.0
    %7893 = vmatprep.subr.mxu0 0.0
    %7894 = vmatpush2.msra.mxu0 0.0
    %7895 = vmatprep.subr.mxu0 0.0
    %7896 = vmatpush2.msra.mxu0 0.0
    %7897 = vmatprep.subr.mxu0 0.0
    %7898 = vmatpush2.msra.mxu0 0.0
    %7899 = vmatprep.subr.mxu0 0.0
    %7900 = vmatpush2.msra.mxu0 0.0
    %7901 = vmatprep.subr.mxu0 0.0
    %7902 = vmatpush2.msra.mxu0 0.0
    %7903 = vmatprep.subr.mxu0 0.0
    %7904 = vmatpush2.msra.mxu0 0.0
    %7905 = vmatprep.subr.mxu0 0.0
    %7906 = vmatpush2.msra.mxu0 0.0
    %7907 = vmatprep.subr.mxu0 0.0
    %7908 = vmatpush2.msra.mxu0 0.0
    %7909 = vmatprep.mubr.f32.mxu0 0.0
    %7910 = vmatmul.mubr.f32.gmra.mxu0 %v7795
    %v7911 = vpop.f32.mrf.mxu0
    %v7912 = vadd.f32 0.0, %v7911
    %v7913 = vpop.f32.mrf.mxu0
    %v7914 = vadd.f32 0.0, %v7913
    %7915 = vdwg.mxu0
    %7916 = vmatprep.subr.mxu0 0.0
    %7917 = vmatpush1.msra.mxu0 %v7844
    %7918 = vmatprep.subr.mxu0 0.0
    %7919 = vmatpush1.msra.mxu0 %v7841
    %7920 = vmatprep.subr.mxu0 0.0
    %7921 = vmatpush1.msra.mxu0 %v7838
    %7922 = vmatprep.subr.mxu0 0.0
    %7923 = vmatpush1.msra.mxu0 %v7835
    %7924 = vmatprep.subr.mxu0 0.0
    %7925 = vmatpush1.msra.mxu0 %v7832
    %7926 = vmatprep.subr.mxu0 0.0
    %7927 = vmatpush1.msra.mxu0 %v7829
    %7928 = vmatprep.subr.mxu0 0.0
    %7929 = vmatpush1.msra.mxu0 %v7826
    %7930 = vmatprep.subr.mxu0 0.0
    %7931 = vmatpush1.msra.mxu0 %v7823
    %7932 = vmatprep.subr.mxu0 0.0
    %7933 = vmatpush1.msra.mxu0 %v7820
    %7934 = vmatprep.subr.mxu0 0.0
    %7935 = vmatpush1.msra.mxu0 %v7817
    %7936 = vmatprep.subr.mxu0 0.0
    %7937 = vmatpush1.msra.mxu0 %v7814
    %7938 = vmatprep.subr.mxu0 0.0
    %7939 = vmatpush1.msra.mxu0 %v7811
    %7940 = vmatprep.subr.mxu0 0.0
    %7941 = vmatpush1.msra.mxu0 %v7808
    %7942 = vmatprep.subr.mxu0 0.0
    %7943 = vmatpush1.msra.mxu0 %v7805
    %7944 = vmatprep.subr.mxu0 0.0
    %7945 = vmatpush1.msra.mxu0 %v7802
    %7946 = vmatprep.subr.mxu0 0.0
    %7947 = vmatpush1.msra.mxu0 %v7799
    %7948 = vmatprep.subr.mxu0 0.0
    %7949 = vmatpush2.msra.mxu0 0.0
    %7950 = vmatprep.subr.mxu0 0.0
    %7951 = vmatpush2.msra.mxu0 0.0
    %7952 = vmatprep.subr.mxu0 0.0
    %7953 = vmatpush2.msra.mxu0 0.0
    %7954 = vmatprep.subr.mxu0 0.0
    %7955 = vmatpush2.msra.mxu0 0.0
    %7956 = vmatprep.subr.mxu0 0.0
    %7957 = vmatpush2.msra.mxu0 0.0
    %7958 = vmatprep.subr.mxu0 0.0
    %7959 = vmatpush2.msra.mxu0 0.0
    %7960 = vmatprep.subr.mxu0 0.0
    %7961 = vmatpush2.msra.mxu0 0.0
    %7962 = vmatprep.subr.mxu0 0.0
    %7963 = vmatpush2.msra.mxu0 0.0
    %7964 = vmatprep.subr.mxu0 0.0
    %7965 = vmatpush2.msra.mxu0 0.0
    %7966 = vmatprep.subr.mxu0 0.0
    %7967 = vmatpush2.msra.mxu0 0.0
    %7968 = vmatprep.subr.mxu0 0.0
    %7969 = vmatpush2.msra.mxu0 0.0
    %7970 = vmatprep.subr.mxu0 0.0
    %7971 = vmatpush2.msra.mxu0 0.0
    %7972 = vmatprep.subr.mxu0 0.0
    %7973 = vmatpush2.msra.mxu0 0.0
    %7974 = vmatprep.subr.mxu0 0.0
    %7975 = vmatpush2.msra.mxu0 0.0
    %7976 = vmatprep.subr.mxu0 0.0
    %7977 = vmatpush2.msra.mxu0 0.0
    %7978 = vmatprep.subr.mxu0 0.0
    %7979 = vmatpush2.msra.mxu0 0.0
    %7980 = vmatprep.mubr.f32.mxu0 0.0
    %7981 = vmatmul.mubr.f32.gmra.mxu0 %v7795
    %v7982 = vpop.f32.mrf.mxu0
    %v7983 = vadd.f32 0.0, %v7982
    %v7984 = vpop.f32.mrf.mxu0
    %7985 = vdwg.mxu0
    %v7986 = vadd.f32 %v7784, %v7912
    %v7987 = vadd.f32 %v7785, %v7914
    %v7988 = vadd.f32 %v7786, %v7983
    %v7989 = vld [vmem:[%s8] sm:$0x7]
    %v7991 = vlaneseq
    %v7992 = vshrl.u32 %v7991, 7
    %v7993 = vsub.s32 0, %v7992
    %v7994 = vrot.slane %v7989, %v7993
    %v7995 = vlaneseq
    %v7996 = vshrl.u32 %v7995, 7
    %v7997 = vsub.s32 1, %v7996
    %v7998 = vrot.slane %v7989, %v7997
    %v7999 = vlaneseq
    %v8000 = vshrl.u32 %v7999, 7
    %v8001 = vsub.s32 2, %v8000
    %v8002 = vrot.slane %v7989, %v8001
    %v8006 = vadd.f32 %v7986, %v7994
    %v8007 = vadd.f32 %v7987, %v7998
    %v8008 = vadd.f32 %v7988, %v8002
    %v8009 = vmax.f32 %v8006, 0.0
    %v8010 = vmax.f32 %v8007, 0.0
    %v8011 = vmax.f32 %v8008, 0.0
    %v8012 = vld [vmem:[%s9] sm:$0xff]
    %v8013 = vld [vmem:[%s9 + $0x8] sm:$0xff]
    %v8014 = vld [vmem:[%s9 + $0x10] sm:$0xff]
    %v8015 = vld [vmem:[%s9 + $0x18] sm:$0xff]
    %v8016 = vld [vmem:[%s9 + $0x20] sm:$0xff]
    %v8017 = vld [vmem:[%s9 + $0x28] sm:$0xff]
    %v8018 = vld [vmem:[%s9 + $0x30] sm:$0xff]
    %v8019 = vld [vmem:[%s9 + $0x38] sm:$0xff]
    %v8020 = vld [vmem:[%s9 + $0x40] sm:$0xff]
    %v8021 = vld [vmem:[%s9 + $0x48] sm:$0xff]
    %v8022 = vld [vmem:[%s9 + $0x50] sm:$0xff]
    %v8023 = vld [vmem:[%s9 + $0x58] sm:$0xff]
    %v8024 = vld [vmem:[%s9 + $0x60] sm:$0xff]
    %v8025 = vld [vmem:[%s9 + $0x68] sm:$0xff]
    %v8026 = vld [vmem:[%s9 + $0x70] sm:$0xff]
    %v8027 = vld [vmem:[%s9 + $0x78] sm:$0xff]
    %v8028 = vld [vmem:[%s9 + $0x80] sm:$0xff]
    %v8029 = vld [vmem:[%s9 + $0x88] sm:$0xff]
    %v8030 = vld [vmem:[%s9 + $0x90] sm:$0xff]
    %v8031 = vld [vmem:[%s9 + $0x98] sm:$0xff]
    %v8032 = vld [vmem:[%s9 + $0xa0] sm:$0xff]
    %v8033 = vld [vmem:[%s9 + $0xa8] sm:$0xff]
    %v8034 = vld [vmem:[%s9 + $0xb0] sm:$0xff]
    %v8035 = vld [vmem:[%s9 + $0xb8] sm:$0xff]
    %v8036 = vld [vmem:[%s9 + $0xc0] sm:$0xff]
    %v8037 = vld [vmem:[%s9 + $0xc8] sm:$0xff]
    %v8038 = vld [vmem:[%s9 + $0xd0] sm:$0xff]
    %v8039 = vld [vmem:[%s9 + $0xd8] sm:$0xff]
    %v8040 = vld [vmem:[%s9 + $0xe0] sm:$0xff]
    %v8041 = vld [vmem:[%s9 + $0xe8] sm:$0xff]
    %v8042 = vld [vmem:[%s9 + $0xf0] sm:$0xff]
    %v8043 = vld [vmem:[%s9 + $0xf8] sm:$0xff]
    %v8044 = vld [vmem:[%s9 + $0x100] sm:$0xff]
    %v8045 = vld [vmem:[%s9 + $0x108] sm:$0xff]
    %v8046 = vld [vmem:[%s9 + $0x110] sm:$0xff]
    %v8047 = vld [vmem:[%s9 + $0x118] sm:$0xff]
    %v8048 = vld [vmem:[%s9 + $0x120] sm:$0xff]
    %v8049 = vld [vmem:[%s9 + $0x128] sm:$0xf]
    %v8050 = vld [vmem:[%s10] sm:$0x1]
    %v8052 = vlaneseq
    %v8053 = vshrl.u32 %v8052, 7
    %v8054 = vsub.s32 0, %v8053
    %v8055 = vrot.slane %v8050, %v8054
    %vm8057 = vcmask 359424
    %v8059 = vsel %vm8057, %v8011, 0
    %vm8061 = vcmask 1043456
    %v8063 = vsel %vm8061, %v8049, 0
    %8065 = vmatprep.subr.mxu0 0.0
    %8066 = vmatpush1.msra.mxu0 %v8027
    %8067 = vmatprep.subr.mxu0 0.0
    %8068 = vmatpush1.msra.mxu0 %v8026
    %8069 = vmatprep.subr.mxu0 0.0
    %8070 = vmatpush1.msra.mxu0 %v8025
    %8071 = vmatprep.subr.mxu0 0.0
    %8072 = vmatpush1.msra.mxu0 %v8024
    %8073 = vmatprep.subr.mxu0 0.0
    %8074 = vmatpush1.msra.mxu0 %v8023
    %8075 = vmatprep.subr.mxu0 0.0
    %8076 = vmatpush1.msra.mxu0 %v8022
    %8077 = vmatprep.subr.mxu0 0.0
    %8078 = vmatpush1.msra.mxu0 %v8021
    %8079 = vmatprep.subr.mxu0 0.0
    %8080 = vmatpush1.msra.mxu0 %v8020
    %8081 = vmatprep.subr.mxu0 0.0
    %8082 = vmatpush1.msra.mxu0 %v8019
    %8083 = vmatprep.subr.mxu0 0.0
    %8084 = vmatpush1.msra.mxu0 %v8018
    %8085 = vmatprep.subr.mxu0 0.0
    %8086 = vmatpush1.msra.mxu0 %v8017
    %8087 = vmatprep.subr.mxu0 0.0
    %8088 = vmatpush1.msra.mxu0 %v8016
    %8089 = vmatprep.subr.mxu0 0.0
    %8090 = vmatpush1.msra.mxu0 %v8015
    %8091 = vmatprep.subr.mxu0 0.0
    %8092 = vmatpush1.msra.mxu0 %v8014
    %8093 = vmatprep.subr.mxu0 0.0
    %8094 = vmatpush1.msra.mxu0 %v8013
    %8095 = vmatprep.subr.mxu0 0.0
    %8096 = vmatpush1.msra.mxu0 %v8012
    %8097 = vmatprep.subr.mxu0 0.0
    %8098 = vmatpush2.msra.mxu0 %v8043
    %8099 = vmatprep.subr.mxu0 0.0
    %8100 = vmatpush2.msra.mxu0 %v8042
    %8101 = vmatprep.subr.mxu0 0.0
    %8102 = vmatpush2.msra.mxu0 %v8041
    %8103 = vmatprep.subr.mxu0 0.0
    %8104 = vmatpush2.msra.mxu0 %v8040
    %8105 = vmatprep.subr.mxu0 0.0
    %8106 = vmatpush2.msra.mxu0 %v8039
    %8107 = vmatprep.subr.mxu0 0.0
    %8108 = vmatpush2.msra.mxu0 %v8038
    %8109 = vmatprep.subr.mxu0 0.0
    %8110 = vmatpush2.msra.mxu0 %v8037
    %8111 = vmatprep.subr.mxu0 0.0
    %8112 = vmatpush2.msra.mxu0 %v8036
    %8113 = vmatprep.subr.mxu0 0.0
    %8114 = vmatpush2.msra.mxu0 %v8035
    %8115 = vmatprep.subr.mxu0 0.0
    %8116 = vmatpush2.msra.mxu0 %v8034
    %8117 = vmatprep.subr.mxu0 0.0
    %8118 = vmatpush2.msra.mxu0 %v8033
    %8119 = vmatprep.subr.mxu0 0.0
    %8120 = vmatpush2.msra.mxu0 %v8032
    %8121 = vmatprep.subr.mxu0 0.0
    %8122 = vmatpush2.msra.mxu0 %v8031
    %8123 = vmatprep.subr.mxu0 0.0
    %8124 = vmatpush2.msra.mxu0 %v8030
    %8125 = vmatprep.subr.mxu0 0.0
    %8126 = vmatpush2.msra.mxu0 %v8029
    %8127 = vmatprep.subr.mxu0 0.0
    %8128 = vmatpush2.msra.mxu0 %v8028
    %8129 = vmatprep.mubr.f32.mxu0 %v8010
    %8130 = vmatmul.mubr.f32.gmra.mxu0 %v8009
    %v8131 = vpop.f32.mrf.mxu0
    %v8132 = vadd.f32 %v8055, %v8131
    %v8133 = vpop.f32.mrf.mxu0
    %8134 = vdwg.mxu0
    %8135 = vmatprep.subr.mxu0 0.0
    %8136 = vmatpush1.msra.mxu0 0.0
    %8137 = vmatprep.subr.mxu0 0.0
    %8138 = vmatpush1.msra.mxu0 0.0
    %8139 = vmatprep.subr.mxu0 0.0
    %8140 = vmatpush1.msra.mxu0 0.0
    %8141 = vmatprep.subr.mxu0 0.0
    %8142 = vmatpush1.msra.mxu0 0.0
    %8143 = vmatprep.subr.mxu0 0.0
    %8144 = vmatpush1.msra.mxu0 0.0
    %8145 = vmatprep.subr.mxu0 0.0
    %8146 = vmatpush1.msra.mxu0 0.0
    %8147 = vmatprep.subr.mxu0 0.0
    %8148 = vmatpush1.msra.mxu0 0.0
    %8149 = vmatprep.subr.mxu0 0.0
    %8150 = vmatpush1.msra.mxu0 0.0
    %8151 = vmatprep.subr.mxu0 0.0
    %8152 = vmatpush1.msra.mxu0 0.0
    %8153 = vmatprep.subr.mxu0 0.0
    %8154 = vmatpush1.msra.mxu0 0.0
    %8155 = vmatprep.subr.mxu0 0.0
    %8156 = vmatpush1.msra.mxu0 %v8063
    %8157 = vmatprep.subr.mxu0 0.0
    %8158 = vmatpush1.msra.mxu0 %v8048
    %8159 = vmatprep.subr.mxu0 0.0
    %8160 = vmatpush1.msra.mxu0 %v8047
    %8161 = vmatprep.subr.mxu0 0.0
    %8162 = vmatpush1.msra.mxu0 %v8046
    %8163 = vmatprep.subr.mxu0 0.0
    %8164 = vmatpush1.msra.mxu0 %v8045
    %8165 = vmatprep.subr.mxu0 0.0
    %8166 = vmatpush1.msra.mxu0 %v8044
    %8167 = vmatprep.subr.mxu0 0.0
    %8168 = vmatpush2.msra.mxu0 0.0
    %8169 = vmatprep.subr.mxu0 0.0
    %8170 = vmatpush2.msra.mxu0 0.0
    %8171 = vmatprep.subr.mxu0 0.0
    %8172 = vmatpush2.msra.mxu0 0.0
    %8173 = vmatprep.subr.mxu0 0.0
    %8174 = vmatpush2.msra.mxu0 0.0
    %8175 = vmatprep.subr.mxu0 0.0
    %8176 = vmatpush2.msra.mxu0 0.0
    %8177 = vmatprep.subr.mxu0 0.0
    %8178 = vmatpush2.msra.mxu0 0.0
    %8179 = vmatprep.subr.mxu0 0.0
    %8180 = vmatpush2.msra.mxu0 0.0
    %8181 = vmatprep.subr.mxu0 0.0
    %8182 = vmatpush2.msra.mxu0 0.0
    %8183 = vmatprep.subr.mxu0 0.0
    %8184 = vmatpush2.msra.mxu0 0.0
    %8185 = vmatprep.subr.mxu0 0.0
    %8186 = vmatpush2.msra.mxu0 0.0
    %8187 = vmatprep.subr.mxu0 0.0
    %8188 = vmatpush2.msra.mxu0 0.0
    %8189 = vmatprep.subr.mxu0 0.0
    %8190 = vmatpush2.msra.mxu0 0.0
    %8191 = vmatprep.subr.mxu0 0.0
    %8192 = vmatpush2.msra.mxu0 0.0
    %8193 = vmatprep.subr.mxu0 0.0
    %8194 = vmatpush2.msra.mxu0 0.0
    %8195 = vmatprep.subr.mxu0 0.0
    %8196 = vmatpush2.msra.mxu0 0.0
    %8197 = vmatprep.subr.mxu0 0.0
    %8198 = vmatpush2.msra.mxu0 0.0
    %8199 = vmatprep.mubr.f32.mxu0 0.0
    %8200 = vmatmul.mubr.f32.gmra.mxu0 %v8059
    %v8201 = vpop.f32.mrf.mxu0
    %v8202 = vadd.f32 %v8132, %v8201
    %v8203 = vpop.f32.mrf.mxu0
    %8204 = vdwg.mxu0
    %v8205 = vtanh.pop %v8202
    %v8206 = vmul.f32 %v8205, %v8205
    %vm8207 = vcmask 130048
    %v8208 = vsel %vm8207, %v8206, 0.0
    %8209 = vadd.xlane.f32.xlu0 %v8208
    %v8210 = vpop.xlane.xlu0 %8209
    %v8211 = vadd.f32 %v8210, 1e-12
    %v8212 = vrsqrt.pop %v8211
    %v8213 = vmul.f32 %v8205, %v8212
    %8214 = vst.msk [vmem:[#allocation7] sm:$0xff] %vm8207, %v8213
    // Predicated region
    $region46: #{tpu_custom_call.1} parent=1 // pred_check
      _
    $region47: #{tpu_custom_call.1} parent=1 // pred_check_branch
      %8216 = sbr.rel (0) target = $region49
    $region48: #{tpu_custom_call.1} parent=1 // pred_region
      %s8218 = ssub.s32 128, 128
      %8219 = vsyncadd [#allocation8], %s8218
      %s8221 = sshll.u32 [#allocation7], 4
      %s8222 = int_to_ptr.vmem [resolvable:$true] %s8221
      %8224 = dma.vmem_to_hbm [thread:$0]  %s8222, 128, %s11, [#allocation8]
    $region49: #{tpu_custom_call.1} parent=1 // pred_fallthru
      _
    // Predicated region
    $region50: #{tpu_custom_call.1} parent=1 // pred_check
      _
    $region51: #{tpu_custom_call.1} parent=1 // pred_check_branch
      %8226 = sbr.rel (0) target = $region53
    $region52: #{tpu_custom_call.1} parent=1 // pred_region
      %8227 = dma.done [#allocation8], 128
    $region53: #{tpu_custom_call.1} parent=1 // pred_fallthru
      _
    %8228 = vsyncpa [#allocation8], 1

</llo_original>
